<compile_context>
chip_gen: v6e
topology: v6e:2x2x1
jax: 0.10.0
libtpu: 0.0.40
codegen_flags: <defaults>
</compile_context>

<pallas_src>
import functools

import jax
import jax.numpy as jnp
from jax.experimental import pallas as pl
from jax.experimental.pallas import tpu as pltpu


# -----------------------------------------------------------------------------
# Kernel 1: embedding lookup + full multi-layer Elman (tanh) RNN, one call.
# -----------------------------------------------------------------------------
def rnn_stack_kernel(*refs, num_layers, seq, batch, hidden, vocab):
    ids_ref, emb_ref = refs[0], refs[1]
    w_refs = refs[2:2 + 3 * num_layers]
    out_ref = refs[2 + 3 * num_layers]          # (seq, batch, hidden) last layer
    hid_ref = refs[3 + 3 * num_layers]          # (num_layers, batch, hidden)

    # Embedding gather as a one-hot matmul (no dynamic indexing, runs on MXU).
    ids = ids_ref[...]                                          # (seq*batch, 1) int32
    iota = jax.lax.broadcasted_iota(jnp.int32, (seq * batch, vocab), 1)
    onehot = (iota == ids).astype(jnp.float32)                  # (seq*batch, vocab)
    layer_in = jnp.dot(onehot, emb_ref[...],
                       preferred_element_type=jnp.float32)      # (seq*batch, emb)

    for l in range(num_layers):
        w_ih = w_refs[3 * l][...]                               # (in, H)
        w_hh = w_refs[3 * l + 1][...]                           # (H, H)
        b = w_refs[3 * l + 2][...]                              # (1, H) = b_ih + b_hh

        # Hoisted input projection: one matmul for the whole sequence.
        xp = jnp.dot(layer_in, w_ih, preferred_element_type=jnp.float32) + b

        h = jnp.zeros((batch, hidden), jnp.float32)
        outs = []
        for t in range(seq):                                    # static unroll (seq small)
            xt = xp[t * batch:(t + 1) * batch, :]
            h = jnp.tanh(xt + jnp.dot(h, w_hh,
                                      preferred_element_type=jnp.float32))
            if l == num_layers - 1:
                out_ref[t] = h.astype(out_ref.dtype)
            else:
                outs.append(h)
        hid_ref[l] = h.astype(hid_ref.dtype)
        if l != num_layers - 1:
            layer_in = jnp.concatenate(outs, axis=0)            # (seq*batch, H)


def rnn_stack(texts, emb, rnn_params):
    """texts: (seq, batch) int32. Returns (result (seq,B,H), hidden (L,B,H))."""
    seq, batch = texts.shape
    vocab = emb.shape[0]
    hidden = rnn_params[0][1].shape[0]
    num_layers = len(rnn_params)

    ids = texts.reshape(seq * batch, 1).astype(jnp.int32)
    weight_args = []
    for (w_ih, w_hh, b_ih, b_hh) in rnn_params:
        weight_args += [w_ih, w_hh, (b_ih + b_hh).reshape(1, hidden)]

    kernel = functools.partial(rnn_stack_kernel, num_layers=num_layers,
                               seq=seq, batch=batch, hidden=hidden, vocab=vocab)
    result, hid = pl.pallas_call(
        kernel,
        out_shape=(jax.ShapeDtypeStruct((seq, batch, hidden), jnp.float32),
                   jax.ShapeDtypeStruct((num_layers, batch, hidden), jnp.float32)),
    )(ids, emb, *weight_args)
    return result, hid


# -----------------------------------------------------------------------------
# Kernel 2: fused classifier  Linear(F,2048) -> Linear(2048,2048) ->
#           Linear(2048,256) -> Linear(256,2) -> LogSoftmax, one call.
# Grid is over the 2048-wide dim between layer 1 and layer 2 (layer-1 N tiles /
# layer-2 K tiles); layers 3, 4 and LogSoftmax run in the finalize step.
# -----------------------------------------------------------------------------
def classifier_kernel(x_ref, w1_ref, b1_ref, w2_ref, b2_ref,
                      w3_ref, b3_ref, w4_ref, b4_ref, o_ref, acc_ref):
    j = pl.program_id(0)

    @pl.when(j == 0)
    def _():
        acc_ref[...] = jnp.zeros_like(acc_ref)

    x = x_ref[...].astype(w1_ref.dtype)
    h1 = jnp.dot(x, w1_ref[...], preferred_element_type=jnp.float32) + b1_ref[...]
    acc_ref[...] += jnp.dot(h1.astype(w2_ref.dtype), w2_ref[...],
                            preferred_element_type=jnp.float32)

    @pl.when(j == pl.num_programs(0) - 1)
    def _():
        h2 = acc_ref[...] + b2_ref[...]
        h3 = jnp.dot(h2.astype(w3_ref.dtype), w3_ref[...],
                     preferred_element_type=jnp.float32) + b3_ref[...]
        y = jnp.dot(h3.astype(w4_ref.dtype), w4_ref[...],
                    preferred_element_type=jnp.float32) + b4_ref[...]
        m = jnp.max(y, axis=-1, keepdims=True)
        z = y - m
        lse = jnp.log(jnp.sum(jnp.exp(z), axis=-1, keepdims=True))
        o_ref[...] = (z - lse).astype(o_ref.dtype)


def classifier_forward(x, classi_params, tk=512):
    (w1, b1), (w2, b2), (w3, b3), (w4, b4) = classi_params
    B, F = x.shape
    Kmid = w1.shape[1]            # 2048 (layer-1 out == layer-2 in)
    N2 = w2.shape[1]              # 2048
    N3 = w3.shape[1]              # 256
    C = w4.shape[1]               # 2

    tk = min(tk, Kmid)
    while Kmid % tk:              # pick a clean divisor of Kmid
        tk //= 2
    grid = (Kmid // tk,)

    return pl.pallas_call(
        classifier_kernel,
        out_shape=jax.ShapeDtypeStruct((B, C), x.dtype),
        grid_spec=pltpu.PrefetchScalarGridSpec(
            num_scalar_prefetch=0,
            grid=grid,
            in_specs=[
                pl.BlockSpec((B, F), lambda j: (0, 0)),        # x     (resident)
                pl.BlockSpec((F, tk), lambda j: (0, j)),       # W1 column tile
                pl.BlockSpec((1, tk), lambda j: (0, j)),       # b1 tile
                pl.BlockSpec((tk, N2), lambda j: (j, 0)),      # W2 row tile
                pl.BlockSpec((1, N2), lambda j: (0, 0)),       # b2    (resident)
                pl.BlockSpec((N2, N3), lambda j: (0, 0)),      # W3    (resident)
                pl.BlockSpec((1, N3), lambda j: (0, 0)),       # b3
                pl.BlockSpec((N3, C), lambda j: (0, 0)),       # W4
                pl.BlockSpec((1, C), lambda j: (0, 0)),        # b4
            ],
            out_specs=pl.BlockSpec((B, C), lambda j: (0, 0)),
            scratch_shapes=[pltpu.VMEM((B, N2), jnp.float32)],
        ),
        compiler_params=pltpu.CompilerParams(
            dimension_semantics=("arbitrary",)),
    )(x,
      w1, b1.reshape(1, Kmid).astype(jnp.float32),
      w2, b2.reshape(1, N2).astype(jnp.float32),
      w3, b3.reshape(1, N3).astype(jnp.float32),
      w4, b4.reshape(1, C).astype(jnp.float32))


# -----------------------------------------------------------------------------
# Parameter init (deterministic, PyTorch-like uniform(-1/sqrt(fan_in), ...))
# -----------------------------------------------------------------------------
def _uniform(key, shape, bound):
    return jax.random.uniform(key, shape, jnp.float32, -bound, bound)


def init_params(key, vocab, emb_dim, hidden, num_layers, seq_len):
    keys = iter(jax.random.split(key, 32))
    emb = jax.random.normal(next(keys), (vocab, emb_dim), jnp.float32)

    rnn = []
    for layer in range(num_layers):
        in_dim = emb_dim if layer == 0 else hidden
        bnd = 1.0 / float(hidden) ** 0.5
        w_ih = _uniform(next(keys), (in_dim, hidden), bnd)   # (In, H) == torch W_ih.T
        w_hh = _uniform(next(keys), (hidden, hidden), bnd)   # (H, H)  == torch W_hh.T
        b_ih = _uniform(next(keys), (hidden,), bnd)
        b_hh = _uniform(next(keys), (hidden,), bnd)
        rnn.append((w_ih, w_hh, b_ih, b_hh))

    # TODO(synk): the skeleton declares Linear(11 * num_hidden_layers, 2048),
    # which is inconsistent with the flattened RNN output (the module itself
    # raises ValueError about padding).  We use the actual flattened feature
    # size (seq_len * hidden) so the forward pass is runnable; the remaining
    # classifier dims (2048, 2048, 256, 2) match the skeleton exactly.
    flat_dim = seq_len * hidden
    dims = [flat_dim, 2048, 2048, 256, 2]
    classi = []
    for d_in, d_out in zip(dims[:-1], dims[1:]):
        bnd = 1.0 / float(d_in) ** 0.5
        # Classifier is HBM-bandwidth bound (batch-2 GEMV): store weights bf16.
        w = _uniform(next(keys), (d_in, d_out), bnd).astype(jnp.bfloat16)
        b = _uniform(next(keys), (d_out,), bnd)              # bias stays f32
        classi.append((w, b))

    return {"emb": emb, "rnn": rnn, "classi": classi}


# -----------------------------------------------------------------------------
# Forward pass matching RNN.forward:
#   x = emb(texts); result, hidden = rnn(x)
#   flattened = result.view(result.size(1), -1); out = classi(flattened)
# -----------------------------------------------------------------------------
def rnn_model_forward(params, texts):
    # texts: (seq, batch) int32 token ids (time-major, like torchtext default).
    result, hidden = rnn_stack(texts, params["emb"], params["rnn"])

    # torch: result.view(result.size(1), -1) on a contiguous (seq, B, H) tensor
    # is a raw row-major reshape to (B, seq*H); jnp.reshape matches that.
    B = result.shape[1]
    flattened = result.reshape(B, -1)

    out = classifier_forward(flattened, params["classi"])
    return out, hidden


# -----------------------------------------------------------------------------
# Pure-JAX reference (for correctness checking only).
# -----------------------------------------------------------------------------
def reference_forward(params, texts):
    x = jnp.take(params["emb"], texts, axis=0)               # (seq, B, E)
    seq, B, _ = x.shape
    inp = x
    hiddens = []
    for (w_ih, w_hh, b_ih, b_hh) in params["rnn"]:
        H = w_hh.shape[0]
        h = jnp.zeros((B, H), jnp.float32)
        outs = []
        for t in range(seq):
            h = jnp.tanh(inp[t] @ w_ih + b_ih + b_hh + h @ w_hh)
            outs.append(h)
        inp = jnp.stack(outs, axis=0)
        hiddens.append(h)
    result = inp
    hidden = jnp.stack(hiddens, axis=0)
    out = result.reshape(B, -1)
    for (w, b) in params["classi"]:
        out = out @ w.astype(jnp.float32) + b
    out = jax.nn.log_softmax(out, axis=-1)
    return out, hidden


if __name__ == "__main__":
    vocab, emb_dim, hidden, num_layers = 50, 200, 32, 2
    seq_len, batch = 8, 2

    key = jax.random.PRNGKey(0)
    k_param, k_text = jax.random.split(key)
    params = init_params(k_param, vocab, emb_dim, hidden, num_layers, seq_len)
    texts = jax.random.randint(k_text, (seq_len, batch), 0, vocab, dtype=jnp.int32)

    fwd = jax.jit(rnn_model_forward)
    out, hid = fwd(params, texts)
    jax.block_until_ready((out, hid))

    assert out.shape == (batch, 2), out.shape
    assert hid.shape == (num_layers, batch, hidden), hid.shape
    # log-softmax rows must (approximately) sum to 1 in prob space
    assert bool(jnp.allclose(jnp.sum(jnp.exp(out), axis=-1), 1.0, atol=1e-4))

    # Numerical check against a pure-JAX reference (bf16 classifier -> loose tol).
    out_ref, hid_ref = reference_forward(params, texts)
    assert bool(jnp.allclose(out, out_ref, atol=2e-2, rtol=2e-2)), "logits mismatch"
    assert bool(jnp.allclose(hid, hid_ref, atol=2e-2, rtol=2e-2)), "hidden mismatch"

    print("KERNEL_OK")
</pallas_src>

<mosaic_0001>
module attributes {stable_mosaic.version = 11 : i64} {
  func.func @classifier_kernel(%arg0: i32, %arg1: memref<2x256xf32, #tpu.memory_space<vmem>>, %arg2: memref<256x512xbf16, #tpu.memory_space<vmem>>, %arg3: memref<1x512xf32, #tpu.memory_space<vmem>>, %arg4: memref<512x2048xbf16, #tpu.memory_space<vmem>>, %arg5: memref<1x2048xf32, #tpu.memory_space<vmem>>, %arg6: memref<2048x256xbf16, #tpu.memory_space<vmem>>, %arg7: memref<1x256xf32, #tpu.memory_space<vmem>>, %arg8: memref<256x2xbf16, #tpu.memory_space<vmem>>, %arg9: memref<1x2xf32, #tpu.memory_space<vmem>>, %arg10: memref<2x2xf32, #tpu.memory_space<vmem>>, %arg11: memref<2x2048xf32, #tpu.memory_space<vmem>>) attributes {dimension_semantics = [#tpu.dimension_semantics<arbitrary>], iteration_bounds = array<i64: 4>, scalar_prefetch = 0 : i64, scratch_operands = 1 : i64, tpu.core_type = #tpu.core_type<tc>, window_params = [{pipeline_mode = #tpu.pipeline_mode<synchronous>, transform_indices = @transform_0, window_bounds = array<i64: 2, 256>}, {transform_indices = @transform_1, window_bounds = array<i64: 256, 512>}, {transform_indices = @transform_2, window_bounds = array<i64: 1, 512>}, {transform_indices = @transform_3, window_bounds = array<i64: 512, 2048>}, {pipeline_mode = #tpu.pipeline_mode<synchronous>, transform_indices = @transform_4, window_bounds = array<i64: 1, 2048>}, {pipeline_mode = #tpu.pipeline_mode<synchronous>, transform_indices = @transform_5, window_bounds = array<i64: 2048, 256>}, {pipeline_mode = #tpu.pipeline_mode<synchronous>, transform_indices = @transform_6, window_bounds = array<i64: 1, 256>}, {pipeline_mode = #tpu.pipeline_mode<synchronous>, transform_indices = @transform_7, window_bounds = array<i64: 256, 2>}, {pipeline_mode = #tpu.pipeline_mode<synchronous>, transform_indices = @transform_8, window_bounds = array<i64: 1, 2>}, {pipeline_mode = #tpu.pipeline_mode<synchronous>, transform_indices = @transform_9, window_bounds = array<i64: 2, 2>}]} {
    %c0_i32 = arith.constant 0 : i32
    %0 = arith.cmpi eq, %arg0, %c0_i32 : i32
    %1 = arith.extui %0 : i1 to i32
    %c0_i32_0 = arith.constant 0 : i32
    %2 = arith.cmpi ne, %1, %c0_i32_0 : i32
    scf.if %2 {
      %cst_14 = arith.constant 0.000000e+00 : f32
      %19 = vector.broadcast %cst_14 : f32 to vector<2x2048xf32>
      %c0_15 = arith.constant 0 : index
      %c0_16 = arith.constant 0 : index
      %20 = vector.load %arg11[%c0_15, %c0_16] : memref<2x2048xf32, #tpu.memory_space<vmem>>, vector<2x2048xf32>
      tpu.vector_store %arg11[%c0_15, %c0_16], %19 {strides = array<i32>} : memref<2x2048xf32, #tpu.memory_space<vmem>>, vector<2x2048xf32>,
    } else {
    }
    %c0 = arith.constant 0 : index
    %c0_1 = arith.constant 0 : index
    %3 = vector.load %arg1[%c0, %c0_1] : memref<2x256xf32, #tpu.memory_space<vmem>>, vector<2x256xf32>
    %4 = arith.truncf %3 : vector<2x256xf32> to vector<2x256xbf16>
    %c0_2 = arith.constant 0 : index
    %c0_3 = arith.constant 0 : index
    %5 = vector.load %arg2[%c0_2, %c0_3] : memref<256x512xbf16, #tpu.memory_space<vmem>>, vector<256x512xbf16>
    %cst = arith.constant dense<0.000000e+00> : vector<2x512xf32>
    %6 = tpu.matmul %4, %5, %cst {dimension_numbers = #tpu.dot_dimension_numbers<[1], [0], [0], [1], [0, 0, 1, 1], [], []>} : vector<2x256xbf16>, vector<256x512xbf16>, vector<2x512xf32> -> vector<2x512xf32>
    %c0_4 = arith.constant 0 : index
    %c0_5 = arith.constant 0 : index
    %7 = vector.load %arg3[%c0_4, %c0_5] : memref<1x512xf32, #tpu.memory_space<vmem>>, vector<1x512xf32>
    %8 = vector.broadcast %7 : vector<1x512xf32> to vector<2x512xf32>
    %9 = arith.addf %6, %8 : vector<2x512xf32>
    %c0_6 = arith.constant 0 : index
    %c0_7 = arith.constant 0 : index
    %10 = vector.load %arg11[%c0_6, %c0_7] : memref<2x2048xf32, #tpu.memory_space<vmem>>, vector<2x2048xf32>
    %11 = arith.truncf %9 : vector<2x512xf32> to vector<2x512xbf16>
    %c0_8 = arith.constant 0 : index
    %c0_9 = arith.constant 0 : index
    %12 = vector.load %arg4[%c0_8, %c0_9] : memref<512x2048xbf16, #tpu.memory_space<vmem>>, vector<512x2048xbf16>
    %cst_10 = arith.constant dense<0.000000e+00> : vector<2x2048xf32>
    %13 = tpu.matmul %11, %12, %cst_10 {dimension_numbers = #tpu.dot_dimension_numbers<[1], [0], [0], [1], [0, 0, 1, 1], [], []>} : vector<2x512xbf16>, vector<512x2048xbf16>, vector<2x2048xf32> -> vector<2x2048xf32>
    %14 = arith.addf %10, %13 : vector<2x2048xf32>
    %c0_11 = arith.constant 0 : index
    %c0_12 = arith.constant 0 : index
    %15 = vector.load %arg11[%c0_11, %c0_12] : memref<2x2048xf32, #tpu.memory_space<vmem>>, vector<2x2048xf32>
    tpu.vector_store %arg11[%c0_11, %c0_12], %14 {strides = array<i32>} : memref<2x2048xf32, #tpu.memory_space<vmem>>, vector<2x2048xf32>,
    %c3_i32 = arith.constant 3 : i32
    %16 = arith.cmpi eq, %arg0, %c3_i32 : i32
    %17 = arith.extui %16 : i1 to i32
    %c0_i32_13 = arith.constant 0 : i32
    %18 = arith.cmpi ne, %17, %c0_i32_13 : i32
    scf.if %18 {
      %c0_14 = arith.constant 0 : index
      %c0_15 = arith.constant 0 : index
      %19 = vector.load %arg11[%c0_14, %c0_15] : memref<2x2048xf32, #tpu.memory_space<vmem>>, vector<2x2048xf32>
      %c0_16 = arith.constant 0 : index
      %c0_17 = arith.constant 0 : index
      %20 = vector.load %arg5[%c0_16, %c0_17] : memref<1x2048xf32, #tpu.memory_space<vmem>>, vector<1x2048xf32>
      %21 = vector.broadcast %20 : vector<1x2048xf32> to vector<2x2048xf32>
      %22 = arith.addf %19, %21 : vector<2x2048xf32>
      %23 = arith.truncf %22 : vector<2x2048xf32> to vector<2x2048xbf16>
      %c0_18 = arith.constant 0 : index
      %c0_19 = arith.constant 0 : index
      %24 = vector.load %arg6[%c0_18, %c0_19] : memref<2048x256xbf16, #tpu.memory_space<vmem>>, vector<2048x256xbf16>
      %cst_20 = arith.constant dense<0.000000e+00> : vector<2x256xf32>
      %25 = tpu.matmul %23, %24, %cst_20 {dimension_numbers = #tpu.dot_dimension_numbers<[1], [0], [0], [1], [0, 0, 1, 1], [], []>} : vector<2x2048xbf16>, vector<2048x256xbf16>, vector<2x256xf32> -> vector<2x256xf32>
      %c0_21 = arith.constant 0 : index
      %c0_22 = arith.constant 0 : index
      %26 = vector.load %arg7[%c0_21, %c0_22] : memref<1x256xf32, #tpu.memory_space<vmem>>, vector<1x256xf32>
      %27 = vector.broadcast %26 : vector<1x256xf32> to vector<2x256xf32>
      %28 = arith.addf %25, %27 : vector<2x256xf32>
      %29 = arith.truncf %28 : vector<2x256xf32> to vector<2x256xbf16>
      %c0_23 = arith.constant 0 : index
      %c0_24 = arith.constant 0 : index
      %30 = vector.load %arg8[%c0_23, %c0_24] : memref<256x2xbf16, #tpu.memory_space<vmem>>, vector<256x2xbf16>
      %cst_25 = arith.constant dense<0.000000e+00> : vector<2x2xf32>
      %31 = tpu.matmul %29, %30, %cst_25 {dimension_numbers = #tpu.dot_dimension_numbers<[1], [0], [0], [1], [0, 0, 1, 1], [], []>} : vector<2x256xbf16>, vector<256x2xbf16>, vector<2x2xf32> -> vector<2x2xf32>
      %c0_26 = arith.constant 0 : index
      %c0_27 = arith.constant 0 : index
      %32 = vector.load %arg9[%c0_26, %c0_27] : memref<1x2xf32, #tpu.memory_space<vmem>>, vector<1x2xf32>
      %33 = vector.broadcast %32 : vector<1x2xf32> to vector<2x2xf32>
      %34 = arith.addf %31, %33 : vector<2x2xf32>
      %cst_28 = arith.constant dense<0xFF800000> : vector<2xf32>
      %35 = vector.multi_reduction <maximumf>, %34, %cst_28 [1] : vector<2x2xf32> to vector<2xf32>
      %36 = vector.shape_cast %35 : vector<2xf32> to vector<2x1xf32>
      %37 = vector.broadcast %36 : vector<2x1xf32> to vector<2x2xf32>
      %38 = arith.subf %34, %37 : vector<2x2xf32>
      %39 = math.exp %38 : vector<2x2xf32>
      %cst_29 = arith.constant dense<0.000000e+00> : vector<2xf32>
      %40 = vector.multi_reduction <add>, %39, %cst_29 [1] : vector<2x2xf32> to vector<2xf32>
      %41 = vector.shape_cast %40 : vector<2xf32> to vector<2x1xf32>
      %42 = math.log %41 : vector<2x1xf32>
      %43 = vector.broadcast %42 : vector<2x1xf32> to vector<2x2xf32>
      %44 = arith.subf %38, %43 : vector<2x2xf32>
      %c0_30 = arith.constant 0 : index
      %c0_31 = arith.constant 0 : index
      %45 = vector.load %arg10[%c0_30, %c0_31] : memref<2x2xf32, #tpu.memory_space<vmem>>, vector<2x2xf32>
      tpu.vector_store %arg10[%c0_30, %c0_31], %44 {strides = array<i32>} : memref<2x2xf32, #tpu.memory_space<vmem>>, vector<2x2xf32>,
    } else {
    }
    return
  }
  func.func @transform_0(%arg0: i32) -> (i32, i32) {
    %c0_i32 = arith.constant 0 : i32
    %c0_i32_0 = arith.constant 0 : i32
    %c0_i32_1 = arith.constant 0 : i32
    return %c0_i32, %c0_i32_0 : i32, i32
  }
  func.func @transform_1(%arg0: i32) -> (i32, i32) {
    %c0_i32 = arith.constant 0 : i32
    %c0_i32_0 = arith.constant 0 : i32
    return %c0_i32, %arg0 : i32, i32
  }
  func.func @transform_2(%arg0: i32) -> (i32, i32) {
    %c0_i32 = arith.constant 0 : i32
    %c0_i32_0 = arith.constant 0 : i32
    return %c0_i32, %arg0 : i32, i32
  }
  func.func @transform_3(%arg0: i32) -> (i32, i32) {
    %c0_i32 = arith.constant 0 : i32
    %c0_i32_0 = arith.constant 0 : i32
    return %arg0, %c0_i32 : i32, i32
  }
  func.func @transform_4(%arg0: i32) -> (i32, i32) {
    %c0_i32 = arith.constant 0 : i32
    %c0_i32_0 = arith.constant 0 : i32
    %c0_i32_1 = arith.constant 0 : i32
    return %c0_i32, %c0_i32_0 : i32, i32
  }
  func.func @transform_5(%arg0: i32) -> (i32, i32) {
    %c0_i32 = arith.constant 0 : i32
    %c0_i32_0 = arith.constant 0 : i32
    %c0_i32_1 = arith.constant 0 : i32
    return %c0_i32, %c0_i32_0 : i32, i32
  }
  func.func @transform_6(%arg0: i32) -> (i32, i32) {
    %c0_i32 = arith.constant 0 : i32
    %c0_i32_0 = arith.constant 0 : i32
    %c0_i32_1 = arith.constant 0 : i32
    return %c0_i32, %c0_i32_0 : i32, i32
  }
  func.func @transform_7(%arg0: i32) -> (i32, i32) {
    %c0_i32 = arith.constant 0 : i32
    %c0_i32_0 = arith.constant 0 : i32
    %c0_i32_1 = arith.constant 0 : i32
    return %c0_i32, %c0_i32_0 : i32, i32
  }
  func.func @transform_8(%arg0: i32) -> (i32, i32) {
    %c0_i32 = arith.constant 0 : i32
    %c0_i32_0 = arith.constant 0 : i32
    %c0_i32_1 = arith.constant 0 : i32
    return %c0_i32, %c0_i32_0 : i32, i32
  }
  func.func @transform_9(%arg0: i32) -> (i32, i32) {
    %c0_i32 = arith.constant 0 : i32
    %c0_i32_0 = arith.constant 0 : i32
    %c0_i32_1 = arith.constant 0 : i32
    return %c0_i32, %c0_i32_0 : i32, i32
  }
}

module attributes {stable_mosaic.version = 11 : i64} {
  func.func @rnn_stack_kernel(%arg0: memref<16x1xi32, #tpu.memory_space<vmem>>, %arg1: memref<50x200xf32, #tpu.memory_space<vmem>>, %arg2: memref<200x32xf32, #tpu.memory_space<vmem>>, %arg3: memref<32x32xf32, #tpu.memory_space<vmem>>, %arg4: memref<1x32xf32, #tpu.memory_space<vmem>>, %arg5: memref<32x32xf32, #tpu.memory_space<vmem>>, %arg6: memref<32x32xf32, #tpu.memory_space<vmem>>, %arg7: memref<1x32xf32, #tpu.memory_space<vmem>>, %arg8: memref<8x2x32xf32, #tpu.memory_space<vmem>>, %arg9: memref<2x2x32xf32, #tpu.memory_space<vmem>>) attributes {dimension_semantics = [], scalar_prefetch = 0 : i64, scratch_operands = 0 : i64, tpu.core_type = #tpu.core_type<tc>} {
    %c0 = arith.constant 0 : index
    %c0_0 = arith.constant 0 : index
    %0 = vector.load %arg0[%c0, %c0_0] : memref<16x1xi32, #tpu.memory_space<vmem>>, vector<16x1xi32>
    %1 = tpu.iota {dimensions = array<i32: 1>} : vector<16x50xi32>
    %2 = vector.broadcast %0 : vector<16x1xi32> to vector<16x50xi32>
    %3 = arith.cmpi eq, %1, %2 : vector<16x50xi32>
    %4 = arith.extui %3 : vector<16x50xi1> to vector<16x50xi32>
    %5 = arith.sitofp %4 : vector<16x50xi32> to vector<16x50xf32>
    %c0_1 = arith.constant 0 : index
    %c0_2 = arith.constant 0 : index
    %6 = vector.load %arg1[%c0_1, %c0_2] : memref<50x200xf32, #tpu.memory_space<vmem>>, vector<50x200xf32>
    %cst = arith.constant dense<0.000000e+00> : vector<16x200xf32>
    %7 = tpu.matmul %5, %6, %cst {dimension_numbers = #tpu.dot_dimension_numbers<[1], [0], [0], [1], [0, 0, 1, 1], [], []>} : vector<16x50xf32>, vector<50x200xf32>, vector<16x200xf32> -> vector<16x200xf32>
    %c0_3 = arith.constant 0 : index
    %c0_4 = arith.constant 0 : index
    %8 = vector.load %arg2[%c0_3, %c0_4] : memref<200x32xf32, #tpu.memory_space<vmem>>, vector<200x32xf32>
    %c0_5 = arith.constant 0 : index
    %c0_6 = arith.constant 0 : index
    %9 = vector.load %arg3[%c0_5, %c0_6] : memref<32x32xf32, #tpu.memory_space<vmem>>, vector<32x32xf32>
    %c0_7 = arith.constant 0 : index
    %c0_8 = arith.constant 0 : index
    %10 = vector.load %arg4[%c0_7, %c0_8] : memref<1x32xf32, #tpu.memory_space<vmem>>, vector<1x32xf32>
    %cst_9 = arith.constant dense<0.000000e+00> : vector<16x32xf32>
    %11 = tpu.matmul %7, %8, %cst_9 {dimension_numbers = #tpu.dot_dimension_numbers<[1], [0], [0], [1], [0, 0, 1, 1], [], []>} : vector<16x200xf32>, vector<200x32xf32>, vector<16x32xf32> -> vector<16x32xf32>
    %12 = vector.broadcast %10 : vector<1x32xf32> to vector<16x32xf32>
    %13 = arith.addf %11, %12 : vector<16x32xf32>
    %cst_10 = arith.constant 0.000000e+00 : f32
    %14 = vector.broadcast %cst_10 : f32 to vector<2x32xf32>
    %15 = vector.extract_strided_slice %13 {offsets = [0, 0], sizes = [2, 32], strides = [1, 1]} : vector<16x32xf32> to vector<2x32xf32>
    %cst_11 = arith.constant dense<0.000000e+00> : vector<2x32xf32>
    %16 = tpu.matmul %14, %9, %cst_11 {dimension_numbers = #tpu.dot_dimension_numbers<[1], [0], [0], [1], [0, 0, 1, 1], [], []>} : vector<2x32xf32>, vector<32x32xf32>, vector<2x32xf32> -> vector<2x32xf32>
    %17 = arith.addf %15, %16 : vector<2x32xf32>
    %18 = math.tanh %17 : vector<2x32xf32>
    %19 = vector.extract_strided_slice %13 {offsets = [2, 0], sizes = [2, 32], strides = [1, 1]} : vector<16x32xf32> to vector<2x32xf32>
    %cst_12 = arith.constant dense<0.000000e+00> : vector<2x32xf32>
    %20 = tpu.matmul %18, %9, %cst_12 {dimension_numbers = #tpu.dot_dimension_numbers<[1], [0], [0], [1], [0, 0, 1, 1], [], []>} : vector<2x32xf32>, vector<32x32xf32>, vector<2x32xf32> -> vector<2x32xf32>
    %21 = arith.addf %19, %20 : vector<2x32xf32>
    %22 = math.tanh %21 : vector<2x32xf32>
    %23 = vector.extract_strided_slice %13 {offsets = [4, 0], sizes = [2, 32], strides = [1, 1]} : vector<16x32xf32> to vector<2x32xf32>
    %cst_13 = arith.constant dense<0.000000e+00> : vector<2x32xf32>
    %24 = tpu.matmul %22, %9, %cst_13 {dimension_numbers = #tpu.dot_dimension_numbers<[1], [0], [0], [1], [0, 0, 1, 1], [], []>} : vector<2x32xf32>, vector<32x32xf32>, vector<2x32xf32> -> vector<2x32xf32>
    %25 = arith.addf %23, %24 : vector<2x32xf32>
    %26 = math.tanh %25 : vector<2x32xf32>
    %27 = vector.extract_strided_slice %13 {offsets = [6, 0], sizes = [2, 32], strides = [1, 1]} : vector<16x32xf32> to vector<2x32xf32>
    %cst_14 = arith.constant dense<0.000000e+00> : vector<2x32xf32>
    %28 = tpu.matmul %26, %9, %cst_14 {dimension_numbers = #tpu.dot_dimension_numbers<[1], [0], [0], [1], [0, 0, 1, 1], [], []>} : vector<2x32xf32>, vector<32x32xf32>, vector<2x32xf32> -> vector<2x32xf32>
    %29 = arith.addf %27, %28 : vector<2x32xf32>
    %30 = math.tanh %29 : vector<2x32xf32>
    %31 = vector.extract_strided_slice %13 {offsets = [8, 0], sizes = [2, 32], strides = [1, 1]} : vector<16x32xf32> to vector<2x32xf32>
    %cst_15 = arith.constant dense<0.000000e+00> : vector<2x32xf32>
    %32 = tpu.matmul %30, %9, %cst_15 {dimension_numbers = #tpu.dot_dimension_numbers<[1], [0], [0], [1], [0, 0, 1, 1], [], []>} : vector<2x32xf32>, vector<32x32xf32>, vector<2x32xf32> -> vector<2x32xf32>
    %33 = arith.addf %31, %32 : vector<2x32xf32>
    %34 = math.tanh %33 : vector<2x32xf32>
    %35 = vector.extract_strided_slice %13 {offsets = [10, 0], sizes = [2, 32], strides = [1, 1]} : vector<16x32xf32> to vector<2x32xf32>
    %cst_16 = arith.constant dense<0.000000e+00> : vector<2x32xf32>
    %36 = tpu.matmul %34, %9, %cst_16 {dimension_numbers = #tpu.dot_dimension_numbers<[1], [0], [0], [1], [0, 0, 1, 1], [], []>} : vector<2x32xf32>, vector<32x32xf32>, vector<2x32xf32> -> vector<2x32xf32>
    %37 = arith.addf %35, %36 : vector<2x32xf32>
    %38 = math.tanh %37 : vector<2x32xf32>
    %39 = vector.extract_strided_slice %13 {offsets = [12, 0], sizes = [2, 32], strides = [1, 1]} : vector<16x32xf32> to vector<2x32xf32>
    %cst_17 = arith.constant dense<0.000000e+00> : vector<2x32xf32>
    %40 = tpu.matmul %38, %9, %cst_17 {dimension_numbers = #tpu.dot_dimension_numbers<[1], [0], [0], [1], [0, 0, 1, 1], [], []>} : vector<2x32xf32>, vector<32x32xf32>, vector<2x32xf32> -> vector<2x32xf32>
    %41 = arith.addf %39, %40 : vector<2x32xf32>
    %42 = math.tanh %41 : vector<2x32xf32>
    %43 = vector.extract_strided_slice %13 {offsets = [14, 0], sizes = [2, 32], strides = [1, 1]} : vector<16x32xf32> to vector<2x32xf32>
    %cst_18 = arith.constant dense<0.000000e+00> : vector<2x32xf32>
    %44 = tpu.matmul %42, %9, %cst_18 {dimension_numbers = #tpu.dot_dimension_numbers<[1], [0], [0], [1], [0, 0, 1, 1], [], []>} : vector<2x32xf32>, vector<32x32xf32>, vector<2x32xf32> -> vector<2x32xf32>
    %45 = arith.addf %43, %44 : vector<2x32xf32>
    %46 = math.tanh %45 : vector<2x32xf32>
    %c0_19 = arith.constant 0 : index
    %c0_20 = arith.constant 0 : index
    %c0_21 = arith.constant 0 : index
    %47 = vector.load %arg9[%c0_19, %c0_20, %c0_21] : memref<2x2x32xf32, #tpu.memory_space<vmem>>, vector<1x2x32xf32>
    %48 = vector.shape_cast %47 : vector<1x2x32xf32> to vector<2x32xf32>
    %49 = vector.shape_cast %46 : vector<2x32xf32> to vector<1x2x32xf32>
    tpu.vector_store %arg9[%c0_19, %c0_20, %c0_21], %49 {strides = array<i32>} : memref<2x2x32xf32, #tpu.memory_space<vmem>>, vector<1x2x32xf32>,
    %50 = tpu.concatenate %18, %22, %26, %30, %34, %38, %42, %46 in 0 : vector<2x32xf32>, vector<2x32xf32>, vector<2x32xf32>, vector<2x32xf32>, vector<2x32xf32>, vector<2x32xf32>, vector<2x32xf32>, vector<2x32xf32> -> vector<16x32xf32>
    %c0_22 = arith.constant 0 : index
    %c0_23 = arith.constant 0 : index
    %51 = vector.load %arg5[%c0_22, %c0_23] : memref<32x32xf32, #tpu.memory_space<vmem>>, vector<32x32xf32>
    %c0_24 = arith.constant 0 : index
    %c0_25 = arith.constant 0 : index
    %52 = vector.load %arg6[%c0_24, %c0_25] : memref<32x32xf32, #tpu.memory_space<vmem>>, vector<32x32xf32>
    %c0_26 = arith.constant 0 : index
    %c0_27 = arith.constant 0 : index
    %53 = vector.load %arg7[%c0_26, %c0_27] : memref<1x32xf32, #tpu.memory_space<vmem>>, vector<1x32xf32>
    %cst_28 = arith.constant dense<0.000000e+00> : vector<16x32xf32>
    %54 = tpu.matmul %50, %51, %cst_28 {dimension_numbers = #tpu.dot_dimension_numbers<[1], [0], [0], [1], [0, 0, 1, 1], [], []>} : vector<16x32xf32>, vector<32x32xf32>, vector<16x32xf32> -> vector<16x32xf32>
    %55 = vector.broadcast %53 : vector<1x32xf32> to vector<16x32xf32>
    %56 = arith.addf %54, %55 : vector<16x32xf32>
    %cst_29 = arith.constant 0.000000e+00 : f32
    %57 = vector.broadcast %cst_29 : f32 to vector<2x32xf32>
    %58 = vector.extract_strided_slice %56 {offsets = [0, 0], sizes = [2, 32], strides = [1, 1]} : vector<16x32xf32> to vector<2x32xf32>
    %cst_30 = arith.constant dense<0.000000e+00> : vector<2x32xf32>
    %59 = tpu.matmul %57, %52, %cst_30 {dimension_numbers = #tpu.dot_dimension_numbers<[1], [0], [0], [1], [0, 0, 1, 1], [], []>} : vector<2x32xf32>, vector<32x32xf32>, vector<2x32xf32> -> vector<2x32xf32>
    %60 = arith.addf %58, %59 : vector<2x32xf32>
    %61 = math.tanh %60 : vector<2x32xf32>
    %c0_31 = arith.constant 0 : index
    %c0_32 = arith.constant 0 : index
    %c0_33 = arith.constant 0 : index
    %62 = vector.load %arg8[%c0_31, %c0_32, %c0_33] : memref<8x2x32xf32, #tpu.memory_space<vmem>>, vector<1x2x32xf32>
    %63 = vector.shape_cast %62 : vector<1x2x32xf32> to vector<2x32xf32>
    %64 = vector.shape_cast %61 : vector<2x32xf32> to vector<1x2x32xf32>
    tpu.vector_store %arg8[%c0_31, %c0_32, %c0_33], %64 {strides = array<i32>} : memref<8x2x32xf32, #tpu.memory_space<vmem>>, vector<1x2x32xf32>,
    %65 = vector.extract_strided_slice %56 {offsets = [2, 0], sizes = [2, 32], strides = [1, 1]} : vector<16x32xf32> to vector<2x32xf32>
    %cst_34 = arith.constant dense<0.000000e+00> : vector<2x32xf32>
    %66 = tpu.matmul %61, %52, %cst_34 {dimension_numbers = #tpu.dot_dimension_numbers<[1], [0], [0], [1], [0, 0, 1, 1], [], []>} : vector<2x32xf32>, vector<32x32xf32>, vector<2x32xf32> -> vector<2x32xf32>
    %67 = arith.addf %65, %66 : vector<2x32xf32>
    %68 = math.tanh %67 : vector<2x32xf32>
    %c1 = arith.constant 1 : index
    %c0_35 = arith.constant 0 : index
    %c0_36 = arith.constant 0 : index
    %69 = vector.load %arg8[%c1, %c0_35, %c0_36] : memref<8x2x32xf32, #tpu.memory_space<vmem>>, vector<1x2x32xf32>
    %70 = vector.shape_cast %69 : vector<1x2x32xf32> to vector<2x32xf32>
    %71 = vector.shape_cast %68 : vector<2x32xf32> to vector<1x2x32xf32>
    tpu.vector_store %arg8[%c1, %c0_35, %c0_36], %71 {strides = array<i32>} : memref<8x2x32xf32, #tpu.memory_space<vmem>>, vector<1x2x32xf32>,
    %72 = vector.extract_strided_slice %56 {offsets = [4, 0], sizes = [2, 32], strides = [1, 1]} : vector<16x32xf32> to vector<2x32xf32>
    %cst_37 = arith.constant dense<0.000000e+00> : vector<2x32xf32>
    %73 = tpu.matmul %68, %52, %cst_37 {dimension_numbers = #tpu.dot_dimension_numbers<[1], [0], [0], [1], [0, 0, 1, 1], [], []>} : vector<2x32xf32>, vector<32x32xf32>, vector<2x32xf32> -> vector<2x32xf32>
    %74 = arith.addf %72, %73 : vector<2x32xf32>
    %75 = math.tanh %74 : vector<2x32xf32>
    %c2 = arith.constant 2 : index
    %c0_38 = arith.constant 0 : index
    %c0_39 = arith.constant 0 : index
    %76 = vector.load %arg8[%c2, %c0_38, %c0_39] : memref<8x2x32xf32, #tpu.memory_space<vmem>>, vector<1x2x32xf32>
    %77 = vector.shape_cast %76 : vector<1x2x32xf32> to vector<2x32xf32>
    %78 = vector.shape_cast %75 : vector<2x32xf32> to vector<1x2x32xf32>
    tpu.vector_store %arg8[%c2, %c0_38, %c0_39], %78 {strides = array<i32>} : memref<8x2x32xf32, #tpu.memory_space<vmem>>, vector<1x2x32xf32>,
    %79 = vector.extract_strided_slice %56 {offsets = [6, 0], sizes = [2, 32], strides = [1, 1]} : vector<16x32xf32> to vector<2x32xf32>
    %cst_40 = arith.constant dense<0.000000e+00> : vector<2x32xf32>
    %80 = tpu.matmul %75, %52, %cst_40 {dimension_numbers = #tpu.dot_dimension_numbers<[1], [0], [0], [1], [0, 0, 1, 1], [], []>} : vector<2x32xf32>, vector<32x32xf32>, vector<2x32xf32> -> vector<2x32xf32>
    %81 = arith.addf %79, %80 : vector<2x32xf32>
    %82 = math.tanh %81 : vector<2x32xf32>
    %c3 = arith.constant 3 : index
    %c0_41 = arith.constant 0 : index
    %c0_42 = arith.constant 0 : index
    %83 = vector.load %arg8[%c3, %c0_41, %c0_42] : memref<8x2x32xf32, #tpu.memory_space<vmem>>, vector<1x2x32xf32>
    %84 = vector.shape_cast %83 : vector<1x2x32xf32> to vector<2x32xf32>
    %85 = vector.shape_cast %82 : vector<2x32xf32> to vector<1x2x32xf32>
    tpu.vector_store %arg8[%c3, %c0_41, %c0_42], %85 {strides = array<i32>} : memref<8x2x32xf32, #tpu.memory_space<vmem>>, vector<1x2x32xf32>,
    %86 = vector.extract_strided_slice %56 {offsets = [8, 0], sizes = [2, 32], strides = [1, 1]} : vector<16x32xf32> to vector<2x32xf32>
    %cst_43 = arith.constant dense<0.000000e+00> : vector<2x32xf32>
    %87 = tpu.matmul %82, %52, %cst_43 {dimension_numbers = #tpu.dot_dimension_numbers<[1], [0], [0], [1], [0, 0, 1, 1], [], []>} : vector<2x32xf32>, vector<32x32xf32>, vector<2x32xf32> -> vector<2x32xf32>
    %88 = arith.addf %86, %87 : vector<2x32xf32>
    %89 = math.tanh %88 : vector<2x32xf32>
    %c4 = arith.constant 4 : index
    %c0_44 = arith.constant 0 : index
    %c0_45 = arith.constant 0 : index
    %90 = vector.load %arg8[%c4, %c0_44, %c0_45] : memref<8x2x32xf32, #tpu.memory_space<vmem>>, vector<1x2x32xf32>
    %91 = vector.shape_cast %90 : vector<1x2x32xf32> to vector<2x32xf32>
    %92 = vector.shape_cast %89 : vector<2x32xf32> to vector<1x2x32xf32>
    tpu.vector_store %arg8[%c4, %c0_44, %c0_45], %92 {strides = array<i32>} : memref<8x2x32xf32, #tpu.memory_space<vmem>>, vector<1x2x32xf32>,
    %93 = vector.extract_strided_slice %56 {offsets = [10, 0], sizes = [2, 32], strides = [1, 1]} : vector<16x32xf32> to vector<2x32xf32>
    %cst_46 = arith.constant dense<0.000000e+00> : vector<2x32xf32>
    %94 = tpu.matmul %89, %52, %cst_46 {dimension_numbers = #tpu.dot_dimension_numbers<[1], [0], [0], [1], [0, 0, 1, 1], [], []>} : vector<2x32xf32>, vector<32x32xf32>, vector<2x32xf32> -> vector<2x32xf32>
    %95 = arith.addf %93, %94 : vector<2x32xf32>
    %96 = math.tanh %95 : vector<2x32xf32>
    %c5 = arith.constant 5 : index
    %c0_47 = arith.constant 0 : index
    %c0_48 = arith.constant 0 : index
    %97 = vector.load %arg8[%c5, %c0_47, %c0_48] : memref<8x2x32xf32, #tpu.memory_space<vmem>>, vector<1x2x32xf32>
    %98 = vector.shape_cast %97 : vector<1x2x32xf32> to vector<2x32xf32>
    %99 = vector.shape_cast %96 : vector<2x32xf32> to vector<1x2x32xf32>
    tpu.vector_store %arg8[%c5, %c0_47, %c0_48], %99 {strides = array<i32>} : memref<8x2x32xf32, #tpu.memory_space<vmem>>, vector<1x2x32xf32>,
    %100 = vector.extract_strided_slice %56 {offsets = [12, 0], sizes = [2, 32], strides = [1, 1]} : vector<16x32xf32> to vector<2x32xf32>
    %cst_49 = arith.constant dense<0.000000e+00> : vector<2x32xf32>
    %101 = tpu.matmul %96, %52, %cst_49 {dimension_numbers = #tpu.dot_dimension_numbers<[1], [0], [0], [1], [0, 0, 1, 1], [], []>} : vector<2x32xf32>, vector<32x32xf32>, vector<2x32xf32> -> vector<2x32xf32>
    %102 = arith.addf %100, %101 : vector<2x32xf32>
    %103 = math.tanh %102 : vector<2x32xf32>
    %c6 = arith.constant 6 : index
    %c0_50 = arith.constant 0 : index
    %c0_51 = arith.constant 0 : index
    %104 = vector.load %arg8[%c6, %c0_50, %c0_51] : memref<8x2x32xf32, #tpu.memory_space<vmem>>, vector<1x2x32xf32>
    %105 = vector.shape_cast %104 : vector<1x2x32xf32> to vector<2x32xf32>
    %106 = vector.shape_cast %103 : vector<2x32xf32> to vector<1x2x32xf32>
    tpu.vector_store %arg8[%c6, %c0_50, %c0_51], %106 {strides = array<i32>} : memref<8x2x32xf32, #tpu.memory_space<vmem>>, vector<1x2x32xf32>,
    %107 = vector.extract_strided_slice %56 {offsets = [14, 0], sizes = [2, 32], strides = [1, 1]} : vector<16x32xf32> to vector<2x32xf32>
    %cst_52 = arith.constant dense<0.000000e+00> : vector<2x32xf32>
    %108 = tpu.matmul %103, %52, %cst_52 {dimension_numbers = #tpu.dot_dimension_numbers<[1], [0], [0], [1], [0, 0, 1, 1], [], []>} : vector<2x32xf32>, vector<32x32xf32>, vector<2x32xf32> -> vector<2x32xf32>
    %109 = arith.addf %107, %108 : vector<2x32xf32>
    %110 = math.tanh %109 : vector<2x32xf32>
    %c7 = arith.constant 7 : index
    %c0_53 = arith.constant 0 : index
    %c0_54 = arith.constant 0 : index
    %111 = vector.load %arg8[%c7, %c0_53, %c0_54] : memref<8x2x32xf32, #tpu.memory_space<vmem>>, vector<1x2x32xf32>
    %112 = vector.shape_cast %111 : vector<1x2x32xf32> to vector<2x32xf32>
    %113 = vector.shape_cast %110 : vector<2x32xf32> to vector<1x2x32xf32>
    tpu.vector_store %arg8[%c7, %c0_53, %c0_54], %113 {strides = array<i32>} : memref<8x2x32xf32, #tpu.memory_space<vmem>>, vector<1x2x32xf32>,
    %c1_55 = arith.constant 1 : index
    %c0_56 = arith.constant 0 : index
    %c0_57 = arith.constant 0 : index
    %114 = vector.load %arg9[%c1_55, %c0_56, %c0_57] : memref<2x2x32xf32, #tpu.memory_space<vmem>>, vector<1x2x32xf32>
    %115 = vector.shape_cast %114 : vector<1x2x32xf32> to vector<2x32xf32>
    %116 = vector.shape_cast %110 : vector<2x32xf32> to vector<1x2x32xf32>
    tpu.vector_store %arg9[%c1_55, %c0_56, %c0_57], %116 {strides = array<i32>} : memref<2x2x32xf32, #tpu.memory_space<vmem>>, vector<1x2x32xf32>,
    return
  }
}

</mosaic_0001>

<llo_original>
// kernel: rnn_model_forward.2
$region0: #{rnn_model_forward.2}
  #allocation0 [shape = 'u32[]', space=smem, size = 0x4, offset = 0x4, fixed_abs, tag = 'smem constant byte address 0x4 - core index']
  #allocation1 [shape = 'u32[144,128]{1,0:T(1,128)}', space=vmem, size = 0x12000, scoped, tag = 'internal scratch']
  %s0 = inlined_call_operand.vmem [shape: s32[16,1], index: 0, kind: input, shape index: {}]
  %s1 = inlined_call_operand.hbm [shape: f32[50,200], index: 1, kind: input, shape index: {}]
  %s2 = inlined_call_operand.vmem [shape: f32[200,32], index: 2, kind: input, shape index: {}]
  %s3 = inlined_call_operand.hbm [shape: f32[32,32], index: 3, kind: input, shape index: {}]
  %s4 = inlined_call_operand.vmem [shape: f32[1,32], index: 4, kind: input, shape index: {}]
  %s5 = inlined_call_operand.hbm [shape: f32[32,32], index: 5, kind: input, shape index: {}]
  %s6 = inlined_call_operand.hbm [shape: f32[32,32], index: 6, kind: input, shape index: {}]
  %s7 = inlined_call_operand.vmem [shape: f32[1,32], index: 7, kind: input, shape index: {}]
  %s8 = inlined_call_operand.vmem [shape: f32[8,2,32], index: 8, kind: output, shape index: {0}]
  %s9 = inlined_call_operand.hbm [shape: f32[2,2,32], index: 9, kind: output, shape index: {1}]
  %10 = xla_tuple %s8, %s9
  %s11 = sld [smem:[#allocation0]]
  $region66: #{rnn_model_forward.2} parent=0
    _
  %s13 = ssub.s32 1, %s11
  %s14 = scalar_select 0, %s13, %s11
  $region1: #{rnn_model_forward.2} parent=0
    #allocation2 [shape = 'u8[57344]{0}', space=vmem, size = 0xe000, scoped, tag = 'input window, operand 1, single buffered']
    #allocation3 [shape = 's32[1]{0}', space=sflag, size = 0x4, scoped, tag = 'scoped memory for rnn_model_forward.2']
    #allocation4 [shape = 's32[1]{0}', space=sflag, size = 0x4, scoped, tag = 'scoped memory for rnn_model_forward.2']
    #allocation5 [shape = 'u8[16384]{0}', space=vmem, size = 0x4000, scoped, tag = 'input window, operand 3, single buffered']
    #allocation6 [shape = 's32[1]{0}', space=sflag, size = 0x4, scoped, tag = 'scoped memory for rnn_model_forward.2']
    #allocation7 [shape = 'u8[16384]{0}', space=vmem, size = 0x4000, scoped, tag = 'input window, operand 5, single buffered']
    #allocation8 [shape = 'u8[16384]{0}', space=vmem, size = 0x4000, scoped, tag = 'input window, operand 6, single buffered']
    #allocation9 [shape = 's32[1]{0}', space=sflag, size = 0x4, scoped, tag = 'scoped memory for rnn_model_forward.2']
    #allocation10 [shape = 'u8[2048]{0}', space=vmem, size = 0x800, scoped, tag = 'output window, operand 1, single buffered']
    %15 = vsyncpa [#allocation3], 0
    %16 = vsyncpa [#allocation6], 0
    %17 = vsyncpa [#allocation9], 0
    %18 = vsyncpa [#allocation4], 0
    // Predicated region
    $region2: #{rnn_model_forward.2} parent=1 // pred_check
      _
    $region3: #{rnn_model_forward.2} parent=1 // pred_check_branch
      %20 = sbr.rel (0) target = $region5
    $region4: #{rnn_model_forward.2} parent=1 // pred_region
      _
    $region5: #{rnn_model_forward.2} parent=1 // pred_fallthru
      _
    // Predicated region
    $region6: #{rnn_model_forward.2} parent=1 // pred_check
      _
    $region7: #{rnn_model_forward.2} parent=1 // pred_check_branch
      %22 = sbr.rel (0) target = $region9
    $region8: #{rnn_model_forward.2} parent=1 // pred_region
      %s24 = ssub.s32 1792, 1792
      %25 = vsyncadd [#allocation3], %s24
      %s26 = sshll.u32 [#allocation2], 4
      %s27 = int_to_ptr.vmem [resolvable:$true] %s26
      %32 = dma.hbm_to_vmem [thread:$0]  %s1, 1792, %s27, [#allocation3], 256, 256, 16
    $region9: #{rnn_model_forward.2} parent=1 // pred_fallthru
      _
    // Predicated region
    $region10: #{rnn_model_forward.2} parent=1 // pred_check
      _
    $region11: #{rnn_model_forward.2} parent=1 // pred_check_branch
      %34 = sbr.rel (0) target = $region13
    $region12: #{rnn_model_forward.2} parent=1 // pred_region
      _
    $region13: #{rnn_model_forward.2} parent=1 // pred_fallthru
      _
    // Predicated region
    $region14: #{rnn_model_forward.2} parent=1 // pred_check
      _
    $region15: #{rnn_model_forward.2} parent=1 // pred_check_branch
      %36 = sbr.rel (0) target = $region17
    $region16: #{rnn_model_forward.2} parent=1 // pred_region
      %s38 = ssub.s32 512, 512
      %39 = vsyncadd [#allocation6], %s38
      %s40 = sshll.u32 [#allocation5], 4
      %s41 = int_to_ptr.vmem [resolvable:$true] %s40
      %46 = dma.hbm_to_vmem [thread:$0]  %s3, 512, %s41, [#allocation6], 128, 128, 8
    $region17: #{rnn_model_forward.2} parent=1 // pred_fallthru
      _
    // Predicated region
    $region18: #{rnn_model_forward.2} parent=1 // pred_check
      _
    $region19: #{rnn_model_forward.2} parent=1 // pred_check_branch
      %48 = sbr.rel (0) target = $region21
    $region20: #{rnn_model_forward.2} parent=1 // pred_region
      _
    $region21: #{rnn_model_forward.2} parent=1 // pred_fallthru
      _
    // Predicated region
    $region22: #{rnn_model_forward.2} parent=1 // pred_check
      _
    $region23: #{rnn_model_forward.2} parent=1 // pred_check_branch
      %50 = sbr.rel (0) target = $region25
    $region24: #{rnn_model_forward.2} parent=1 // pred_region
      %s52 = ssub.s32 512, 512
      %53 = vsyncadd [#allocation6], %s52
      %s54 = sshll.u32 [#allocation7], 4
      %s55 = int_to_ptr.vmem [resolvable:$true] %s54
      %60 = dma.hbm_to_vmem [thread:$0]  %s5, 512, %s55, [#allocation6], 128, 128, 8
    $region25: #{rnn_model_forward.2} parent=1 // pred_fallthru
      _
    // Predicated region
    $region26: #{rnn_model_forward.2} parent=1 // pred_check
      _
    $region27: #{rnn_model_forward.2} parent=1 // pred_check_branch
      %62 = sbr.rel (0) target = $region29
    $region28: #{rnn_model_forward.2} parent=1 // pred_region
      %s64 = ssub.s32 512, 512
      %65 = vsyncadd [#allocation9], %s64
      %s66 = sshll.u32 [#allocation8], 4
      %s67 = int_to_ptr.vmem [resolvable:$true] %s66
      %72 = dma.hbm_to_vmem [thread:$0]  %s6, 512, %s67, [#allocation9], 128, 128, 8
    $region29: #{rnn_model_forward.2} parent=1 // pred_fallthru
      _
    // Predicated region
    $region30: #{rnn_model_forward.2} parent=1 // pred_check
      _
    $region31: #{rnn_model_forward.2} parent=1 // pred_check_branch
      %74 = sbr.rel (0) target = $region33
    $region32: #{rnn_model_forward.2} parent=1 // pred_region
      _
    $region33: #{rnn_model_forward.2} parent=1 // pred_fallthru
      _
    // Predicated region
    $region34: #{rnn_model_forward.2} parent=1 // pred_check
      _
    $region35: #{rnn_model_forward.2} parent=1 // pred_check_branch
      %76 = sbr.rel (0) target = $region37
    $region36: #{rnn_model_forward.2} parent=1 // pred_region
      %77 = dma.done [#allocation3], 1792
    $region37: #{rnn_model_forward.2} parent=1 // pred_fallthru
      _
    // Predicated region
    $region38: #{rnn_model_forward.2} parent=1 // pred_check
      _
    $region39: #{rnn_model_forward.2} parent=1 // pred_check_branch
      %79 = sbr.rel (0) target = $region41
    $region40: #{rnn_model_forward.2} parent=1 // pred_region
      %80 = dma.done [#allocation6], 512
    $region41: #{rnn_model_forward.2} parent=1 // pred_fallthru
      _
    // Predicated region
    $region42: #{rnn_model_forward.2} parent=1 // pred_check
      _
    $region43: #{rnn_model_forward.2} parent=1 // pred_check_branch
      %82 = sbr.rel (0) target = $region45
    $region44: #{rnn_model_forward.2} parent=1 // pred_region
      %83 = dma.done [#allocation6], 512
    $region45: #{rnn_model_forward.2} parent=1 // pred_fallthru
      _
    // Predicated region
    $region46: #{rnn_model_forward.2} parent=1 // pred_check
      _
    $region47: #{rnn_model_forward.2} parent=1 // pred_check_branch
      %85 = sbr.rel (0) target = $region49
    $region48: #{rnn_model_forward.2} parent=1 // pred_region
      %86 = dma.done [#allocation9], 512
    $region49: #{rnn_model_forward.2} parent=1 // pred_fallthru
      _
    %v87 = vld [vmem:[%s0] sm:$0xff]
    %v88 = vld [vmem:[%s0 + $0x8] sm:$0xff]
    %v89 = vlaneseq
    %v90 = vand.u32 %v89, 127
    %91 = vset.pattern.permute.xlu0 0
    %92 = vperm.xlu0 %91, %v87
    %v93 = vpop.permute.xlu0 %92
    %94 = vset.pattern.permute.xlu0 0
    %95 = vperm.xlu0 %94, %v88
    %v96 = vpop.permute.xlu0 %95
    %vm97 = vcmp.eq.s32.totalorder %v90, %v93
    %vm98 = vcmp.eq.s32.totalorder %v90, %v96
    %v99 = vsel %vm97, 1, 0
    %v100 = vsel %vm98, 1, 0
    %v101 = vcvt.s32.f32 %v99
    %v102 = vcvt.s32.f32 %v100
    %v103 = vld [vmem:[#allocation2] sm:$0xff]
    %v104 = vld [vmem:[#allocation2 + $0x8] sm:$0xff]
    %v105 = vld [vmem:[#allocation2 + $0x10] sm:$0xff]
    %v106 = vld [vmem:[#allocation2 + $0x18] sm:$0xff]
    %v107 = vld [vmem:[#allocation2 + $0x20] sm:$0xff]
    %v108 = vld [vmem:[#allocation2 + $0x28] sm:$0xff]
    %v109 = vld [vmem:[#allocation2 + $0x30] sm:$0xff]
    %v110 = vld [vmem:[#allocation2 + $0x38] sm:$0xff]
    %v111 = vld [vmem:[#allocation2 + $0x40] sm:$0xff]
    %v112 = vld [vmem:[#allocation2 + $0x48] sm:$0xff]
    %v113 = vld [vmem:[#allocation2 + $0x50] sm:$0xff]
    %v114 = vld [vmem:[#allocation2 + $0x58] sm:$0xff]
    %v115 = vld [vmem:[#allocation2 + $0x60] sm:$0x3]
    %v116 = vld [vmem:[#allocation2 + $0x68] sm:$0x3]
    %vm117 = vcmask 408576
    %v119 = vsel %vm117, %v101, 0
    %v122 = vsel %vm117, %v102, 0
    %vm124 = vcmask 1041408
    %v126 = vsel %vm124, %v115, 0
    %v129 = vsel %vm124, %v116, 0
    %131 = vmatprep.subr.mxu0 0.0
    %132 = vmatpush1.msra.mxu0 0.0
    %133 = vmatprep.subr.mxu0 0.0
    %134 = vmatpush1.msra.mxu0 0.0
    %135 = vmatprep.subr.mxu0 0.0
    %136 = vmatpush1.msra.mxu0 0.0
    %137 = vmatprep.subr.mxu0 0.0
    %138 = vmatpush1.msra.mxu0 0.0
    %139 = vmatprep.subr.mxu0 0.0
    %140 = vmatpush1.msra.mxu0 0.0
    %141 = vmatprep.subr.mxu0 0.0
    %142 = vmatpush1.msra.mxu0 0.0
    %143 = vmatprep.subr.mxu0 0.0
    %144 = vmatpush1.msra.mxu0 0.0
    %145 = vmatprep.subr.mxu0 0.0
    %146 = vmatpush1.msra.mxu0 0.0
    %147 = vmatprep.subr.mxu0 0.0
    %148 = vmatpush1.msra.mxu0 0.0
    %149 = vmatprep.subr.mxu0 %v129
    %150 = vmatpush1.msra.mxu0 %v126
    %151 = vmatprep.subr.mxu0 %v114
    %152 = vmatpush1.msra.mxu0 %v113
    %153 = vmatprep.subr.mxu0 %v112
    %154 = vmatpush1.msra.mxu0 %v111
    %155 = vmatprep.subr.mxu0 %v110
    %156 = vmatpush1.msra.mxu0 %v109
    %157 = vmatprep.subr.mxu0 %v108
    %158 = vmatpush1.msra.mxu0 %v107
    %159 = vmatprep.subr.mxu0 %v106
    %160 = vmatpush1.msra.mxu0 %v105
    %161 = vmatprep.subr.mxu0 %v104
    %162 = vmatpush1.msra.mxu0 %v103
    %163 = vmatprep.subr.mxu0 0.0
    %164 = vmatpush2.msra.mxu0 0.0
    %165 = vmatprep.subr.mxu0 0.0
    %166 = vmatpush2.msra.mxu0 0.0
    %167 = vmatprep.subr.mxu0 0.0
    %168 = vmatpush2.msra.mxu0 0.0
    %169 = vmatprep.subr.mxu0 0.0
    %170 = vmatpush2.msra.mxu0 0.0
    %171 = vmatprep.subr.mxu0 0.0
    %172 = vmatpush2.msra.mxu0 0.0
    %173 = vmatprep.subr.mxu0 0.0
    %174 = vmatpush2.msra.mxu0 0.0
    %175 = vmatprep.subr.mxu0 0.0
    %176 = vmatpush2.msra.mxu0 0.0
    %177 = vmatprep.subr.mxu0 0.0
    %178 = vmatpush2.msra.mxu0 0.0
    %179 = vmatprep.subr.mxu0 0.0
    %180 = vmatpush2.msra.mxu0 0.0
    %181 = vmatprep.subr.mxu0 0.0
    %182 = vmatpush2.msra.mxu0 0.0
    %183 = vmatprep.subr.mxu0 0.0
    %184 = vmatpush2.msra.mxu0 0.0
    %185 = vmatprep.subr.mxu0 0.0
    %186 = vmatpush2.msra.mxu0 0.0
    %187 = vmatprep.subr.mxu0 0.0
    %188 = vmatpush2.msra.mxu0 0.0
    %189 = vmatprep.subr.mxu0 0.0
    %190 = vmatpush2.msra.mxu0 0.0
    %191 = vmatprep.subr.mxu0 0.0
    %192 = vmatpush2.msra.mxu0 0.0
    %193 = vmatprep.subr.mxu0 0.0
    %194 = vmatpush2.msra.mxu0 0.0
    %195 = vmatprep.mubr.f32.mxu0 0.0
    %196 = vmatmul.mubr.f32.gmra.mxu0 %v119
    %v197 = vpop.f32.mrf.mxu0
    %v198 = vadd.f32 0.0, %v197
    %v199 = vpop.f32.mrf.mxu0
    %v200 = vadd.f32 0.0, %v199
    %201 = vmatprep.mubr.f32.mxu0 0.0
    %202 = vmatmul.mubr.f32.gmra.mxu0 %v122
    %v203 = vpop.f32.mrf.mxu0
    %v204 = vadd.f32 0.0, %v203
    %v205 = vpop.f32.mrf.mxu0
    %v206 = vadd.f32 0.0, %v205
    %207 = vdwg.mxu0
    %v208 = vld [vmem:[%s2] sm:$0xff]
    %v209 = vld [vmem:[%s2 + $0x8] sm:$0xff]
    %v210 = vld [vmem:[%s2 + $0x10] sm:$0xff]
    %v211 = vld [vmem:[%s2 + $0x18] sm:$0xff]
    %v212 = vld [vmem:[%s2 + $0x20] sm:$0xff]
    %v213 = vld [vmem:[%s2 + $0x28] sm:$0xff]
    %v214 = vld [vmem:[%s2 + $0x30] sm:$0xff]
    %v215 = vld [vmem:[%s2 + $0x38] sm:$0xff]
    %v216 = vld [vmem:[%s2 + $0x40] sm:$0xff]
    %v217 = vld [vmem:[%s2 + $0x48] sm:$0xff]
    %v218 = vld [vmem:[%s2 + $0x50] sm:$0xff]
    %v219 = vld [vmem:[%s2 + $0x58] sm:$0xff]
    %v220 = vld [vmem:[%s2 + $0x60] sm:$0xff]
    %v221 = vld [vmem:[%s2 + $0x68] sm:$0xff]
    %v222 = vld [vmem:[%s2 + $0x70] sm:$0xff]
    %v223 = vld [vmem:[%s2 + $0x78] sm:$0xff]
    %v224 = vld [vmem:[%s2 + $0x80] sm:$0xff]
    %v225 = vld [vmem:[%s2 + $0x88] sm:$0xff]
    %v226 = vld [vmem:[%s2 + $0x90] sm:$0xff]
    %v227 = vld [vmem:[%s2 + $0x98] sm:$0xff]
    %v228 = vld [vmem:[%s2 + $0xa0] sm:$0xff]
    %v229 = vld [vmem:[%s2 + $0xa8] sm:$0xff]
    %v230 = vld [vmem:[%s2 + $0xb0] sm:$0xff]
    %v231 = vld [vmem:[%s2 + $0xb8] sm:$0xff]
    %v232 = vld [vmem:[%s2 + $0xc0] sm:$0xff]
    %v233 = vld [vmem:[#allocation5] sm:$0xff]
    %v234 = vld [vmem:[#allocation5 + $0x8] sm:$0xff]
    %v235 = vld [vmem:[#allocation5 + $0x10] sm:$0xff]
    %v236 = vld [vmem:[#allocation5 + $0x18] sm:$0xff]
    %v237 = vld [vmem:[%s4] sm:$0x1]
    %v239 = vlaneseq
    %v240 = vshrl.u32 %v239, 7
    %v241 = vsub.s32 0, %v240
    %v242 = vrot.slane %v237, %v241
    %vm244 = vcmask 588800
    %v246 = vsel %vm244, %v200, 0
    %v249 = vsel %vm244, %v206, 0
    %251 = vmatprep.subr.mxu0 0.0
    %252 = vmatpush1.msra.mxu0 %v223
    %253 = vmatprep.subr.mxu0 0.0
    %254 = vmatpush1.msra.mxu0 %v222
    %255 = vmatprep.subr.mxu0 0.0
    %256 = vmatpush1.msra.mxu0 %v221
    %257 = vmatprep.subr.mxu0 0.0
    %258 = vmatpush1.msra.mxu0 %v220
    %259 = vmatprep.subr.mxu0 0.0
    %260 = vmatpush1.msra.mxu0 %v219
    %261 = vmatprep.subr.mxu0 0.0
    %262 = vmatpush1.msra.mxu0 %v218
    %263 = vmatprep.subr.mxu0 0.0
    %264 = vmatpush1.msra.mxu0 %v217
    %265 = vmatprep.subr.mxu0 0.0
    %266 = vmatpush1.msra.mxu0 %v216
    %267 = vmatprep.subr.mxu0 0.0
    %268 = vmatpush1.msra.mxu0 %v215
    %269 = vmatprep.subr.mxu0 0.0
    %270 = vmatpush1.msra.mxu0 %v214
    %271 = vmatprep.subr.mxu0 0.0
    %272 = vmatpush1.msra.mxu0 %v213
    %273 = vmatprep.subr.mxu0 0.0
    %274 = vmatpush1.msra.mxu0 %v212
    %275 = vmatprep.subr.mxu0 0.0
    %276 = vmatpush1.msra.mxu0 %v211
    %277 = vmatprep.subr.mxu0 0.0
    %278 = vmatpush1.msra.mxu0 %v210
    %279 = vmatprep.subr.mxu0 0.0
    %280 = vmatpush1.msra.mxu0 %v209
    %281 = vmatprep.subr.mxu0 0.0
    %282 = vmatpush1.msra.mxu0 %v208
    %283 = vmatprep.subr.mxu0 0.0
    %284 = vmatpush2.msra.mxu0 0.0
    %285 = vmatprep.subr.mxu0 0.0
    %286 = vmatpush2.msra.mxu0 0.0
    %287 = vmatprep.subr.mxu0 0.0
    %288 = vmatpush2.msra.mxu0 0.0
    %289 = vmatprep.subr.mxu0 0.0
    %290 = vmatpush2.msra.mxu0 0.0
    %291 = vmatprep.subr.mxu0 0.0
    %292 = vmatpush2.msra.mxu0 0.0
    %293 = vmatprep.subr.mxu0 0.0
    %294 = vmatpush2.msra.mxu0 0.0
    %295 = vmatprep.subr.mxu0 0.0
    %296 = vmatpush2.msra.mxu0 0.0
    %297 = vmatprep.subr.mxu0 0.0
    %298 = vmatpush2.msra.mxu0 %v232
    %299 = vmatprep.subr.mxu0 0.0
    %300 = vmatpush2.msra.mxu0 %v231
    %301 = vmatprep.subr.mxu0 0.0
    %302 = vmatpush2.msra.mxu0 %v230
    %303 = vmatprep.subr.mxu0 0.0
    %304 = vmatpush2.msra.mxu0 %v229
    %305 = vmatprep.subr.mxu0 0.0
    %306 = vmatpush2.msra.mxu0 %v228
    %307 = vmatprep.subr.mxu0 0.0
    %308 = vmatpush2.msra.mxu0 %v227
    %309 = vmatprep.subr.mxu0 0.0
    %310 = vmatpush2.msra.mxu0 %v226
    %311 = vmatprep.subr.mxu0 0.0
    %312 = vmatpush2.msra.mxu0 %v225
    %313 = vmatprep.subr.mxu0 0.0
    %314 = vmatpush2.msra.mxu0 %v224
    %315 = vmatprep.mubr.f32.mxu0 %v246
    %316 = vmatmul.mubr.f32.gmra.mxu0 %v198
    %v317 = vpop.f32.mrf.mxu0
    %v318 = vadd.f32 %v242, %v317
    %v319 = vpop.f32.mrf.mxu0
    %320 = vmatprep.mubr.f32.mxu0 %v249
    %321 = vmatmul.mubr.f32.gmra.mxu0 %v204
    %v322 = vpop.f32.mrf.mxu0
    %v323 = vadd.f32 %v242, %v322
    %v324 = vpop.f32.mrf.mxu0
    %325 = vdwg.mxu0
    %vm326 = vcmask 261120
    %v328 = vsel %vm326, 0.0, 0
    %330 = vmatprep.subr.mxu0 0.0
    %331 = vmatpush1.msra.mxu0 0.0
    %332 = vmatprep.subr.mxu0 0.0
    %333 = vmatpush1.msra.mxu0 0.0
    %334 = vmatprep.subr.mxu0 0.0
    %335 = vmatpush1.msra.mxu0 0.0
    %336 = vmatprep.subr.mxu0 0.0
    %337 = vmatpush1.msra.mxu0 0.0
    %338 = vmatprep.subr.mxu0 0.0
    %339 = vmatpush1.msra.mxu0 0.0
    %340 = vmatprep.subr.mxu0 0.0
    %341 = vmatpush1.msra.mxu0 0.0
    %342 = vmatprep.subr.mxu0 0.0
    %343 = vmatpush1.msra.mxu0 0.0
    %344 = vmatprep.subr.mxu0 0.0
    %345 = vmatpush1.msra.mxu0 0.0
    %346 = vmatprep.subr.mxu0 0.0
    %347 = vmatpush1.msra.mxu0 0.0
    %348 = vmatprep.subr.mxu0 0.0
    %349 = vmatpush1.msra.mxu0 0.0
    %350 = vmatprep.subr.mxu0 0.0
    %351 = vmatpush1.msra.mxu0 0.0
    %352 = vmatprep.subr.mxu0 0.0
    %353 = vmatpush1.msra.mxu0 0.0
    %354 = vmatprep.subr.mxu0 0.0
    %355 = vmatpush1.msra.mxu0 %v236
    %356 = vmatprep.subr.mxu0 0.0
    %357 = vmatpush1.msra.mxu0 %v235
    %358 = vmatprep.subr.mxu0 0.0
    %359 = vmatpush1.msra.mxu0 %v234
    %360 = vmatprep.subr.mxu0 0.0
    %361 = vmatpush1.msra.mxu0 %v233
    %362 = vmatprep.subr.mxu0 0.0
    %363 = vmatpush2.msra.mxu0 0.0
    %364 = vmatprep.subr.mxu0 0.0
    %365 = vmatpush2.msra.mxu0 0.0
    %366 = vmatprep.subr.mxu0 0.0
    %367 = vmatpush2.msra.mxu0 0.0
    %368 = vmatprep.subr.mxu0 0.0
    %369 = vmatpush2.msra.mxu0 0.0
    %370 = vmatprep.subr.mxu0 0.0
    %371 = vmatpush2.msra.mxu0 0.0
    %372 = vmatprep.subr.mxu0 0.0
    %373 = vmatpush2.msra.mxu0 0.0
    %374 = vmatprep.subr.mxu0 0.0
    %375 = vmatpush2.msra.mxu0 0.0
    %376 = vmatprep.subr.mxu0 0.0
    %377 = vmatpush2.msra.mxu0 0.0
    %378 = vmatprep.subr.mxu0 0.0
    %379 = vmatpush2.msra.mxu0 0.0
    %380 = vmatprep.subr.mxu0 0.0
    %381 = vmatpush2.msra.mxu0 0.0
    %382 = vmatprep.subr.mxu0 0.0
    %383 = vmatpush2.msra.mxu0 0.0
    %384 = vmatprep.subr.mxu0 0.0
    %385 = vmatpush2.msra.mxu0 0.0
    %386 = vmatprep.subr.mxu0 0.0
    %387 = vmatpush2.msra.mxu0 0.0
    %388 = vmatprep.subr.mxu0 0.0
    %389 = vmatpush2.msra.mxu0 0.0
    %390 = vmatprep.subr.mxu0 0.0
    %391 = vmatpush2.msra.mxu0 0.0
    %392 = vmatprep.subr.mxu0 0.0
    %393 = vmatpush2.msra.mxu0 0.0
    %394 = vmatprep.mubr.f32.mxu0 0.0
    %395 = vmatmul.mubr.f32.gmra.mxu0 %v328
    %v396 = vpop.f32.mrf.mxu0
    %v397 = vadd.f32 0.0, %v396
    %v398 = vpop.f32.mrf.mxu0
    %399 = vdwg.mxu0
    %v400 = vadd.f32 %v318, %v397
    %v401 = vtanh.pop %v400
    %v403 = vsel %vm326, %v401, 0
    %405 = vmatprep.subr.mxu0 0.0
    %406 = vmatpush1.msra.mxu0 0.0
    %407 = vmatprep.subr.mxu0 0.0
    %408 = vmatpush1.msra.mxu0 0.0
    %409 = vmatprep.subr.mxu0 0.0
    %410 = vmatpush1.msra.mxu0 0.0
    %411 = vmatprep.subr.mxu0 0.0
    %412 = vmatpush1.msra.mxu0 0.0
    %413 = vmatprep.subr.mxu0 0.0
    %414 = vmatpush1.msra.mxu0 0.0
    %415 = vmatprep.subr.mxu0 0.0
    %416 = vmatpush1.msra.mxu0 0.0
    %417 = vmatprep.subr.mxu0 0.0
    %418 = vmatpush1.msra.mxu0 0.0
    %419 = vmatprep.subr.mxu0 0.0
    %420 = vmatpush1.msra.mxu0 0.0
    %421 = vmatprep.subr.mxu0 0.0
    %422 = vmatpush1.msra.mxu0 0.0
    %423 = vmatprep.subr.mxu0 0.0
    %424 = vmatpush1.msra.mxu0 0.0
    %425 = vmatprep.subr.mxu0 0.0
    %426 = vmatpush1.msra.mxu0 0.0
    %427 = vmatprep.subr.mxu0 0.0
    %428 = vmatpush1.msra.mxu0 0.0
    %429 = vmatprep.subr.mxu0 0.0
    %430 = vmatpush1.msra.mxu0 %v236
    %431 = vmatprep.subr.mxu0 0.0
    %432 = vmatpush1.msra.mxu0 %v235
    %433 = vmatprep.subr.mxu0 0.0
    %434 = vmatpush1.msra.mxu0 %v234
    %435 = vmatprep.subr.mxu0 0.0
    %436 = vmatpush1.msra.mxu0 %v233
    %437 = vmatprep.subr.mxu0 0.0
    %438 = vmatpush2.msra.mxu0 0.0
    %439 = vmatprep.subr.mxu0 0.0
    %440 = vmatpush2.msra.mxu0 0.0
    %441 = vmatprep.subr.mxu0 0.0
    %442 = vmatpush2.msra.mxu0 0.0
    %443 = vmatprep.subr.mxu0 0.0
    %444 = vmatpush2.msra.mxu0 0.0
    %445 = vmatprep.subr.mxu0 0.0
    %446 = vmatpush2.msra.mxu0 0.0
    %447 = vmatprep.subr.mxu0 0.0
    %448 = vmatpush2.msra.mxu0 0.0
    %449 = vmatprep.subr.mxu0 0.0
    %450 = vmatpush2.msra.mxu0 0.0
    %451 = vmatprep.subr.mxu0 0.0
    %452 = vmatpush2.msra.mxu0 0.0
    %453 = vmatprep.subr.mxu0 0.0
    %454 = vmatpush2.msra.mxu0 0.0
    %455 = vmatprep.subr.mxu0 0.0
    %456 = vmatpush2.msra.mxu0 0.0
    %457 = vmatprep.subr.mxu0 0.0
    %458 = vmatpush2.msra.mxu0 0.0
    %459 = vmatprep.subr.mxu0 0.0
    %460 = vmatpush2.msra.mxu0 0.0
    %461 = vmatprep.subr.mxu0 0.0
    %462 = vmatpush2.msra.mxu0 0.0
    %463 = vmatprep.subr.mxu0 0.0
    %464 = vmatpush2.msra.mxu0 0.0
    %465 = vmatprep.subr.mxu0 0.0
    %466 = vmatpush2.msra.mxu0 0.0
    %467 = vmatprep.subr.mxu0 0.0
    %468 = vmatpush2.msra.mxu0 0.0
    %469 = vmatprep.mubr.f32.mxu0 0.0
    %470 = vmatmul.mubr.f32.gmra.mxu0 %v403
    %v471 = vpop.f32.mrf.mxu0
    %v472 = vadd.f32 0.0, %v471
    %v473 = vpop.f32.mrf.mxu0
    %474 = vdwg.mxu0
    %v476 = vrot.slane %v472, 6
    %v478 = vadd.f32 %v318, %v476
    %v479 = vtanh.pop %v478
    %v481 = vrot.slane %v479, 2
    %v482 = vsel %vm326, %v481, 0
    %484 = vmatprep.subr.mxu0 0.0
    %485 = vmatpush1.msra.mxu0 0.0
    %486 = vmatprep.subr.mxu0 0.0
    %487 = vmatpush1.msra.mxu0 0.0
    %488 = vmatprep.subr.mxu0 0.0
    %489 = vmatpush1.msra.mxu0 0.0
    %490 = vmatprep.subr.mxu0 0.0
    %491 = vmatpush1.msra.mxu0 0.0
    %492 = vmatprep.subr.mxu0 0.0
    %493 = vmatpush1.msra.mxu0 0.0
    %494 = vmatprep.subr.mxu0 0.0
    %495 = vmatpush1.msra.mxu0 0.0
    %496 = vmatprep.subr.mxu0 0.0
    %497 = vmatpush1.msra.mxu0 0.0
    %498 = vmatprep.subr.mxu0 0.0
    %499 = vmatpush1.msra.mxu0 0.0
    %500 = vmatprep.subr.mxu0 0.0
    %501 = vmatpush1.msra.mxu0 0.0
    %502 = vmatprep.subr.mxu0 0.0
    %503 = vmatpush1.msra.mxu0 0.0
    %504 = vmatprep.subr.mxu0 0.0
    %505 = vmatpush1.msra.mxu0 0.0
    %506 = vmatprep.subr.mxu0 0.0
    %507 = vmatpush1.msra.mxu0 0.0
    %508 = vmatprep.subr.mxu0 0.0
    %509 = vmatpush1.msra.mxu0 %v236
    %510 = vmatprep.subr.mxu0 0.0
    %511 = vmatpush1.msra.mxu0 %v235
    %512 = vmatprep.subr.mxu0 0.0
    %513 = vmatpush1.msra.mxu0 %v234
    %514 = vmatprep.subr.mxu0 0.0
    %515 = vmatpush1.msra.mxu0 %v233
    %516 = vmatprep.subr.mxu0 0.0
    %517 = vmatpush2.msra.mxu0 0.0
    %518 = vmatprep.subr.mxu0 0.0
    %519 = vmatpush2.msra.mxu0 0.0
    %520 = vmatprep.subr.mxu0 0.0
    %521 = vmatpush2.msra.mxu0 0.0
    %522 = vmatprep.subr.mxu0 0.0
    %523 = vmatpush2.msra.mxu0 0.0
    %524 = vmatprep.subr.mxu0 0.0
    %525 = vmatpush2.msra.mxu0 0.0
    %526 = vmatprep.subr.mxu0 0.0
    %527 = vmatpush2.msra.mxu0 0.0
    %528 = vmatprep.subr.mxu0 0.0
    %529 = vmatpush2.msra.mxu0 0.0
    %530 = vmatprep.subr.mxu0 0.0
    %531 = vmatpush2.msra.mxu0 0.0
    %532 = vmatprep.subr.mxu0 0.0
    %533 = vmatpush2.msra.mxu0 0.0
    %534 = vmatprep.subr.mxu0 0.0
    %535 = vmatpush2.msra.mxu0 0.0
    %536 = vmatprep.subr.mxu0 0.0
    %537 = vmatpush2.msra.mxu0 0.0
    %538 = vmatprep.subr.mxu0 0.0
    %539 = vmatpush2.msra.mxu0 0.0
    %540 = vmatprep.subr.mxu0 0.0
    %541 = vmatpush2.msra.mxu0 0.0
    %542 = vmatprep.subr.mxu0 0.0
    %543 = vmatpush2.msra.mxu0 0.0
    %544 = vmatprep.subr.mxu0 0.0
    %545 = vmatpush2.msra.mxu0 0.0
    %546 = vmatprep.subr.mxu0 0.0
    %547 = vmatpush2.msra.mxu0 0.0
    %548 = vmatprep.mubr.f32.mxu0 0.0
    %549 = vmatmul.mubr.f32.gmra.mxu0 %v482
    %v550 = vpop.f32.mrf.mxu0
    %v551 = vadd.f32 0.0, %v550
    %v552 = vpop.f32.mrf.mxu0
    %553 = vdwg.mxu0
    %v555 = vrot.slane %v551, 4
    %v557 = vadd.f32 %v318, %v555
    %v558 = vtanh.pop %v557
    %v560 = vrot.slane %v558, 4
    %v561 = vsel %vm326, %v560, 0
    %563 = vmatprep.subr.mxu0 0.0
    %564 = vmatpush1.msra.mxu0 0.0
    %565 = vmatprep.subr.mxu0 0.0
    %566 = vmatpush1.msra.mxu0 0.0
    %567 = vmatprep.subr.mxu0 0.0
    %568 = vmatpush1.msra.mxu0 0.0
    %569 = vmatprep.subr.mxu0 0.0
    %570 = vmatpush1.msra.mxu0 0.0
    %571 = vmatprep.subr.mxu0 0.0
    %572 = vmatpush1.msra.mxu0 0.0
    %573 = vmatprep.subr.mxu0 0.0
    %574 = vmatpush1.msra.mxu0 0.0
    %575 = vmatprep.subr.mxu0 0.0
    %576 = vmatpush1.msra.mxu0 0.0
    %577 = vmatprep.subr.mxu0 0.0
    %578 = vmatpush1.msra.mxu0 0.0
    %579 = vmatprep.subr.mxu0 0.0
    %580 = vmatpush1.msra.mxu0 0.0
    %581 = vmatprep.subr.mxu0 0.0
    %582 = vmatpush1.msra.mxu0 0.0
    %583 = vmatprep.subr.mxu0 0.0
    %584 = vmatpush1.msra.mxu0 0.0
    %585 = vmatprep.subr.mxu0 0.0
    %586 = vmatpush1.msra.mxu0 0.0
    %587 = vmatprep.subr.mxu0 0.0
    %588 = vmatpush1.msra.mxu0 %v236
    %589 = vmatprep.subr.mxu0 0.0
    %590 = vmatpush1.msra.mxu0 %v235
    %591 = vmatprep.subr.mxu0 0.0
    %592 = vmatpush1.msra.mxu0 %v234
    %593 = vmatprep.subr.mxu0 0.0
    %594 = vmatpush1.msra.mxu0 %v233
    %595 = vmatprep.subr.mxu0 0.0
    %596 = vmatpush2.msra.mxu0 0.0
    %597 = vmatprep.subr.mxu0 0.0
    %598 = vmatpush2.msra.mxu0 0.0
    %599 = vmatprep.subr.mxu0 0.0
    %600 = vmatpush2.msra.mxu0 0.0
    %601 = vmatprep.subr.mxu0 0.0
    %602 = vmatpush2.msra.mxu0 0.0
    %603 = vmatprep.subr.mxu0 0.0
    %604 = vmatpush2.msra.mxu0 0.0
    %605 = vmatprep.subr.mxu0 0.0
    %606 = vmatpush2.msra.mxu0 0.0
    %607 = vmatprep.subr.mxu0 0.0
    %608 = vmatpush2.msra.mxu0 0.0
    %609 = vmatprep.subr.mxu0 0.0
    %610 = vmatpush2.msra.mxu0 0.0
    %611 = vmatprep.subr.mxu0 0.0
    %612 = vmatpush2.msra.mxu0 0.0
    %613 = vmatprep.subr.mxu0 0.0
    %614 = vmatpush2.msra.mxu0 0.0
    %615 = vmatprep.subr.mxu0 0.0
    %616 = vmatpush2.msra.mxu0 0.0
    %617 = vmatprep.subr.mxu0 0.0
    %618 = vmatpush2.msra.mxu0 0.0
    %619 = vmatprep.subr.mxu0 0.0
    %620 = vmatpush2.msra.mxu0 0.0
    %621 = vmatprep.subr.mxu0 0.0
    %622 = vmatpush2.msra.mxu0 0.0
    %623 = vmatprep.subr.mxu0 0.0
    %624 = vmatpush2.msra.mxu0 0.0
    %625 = vmatprep.subr.mxu0 0.0
    %626 = vmatpush2.msra.mxu0 0.0
    %627 = vmatprep.mubr.f32.mxu0 0.0
    %628 = vmatmul.mubr.f32.gmra.mxu0 %v561
    %v629 = vpop.f32.mrf.mxu0
    %v630 = vadd.f32 0.0, %v629
    %v631 = vpop.f32.mrf.mxu0
    %632 = vdwg.mxu0
    %v634 = vrot.slane %v630, 2
    %v636 = vadd.f32 %v318, %v634
    %v637 = vtanh.pop %v636
    %v639 = vrot.slane %v637, 6
    %v640 = vsel %vm326, %v639, 0
    %642 = vmatprep.subr.mxu0 0.0
    %643 = vmatpush1.msra.mxu0 0.0
    %644 = vmatprep.subr.mxu0 0.0
    %645 = vmatpush1.msra.mxu0 0.0
    %646 = vmatprep.subr.mxu0 0.0
    %647 = vmatpush1.msra.mxu0 0.0
    %648 = vmatprep.subr.mxu0 0.0
    %649 = vmatpush1.msra.mxu0 0.0
    %650 = vmatprep.subr.mxu0 0.0
    %651 = vmatpush1.msra.mxu0 0.0
    %652 = vmatprep.subr.mxu0 0.0
    %653 = vmatpush1.msra.mxu0 0.0
    %654 = vmatprep.subr.mxu0 0.0
    %655 = vmatpush1.msra.mxu0 0.0
    %656 = vmatprep.subr.mxu0 0.0
    %657 = vmatpush1.msra.mxu0 0.0
    %658 = vmatprep.subr.mxu0 0.0
    %659 = vmatpush1.msra.mxu0 0.0
    %660 = vmatprep.subr.mxu0 0.0
    %661 = vmatpush1.msra.mxu0 0.0
    %662 = vmatprep.subr.mxu0 0.0
    %663 = vmatpush1.msra.mxu0 0.0
    %664 = vmatprep.subr.mxu0 0.0
    %665 = vmatpush1.msra.mxu0 0.0
    %666 = vmatprep.subr.mxu0 0.0
    %667 = vmatpush1.msra.mxu0 %v236
    %668 = vmatprep.subr.mxu0 0.0
    %669 = vmatpush1.msra.mxu0 %v235
    %670 = vmatprep.subr.mxu0 0.0
    %671 = vmatpush1.msra.mxu0 %v234
    %672 = vmatprep.subr.mxu0 0.0
    %673 = vmatpush1.msra.mxu0 %v233
    %674 = vmatprep.subr.mxu0 0.0
    %675 = vmatpush2.msra.mxu0 0.0
    %676 = vmatprep.subr.mxu0 0.0
    %677 = vmatpush2.msra.mxu0 0.0
    %678 = vmatprep.subr.mxu0 0.0
    %679 = vmatpush2.msra.mxu0 0.0
    %680 = vmatprep.subr.mxu0 0.0
    %681 = vmatpush2.msra.mxu0 0.0
    %682 = vmatprep.subr.mxu0 0.0
    %683 = vmatpush2.msra.mxu0 0.0
    %684 = vmatprep.subr.mxu0 0.0
    %685 = vmatpush2.msra.mxu0 0.0
    %686 = vmatprep.subr.mxu0 0.0
    %687 = vmatpush2.msra.mxu0 0.0
    %688 = vmatprep.subr.mxu0 0.0
    %689 = vmatpush2.msra.mxu0 0.0
    %690 = vmatprep.subr.mxu0 0.0
    %691 = vmatpush2.msra.mxu0 0.0
    %692 = vmatprep.subr.mxu0 0.0
    %693 = vmatpush2.msra.mxu0 0.0
    %694 = vmatprep.subr.mxu0 0.0
    %695 = vmatpush2.msra.mxu0 0.0
    %696 = vmatprep.subr.mxu0 0.0
    %697 = vmatpush2.msra.mxu0 0.0
    %698 = vmatprep.subr.mxu0 0.0
    %699 = vmatpush2.msra.mxu0 0.0
    %700 = vmatprep.subr.mxu0 0.0
    %701 = vmatpush2.msra.mxu0 0.0
    %702 = vmatprep.subr.mxu0 0.0
    %703 = vmatpush2.msra.mxu0 0.0
    %704 = vmatprep.subr.mxu0 0.0
    %705 = vmatpush2.msra.mxu0 0.0
    %706 = vmatprep.mubr.f32.mxu0 0.0
    %707 = vmatmul.mubr.f32.gmra.mxu0 %v640
    %v708 = vpop.f32.mrf.mxu0
    %v709 = vadd.f32 0.0, %v708
    %v710 = vpop.f32.mrf.mxu0
    %711 = vdwg.mxu0
    %v712 = vadd.f32 %v323, %v709
    %v713 = vtanh.pop %v712
    %v715 = vsel %vm326, %v713, 0
    %717 = vmatprep.subr.mxu0 0.0
    %718 = vmatpush1.msra.mxu0 0.0
    %719 = vmatprep.subr.mxu0 0.0
    %720 = vmatpush1.msra.mxu0 0.0
    %721 = vmatprep.subr.mxu0 0.0
    %722 = vmatpush1.msra.mxu0 0.0
    %723 = vmatprep.subr.mxu0 0.0
    %724 = vmatpush1.msra.mxu0 0.0
    %725 = vmatprep.subr.mxu0 0.0
    %726 = vmatpush1.msra.mxu0 0.0
    %727 = vmatprep.subr.mxu0 0.0
    %728 = vmatpush1.msra.mxu0 0.0
    %729 = vmatprep.subr.mxu0 0.0
    %730 = vmatpush1.msra.mxu0 0.0
    %731 = vmatprep.subr.mxu0 0.0
    %732 = vmatpush1.msra.mxu0 0.0
    %733 = vmatprep.subr.mxu0 0.0
    %734 = vmatpush1.msra.mxu0 0.0
    %735 = vmatprep.subr.mxu0 0.0
    %736 = vmatpush1.msra.mxu0 0.0
    %737 = vmatprep.subr.mxu0 0.0
    %738 = vmatpush1.msra.mxu0 0.0
    %739 = vmatprep.subr.mxu0 0.0
    %740 = vmatpush1.msra.mxu0 0.0
    %741 = vmatprep.subr.mxu0 0.0
    %742 = vmatpush1.msra.mxu0 %v236
    %743 = vmatprep.subr.mxu0 0.0
    %744 = vmatpush1.msra.mxu0 %v235
    %745 = vmatprep.subr.mxu0 0.0
    %746 = vmatpush1.msra.mxu0 %v234
    %747 = vmatprep.subr.mxu0 0.0
    %748 = vmatpush1.msra.mxu0 %v233
    %749 = vmatprep.subr.mxu0 0.0
    %750 = vmatpush2.msra.mxu0 0.0
    %751 = vmatprep.subr.mxu0 0.0
    %752 = vmatpush2.msra.mxu0 0.0
    %753 = vmatprep.subr.mxu0 0.0
    %754 = vmatpush2.msra.mxu0 0.0
    %755 = vmatprep.subr.mxu0 0.0
    %756 = vmatpush2.msra.mxu0 0.0
    %757 = vmatprep.subr.mxu0 0.0
    %758 = vmatpush2.msra.mxu0 0.0
    %759 = vmatprep.subr.mxu0 0.0
    %760 = vmatpush2.msra.mxu0 0.0
    %761 = vmatprep.subr.mxu0 0.0
    %762 = vmatpush2.msra.mxu0 0.0
    %763 = vmatprep.subr.mxu0 0.0
    %764 = vmatpush2.msra.mxu0 0.0
    %765 = vmatprep.subr.mxu0 0.0
    %766 = vmatpush2.msra.mxu0 0.0
    %767 = vmatprep.subr.mxu0 0.0
    %768 = vmatpush2.msra.mxu0 0.0
    %769 = vmatprep.subr.mxu0 0.0
    %770 = vmatpush2.msra.mxu0 0.0
    %771 = vmatprep.subr.mxu0 0.0
    %772 = vmatpush2.msra.mxu0 0.0
    %773 = vmatprep.subr.mxu0 0.0
    %774 = vmatpush2.msra.mxu0 0.0
    %775 = vmatprep.subr.mxu0 0.0
    %776 = vmatpush2.msra.mxu0 0.0
    %777 = vmatprep.subr.mxu0 0.0
    %778 = vmatpush2.msra.mxu0 0.0
    %779 = vmatprep.subr.mxu0 0.0
    %780 = vmatpush2.msra.mxu0 0.0
    %781 = vmatprep.mubr.f32.mxu0 0.0
    %782 = vmatmul.mubr.f32.gmra.mxu0 %v715
    %v783 = vpop.f32.mrf.mxu0
    %v784 = vadd.f32 0.0, %v783
    %v785 = vpop.f32.mrf.mxu0
    %786 = vdwg.mxu0
    %v788 = vrot.slane %v784, 6
    %v790 = vadd.f32 %v323, %v788
    %v791 = vtanh.pop %v790
    %v793 = vrot.slane %v791, 2
    %v794 = vsel %vm326, %v793, 0
    %796 = vmatprep.subr.mxu0 0.0
    %797 = vmatpush1.msra.mxu0 0.0
    %798 = vmatprep.subr.mxu0 0.0
    %799 = vmatpush1.msra.mxu0 0.0
    %800 = vmatprep.subr.mxu0 0.0
    %801 = vmatpush1.msra.mxu0 0.0
    %802 = vmatprep.subr.mxu0 0.0
    %803 = vmatpush1.msra.mxu0 0.0
    %804 = vmatprep.subr.mxu0 0.0
    %805 = vmatpush1.msra.mxu0 0.0
    %806 = vmatprep.subr.mxu0 0.0
    %807 = vmatpush1.msra.mxu0 0.0
    %808 = vmatprep.subr.mxu0 0.0
    %809 = vmatpush1.msra.mxu0 0.0
    %810 = vmatprep.subr.mxu0 0.0
    %811 = vmatpush1.msra.mxu0 0.0
    %812 = vmatprep.subr.mxu0 0.0
    %813 = vmatpush1.msra.mxu0 0.0
    %814 = vmatprep.subr.mxu0 0.0
    %815 = vmatpush1.msra.mxu0 0.0
    %816 = vmatprep.subr.mxu0 0.0
    %817 = vmatpush1.msra.mxu0 0.0
    %818 = vmatprep.subr.mxu0 0.0
    %819 = vmatpush1.msra.mxu0 0.0
    %820 = vmatprep.subr.mxu0 0.0
    %821 = vmatpush1.msra.mxu0 %v236
    %822 = vmatprep.subr.mxu0 0.0
    %823 = vmatpush1.msra.mxu0 %v235
    %824 = vmatprep.subr.mxu0 0.0
    %825 = vmatpush1.msra.mxu0 %v234
    %826 = vmatprep.subr.mxu0 0.0
    %827 = vmatpush1.msra.mxu0 %v233
    %828 = vmatprep.subr.mxu0 0.0
    %829 = vmatpush2.msra.mxu0 0.0
    %830 = vmatprep.subr.mxu0 0.0
    %831 = vmatpush2.msra.mxu0 0.0
    %832 = vmatprep.subr.mxu0 0.0
    %833 = vmatpush2.msra.mxu0 0.0
    %834 = vmatprep.subr.mxu0 0.0
    %835 = vmatpush2.msra.mxu0 0.0
    %836 = vmatprep.subr.mxu0 0.0
    %837 = vmatpush2.msra.mxu0 0.0
    %838 = vmatprep.subr.mxu0 0.0
    %839 = vmatpush2.msra.mxu0 0.0
    %840 = vmatprep.subr.mxu0 0.0
    %841 = vmatpush2.msra.mxu0 0.0
    %842 = vmatprep.subr.mxu0 0.0
    %843 = vmatpush2.msra.mxu0 0.0
    %844 = vmatprep.subr.mxu0 0.0
    %845 = vmatpush2.msra.mxu0 0.0
    %846 = vmatprep.subr.mxu0 0.0
    %847 = vmatpush2.msra.mxu0 0.0
    %848 = vmatprep.subr.mxu0 0.0
    %849 = vmatpush2.msra.mxu0 0.0
    %850 = vmatprep.subr.mxu0 0.0
    %851 = vmatpush2.msra.mxu0 0.0
    %852 = vmatprep.subr.mxu0 0.0
    %853 = vmatpush2.msra.mxu0 0.0
    %854 = vmatprep.subr.mxu0 0.0
    %855 = vmatpush2.msra.mxu0 0.0
    %856 = vmatprep.subr.mxu0 0.0
    %857 = vmatpush2.msra.mxu0 0.0
    %858 = vmatprep.subr.mxu0 0.0
    %859 = vmatpush2.msra.mxu0 0.0
    %860 = vmatprep.mubr.f32.mxu0 0.0
    %861 = vmatmul.mubr.f32.gmra.mxu0 %v794
    %v862 = vpop.f32.mrf.mxu0
    %v863 = vadd.f32 0.0, %v862
    %v864 = vpop.f32.mrf.mxu0
    %865 = vdwg.mxu0
    %v867 = vrot.slane %v863, 4
    %v869 = vadd.f32 %v323, %v867
    %v870 = vtanh.pop %v869
    %v872 = vrot.slane %v870, 4
    %v873 = vsel %vm326, %v872, 0
    %875 = vmatprep.subr.mxu0 0.0
    %876 = vmatpush1.msra.mxu0 0.0
    %877 = vmatprep.subr.mxu0 0.0
    %878 = vmatpush1.msra.mxu0 0.0
    %879 = vmatprep.subr.mxu0 0.0
    %880 = vmatpush1.msra.mxu0 0.0
    %881 = vmatprep.subr.mxu0 0.0
    %882 = vmatpush1.msra.mxu0 0.0
    %883 = vmatprep.subr.mxu0 0.0
    %884 = vmatpush1.msra.mxu0 0.0
    %885 = vmatprep.subr.mxu0 0.0
    %886 = vmatpush1.msra.mxu0 0.0
    %887 = vmatprep.subr.mxu0 0.0
    %888 = vmatpush1.msra.mxu0 0.0
    %889 = vmatprep.subr.mxu0 0.0
    %890 = vmatpush1.msra.mxu0 0.0
    %891 = vmatprep.subr.mxu0 0.0
    %892 = vmatpush1.msra.mxu0 0.0
    %893 = vmatprep.subr.mxu0 0.0
    %894 = vmatpush1.msra.mxu0 0.0
    %895 = vmatprep.subr.mxu0 0.0
    %896 = vmatpush1.msra.mxu0 0.0
    %897 = vmatprep.subr.mxu0 0.0
    %898 = vmatpush1.msra.mxu0 0.0
    %899 = vmatprep.subr.mxu0 0.0
    %900 = vmatpush1.msra.mxu0 %v236
    %901 = vmatprep.subr.mxu0 0.0
    %902 = vmatpush1.msra.mxu0 %v235
    %903 = vmatprep.subr.mxu0 0.0
    %904 = vmatpush1.msra.mxu0 %v234
    %905 = vmatprep.subr.mxu0 0.0
    %906 = vmatpush1.msra.mxu0 %v233
    %907 = vmatprep.subr.mxu0 0.0
    %908 = vmatpush2.msra.mxu0 0.0
    %909 = vmatprep.subr.mxu0 0.0
    %910 = vmatpush2.msra.mxu0 0.0
    %911 = vmatprep.subr.mxu0 0.0
    %912 = vmatpush2.msra.mxu0 0.0
    %913 = vmatprep.subr.mxu0 0.0
    %914 = vmatpush2.msra.mxu0 0.0
    %915 = vmatprep.subr.mxu0 0.0
    %916 = vmatpush2.msra.mxu0 0.0
    %917 = vmatprep.subr.mxu0 0.0
    %918 = vmatpush2.msra.mxu0 0.0
    %919 = vmatprep.subr.mxu0 0.0
    %920 = vmatpush2.msra.mxu0 0.0
    %921 = vmatprep.subr.mxu0 0.0
    %922 = vmatpush2.msra.mxu0 0.0
    %923 = vmatprep.subr.mxu0 0.0
    %924 = vmatpush2.msra.mxu0 0.0
    %925 = vmatprep.subr.mxu0 0.0
    %926 = vmatpush2.msra.mxu0 0.0
    %927 = vmatprep.subr.mxu0 0.0
    %928 = vmatpush2.msra.mxu0 0.0
    %929 = vmatprep.subr.mxu0 0.0
    %930 = vmatpush2.msra.mxu0 0.0
    %931 = vmatprep.subr.mxu0 0.0
    %932 = vmatpush2.msra.mxu0 0.0
    %933 = vmatprep.subr.mxu0 0.0
    %934 = vmatpush2.msra.mxu0 0.0
    %935 = vmatprep.subr.mxu0 0.0
    %936 = vmatpush2.msra.mxu0 0.0
    %937 = vmatprep.subr.mxu0 0.0
    %938 = vmatpush2.msra.mxu0 0.0
    %939 = vmatprep.mubr.f32.mxu0 0.0
    %940 = vmatmul.mubr.f32.gmra.mxu0 %v873
    %v941 = vpop.f32.mrf.mxu0
    %v942 = vadd.f32 0.0, %v941
    %v943 = vpop.f32.mrf.mxu0
    %944 = vdwg.mxu0
    %v946 = vrot.slane %v942, 2
    %v948 = vadd.f32 %v323, %v946
    %v949 = vtanh.pop %v948
    %vm950 = vcmask 261126
    %951 = vst.msk [vmem:[#allocation10 - $0x6] sm:$0xc0] %vm950, %v949
    %v952 = vsel %vm124, %v401, %v479
    %vm953 = vcmask 1043456
    %v954 = vsel %vm953, %v952, %v558
    %vm955 = vcmask 1045504
    %v956 = vsel %vm955, %v954, %v637
    %v957 = vsel %vm124, %v713, %v791
    %v958 = vsel %vm953, %v957, %v870
    %v959 = vsel %vm955, %v958, %v949
    %v960 = vld [vmem:[#allocation7] sm:$0xff]
    %v961 = vld [vmem:[#allocation7 + $0x8] sm:$0xff]
    %v962 = vld [vmem:[#allocation7 + $0x10] sm:$0xff]
    %v963 = vld [vmem:[#allocation7 + $0x18] sm:$0xff]
    %v964 = vld [vmem:[#allocation8] sm:$0xff]
    %v965 = vld [vmem:[#allocation8 + $0x8] sm:$0xff]
    %v966 = vld [vmem:[#allocation8 + $0x10] sm:$0xff]
    %v967 = vld [vmem:[#allocation8 + $0x18] sm:$0xff]
    %v968 = vld [vmem:[%s7] sm:$0x1]
    %v970 = vlaneseq
    %v971 = vshrl.u32 %v970, 7
    %v972 = vsub.s32 0, %v971
    %v973 = vrot.slane %v968, %v972
    %v976 = vsel %vm326, %v956, 0
    %v979 = vsel %vm326, %v959, 0
    %981 = vmatprep.subr.mxu0 0.0
    %982 = vmatpush1.msra.mxu0 0.0
    %983 = vmatprep.subr.mxu0 0.0
    %984 = vmatpush1.msra.mxu0 0.0
    %985 = vmatprep.subr.mxu0 0.0
    %986 = vmatpush1.msra.mxu0 0.0
    %987 = vmatprep.subr.mxu0 0.0
    %988 = vmatpush1.msra.mxu0 0.0
    %989 = vmatprep.subr.mxu0 0.0
    %990 = vmatpush1.msra.mxu0 0.0
    %991 = vmatprep.subr.mxu0 0.0
    %992 = vmatpush1.msra.mxu0 0.0
    %993 = vmatprep.subr.mxu0 0.0
    %994 = vmatpush1.msra.mxu0 0.0
    %995 = vmatprep.subr.mxu0 0.0
    %996 = vmatpush1.msra.mxu0 0.0
    %997 = vmatprep.subr.mxu0 0.0
    %998 = vmatpush1.msra.mxu0 0.0
    %999 = vmatprep.subr.mxu0 0.0
    %1000 = vmatpush1.msra.mxu0 0.0
    %1001 = vmatprep.subr.mxu0 0.0
    %1002 = vmatpush1.msra.mxu0 0.0
    %1003 = vmatprep.subr.mxu0 0.0
    %1004 = vmatpush1.msra.mxu0 0.0
    %1005 = vmatprep.subr.mxu0 0.0
    %1006 = vmatpush1.msra.mxu0 %v963
    %1007 = vmatprep.subr.mxu0 0.0
    %1008 = vmatpush1.msra.mxu0 %v962
    %1009 = vmatprep.subr.mxu0 0.0
    %1010 = vmatpush1.msra.mxu0 %v961
    %1011 = vmatprep.subr.mxu0 0.0
    %1012 = vmatpush1.msra.mxu0 %v960
    %1013 = vmatprep.subr.mxu0 0.0
    %1014 = vmatpush2.msra.mxu0 0.0
    %1015 = vmatprep.subr.mxu0 0.0
    %1016 = vmatpush2.msra.mxu0 0.0
    %1017 = vmatprep.subr.mxu0 0.0
    %1018 = vmatpush2.msra.mxu0 0.0
    %1019 = vmatprep.subr.mxu0 0.0
    %1020 = vmatpush2.msra.mxu0 0.0
    %1021 = vmatprep.subr.mxu0 0.0
    %1022 = vmatpush2.msra.mxu0 0.0
    %1023 = vmatprep.subr.mxu0 0.0
    %1024 = vmatpush2.msra.mxu0 0.0
    %1025 = vmatprep.subr.mxu0 0.0
    %1026 = vmatpush2.msra.mxu0 0.0
    %1027 = vmatprep.subr.mxu0 0.0
    %1028 = vmatpush2.msra.mxu0 0.0
    %1029 = vmatprep.subr.mxu0 0.0
    %1030 = vmatpush2.msra.mxu0 0.0
    %1031 = vmatprep.subr.mxu0 0.0
    %1032 = vmatpush2.msra.mxu0 0.0
    %1033 = vmatprep.subr.mxu0 0.0
    %1034 = vmatpush2.msra.mxu0 0.0
    %1035 = vmatprep.subr.mxu0 0.0
    %1036 = vmatpush2.msra.mxu0 0.0
    %1037 = vmatprep.subr.mxu0 0.0
    %1038 = vmatpush2.msra.mxu0 0.0
    %1039 = vmatprep.subr.mxu0 0.0
    %1040 = vmatpush2.msra.mxu0 0.0
    %1041 = vmatprep.subr.mxu0 0.0
    %1042 = vmatpush2.msra.mxu0 0.0
    %1043 = vmatprep.subr.mxu0 0.0
    %1044 = vmatpush2.msra.mxu0 0.0
    %1045 = vmatprep.mubr.f32.mxu0 0.0
    %1046 = vmatmul.mubr.f32.gmra.mxu0 %v976
    %v1047 = vpop.f32.mrf.mxu0
    %v1048 = vadd.f32 %v973, %v1047
    %v1049 = vpop.f32.mrf.mxu0
    %1050 = vmatprep.mubr.f32.mxu0 0.0
    %1051 = vmatmul.mubr.f32.gmra.mxu0 %v979
    %v1052 = vpop.f32.mrf.mxu0
    %v1053 = vadd.f32 %v973, %v1052
    %v1054 = vpop.f32.mrf.mxu0
    %1055 = vdwg.mxu0
    %1056 = vmatprep.subr.mxu0 0.0
    %1057 = vmatpush1.msra.mxu0 0.0
    %1058 = vmatprep.subr.mxu0 0.0
    %1059 = vmatpush1.msra.mxu0 0.0
    %1060 = vmatprep.subr.mxu0 0.0
    %1061 = vmatpush1.msra.mxu0 0.0
    %1062 = vmatprep.subr.mxu0 0.0
    %1063 = vmatpush1.msra.mxu0 0.0
    %1064 = vmatprep.subr.mxu0 0.0
    %1065 = vmatpush1.msra.mxu0 0.0
    %1066 = vmatprep.subr.mxu0 0.0
    %1067 = vmatpush1.msra.mxu0 0.0
    %1068 = vmatprep.subr.mxu0 0.0
    %1069 = vmatpush1.msra.mxu0 0.0
    %1070 = vmatprep.subr.mxu0 0.0
    %1071 = vmatpush1.msra.mxu0 0.0
    %1072 = vmatprep.subr.mxu0 0.0
    %1073 = vmatpush1.msra.mxu0 0.0
    %1074 = vmatprep.subr.mxu0 0.0
    %1075 = vmatpush1.msra.mxu0 0.0
    %1076 = vmatprep.subr.mxu0 0.0
    %1077 = vmatpush1.msra.mxu0 0.0
    %1078 = vmatprep.subr.mxu0 0.0
    %1079 = vmatpush1.msra.mxu0 0.0
    %1080 = vmatprep.subr.mxu0 0.0
    %1081 = vmatpush1.msra.mxu0 %v967
    %1082 = vmatprep.subr.mxu0 0.0
    %1083 = vmatpush1.msra.mxu0 %v966
    %1084 = vmatprep.subr.mxu0 0.0
    %1085 = vmatpush1.msra.mxu0 %v965
    %1086 = vmatprep.subr.mxu0 0.0
    %1087 = vmatpush1.msra.mxu0 %v964
    %1088 = vmatprep.subr.mxu0 0.0
    %1089 = vmatpush2.msra.mxu0 0.0
    %1090 = vmatprep.subr.mxu0 0.0
    %1091 = vmatpush2.msra.mxu0 0.0
    %1092 = vmatprep.subr.mxu0 0.0
    %1093 = vmatpush2.msra.mxu0 0.0
    %1094 = vmatprep.subr.mxu0 0.0
    %1095 = vmatpush2.msra.mxu0 0.0
    %1096 = vmatprep.subr.mxu0 0.0
    %1097 = vmatpush2.msra.mxu0 0.0
    %1098 = vmatprep.subr.mxu0 0.0
    %1099 = vmatpush2.msra.mxu0 0.0
    %1100 = vmatprep.subr.mxu0 0.0
    %1101 = vmatpush2.msra.mxu0 0.0
    %1102 = vmatprep.subr.mxu0 0.0
    %1103 = vmatpush2.msra.mxu0 0.0
    %1104 = vmatprep.subr.mxu0 0.0
    %1105 = vmatpush2.msra.mxu0 0.0
    %1106 = vmatprep.subr.mxu0 0.0
    %1107 = vmatpush2.msra.mxu0 0.0
    %1108 = vmatprep.subr.mxu0 0.0
    %1109 = vmatpush2.msra.mxu0 0.0
    %1110 = vmatprep.subr.mxu0 0.0
    %1111 = vmatpush2.msra.mxu0 0.0
    %1112 = vmatprep.subr.mxu0 0.0
    %1113 = vmatpush2.msra.mxu0 0.0
    %1114 = vmatprep.subr.mxu0 0.0
    %1115 = vmatpush2.msra.mxu0 0.0
    %1116 = vmatprep.subr.mxu0 0.0
    %1117 = vmatpush2.msra.mxu0 0.0
    %1118 = vmatprep.subr.mxu0 0.0
    %1119 = vmatpush2.msra.mxu0 0.0
    %1120 = vmatprep.mubr.f32.mxu0 0.0
    %1121 = vmatmul.mubr.f32.gmra.mxu0 %v328
    %v1122 = vpop.f32.mrf.mxu0
    %v1123 = vadd.f32 0.0, %v1122
    %v1124 = vpop.f32.mrf.mxu0
    %1125 = vdwg.mxu0
    %v1126 = vadd.f32 %v1048, %v1123
    %v1127 = vtanh.pop %v1126
    %vm1128 = vcmask 254976
    %1129 = vst.msk [vmem:[%s8] sm:$0x3] %vm1128, %v1127
    %v1131 = vsel %vm326, %v1127, 0
    %1133 = vmatprep.subr.mxu0 0.0
    %1134 = vmatpush1.msra.mxu0 0.0
    %1135 = vmatprep.subr.mxu0 0.0
    %1136 = vmatpush1.msra.mxu0 0.0
    %1137 = vmatprep.subr.mxu0 0.0
    %1138 = vmatpush1.msra.mxu0 0.0
    %1139 = vmatprep.subr.mxu0 0.0
    %1140 = vmatpush1.msra.mxu0 0.0
    %1141 = vmatprep.subr.mxu0 0.0
    %1142 = vmatpush1.msra.mxu0 0.0
    %1143 = vmatprep.subr.mxu0 0.0
    %1144 = vmatpush1.msra.mxu0 0.0
    %1145 = vmatprep.subr.mxu0 0.0
    %1146 = vmatpush1.msra.mxu0 0.0
    %1147 = vmatprep.subr.mxu0 0.0
    %1148 = vmatpush1.msra.mxu0 0.0
    %1149 = vmatprep.subr.mxu0 0.0
    %1150 = vmatpush1.msra.mxu0 0.0
    %1151 = vmatprep.subr.mxu0 0.0
    %1152 = vmatpush1.msra.mxu0 0.0
    %1153 = vmatprep.subr.mxu0 0.0
    %1154 = vmatpush1.msra.mxu0 0.0
    %1155 = vmatprep.subr.mxu0 0.0
    %1156 = vmatpush1.msra.mxu0 0.0
    %1157 = vmatprep.subr.mxu0 0.0
    %1158 = vmatpush1.msra.mxu0 %v967
    %1159 = vmatprep.subr.mxu0 0.0
    %1160 = vmatpush1.msra.mxu0 %v966
    %1161 = vmatprep.subr.mxu0 0.0
    %1162 = vmatpush1.msra.mxu0 %v965
    %1163 = vmatprep.subr.mxu0 0.0
    %1164 = vmatpush1.msra.mxu0 %v964
    %1165 = vmatprep.subr.mxu0 0.0
    %1166 = vmatpush2.msra.mxu0 0.0
    %1167 = vmatprep.subr.mxu0 0.0
    %1168 = vmatpush2.msra.mxu0 0.0
    %1169 = vmatprep.subr.mxu0 0.0
    %1170 = vmatpush2.msra.mxu0 0.0
    %1171 = vmatprep.subr.mxu0 0.0
    %1172 = vmatpush2.msra.mxu0 0.0
    %1173 = vmatprep.subr.mxu0 0.0
    %1174 = vmatpush2.msra.mxu0 0.0
    %1175 = vmatprep.subr.mxu0 0.0
    %1176 = vmatpush2.msra.mxu0 0.0
    %1177 = vmatprep.subr.mxu0 0.0
    %1178 = vmatpush2.msra.mxu0 0.0
    %1179 = vmatprep.subr.mxu0 0.0
    %1180 = vmatpush2.msra.mxu0 0.0
    %1181 = vmatprep.subr.mxu0 0.0
    %1182 = vmatpush2.msra.mxu0 0.0
    %1183 = vmatprep.subr.mxu0 0.0
    %1184 = vmatpush2.msra.mxu0 0.0
    %1185 = vmatprep.subr.mxu0 0.0
    %1186 = vmatpush2.msra.mxu0 0.0
    %1187 = vmatprep.subr.mxu0 0.0
    %1188 = vmatpush2.msra.mxu0 0.0
    %1189 = vmatprep.subr.mxu0 0.0
    %1190 = vmatpush2.msra.mxu0 0.0
    %1191 = vmatprep.subr.mxu0 0.0
    %1192 = vmatpush2.msra.mxu0 0.0
    %1193 = vmatprep.subr.mxu0 0.0
    %1194 = vmatpush2.msra.mxu0 0.0
    %1195 = vmatprep.subr.mxu0 0.0
    %1196 = vmatpush2.msra.mxu0 0.0
    %1197 = vmatprep.mubr.f32.mxu0 0.0
    %1198 = vmatmul.mubr.f32.gmra.mxu0 %v1131
    %v1199 = vpop.f32.mrf.mxu0
    %v1200 = vadd.f32 0.0, %v1199
    %v1201 = vpop.f32.mrf.mxu0
    %1202 = vdwg.mxu0
    %v1204 = vrot.slane %v1200, 6
    %v1206 = vadd.f32 %v1048, %v1204
    %v1207 = vtanh.pop %v1206
    %s1208 = scalar_lea.vmem %s8, 2
    %vm1209 = vcmask 257026
    %1210 = vst.msk [vmem:[%s1208 - $0x2] sm:$0xc] %vm1209, %v1207
    %v1212 = vrot.slane %v1207, 2
    %v1213 = vsel %vm326, %v1212, 0
    %1215 = vmatprep.subr.mxu0 0.0
    %1216 = vmatpush1.msra.mxu0 0.0
    %1217 = vmatprep.subr.mxu0 0.0
    %1218 = vmatpush1.msra.mxu0 0.0
    %1219 = vmatprep.subr.mxu0 0.0
    %1220 = vmatpush1.msra.mxu0 0.0
    %1221 = vmatprep.subr.mxu0 0.0
    %1222 = vmatpush1.msra.mxu0 0.0
    %1223 = vmatprep.subr.mxu0 0.0
    %1224 = vmatpush1.msra.mxu0 0.0
    %1225 = vmatprep.subr.mxu0 0.0
    %1226 = vmatpush1.msra.mxu0 0.0
    %1227 = vmatprep.subr.mxu0 0.0
    %1228 = vmatpush1.msra.mxu0 0.0
    %1229 = vmatprep.subr.mxu0 0.0
    %1230 = vmatpush1.msra.mxu0 0.0
    %1231 = vmatprep.subr.mxu0 0.0
    %1232 = vmatpush1.msra.mxu0 0.0
    %1233 = vmatprep.subr.mxu0 0.0
    %1234 = vmatpush1.msra.mxu0 0.0
    %1235 = vmatprep.subr.mxu0 0.0
    %1236 = vmatpush1.msra.mxu0 0.0
    %1237 = vmatprep.subr.mxu0 0.0
    %1238 = vmatpush1.msra.mxu0 0.0
    %1239 = vmatprep.subr.mxu0 0.0
    %1240 = vmatpush1.msra.mxu0 %v967
    %1241 = vmatprep.subr.mxu0 0.0
    %1242 = vmatpush1.msra.mxu0 %v966
    %1243 = vmatprep.subr.mxu0 0.0
    %1244 = vmatpush1.msra.mxu0 %v965
    %1245 = vmatprep.subr.mxu0 0.0
    %1246 = vmatpush1.msra.mxu0 %v964
    %1247 = vmatprep.subr.mxu0 0.0
    %1248 = vmatpush2.msra.mxu0 0.0
    %1249 = vmatprep.subr.mxu0 0.0
    %1250 = vmatpush2.msra.mxu0 0.0
    %1251 = vmatprep.subr.mxu0 0.0
    %1252 = vmatpush2.msra.mxu0 0.0
    %1253 = vmatprep.subr.mxu0 0.0
    %1254 = vmatpush2.msra.mxu0 0.0
    %1255 = vmatprep.subr.mxu0 0.0
    %1256 = vmatpush2.msra.mxu0 0.0
    %1257 = vmatprep.subr.mxu0 0.0
    %1258 = vmatpush2.msra.mxu0 0.0
    %1259 = vmatprep.subr.mxu0 0.0
    %1260 = vmatpush2.msra.mxu0 0.0
    %1261 = vmatprep.subr.mxu0 0.0
    %1262 = vmatpush2.msra.mxu0 0.0
    %1263 = vmatprep.subr.mxu0 0.0
    %1264 = vmatpush2.msra.mxu0 0.0
    %1265 = vmatprep.subr.mxu0 0.0
    %1266 = vmatpush2.msra.mxu0 0.0
    %1267 = vmatprep.subr.mxu0 0.0
    %1268 = vmatpush2.msra.mxu0 0.0
    %1269 = vmatprep.subr.mxu0 0.0
    %1270 = vmatpush2.msra.mxu0 0.0
    %1271 = vmatprep.subr.mxu0 0.0
    %1272 = vmatpush2.msra.mxu0 0.0
    %1273 = vmatprep.subr.mxu0 0.0
    %1274 = vmatpush2.msra.mxu0 0.0
    %1275 = vmatprep.subr.mxu0 0.0
    %1276 = vmatpush2.msra.mxu0 0.0
    %1277 = vmatprep.subr.mxu0 0.0
    %1278 = vmatpush2.msra.mxu0 0.0
    %1279 = vmatprep.mubr.f32.mxu0 0.0
    %1280 = vmatmul.mubr.f32.gmra.mxu0 %v1213
    %v1281 = vpop.f32.mrf.mxu0
    %v1282 = vadd.f32 0.0, %v1281
    %v1283 = vpop.f32.mrf.mxu0
    %1284 = vdwg.mxu0
    %v1286 = vrot.slane %v1282, 4
    %v1288 = vadd.f32 %v1048, %v1286
    %v1289 = vtanh.pop %v1288
    %s1290 = scalar_lea.vmem %s8, 4
    %vm1291 = vcmask 259076
    %1292 = vst.msk [vmem:[%s1290 - $0x4] sm:$0x30] %vm1291, %v1289
    %v1294 = vrot.slane %v1289, 4
    %v1295 = vsel %vm326, %v1294, 0
    %1297 = vmatprep.subr.mxu0 0.0
    %1298 = vmatpush1.msra.mxu0 0.0
    %1299 = vmatprep.subr.mxu0 0.0
    %1300 = vmatpush1.msra.mxu0 0.0
    %1301 = vmatprep.subr.mxu0 0.0
    %1302 = vmatpush1.msra.mxu0 0.0
    %1303 = vmatprep.subr.mxu0 0.0
    %1304 = vmatpush1.msra.mxu0 0.0
    %1305 = vmatprep.subr.mxu0 0.0
    %1306 = vmatpush1.msra.mxu0 0.0
    %1307 = vmatprep.subr.mxu0 0.0
    %1308 = vmatpush1.msra.mxu0 0.0
    %1309 = vmatprep.subr.mxu0 0.0
    %1310 = vmatpush1.msra.mxu0 0.0
    %1311 = vmatprep.subr.mxu0 0.0
    %1312 = vmatpush1.msra.mxu0 0.0
    %1313 = vmatprep.subr.mxu0 0.0
    %1314 = vmatpush1.msra.mxu0 0.0
    %1315 = vmatprep.subr.mxu0 0.0
    %1316 = vmatpush1.msra.mxu0 0.0
    %1317 = vmatprep.subr.mxu0 0.0
    %1318 = vmatpush1.msra.mxu0 0.0
    %1319 = vmatprep.subr.mxu0 0.0
    %1320 = vmatpush1.msra.mxu0 0.0
    %1321 = vmatprep.subr.mxu0 0.0
    %1322 = vmatpush1.msra.mxu0 %v967
    %1323 = vmatprep.subr.mxu0 0.0
    %1324 = vmatpush1.msra.mxu0 %v966
    %1325 = vmatprep.subr.mxu0 0.0
    %1326 = vmatpush1.msra.mxu0 %v965
    %1327 = vmatprep.subr.mxu0 0.0
    %1328 = vmatpush1.msra.mxu0 %v964
    %1329 = vmatprep.subr.mxu0 0.0
    %1330 = vmatpush2.msra.mxu0 0.0
    %1331 = vmatprep.subr.mxu0 0.0
    %1332 = vmatpush2.msra.mxu0 0.0
    %1333 = vmatprep.subr.mxu0 0.0
    %1334 = vmatpush2.msra.mxu0 0.0
    %1335 = vmatprep.subr.mxu0 0.0
    %1336 = vmatpush2.msra.mxu0 0.0
    %1337 = vmatprep.subr.mxu0 0.0
    %1338 = vmatpush2.msra.mxu0 0.0
    %1339 = vmatprep.subr.mxu0 0.0
    %1340 = vmatpush2.msra.mxu0 0.0
    %1341 = vmatprep.subr.mxu0 0.0
    %1342 = vmatpush2.msra.mxu0 0.0
    %1343 = vmatprep.subr.mxu0 0.0
    %1344 = vmatpush2.msra.mxu0 0.0
    %1345 = vmatprep.subr.mxu0 0.0
    %1346 = vmatpush2.msra.mxu0 0.0
    %1347 = vmatprep.subr.mxu0 0.0
    %1348 = vmatpush2.msra.mxu0 0.0
    %1349 = vmatprep.subr.mxu0 0.0
    %1350 = vmatpush2.msra.mxu0 0.0
    %1351 = vmatprep.subr.mxu0 0.0
    %1352 = vmatpush2.msra.mxu0 0.0
    %1353 = vmatprep.subr.mxu0 0.0
    %1354 = vmatpush2.msra.mxu0 0.0
    %1355 = vmatprep.subr.mxu0 0.0
    %1356 = vmatpush2.msra.mxu0 0.0
    %1357 = vmatprep.subr.mxu0 0.0
    %1358 = vmatpush2.msra.mxu0 0.0
    %1359 = vmatprep.subr.mxu0 0.0
    %1360 = vmatpush2.msra.mxu0 0.0
    %1361 = vmatprep.mubr.f32.mxu0 0.0
    %1362 = vmatmul.mubr.f32.gmra.mxu0 %v1295
    %v1363 = vpop.f32.mrf.mxu0
    %v1364 = vadd.f32 0.0, %v1363
    %v1365 = vpop.f32.mrf.mxu0
    %1366 = vdwg.mxu0
    %v1368 = vrot.slane %v1364, 2
    %v1370 = vadd.f32 %v1048, %v1368
    %v1371 = vtanh.pop %v1370
    %s1372 = scalar_lea.vmem %s8, 6
    %1373 = vst.msk [vmem:[%s1372 - $0x6] sm:$0xc0] %vm950, %v1371
    %v1375 = vrot.slane %v1371, 6
    %v1376 = vsel %vm326, %v1375, 0
    %1378 = vmatprep.subr.mxu0 0.0
    %1379 = vmatpush1.msra.mxu0 0.0
    %1380 = vmatprep.subr.mxu0 0.0
    %1381 = vmatpush1.msra.mxu0 0.0
    %1382 = vmatprep.subr.mxu0 0.0
    %1383 = vmatpush1.msra.mxu0 0.0
    %1384 = vmatprep.subr.mxu0 0.0
    %1385 = vmatpush1.msra.mxu0 0.0
    %1386 = vmatprep.subr.mxu0 0.0
    %1387 = vmatpush1.msra.mxu0 0.0
    %1388 = vmatprep.subr.mxu0 0.0
    %1389 = vmatpush1.msra.mxu0 0.0
    %1390 = vmatprep.subr.mxu0 0.0
    %1391 = vmatpush1.msra.mxu0 0.0
    %1392 = vmatprep.subr.mxu0 0.0
    %1393 = vmatpush1.msra.mxu0 0.0
    %1394 = vmatprep.subr.mxu0 0.0
    %1395 = vmatpush1.msra.mxu0 0.0
    %1396 = vmatprep.subr.mxu0 0.0
    %1397 = vmatpush1.msra.mxu0 0.0
    %1398 = vmatprep.subr.mxu0 0.0
    %1399 = vmatpush1.msra.mxu0 0.0
    %1400 = vmatprep.subr.mxu0 0.0
    %1401 = vmatpush1.msra.mxu0 0.0
    %1402 = vmatprep.subr.mxu0 0.0
    %1403 = vmatpush1.msra.mxu0 %v967
    %1404 = vmatprep.subr.mxu0 0.0
    %1405 = vmatpush1.msra.mxu0 %v966
    %1406 = vmatprep.subr.mxu0 0.0
    %1407 = vmatpush1.msra.mxu0 %v965
    %1408 = vmatprep.subr.mxu0 0.0
    %1409 = vmatpush1.msra.mxu0 %v964
    %1410 = vmatprep.subr.mxu0 0.0
    %1411 = vmatpush2.msra.mxu0 0.0
    %1412 = vmatprep.subr.mxu0 0.0
    %1413 = vmatpush2.msra.mxu0 0.0
    %1414 = vmatprep.subr.mxu0 0.0
    %1415 = vmatpush2.msra.mxu0 0.0
    %1416 = vmatprep.subr.mxu0 0.0
    %1417 = vmatpush2.msra.mxu0 0.0
    %1418 = vmatprep.subr.mxu0 0.0
    %1419 = vmatpush2.msra.mxu0 0.0
    %1420 = vmatprep.subr.mxu0 0.0
    %1421 = vmatpush2.msra.mxu0 0.0
    %1422 = vmatprep.subr.mxu0 0.0
    %1423 = vmatpush2.msra.mxu0 0.0
    %1424 = vmatprep.subr.mxu0 0.0
    %1425 = vmatpush2.msra.mxu0 0.0
    %1426 = vmatprep.subr.mxu0 0.0
    %1427 = vmatpush2.msra.mxu0 0.0
    %1428 = vmatprep.subr.mxu0 0.0
    %1429 = vmatpush2.msra.mxu0 0.0
    %1430 = vmatprep.subr.mxu0 0.0
    %1431 = vmatpush2.msra.mxu0 0.0
    %1432 = vmatprep.subr.mxu0 0.0
    %1433 = vmatpush2.msra.mxu0 0.0
    %1434 = vmatprep.subr.mxu0 0.0
    %1435 = vmatpush2.msra.mxu0 0.0
    %1436 = vmatprep.subr.mxu0 0.0
    %1437 = vmatpush2.msra.mxu0 0.0
    %1438 = vmatprep.subr.mxu0 0.0
    %1439 = vmatpush2.msra.mxu0 0.0
    %1440 = vmatprep.subr.mxu0 0.0
    %1441 = vmatpush2.msra.mxu0 0.0
    %1442 = vmatprep.mubr.f32.mxu0 0.0
    %1443 = vmatmul.mubr.f32.gmra.mxu0 %v1376
    %v1444 = vpop.f32.mrf.mxu0
    %v1445 = vadd.f32 0.0, %v1444
    %v1446 = vpop.f32.mrf.mxu0
    %1447 = vdwg.mxu0
    %v1448 = vadd.f32 %v1053, %v1445
    %v1449 = vtanh.pop %v1448
    %s1450 = scalar_lea.vmem %s8, 8
    %1451 = vst.msk [vmem:[%s1450] sm:$0x3] %vm1128, %v1449
    %v1453 = vsel %vm326, %v1449, 0
    %1455 = vmatprep.subr.mxu0 0.0
    %1456 = vmatpush1.msra.mxu0 0.0
    %1457 = vmatprep.subr.mxu0 0.0
    %1458 = vmatpush1.msra.mxu0 0.0
    %1459 = vmatprep.subr.mxu0 0.0
    %1460 = vmatpush1.msra.mxu0 0.0
    %1461 = vmatprep.subr.mxu0 0.0
    %1462 = vmatpush1.msra.mxu0 0.0
    %1463 = vmatprep.subr.mxu0 0.0
    %1464 = vmatpush1.msra.mxu0 0.0
    %1465 = vmatprep.subr.mxu0 0.0
    %1466 = vmatpush1.msra.mxu0 0.0
    %1467 = vmatprep.subr.mxu0 0.0
    %1468 = vmatpush1.msra.mxu0 0.0
    %1469 = vmatprep.subr.mxu0 0.0
    %1470 = vmatpush1.msra.mxu0 0.0
    %1471 = vmatprep.subr.mxu0 0.0
    %1472 = vmatpush1.msra.mxu0 0.0
    %1473 = vmatprep.subr.mxu0 0.0
    %1474 = vmatpush1.msra.mxu0 0.0
    %1475 = vmatprep.subr.mxu0 0.0
    %1476 = vmatpush1.msra.mxu0 0.0
    %1477 = vmatprep.subr.mxu0 0.0
    %1478 = vmatpush1.msra.mxu0 0.0
    %1479 = vmatprep.subr.mxu0 0.0
    %1480 = vmatpush1.msra.mxu0 %v967
    %1481 = vmatprep.subr.mxu0 0.0
    %1482 = vmatpush1.msra.mxu0 %v966
    %1483 = vmatprep.subr.mxu0 0.0
    %1484 = vmatpush1.msra.mxu0 %v965
    %1485 = vmatprep.subr.mxu0 0.0
    %1486 = vmatpush1.msra.mxu0 %v964
    %1487 = vmatprep.subr.mxu0 0.0
    %1488 = vmatpush2.msra.mxu0 0.0
    %1489 = vmatprep.subr.mxu0 0.0
    %1490 = vmatpush2.msra.mxu0 0.0
    %1491 = vmatprep.subr.mxu0 0.0
    %1492 = vmatpush2.msra.mxu0 0.0
    %1493 = vmatprep.subr.mxu0 0.0
    %1494 = vmatpush2.msra.mxu0 0.0
    %1495 = vmatprep.subr.mxu0 0.0
    %1496 = vmatpush2.msra.mxu0 0.0
    %1497 = vmatprep.subr.mxu0 0.0
    %1498 = vmatpush2.msra.mxu0 0.0
    %1499 = vmatprep.subr.mxu0 0.0
    %1500 = vmatpush2.msra.mxu0 0.0
    %1501 = vmatprep.subr.mxu0 0.0
    %1502 = vmatpush2.msra.mxu0 0.0
    %1503 = vmatprep.subr.mxu0 0.0
    %1504 = vmatpush2.msra.mxu0 0.0
    %1505 = vmatprep.subr.mxu0 0.0
    %1506 = vmatpush2.msra.mxu0 0.0
    %1507 = vmatprep.subr.mxu0 0.0
    %1508 = vmatpush2.msra.mxu0 0.0
    %1509 = vmatprep.subr.mxu0 0.0
    %1510 = vmatpush2.msra.mxu0 0.0
    %1511 = vmatprep.subr.mxu0 0.0
    %1512 = vmatpush2.msra.mxu0 0.0
    %1513 = vmatprep.subr.mxu0 0.0
    %1514 = vmatpush2.msra.mxu0 0.0
    %1515 = vmatprep.subr.mxu0 0.0
    %1516 = vmatpush2.msra.mxu0 0.0
    %1517 = vmatprep.subr.mxu0 0.0
    %1518 = vmatpush2.msra.mxu0 0.0
    %1519 = vmatprep.mubr.f32.mxu0 0.0
    %1520 = vmatmul.mubr.f32.gmra.mxu0 %v1453
    %v1521 = vpop.f32.mrf.mxu0
    %v1522 = vadd.f32 0.0, %v1521
    %v1523 = vpop.f32.mrf.mxu0
    %1524 = vdwg.mxu0
    %v1526 = vrot.slane %v1522, 6
    %v1528 = vadd.f32 %v1053, %v1526
    %v1529 = vtanh.pop %v1528
    %s1530 = scalar_lea.vmem %s8, 10
    %1531 = vst.msk [vmem:[%s1530 - $0x2] sm:$0xc] %vm1209, %v1529
    %v1533 = vrot.slane %v1529, 2
    %v1534 = vsel %vm326, %v1533, 0
    %1536 = vmatprep.subr.mxu0 0.0
    %1537 = vmatpush1.msra.mxu0 0.0
    %1538 = vmatprep.subr.mxu0 0.0
    %1539 = vmatpush1.msra.mxu0 0.0
    %1540 = vmatprep.subr.mxu0 0.0
    %1541 = vmatpush1.msra.mxu0 0.0
    %1542 = vmatprep.subr.mxu0 0.0
    %1543 = vmatpush1.msra.mxu0 0.0
    %1544 = vmatprep.subr.mxu0 0.0
    %1545 = vmatpush1.msra.mxu0 0.0
    %1546 = vmatprep.subr.mxu0 0.0
    %1547 = vmatpush1.msra.mxu0 0.0
    %1548 = vmatprep.subr.mxu0 0.0
    %1549 = vmatpush1.msra.mxu0 0.0
    %1550 = vmatprep.subr.mxu0 0.0
    %1551 = vmatpush1.msra.mxu0 0.0
    %1552 = vmatprep.subr.mxu0 0.0
    %1553 = vmatpush1.msra.mxu0 0.0
    %1554 = vmatprep.subr.mxu0 0.0
    %1555 = vmatpush1.msra.mxu0 0.0
    %1556 = vmatprep.subr.mxu0 0.0
    %1557 = vmatpush1.msra.mxu0 0.0
    %1558 = vmatprep.subr.mxu0 0.0
    %1559 = vmatpush1.msra.mxu0 0.0
    %1560 = vmatprep.subr.mxu0 0.0
    %1561 = vmatpush1.msra.mxu0 %v967
    %1562 = vmatprep.subr.mxu0 0.0
    %1563 = vmatpush1.msra.mxu0 %v966
    %1564 = vmatprep.subr.mxu0 0.0
    %1565 = vmatpush1.msra.mxu0 %v965
    %1566 = vmatprep.subr.mxu0 0.0
    %1567 = vmatpush1.msra.mxu0 %v964
    %1568 = vmatprep.subr.mxu0 0.0
    %1569 = vmatpush2.msra.mxu0 0.0
    %1570 = vmatprep.subr.mxu0 0.0
    %1571 = vmatpush2.msra.mxu0 0.0
    %1572 = vmatprep.subr.mxu0 0.0
    %1573 = vmatpush2.msra.mxu0 0.0
    %1574 = vmatprep.subr.mxu0 0.0
    %1575 = vmatpush2.msra.mxu0 0.0
    %1576 = vmatprep.subr.mxu0 0.0
    %1577 = vmatpush2.msra.mxu0 0.0
    %1578 = vmatprep.subr.mxu0 0.0
    %1579 = vmatpush2.msra.mxu0 0.0
    %1580 = vmatprep.subr.mxu0 0.0
    %1581 = vmatpush2.msra.mxu0 0.0
    %1582 = vmatprep.subr.mxu0 0.0
    %1583 = vmatpush2.msra.mxu0 0.0
    %1584 = vmatprep.subr.mxu0 0.0
    %1585 = vmatpush2.msra.mxu0 0.0
    %1586 = vmatprep.subr.mxu0 0.0
    %1587 = vmatpush2.msra.mxu0 0.0
    %1588 = vmatprep.subr.mxu0 0.0
    %1589 = vmatpush2.msra.mxu0 0.0
    %1590 = vmatprep.subr.mxu0 0.0
    %1591 = vmatpush2.msra.mxu0 0.0
    %1592 = vmatprep.subr.mxu0 0.0
    %1593 = vmatpush2.msra.mxu0 0.0
    %1594 = vmatprep.subr.mxu0 0.0
    %1595 = vmatpush2.msra.mxu0 0.0
    %1596 = vmatprep.subr.mxu0 0.0
    %1597 = vmatpush2.msra.mxu0 0.0
    %1598 = vmatprep.subr.mxu0 0.0
    %1599 = vmatpush2.msra.mxu0 0.0
    %1600 = vmatprep.mubr.f32.mxu0 0.0
    %1601 = vmatmul.mubr.f32.gmra.mxu0 %v1534
    %v1602 = vpop.f32.mrf.mxu0
    %v1603 = vadd.f32 0.0, %v1602
    %v1604 = vpop.f32.mrf.mxu0
    %1605 = vdwg.mxu0
    %v1607 = vrot.slane %v1603, 4
    %v1609 = vadd.f32 %v1053, %v1607
    %v1610 = vtanh.pop %v1609
    %s1611 = scalar_lea.vmem %s8, 12
    %1612 = vst.msk [vmem:[%s1611 - $0x4] sm:$0x30] %vm1291, %v1610
    %v1614 = vrot.slane %v1610, 4
    %v1615 = vsel %vm326, %v1614, 0
    %1617 = vmatprep.subr.mxu0 0.0
    %1618 = vmatpush1.msra.mxu0 0.0
    %1619 = vmatprep.subr.mxu0 0.0
    %1620 = vmatpush1.msra.mxu0 0.0
    %1621 = vmatprep.subr.mxu0 0.0
    %1622 = vmatpush1.msra.mxu0 0.0
    %1623 = vmatprep.subr.mxu0 0.0
    %1624 = vmatpush1.msra.mxu0 0.0
    %1625 = vmatprep.subr.mxu0 0.0
    %1626 = vmatpush1.msra.mxu0 0.0
    %1627 = vmatprep.subr.mxu0 0.0
    %1628 = vmatpush1.msra.mxu0 0.0
    %1629 = vmatprep.subr.mxu0 0.0
    %1630 = vmatpush1.msra.mxu0 0.0
    %1631 = vmatprep.subr.mxu0 0.0
    %1632 = vmatpush1.msra.mxu0 0.0
    %1633 = vmatprep.subr.mxu0 0.0
    %1634 = vmatpush1.msra.mxu0 0.0
    %1635 = vmatprep.subr.mxu0 0.0
    %1636 = vmatpush1.msra.mxu0 0.0
    %1637 = vmatprep.subr.mxu0 0.0
    %1638 = vmatpush1.msra.mxu0 0.0
    %1639 = vmatprep.subr.mxu0 0.0
    %1640 = vmatpush1.msra.mxu0 0.0
    %1641 = vmatprep.subr.mxu0 0.0
    %1642 = vmatpush1.msra.mxu0 %v967
    %1643 = vmatprep.subr.mxu0 0.0
    %1644 = vmatpush1.msra.mxu0 %v966
    %1645 = vmatprep.subr.mxu0 0.0
    %1646 = vmatpush1.msra.mxu0 %v965
    %1647 = vmatprep.subr.mxu0 0.0
    %1648 = vmatpush1.msra.mxu0 %v964
    %1649 = vmatprep.subr.mxu0 0.0
    %1650 = vmatpush2.msra.mxu0 0.0
    %1651 = vmatprep.subr.mxu0 0.0
    %1652 = vmatpush2.msra.mxu0 0.0
    %1653 = vmatprep.subr.mxu0 0.0
    %1654 = vmatpush2.msra.mxu0 0.0
    %1655 = vmatprep.subr.mxu0 0.0
    %1656 = vmatpush2.msra.mxu0 0.0
    %1657 = vmatprep.subr.mxu0 0.0
    %1658 = vmatpush2.msra.mxu0 0.0
    %1659 = vmatprep.subr.mxu0 0.0
    %1660 = vmatpush2.msra.mxu0 0.0
    %1661 = vmatprep.subr.mxu0 0.0
    %1662 = vmatpush2.msra.mxu0 0.0
    %1663 = vmatprep.subr.mxu0 0.0
    %1664 = vmatpush2.msra.mxu0 0.0
    %1665 = vmatprep.subr.mxu0 0.0
    %1666 = vmatpush2.msra.mxu0 0.0
    %1667 = vmatprep.subr.mxu0 0.0
    %1668 = vmatpush2.msra.mxu0 0.0
    %1669 = vmatprep.subr.mxu0 0.0
    %1670 = vmatpush2.msra.mxu0 0.0
    %1671 = vmatprep.subr.mxu0 0.0
    %1672 = vmatpush2.msra.mxu0 0.0
    %1673 = vmatprep.subr.mxu0 0.0
    %1674 = vmatpush2.msra.mxu0 0.0
    %1675 = vmatprep.subr.mxu0 0.0
    %1676 = vmatpush2.msra.mxu0 0.0
    %1677 = vmatprep.subr.mxu0 0.0
    %1678 = vmatpush2.msra.mxu0 0.0
    %1679 = vmatprep.subr.mxu0 0.0
    %1680 = vmatpush2.msra.mxu0 0.0
    %1681 = vmatprep.mubr.f32.mxu0 0.0
    %1682 = vmatmul.mubr.f32.gmra.mxu0 %v1615
    %v1683 = vpop.f32.mrf.mxu0
    %v1684 = vadd.f32 0.0, %v1683
    %v1685 = vpop.f32.mrf.mxu0
    %1686 = vdwg.mxu0
    %v1688 = vrot.slane %v1684, 2
    %v1690 = vadd.f32 %v1053, %v1688
    %v1691 = vtanh.pop %v1690
    %s1692 = scalar_lea.vmem %s8, 14
    %1693 = vst.msk [vmem:[%s1692 - $0x6] sm:$0xc0] %vm950, %v1691
    %s1694 = scalar_lea.vmem [#allocation10], 2
    %1695 = vst.msk [vmem:[%s1694 - $0x6] sm:$0xc0] %vm950, %v1691
    // Predicated region
    $region50: #{rnn_model_forward.2} parent=1 // pred_check
      _
    $region51: #{rnn_model_forward.2} parent=1 // pred_check_branch
      %1697 = sbr.rel (0) target = $region53
    $region52: #{rnn_model_forward.2} parent=1 // pred_region
      _
    $region53: #{rnn_model_forward.2} parent=1 // pred_fallthru
      _
    // Predicated region
    $region54: #{rnn_model_forward.2} parent=1 // pred_check
      _
    $region55: #{rnn_model_forward.2} parent=1 // pred_check_branch
      %1699 = sbr.rel (0) target = $region57
    $region56: #{rnn_model_forward.2} parent=1 // pred_region
      %s1701 = ssub.s32 64, 64
      %1702 = vsyncadd [#allocation4], %s1701
      %s1703 = sshll.u32 [#allocation10], 4
      %s1704 = int_to_ptr.vmem [resolvable:$true] %s1703
      %1709 = dma.vmem_to_hbm [thread:$0]  %s1704, 64, %s9, [#allocation4], 32, 32, 2
    $region57: #{rnn_model_forward.2} parent=1 // pred_fallthru
      _
    // Predicated region
    $region58: #{rnn_model_forward.2} parent=1 // pred_check
      _
    $region59: #{rnn_model_forward.2} parent=1 // pred_check_branch
      %1711 = sbr.rel (0) target = $region61
    $region60: #{rnn_model_forward.2} parent=1 // pred_region
      _
    $region61: #{rnn_model_forward.2} parent=1 // pred_fallthru
      _
    // Predicated region
    $region62: #{rnn_model_forward.2} parent=1 // pred_check
      _
    $region63: #{rnn_model_forward.2} parent=1 // pred_check_branch
      %1713 = sbr.rel (0) target = $region65
    $region64: #{rnn_model_forward.2} parent=1 // pred_region
      %1714 = dma.done [#allocation4], 64
    $region65: #{rnn_model_forward.2} parent=1 // pred_fallthru
      _
    %1715 = vsyncpa [#allocation3], 1
    %1716 = vsyncpa [#allocation6], 1
    %1717 = vsyncpa [#allocation9], 1
    %1718 = vsyncpa [#allocation4], 1

// kernel: rnn_model_forward.3
$region0: #{rnn_model_forward.3}
  #allocation0 [shape = 'u32[]', space=smem, size = 0x4, offset = 0x4, fixed_abs, tag = 'smem constant byte address 0x4 - core index']
  #allocation1 [shape = 'u32[144,128]{1,0:T(1,128)}', space=vmem, size = 0x12000, scoped, tag = 'internal scratch']
  #allocation2 [shape = 'f32[2,2048]{1,0:T(2,128)}', space=vmem, size = 0x4000, scoped, tag = 'scratch operand']
  %s0 = inlined_call_operand.vmem [shape: f32[2,256], index: 0, kind: input, shape index: {}]
  %s1 = inlined_call_operand.hbm [shape: bf16[256,2048], index: 1, kind: input, shape index: {}]
  %s2 = inlined_call_operand.hbm [shape: f32[1,2048], index: 2, kind: input, shape index: {}]
  %s3 = inlined_call_operand.hbm [shape: bf16[2048,2048], index: 3, kind: input, shape index: {}]
  %s4 = inlined_call_operand.hbm [shape: f32[1,2048], index: 4, kind: input, shape index: {}]
  %s5 = inlined_call_operand.hbm [shape: bf16[2048,256], index: 5, kind: input, shape index: {}]
  %s6 = inlined_call_operand.hbm [shape: f32[1,256], index: 6, kind: input, shape index: {}]
  %s7 = inlined_call_operand.vmem [shape: bf16[256,2], index: 7, kind: input, shape index: {}]
  %s8 = inlined_call_operand.hbm [shape: f32[1,2], index: 8, kind: input, shape index: {}]
  %s9 = inlined_call_operand.hbm [shape: f32[2,2], index: 9, kind: output, shape index: {}]
  %s10 = sld [smem:[#allocation0]]
  $region105: #{rnn_model_forward.3} parent=0
    _
  %s12 = ssub.s32 1, %s10
  %s13 = scalar_select 0, %s12, %s10
  $region1: #{rnn_model_forward.3} parent=0
    #allocation3 [shape = 'u8[524288]{0}', space=vmem, size = 0x80000, scoped, tag = 'input window, operand 1']
    #allocation4 [shape = 's32[2]{0}', space=sflag, size = 0x8, scoped, tag = 'scoped memory for rnn_model_forward.3']
    #allocation5 [shape = 's32[2]{0}', space=sflag, size = 0x8, scoped, tag = 'scoped memory for rnn_model_forward.3']
    #allocation6 [shape = 'u8[4096]{0}', space=vmem, size = 0x1000, scoped, tag = 'input window, operand 2']
    #allocation7 [shape = 's32[2]{0}', space=sflag, size = 0x8, scoped, tag = 'scoped memory for rnn_model_forward.3']
    #allocation8 [shape = 'u8[4194304]{0}', space=vmem, size = 0x400000, scoped, tag = 'input window, operand 3']
    #allocation9 [shape = 'u8[8192]{0}', space=vmem, size = 0x2000, scoped, tag = 'input window, operand 4, single buffered']
    #allocation10 [shape = 's32[1]{0}', space=sflag, size = 0x4, scoped, tag = 'scoped memory for rnn_model_forward.3']
    #allocation11 [shape = 'u8[1048576]{0}', space=vmem, size = 0x100000, scoped, tag = 'input window, operand 5, single buffered']
    #allocation12 [shape = 'u8[1024]{0}', space=vmem, size = 0x400, scoped, tag = 'input window, operand 6, single buffered']
    #allocation13 [shape = 's32[1]{0}', space=sflag, size = 0x4, scoped, tag = 'scoped memory for rnn_model_forward.3']
    #allocation14 [shape = 'u8[512]{0}', space=vmem, size = 0x400, scoped, tag = 'input window, operand 8, single buffered']
    #allocation15 [shape = 'u8[1024]{0}', space=vmem, size = 0x400, scoped, tag = 'output window, operand 0, single buffered']
    %14 = vsyncpa [#allocation4], 0
    %s15 = scalar_lea.sflag [#allocation4], 1
    %16 = vsyncpa %s15, 0
    %17 = vsyncpa [#allocation7], 0
    %s18 = scalar_lea.sflag [#allocation7], 1
    %19 = vsyncpa %s18, 0
    %20 = vsyncpa [#allocation10], 0
    %21 = vsyncpa [#allocation13], 0
    %22 = vsyncpa [#allocation5], 0
    loop: start=0, step=1, limit=6
    $region2: #{rnn_model_forward.3} parent=1 // loop_pre_header
      _
    $region3: #{rnn_model_forward.3} parent=1 // loop_header
      %s24 = sphi 0, %s28
      %p25 = scmp.ge.s32.totalorder %s24, 6
      %s32 = sphi 0, %s32
      %s34 = sphi 0, %s32
      %s35 = sphi 0, %s34
      %s49 = sphi 0, %s35
      %s55 = sphi 0, %s57
      %s58 = sphi 0, %s55
      %s59 = sphi 0, %s58
      %s75 = sphi 0, %s59
      %s81 = sphi 0, %s83
      %s84 = sphi 0, %s81
      %s85 = sphi 0, %s84
      %s101 = sphi 0, %s85
      %s107 = sphi 0, %s109
      %s110 = sphi 0, %s107
      %s111 = sphi 0, %s110
      %s127 = sphi 0, %s111
      %s131 = sphi 0, %s131
      %s133 = sphi 0, %s131
      %s134 = sphi 0, %s133
      %s148 = sphi 0, %s134
      %s152 = sphi 0, %s152
      %s154 = sphi 0, %s152
      %s155 = sphi 0, %s154
      %s169 = sphi 0, %s155
      %s173 = sphi 0, %s173
      %s175 = sphi 0, %s173
      %s176 = sphi 0, %s175
      %s190 = sphi 0, %s176
      %s194 = sphi 0, %s194
      %s196 = sphi 0, %s194
      %s197 = sphi 0, %s196
      %s211 = sphi 0, %s197
      %s215 = sphi 0, %s215
      %s217 = sphi 0, %s215
      %s218 = sphi 0, %s217
      %s232 = sphi 0, %s218
      %s236 = sphi 0, %s236
      %s238 = sphi 0, %s236
      %s239 = sphi 0, %s238
      %s253 = sphi 0, %s239
    $region4: #{rnn_model_forward.3} parent=1 // loop_header_branch
      %27 = sbr.rel (%p25) target = $region8
    $region5: #{rnn_model_forward.3} parent=1 // loop_body
      %s29 = ssub.s32 %s24, 1
      %s30 = ssub.s32 %s24, 2
      %s31 = sadd.s32 %s24, 1
      %s33 = sadd.s32 %s32, 1
      %p36 = scmp.eq.s32.totalorder %s24, 3
      %p37 = scmp.ne.s32.totalorder %s32, %s34
      %p38 = scmp.eq.s32.totalorder %s24, 0
      %p39 = por %p37, %p38
      %p40 = scmp.ne.s32.totalorder %s32, %s34
      %p41 = scmp.eq.s32.totalorder %s29, 3
      %p42 = por %p40, %p41
      %p43 = scmp.ne.s32.totalorder %s34, %s35
      %p44 = scmp.eq.s32.totalorder %s29, 0
      %p45 = por %p43, %p44
      %p46 = scmp.ne.s32.totalorder %s34, %s35
      %p47 = scmp.eq.s32.totalorder %s30, 3
      %p48 = por %p46, %p47
      %p50 = scmp.ne.s32.totalorder %s35, %s49
      %p51 = scmp.eq.s32.totalorder %s30, 0
      %p52 = por %p50, %p51
      %s53 = ssub.s32 %s24, %s31
      %p54 = scmp.eq.s32.totalorder %s53, 0
      %s56 = sadd.s32 %s55, 1
      %s57 = scalar_select %p54, %s55, %s56
      %p60 = pneg %p54
      %p61 = scmp.eq.s32.totalorder %s24, 3
      %p62 = por %p60, %p61
      %p63 = scmp.ne.s32.totalorder %s55, %s58
      %p64 = scmp.eq.s32.totalorder %s24, 0
      %p65 = por %p63, %p64
      %p66 = scmp.ne.s32.totalorder %s55, %s58
      %p67 = scmp.eq.s32.totalorder %s29, 3
      %p68 = por %p66, %p67
      %p69 = scmp.ne.s32.totalorder %s58, %s59
      %p70 = scmp.eq.s32.totalorder %s29, 0
      %p71 = por %p69, %p70
      %p72 = scmp.ne.s32.totalorder %s58, %s59
      %p73 = scmp.eq.s32.totalorder %s30, 3
      %p74 = por %p72, %p73
      %p76 = scmp.ne.s32.totalorder %s59, %s75
      %p77 = scmp.eq.s32.totalorder %s30, 0
      %p78 = por %p76, %p77
      %s79 = ssub.s32 %s24, %s31
      %p80 = scmp.eq.s32.totalorder %s79, 0
      %s82 = sadd.s32 %s81, 1
      %s83 = scalar_select %p80, %s81, %s82
      %p86 = pneg %p80
      %p87 = scmp.eq.s32.totalorder %s24, 3
      %p88 = por %p86, %p87
      %p89 = scmp.ne.s32.totalorder %s81, %s84
      %p90 = scmp.eq.s32.totalorder %s24, 0
      %p91 = por %p89, %p90
      %p92 = scmp.ne.s32.totalorder %s81, %s84
      %p93 = scmp.eq.s32.totalorder %s29, 3
      %p94 = por %p92, %p93
      %p95 = scmp.ne.s32.totalorder %s84, %s85
      %p96 = scmp.eq.s32.totalorder %s29, 0
      %p97 = por %p95, %p96
      %p98 = scmp.ne.s32.totalorder %s84, %s85
      %p99 = scmp.eq.s32.totalorder %s30, 3
      %p100 = por %p98, %p99
      %p102 = scmp.ne.s32.totalorder %s85, %s101
      %p103 = scmp.eq.s32.totalorder %s30, 0
      %p104 = por %p102, %p103
      %s105 = ssub.s32 %s24, %s31
      %p106 = scmp.eq.s32.totalorder %s105, 0
      %s108 = sadd.s32 %s107, 1
      %s109 = scalar_select %p106, %s107, %s108
      %p112 = pneg %p106
      %p113 = scmp.eq.s32.totalorder %s24, 3
      %p114 = por %p112, %p113
      %p115 = scmp.ne.s32.totalorder %s107, %s110
      %p116 = scmp.eq.s32.totalorder %s24, 0
      %p117 = por %p115, %p116
      %p118 = scmp.ne.s32.totalorder %s107, %s110
      %p119 = scmp.eq.s32.totalorder %s29, 3
      %p120 = por %p118, %p119
      %p121 = scmp.ne.s32.totalorder %s110, %s111
      %p122 = scmp.eq.s32.totalorder %s29, 0
      %p123 = por %p121, %p122
      %p124 = scmp.ne.s32.totalorder %s110, %s111
      %p125 = scmp.eq.s32.totalorder %s30, 3
      %p126 = por %p124, %p125
      %p128 = scmp.ne.s32.totalorder %s111, %s127
      %p129 = scmp.eq.s32.totalorder %s30, 0
      %p130 = por %p128, %p129
      %s132 = sadd.s32 %s131, 1
      %p135 = scmp.eq.s32.totalorder %s24, 3
      %p136 = scmp.ne.s32.totalorder %s131, %s133
      %p137 = scmp.eq.s32.totalorder %s24, 0
      %p138 = por %p136, %p137
      %p139 = scmp.ne.s32.totalorder %s131, %s133
      %p140 = scmp.eq.s32.totalorder %s29, 3
      %p141 = por %p139, %p140
      %p142 = scmp.ne.s32.totalorder %s133, %s134
      %p143 = scmp.eq.s32.totalorder %s29, 0
      %p144 = por %p142, %p143
      %p145 = scmp.ne.s32.totalorder %s133, %s134
      %p146 = scmp.eq.s32.totalorder %s30, 3
      %p147 = por %p145, %p146
      %p149 = scmp.ne.s32.totalorder %s134, %s148
      %p150 = scmp.eq.s32.totalorder %s30, 0
      %p151 = por %p149, %p150
      %s153 = sadd.s32 %s152, 1
      %p156 = scmp.eq.s32.totalorder %s24, 3
      %p157 = scmp.ne.s32.totalorder %s152, %s154
      %p158 = scmp.eq.s32.totalorder %s24, 0
      %p159 = por %p157, %p158
      %p160 = scmp.ne.s32.totalorder %s152, %s154
      %p161 = scmp.eq.s32.totalorder %s29, 3
      %p162 = por %p160, %p161
      %p163 = scmp.ne.s32.totalorder %s154, %s155
      %p164 = scmp.eq.s32.totalorder %s29, 0
      %p165 = por %p163, %p164
      %p166 = scmp.ne.s32.totalorder %s154, %s155
      %p167 = scmp.eq.s32.totalorder %s30, 3
      %p168 = por %p166, %p167
      %p170 = scmp.ne.s32.totalorder %s155, %s169
      %p171 = scmp.eq.s32.totalorder %s30, 0
      %p172 = por %p170, %p171
      %s174 = sadd.s32 %s173, 1
      %p177 = scmp.eq.s32.totalorder %s24, 3
      %p178 = scmp.ne.s32.totalorder %s173, %s175
      %p179 = scmp.eq.s32.totalorder %s24, 0
      %p180 = por %p178, %p179
      %p181 = scmp.ne.s32.totalorder %s173, %s175
      %p182 = scmp.eq.s32.totalorder %s29, 3
      %p183 = por %p181, %p182
      %p184 = scmp.ne.s32.totalorder %s175, %s176
      %p185 = scmp.eq.s32.totalorder %s29, 0
      %p186 = por %p184, %p185
      %p187 = scmp.ne.s32.totalorder %s175, %s176
      %p188 = scmp.eq.s32.totalorder %s30, 3
      %p189 = por %p187, %p188
      %p191 = scmp.ne.s32.totalorder %s176, %s190
      %p192 = scmp.eq.s32.totalorder %s30, 0
      %p193 = por %p191, %p192
      %s195 = sadd.s32 %s194, 1
      %p198 = scmp.eq.s32.totalorder %s24, 3
      %p199 = scmp.ne.s32.totalorder %s194, %s196
      %p200 = scmp.eq.s32.totalorder %s24, 0
      %p201 = por %p199, %p200
      %p202 = scmp.ne.s32.totalorder %s194, %s196
      %p203 = scmp.eq.s32.totalorder %s29, 3
      %p204 = por %p202, %p203
      %p205 = scmp.ne.s32.totalorder %s196, %s197
      %p206 = scmp.eq.s32.totalorder %s29, 0
      %p207 = por %p205, %p206
      %p208 = scmp.ne.s32.totalorder %s196, %s197
      %p209 = scmp.eq.s32.totalorder %s30, 3
      %p210 = por %p208, %p209
      %p212 = scmp.ne.s32.totalorder %s197, %s211
      %p213 = scmp.eq.s32.totalorder %s30, 0
      %p214 = por %p212, %p213
      %s216 = sadd.s32 %s215, 1
      %p219 = scmp.eq.s32.totalorder %s24, 3
      %p220 = scmp.ne.s32.totalorder %s215, %s217
      %p221 = scmp.eq.s32.totalorder %s24, 0
      %p222 = por %p220, %p221
      %p223 = scmp.ne.s32.totalorder %s215, %s217
      %p224 = scmp.eq.s32.totalorder %s29, 3
      %p225 = por %p223, %p224
      %p226 = scmp.ne.s32.totalorder %s217, %s218
      %p227 = scmp.eq.s32.totalorder %s29, 0
      %p228 = por %p226, %p227
      %p229 = scmp.ne.s32.totalorder %s217, %s218
      %p230 = scmp.eq.s32.totalorder %s30, 3
      %p231 = por %p229, %p230
      %p233 = scmp.ne.s32.totalorder %s218, %s232
      %p234 = scmp.eq.s32.totalorder %s30, 0
      %p235 = por %p233, %p234
      %s237 = sadd.s32 %s236, 1
      %p240 = scmp.eq.s32.totalorder %s24, 3
      %p241 = scmp.ne.s32.totalorder %s236, %s238
      %p242 = scmp.eq.s32.totalorder %s24, 0
      %p243 = por %p241, %p242
      %p244 = scmp.ne.s32.totalorder %s236, %s238
      %p245 = scmp.eq.s32.totalorder %s29, 3
      %p246 = por %p244, %p245
      %p247 = scmp.ne.s32.totalorder %s238, %s239
      %p248 = scmp.eq.s32.totalorder %s29, 0
      %p249 = por %p247, %p248
      %p250 = scmp.ne.s32.totalorder %s238, %s239
      %p251 = scmp.eq.s32.totalorder %s30, 3
      %p252 = por %p250, %p251
      %p254 = scmp.ne.s32.totalorder %s239, %s253
      %p255 = scmp.eq.s32.totalorder %s30, 0
      %p256 = por %p254, %p255
      %p257 = scmp.le.s32.totalorder 1, %s24
      %p258 = scmp.lt.s32.totalorder %s24, 5
      %p259 = pnand %p257, %p258
      %p260 = pneg %p259
      // Predicated region
      $region9: #{rnn_model_forward.3} parent=5 // pred_check
        _
      $region10: #{rnn_model_forward.3} parent=5 // pred_check_branch
        %262 = sbr.rel (%p259) target = $region12
      $region11: #{rnn_model_forward.3} parent=5 // pred_region
        %s263 = ssub.s32 %s24, 1
        // Predicated region
        $region13: #{rnn_model_forward.3} parent=11 // pred_check
          %p264 = pneg %p45
        $region14: #{rnn_model_forward.3} parent=11 // pred_check_branch
          %266 = sbr.rel (%p264) target = $region16
        $region15: #{rnn_model_forward.3} parent=11 // pred_region
          _
        $region16: #{rnn_model_forward.3} parent=11 // pred_fallthru
          _
        // Predicated region
        $region17: #{rnn_model_forward.3} parent=11 // pred_check
          %p267 = pneg %p144
        $region18: #{rnn_model_forward.3} parent=11 // pred_check_branch
          %269 = sbr.rel (%p267) target = $region20
        $region19: #{rnn_model_forward.3} parent=11 // pred_region
          %s271 = ssub.s32 256, 256
          %272 = vsyncadd [#allocation10], %s271
          %s274 = sshll.u32 [#allocation9], 4
          %s275 = int_to_ptr.vmem [resolvable:$true] %s274
          %277 = dma.hbm_to_vmem [thread:$0]  %s4, 256, %s275, [#allocation10]
        $region20: #{rnn_model_forward.3} parent=11 // pred_fallthru
          _
        // Predicated region
        $region21: #{rnn_model_forward.3} parent=11 // pred_check
          %p278 = pneg %p165
        $region22: #{rnn_model_forward.3} parent=11 // pred_check_branch
          %280 = sbr.rel (%p278) target = $region24
        $region23: #{rnn_model_forward.3} parent=11 // pred_region
          %s282 = ssub.s32 32768, 32768
          %283 = vsyncadd [#allocation10], %s282
          %s284 = sshll.u32 [#allocation11], 4
          %s285 = int_to_ptr.vmem [resolvable:$true] %s284
          %290 = dma.hbm_to_vmem [thread:$0]  %s5, 32768, %s285, [#allocation10], 128, 128, 8
        $region24: #{rnn_model_forward.3} parent=11 // pred_fallthru
          _
        // Predicated region
        $region25: #{rnn_model_forward.3} parent=11 // pred_check
          %p291 = pneg %p186
        $region26: #{rnn_model_forward.3} parent=11 // pred_check_branch
          %293 = sbr.rel (%p291) target = $region28
        $region27: #{rnn_model_forward.3} parent=11 // pred_region
          %s295 = ssub.s32 32, 32
          %296 = vsyncadd [#allocation13], %s295
          %s298 = sshll.u32 [#allocation12], 4
          %s299 = int_to_ptr.vmem [resolvable:$true] %s298
          %301 = dma.hbm_to_vmem [thread:$0]  %s6, 32, %s299, [#allocation13]
        $region28: #{rnn_model_forward.3} parent=11 // pred_fallthru
          _
        // Predicated region
        $region29: #{rnn_model_forward.3} parent=11 // pred_check
          %p302 = pneg %p207
        $region30: #{rnn_model_forward.3} parent=11 // pred_check_branch
          %304 = sbr.rel (%p302) target = $region32
        $region31: #{rnn_model_forward.3} parent=11 // pred_region
          _
        $region32: #{rnn_model_forward.3} parent=11 // pred_fallthru
          _
        // Predicated region
        $region33: #{rnn_model_forward.3} parent=11 // pred_check
          %p305 = pneg %p228
        $region34: #{rnn_model_forward.3} parent=11 // pred_check_branch
          %307 = sbr.rel (%p305) target = $region36
        $region35: #{rnn_model_forward.3} parent=11 // pred_region
          %s309 = ssub.s32 16, 16
          %310 = vsyncadd [#allocation13], %s309
          %s312 = sshll.u32 [#allocation14], 4
          %s313 = int_to_ptr.vmem [resolvable:$true] %s312
          %315 = dma.hbm_to_vmem [thread:$0]  %s8, 16, %s313, [#allocation13]
        $region36: #{rnn_model_forward.3} parent=11 // pred_fallthru
          _
      $region12: #{rnn_model_forward.3} parent=5 // pred_fallthru
        _
      %p316 = scmp.lt.s32.totalorder %s24, 4
      // Predicated region
      $region37: #{rnn_model_forward.3} parent=5 // pred_check
        %p317 = pneg %p316
      $region38: #{rnn_model_forward.3} parent=5 // pred_check_branch
        %319 = sbr.rel (%p317) target = $region40
      $region39: #{rnn_model_forward.3} parent=5 // pred_region
        // Predicated region
        $region41: #{rnn_model_forward.3} parent=39 // pred_check
          %p320 = pneg %p65
        $region42: #{rnn_model_forward.3} parent=39 // pred_check_branch
          %322 = sbr.rel (%p320) target = $region44
        $region43: #{rnn_model_forward.3} parent=39 // pred_region
          %s323 = sand.u32 %s55, 1
          %s324 = scalar_lea.sflag [#allocation4], %s323
          %s325 = sand.u32 %s55, 1
          %s326 = smul.addr %s325, 512
          %s327 = scalar_lea.vmem [#allocation3], %s326
          %s328 = smul.u32 4, %s24
          %s330 = ssub.s32 8192, 8192
          %331 = vsyncadd %s324, %s330
          %s332 = smul.addr %s328, 64
          %s333 = scalar_lea.hbm %s1, %s332
          %s334 = sshll.u32 %s327, 4
          %s335 = int_to_ptr.vmem [resolvable:$true] %s334
          %340 = dma.hbm_to_vmem [thread:$0]  %s333, 8192, %s335, %s324, 1024, 256, 16
        $region44: #{rnn_model_forward.3} parent=39 // pred_fallthru
          _
        // Predicated region
        $region45: #{rnn_model_forward.3} parent=39 // pred_check
          %p341 = pneg %p91
        $region46: #{rnn_model_forward.3} parent=39 // pred_check_branch
          %343 = sbr.rel (%p341) target = $region48
        $region47: #{rnn_model_forward.3} parent=39 // pred_region
          %s344 = sand.u32 %s24, 1
          %s345 = scalar_lea.sflag [#allocation7], %s344
          %s346 = sand.u32 %s81, 1
          %s347 = smul.addr %s346, 4
          %s348 = scalar_lea.vmem [#allocation6], %s347
          %s349 = smul.u32 4, %s24
          %s351 = ssub.s32 64, 64
          %352 = vsyncadd %s345, %s351
          %s353 = smul.addr %s349, 16
          %s354 = scalar_lea.hbm %s2, %s353
          %s356 = sshll.u32 %s348, 4
          %s357 = int_to_ptr.vmem [resolvable:$true] %s356
          %359 = dma.hbm_to_vmem [thread:$0]  %s354, 64, %s357, %s345
        $region48: #{rnn_model_forward.3} parent=39 // pred_fallthru
          _
        // Predicated region
        $region49: #{rnn_model_forward.3} parent=39 // pred_check
          %p360 = pneg %p117
        $region50: #{rnn_model_forward.3} parent=39 // pred_check_branch
          %362 = sbr.rel (%p360) target = $region52
        $region51: #{rnn_model_forward.3} parent=39 // pred_region
          %s363 = sand.u32 %s24, 1
          %s364 = scalar_lea.sflag [#allocation7], %s363
          %s365 = sand.u32 %s107, 1
          %s366 = smul.addr %s365, 4096
          %s367 = scalar_lea.vmem [#allocation8], %s366
          %s368 = smul.u32 64, %s24
          %s370 = ssub.s32 65536, 65536
          %371 = vsyncadd %s364, %s370
          %s372 = smul.addr %s368, 16
          %s373 = smul.addr %s372, 64
          %s374 = scalar_lea.hbm %s3, %s373
          %s375 = sshll.u32 %s367, 4
          %s376 = int_to_ptr.vmem [resolvable:$true] %s375
          %381 = dma.hbm_to_vmem [thread:$0]  %s374, 65536, %s376, %s364, 1024, 1024, 64
        $region52: #{rnn_model_forward.3} parent=39 // pred_fallthru
          _
      $region40: #{rnn_model_forward.3} parent=5 // pred_fallthru
        _
      %p382 = scmp.le.s32.totalorder 1, %s24
      %p383 = scmp.lt.s32.totalorder %s24, 5
      %p384 = pnand %p382, %p383
      %p385 = pneg %p384
      // Predicated region
      $region53: #{rnn_model_forward.3} parent=5 // pred_check
        _
      $region54: #{rnn_model_forward.3} parent=5 // pred_check_branch
        %387 = sbr.rel (%p384) target = $region56
      $region55: #{rnn_model_forward.3} parent=5 // pred_region
        %s388 = ssub.s32 %s24, 1
        %s389 = sand.u32 %s58, 1
        %s390 = scalar_lea.sflag [#allocation4], %s389
        %s391 = sand.u32 %s58, 1
        %s392 = smul.addr %s391, 512
        %s393 = scalar_lea.vmem [#allocation3], %s392
        // Predicated region
        $region57: #{rnn_model_forward.3} parent=55 // pred_check
          %p394 = pneg %p71
        $region58: #{rnn_model_forward.3} parent=55 // pred_check_branch
          %396 = sbr.rel (%p394) target = $region60
        $region59: #{rnn_model_forward.3} parent=55 // pred_region
          %397 = dma.done %s390, 8192
        $region60: #{rnn_model_forward.3} parent=55 // pred_fallthru
          _
        %s398 = sand.u32 %s29, 1
        %s399 = scalar_lea.sflag [#allocation7], %s398
        %s400 = sand.u32 %s84, 1
        %s401 = smul.addr %s400, 4
        %s402 = scalar_lea.vmem [#allocation6], %s401
        // Predicated region
        $region61: #{rnn_model_forward.3} parent=55 // pred_check
          %p403 = pneg %p97
        $region62: #{rnn_model_forward.3} parent=55 // pred_check_branch
          %405 = sbr.rel (%p403) target = $region64
        $region63: #{rnn_model_forward.3} parent=55 // pred_region
          %406 = dma.done %s399, 64
        $region64: #{rnn_model_forward.3} parent=55 // pred_fallthru
          _
        %s407 = sand.u32 %s29, 1
        %s408 = scalar_lea.sflag [#allocation7], %s407
        %s409 = sand.u32 %s110, 1
        %s410 = smul.addr %s409, 4096
        %s411 = scalar_lea.vmem [#allocation8], %s410
        // Predicated region
        $region65: #{rnn_model_forward.3} parent=55 // pred_check
          %p412 = pneg %p123
        $region66: #{rnn_model_forward.3} parent=55 // pred_check_branch
          %414 = sbr.rel (%p412) target = $region68
        $region67: #{rnn_model_forward.3} parent=55 // pred_region
          %415 = dma.done %s408, 65536
        $region68: #{rnn_model_forward.3} parent=55 // pred_fallthru
          _
        // Predicated region
        $region69: #{rnn_model_forward.3} parent=55 // pred_check
          %p416 = pneg %p144
        $region70: #{rnn_model_forward.3} parent=55 // pred_check_branch
          %418 = sbr.rel (%p416) target = $region72
        $region71: #{rnn_model_forward.3} parent=55 // pred_region
          %419 = dma.done [#allocation10], 256
        $region72: #{rnn_model_forward.3} parent=55 // pred_fallthru
          _
        // Predicated region
        $region73: #{rnn_model_forward.3} parent=55 // pred_check
          %p420 = pneg %p165
        $region74: #{rnn_model_forward.3} parent=55 // pred_check_branch
          %422 = sbr.rel (%p420) target = $region76
        $region75: #{rnn_model_forward.3} parent=55 // pred_region
          %423 = dma.done [#allocation10], 32768
        $region76: #{rnn_model_forward.3} parent=55 // pred_fallthru
          _
        // Predicated region
        $region77: #{rnn_model_forward.3} parent=55 // pred_check
          %p424 = pneg %p186
        $region78: #{rnn_model_forward.3} parent=55 // pred_check_branch
          %426 = sbr.rel (%p424) target = $region80
        $region79: #{rnn_model_forward.3} parent=55 // pred_region
          %427 = dma.done [#allocation13], 32
        $region80: #{rnn_model_forward.3} parent=55 // pred_fallthru
          _
        // Predicated region
        $region81: #{rnn_model_forward.3} parent=55 // pred_check
          %p428 = pneg %p228
        $region82: #{rnn_model_forward.3} parent=55 // pred_check_branch
          %430 = sbr.rel (%p428) target = $region84
        $region83: #{rnn_model_forward.3} parent=55 // pred_region
          %431 = dma.done [#allocation13], 16
        $region84: #{rnn_model_forward.3} parent=55 // pred_fallthru
          _
        %p432 = pneg %p45
        %p433 = pneg %p42
        %s434 = sand.u32 %s58, 1
        %s435 = scalar_lea.sflag [#allocation4], %s434
        %s436 = sand.u32 %s58, 1
        %s437 = smul.addr %s436, 512
        %s438 = scalar_lea.vmem [#allocation3], %s437
        %p439 = pneg %p71
        %p440 = pneg %p68
        %s441 = sand.u32 %s29, 1
        %s442 = scalar_lea.sflag [#allocation7], %s441
        %s443 = sand.u32 %s84, 1
        %s444 = smul.addr %s443, 4
        %s445 = scalar_lea.vmem [#allocation6], %s444
        %p446 = pneg %p97
        %p447 = pneg %p94
        %s448 = sand.u32 %s29, 1
        %s449 = scalar_lea.sflag [#allocation7], %s448
        %s450 = sand.u32 %s110, 1
        %s451 = smul.addr %s450, 4096
        %s452 = scalar_lea.vmem [#allocation8], %s451
        %p453 = pneg %p123
        %p454 = pneg %p120
        %p455 = pneg %p144
        %p456 = pneg %p141
        %p457 = pneg %p165
        %p458 = pneg %p162
        %p459 = pneg %p186
        %p460 = pneg %p183
        %p461 = pneg %p207
        %p462 = pneg %p204
        %p463 = pneg %p228
        %p464 = pneg %p225
        %p465 = pneg %p249
        %p466 = pneg %p246
        %s467 = smul.u32 4, %s29
        %s468 = smul.u32 4, %s29
        %s469 = smul.u32 64, %s29
        %p471 = scmp.eq.s32.totalorder %s29, 0
        // Predicated region
        $region85: #{rnn_model_forward.3} parent=55 // pred_check
          %p472 = pneg %p471
        $region86: #{rnn_model_forward.3} parent=55 // pred_check_branch
          %474 = sbr.rel (%p472) target = $region88
        $region87: #{rnn_model_forward.3} parent=55 // pred_region
          %475 = vst [vmem:[#allocation2] sm:$0xff] 0.0
          %476 = vst [vmem:[#allocation2 + $0x8] sm:$0xff] 0.0
          %477 = vst [vmem:[#allocation2 + $0x10] sm:$0xff] 0.0
          %478 = vst [vmem:[#allocation2 + $0x18] sm:$0xff] 0.0
        $region88: #{rnn_model_forward.3} parent=55 // pred_fallthru
          _
        %v479 = vld [vmem:[%s0] sm:$0xf]
        %v482 = vunpack.c.l.s4 1983009808
        %v483 = vunpack.c.0.s8 %v482
        %v484 = vlaneseq
        %v485 = vshrl.u32 %v484, 7
        %v486 = vsub.s32 %v483, %v485
        %v487 = vrot.slane %v479, %v486
        %v488 = vcombine.high %v487, %v487
        %v491 = vpack.c.bf16 %v487, %v487
        %v492 = vpack.c.bf16 %v488, %v488
        %v493 = vld [vmem:[%s393] sm:$0xff]
        %v494 = vld [vmem:[%s393 + $0x8] sm:$0xff]
        %v495 = vld [vmem:[%s393 + $0x10] sm:$0xff]
        %v496 = vld [vmem:[%s393 + $0x18] sm:$0xff]
        %v497 = vld [vmem:[%s393 + $0x20] sm:$0xff]
        %v498 = vld [vmem:[%s393 + $0x28] sm:$0xff]
        %v499 = vld [vmem:[%s393 + $0x30] sm:$0xff]
        %v500 = vld [vmem:[%s393 + $0x38] sm:$0xff]
        %v501 = vld [vmem:[%s393 + $0x40] sm:$0xff]
        %v502 = vld [vmem:[%s393 + $0x48] sm:$0xff]
        %v503 = vld [vmem:[%s393 + $0x50] sm:$0xff]
        %v504 = vld [vmem:[%s393 + $0x58] sm:$0xff]
        %v505 = vld [vmem:[%s393 + $0x60] sm:$0xff]
        %v506 = vld [vmem:[%s393 + $0x68] sm:$0xff]
        %v507 = vld [vmem:[%s393 + $0x70] sm:$0xff]
        %v508 = vld [vmem:[%s393 + $0x78] sm:$0xff]
        %v509 = vld [vmem:[%s393 + $0x80] sm:$0xff]
        %v510 = vld [vmem:[%s393 + $0x88] sm:$0xff]
        %v511 = vld [vmem:[%s393 + $0x90] sm:$0xff]
        %v512 = vld [vmem:[%s393 + $0x98] sm:$0xff]
        %v513 = vld [vmem:[%s393 + $0xa0] sm:$0xff]
        %v514 = vld [vmem:[%s393 + $0xa8] sm:$0xff]
        %v515 = vld [vmem:[%s393 + $0xb0] sm:$0xff]
        %v516 = vld [vmem:[%s393 + $0xb8] sm:$0xff]
        %v517 = vld [vmem:[%s393 + $0xc0] sm:$0xff]
        %v518 = vld [vmem:[%s393 + $0xc8] sm:$0xff]
        %v519 = vld [vmem:[%s393 + $0xd0] sm:$0xff]
        %v520 = vld [vmem:[%s393 + $0xd8] sm:$0xff]
        %v521 = vld [vmem:[%s393 + $0xe0] sm:$0xff]
        %v522 = vld [vmem:[%s393 + $0xe8] sm:$0xff]
        %v523 = vld [vmem:[%s393 + $0xf0] sm:$0xff]
        %v524 = vld [vmem:[%s393 + $0xf8] sm:$0xff]
        %v525 = vld [vmem:[%s393 + $0x100] sm:$0xff]
        %v526 = vld [vmem:[%s393 + $0x108] sm:$0xff]
        %v527 = vld [vmem:[%s393 + $0x110] sm:$0xff]
        %v528 = vld [vmem:[%s393 + $0x118] sm:$0xff]
        %v529 = vld [vmem:[%s393 + $0x120] sm:$0xff]
        %v530 = vld [vmem:[%s393 + $0x128] sm:$0xff]
        %v531 = vld [vmem:[%s393 + $0x130] sm:$0xff]
        %v532 = vld [vmem:[%s393 + $0x138] sm:$0xff]
        %v533 = vld [vmem:[%s393 + $0x140] sm:$0xff]
        %v534 = vld [vmem:[%s393 + $0x148] sm:$0xff]
        %v535 = vld [vmem:[%s393 + $0x150] sm:$0xff]
        %v536 = vld [vmem:[%s393 + $0x158] sm:$0xff]
        %v537 = vld [vmem:[%s393 + $0x160] sm:$0xff]
        %v538 = vld [vmem:[%s393 + $0x168] sm:$0xff]
        %v539 = vld [vmem:[%s393 + $0x170] sm:$0xff]
        %v540 = vld [vmem:[%s393 + $0x178] sm:$0xff]
        %v541 = vld [vmem:[%s393 + $0x180] sm:$0xff]
        %v542 = vld [vmem:[%s393 + $0x188] sm:$0xff]
        %v543 = vld [vmem:[%s393 + $0x190] sm:$0xff]
        %v544 = vld [vmem:[%s393 + $0x198] sm:$0xff]
        %v545 = vld [vmem:[%s393 + $0x1a0] sm:$0xff]
        %v546 = vld [vmem:[%s393 + $0x1a8] sm:$0xff]
        %v547 = vld [vmem:[%s393 + $0x1b0] sm:$0xff]
        %v548 = vld [vmem:[%s393 + $0x1b8] sm:$0xff]
        %v549 = vld [vmem:[%s393 + $0x1c0] sm:$0xff]
        %v550 = vld [vmem:[%s393 + $0x1c8] sm:$0xff]
        %v551 = vld [vmem:[%s393 + $0x1d0] sm:$0xff]
        %v552 = vld [vmem:[%s393 + $0x1d8] sm:$0xff]
        %v553 = vld [vmem:[%s393 + $0x1e0] sm:$0xff]
        %v554 = vld [vmem:[%s393 + $0x1e8] sm:$0xff]
        %v555 = vld [vmem:[%s393 + $0x1f0] sm:$0xff]
        %v556 = vld [vmem:[%s393 + $0x1f8] sm:$0xff]
        %v557 = vld [vmem:[%s402] sm:$0xf]
        %v559 = vlaneseq
        %v560 = vshrl.u32 %v559, 7
        %v561 = vsub.s32 0, %v560
        %v562 = vrot.slane %v557, %v561
        %v563 = vlaneseq
        %v564 = vshrl.u32 %v563, 7
        %v565 = vsub.s32 1, %v564
        %v566 = vrot.slane %v557, %v565
        %v567 = vlaneseq
        %v568 = vshrl.u32 %v567, 7
        %v569 = vsub.s32 2, %v568
        %v570 = vrot.slane %v557, %v569
        %v571 = vlaneseq
        %v572 = vshrl.u32 %v571, 7
        %v573 = vsub.s32 3, %v572
        %v574 = vrot.slane %v557, %v573
        %v643 = vunpack.c.l.b16 %v493
        %v644 = vunpack.c.h.b16 %v493
        %v645 = vunpack.c.l.b16 %v494
        %v646 = vunpack.c.h.b16 %v494
        %v647 = vunpack.c.l.b16 %v495
        %v648 = vunpack.c.h.b16 %v495
        %v649 = vunpack.c.l.b16 %v496
        %v650 = vunpack.c.h.b16 %v496
        %v651 = vunpack.c.l.b16 %v497
        %v652 = vunpack.c.h.b16 %v497
        %v653 = vunpack.c.l.b16 %v498
        %v654 = vunpack.c.h.b16 %v498
        %v655 = vunpack.c.l.b16 %v499
        %v656 = vunpack.c.h.b16 %v499
        %v657 = vunpack.c.l.b16 %v500
        %v658 = vunpack.c.h.b16 %v500
        %v659 = vunpack.c.l.b16 %v501
        %v660 = vunpack.c.h.b16 %v501
        %v661 = vunpack.c.l.b16 %v502
        %v662 = vunpack.c.h.b16 %v502
        %v663 = vunpack.c.l.b16 %v503
        %v664 = vunpack.c.h.b16 %v503
        %v665 = vunpack.c.l.b16 %v504
        %v666 = vunpack.c.h.b16 %v504
        %v667 = vunpack.c.l.b16 %v505
        %v668 = vunpack.c.h.b16 %v505
        %v669 = vunpack.c.l.b16 %v506
        %v670 = vunpack.c.h.b16 %v506
        %v671 = vunpack.c.l.b16 %v507
        %v672 = vunpack.c.h.b16 %v507
        %v673 = vunpack.c.l.b16 %v508
        %v674 = vunpack.c.h.b16 %v508
        %v675 = vunpack.c.l.b16 %v509
        %v676 = vunpack.c.h.b16 %v509
        %v677 = vunpack.c.l.b16 %v510
        %v678 = vunpack.c.h.b16 %v510
        %v679 = vunpack.c.l.b16 %v511
        %v680 = vunpack.c.h.b16 %v511
        %v681 = vunpack.c.l.b16 %v512
        %v682 = vunpack.c.h.b16 %v512
        %v683 = vunpack.c.l.b16 %v513
        %v684 = vunpack.c.h.b16 %v513
        %v685 = vunpack.c.l.b16 %v514
        %v686 = vunpack.c.h.b16 %v514
        %v687 = vunpack.c.l.b16 %v515
        %v688 = vunpack.c.h.b16 %v515
        %v689 = vunpack.c.l.b16 %v516
        %v690 = vunpack.c.h.b16 %v516
        %v691 = vunpack.c.l.b16 %v517
        %v692 = vunpack.c.h.b16 %v517
        %v693 = vunpack.c.l.b16 %v518
        %v694 = vunpack.c.h.b16 %v518
        %v695 = vunpack.c.l.b16 %v519
        %v696 = vunpack.c.h.b16 %v519
        %v697 = vunpack.c.l.b16 %v520
        %v698 = vunpack.c.h.b16 %v520
        %v699 = vunpack.c.l.b16 %v521
        %v700 = vunpack.c.h.b16 %v521
        %v701 = vunpack.c.l.b16 %v522
        %v702 = vunpack.c.h.b16 %v522
        %v703 = vunpack.c.l.b16 %v523
        %v704 = vunpack.c.h.b16 %v523
        %v705 = vunpack.c.l.b16 %v524
        %v706 = vunpack.c.h.b16 %v524
        %v707 = vunpack.c.l.b16 %v525
        %v708 = vunpack.c.h.b16 %v525
        %v709 = vunpack.c.l.b16 %v526
        %v710 = vunpack.c.h.b16 %v526
        %v711 = vunpack.c.l.b16 %v527
        %v712 = vunpack.c.h.b16 %v527
        %v713 = vunpack.c.l.b16 %v528
        %v714 = vunpack.c.h.b16 %v528
        %v715 = vunpack.c.l.b16 %v529
        %v716 = vunpack.c.h.b16 %v529
        %v717 = vunpack.c.l.b16 %v530
        %v718 = vunpack.c.h.b16 %v530
        %v719 = vunpack.c.l.b16 %v531
        %v720 = vunpack.c.h.b16 %v531
        %v721 = vunpack.c.l.b16 %v532
        %v722 = vunpack.c.h.b16 %v532
        %v723 = vunpack.c.l.b16 %v533
        %v724 = vunpack.c.h.b16 %v533
        %v725 = vunpack.c.l.b16 %v534
        %v726 = vunpack.c.h.b16 %v534
        %v727 = vunpack.c.l.b16 %v535
        %v728 = vunpack.c.h.b16 %v535
        %v729 = vunpack.c.l.b16 %v536
        %v730 = vunpack.c.h.b16 %v536
        %v731 = vunpack.c.l.b16 %v537
        %v732 = vunpack.c.h.b16 %v537
        %v733 = vunpack.c.l.b16 %v538
        %v734 = vunpack.c.h.b16 %v538
        %v735 = vunpack.c.l.b16 %v539
        %v736 = vunpack.c.h.b16 %v539
        %v737 = vunpack.c.l.b16 %v540
        %v738 = vunpack.c.h.b16 %v540
        %v739 = vunpack.c.l.b16 %v541
        %v740 = vunpack.c.h.b16 %v541
        %v741 = vunpack.c.l.b16 %v542
        %v742 = vunpack.c.h.b16 %v542
        %v743 = vunpack.c.l.b16 %v543
        %v744 = vunpack.c.h.b16 %v543
        %v745 = vunpack.c.l.b16 %v544
        %v746 = vunpack.c.h.b16 %v544
        %v747 = vunpack.c.l.b16 %v545
        %v748 = vunpack.c.h.b16 %v545
        %v749 = vunpack.c.l.b16 %v546
        %v750 = vunpack.c.h.b16 %v546
        %v751 = vunpack.c.l.b16 %v547
        %v752 = vunpack.c.h.b16 %v547
        %v753 = vunpack.c.l.b16 %v548
        %v754 = vunpack.c.h.b16 %v548
        %v755 = vunpack.c.l.b16 %v549
        %v756 = vunpack.c.h.b16 %v549
        %v757 = vunpack.c.l.b16 %v550
        %v758 = vunpack.c.h.b16 %v550
        %v759 = vunpack.c.l.b16 %v551
        %v760 = vunpack.c.h.b16 %v551
        %v761 = vunpack.c.l.b16 %v552
        %v762 = vunpack.c.h.b16 %v552
        %v763 = vunpack.c.l.b16 %v553
        %v764 = vunpack.c.h.b16 %v553
        %v765 = vunpack.c.l.b16 %v554
        %v766 = vunpack.c.h.b16 %v554
        %v767 = vunpack.c.l.b16 %v555
        %v768 = vunpack.c.h.b16 %v555
        %v769 = vunpack.c.l.b16 %v556
        %v770 = vunpack.c.h.b16 %v556
        %v771 = vpack.c.b16 %v647, %v643
        %v772 = vpack.c.b16 %v648, %v644
        %v773 = vpack.c.b16 %v649, %v645
        %v774 = vpack.c.b16 %v650, %v646
        %v775 = vpack.c.b16 %v655, %v651
        %v776 = vpack.c.b16 %v656, %v652
        %v777 = vpack.c.b16 %v657, %v653
        %v778 = vpack.c.b16 %v658, %v654
        %v779 = vpack.c.b16 %v663, %v659
        %v780 = vpack.c.b16 %v664, %v660
        %v781 = vpack.c.b16 %v665, %v661
        %v782 = vpack.c.b16 %v666, %v662
        %v783 = vpack.c.b16 %v671, %v667
        %v784 = vpack.c.b16 %v672, %v668
        %v785 = vpack.c.b16 %v673, %v669
        %v786 = vpack.c.b16 %v674, %v670
        %v787 = vpack.c.b16 %v679, %v675
        %v788 = vpack.c.b16 %v680, %v676
        %v789 = vpack.c.b16 %v681, %v677
        %v790 = vpack.c.b16 %v682, %v678
        %v791 = vpack.c.b16 %v687, %v683
        %v792 = vpack.c.b16 %v688, %v684
        %v793 = vpack.c.b16 %v689, %v685
        %v794 = vpack.c.b16 %v690, %v686
        %v795 = vpack.c.b16 %v695, %v691
        %v796 = vpack.c.b16 %v696, %v692
        %v797 = vpack.c.b16 %v697, %v693
        %v798 = vpack.c.b16 %v698, %v694
        %v799 = vpack.c.b16 %v703, %v699
        %v800 = vpack.c.b16 %v704, %v700
        %v801 = vpack.c.b16 %v705, %v701
        %v802 = vpack.c.b16 %v706, %v702
        %v803 = vpack.c.b16 %v711, %v707
        %v804 = vpack.c.b16 %v712, %v708
        %v805 = vpack.c.b16 %v713, %v709
        %v806 = vpack.c.b16 %v714, %v710
        %v807 = vpack.c.b16 %v719, %v715
        %v808 = vpack.c.b16 %v720, %v716
        %v809 = vpack.c.b16 %v721, %v717
        %v810 = vpack.c.b16 %v722, %v718
        %v811 = vpack.c.b16 %v727, %v723
        %v812 = vpack.c.b16 %v728, %v724
        %v813 = vpack.c.b16 %v729, %v725
        %v814 = vpack.c.b16 %v730, %v726
        %v815 = vpack.c.b16 %v735, %v731
        %v816 = vpack.c.b16 %v736, %v732
        %v817 = vpack.c.b16 %v737, %v733
        %v818 = vpack.c.b16 %v738, %v734
        %v819 = vpack.c.b16 %v743, %v739
        %v820 = vpack.c.b16 %v744, %v740
        %v821 = vpack.c.b16 %v745, %v741
        %v822 = vpack.c.b16 %v746, %v742
        %v823 = vpack.c.b16 %v751, %v747
        %v824 = vpack.c.b16 %v752, %v748
        %v825 = vpack.c.b16 %v753, %v749
        %v826 = vpack.c.b16 %v754, %v750
        %v827 = vpack.c.b16 %v759, %v755
        %v828 = vpack.c.b16 %v760, %v756
        %v829 = vpack.c.b16 %v761, %v757
        %v830 = vpack.c.b16 %v762, %v758
        %v831 = vpack.c.b16 %v767, %v763
        %v832 = vpack.c.b16 %v768, %v764
        %v833 = vpack.c.b16 %v769, %v765
        %v834 = vpack.c.b16 %v770, %v766
        %899 = vmatprep.subr.bf16.mxu0 %v800
        %900 = vmatpush1.bf16.msra.mxu0 %v799
        %901 = vmatprep.subr.bf16.mxu0 %v796
        %902 = vmatpush1.bf16.msra.mxu0 %v795
        %903 = vmatprep.subr.bf16.mxu0 %v792
        %904 = vmatpush1.bf16.msra.mxu0 %v791
        %905 = vmatprep.subr.bf16.mxu0 %v788
        %906 = vmatpush1.bf16.msra.mxu0 %v787
        %907 = vmatprep.subr.bf16.mxu0 %v784
        %908 = vmatpush1.bf16.msra.mxu0 %v783
        %909 = vmatprep.subr.bf16.mxu0 %v780
        %910 = vmatpush1.bf16.msra.mxu0 %v779
        %911 = vmatprep.subr.bf16.mxu0 %v776
        %912 = vmatpush1.bf16.msra.mxu0 %v775
        %913 = vmatprep.subr.bf16.mxu0 %v772
        %914 = vmatpush1.bf16.msra.mxu0 %v771
        %915 = vmatprep.subr.bf16.mxu0 %v832
        %916 = vmatpush2.bf16.msra.mxu0 %v831
        %917 = vmatprep.subr.bf16.mxu0 %v828
        %918 = vmatpush2.bf16.msra.mxu0 %v827
        %919 = vmatprep.subr.bf16.mxu0 %v824
        %920 = vmatpush2.bf16.msra.mxu0 %v823
        %921 = vmatprep.subr.bf16.mxu0 %v820
        %922 = vmatpush2.bf16.msra.mxu0 %v819
        %923 = vmatprep.subr.bf16.mxu0 %v816
        %924 = vmatpush2.bf16.msra.mxu0 %v815
        %925 = vmatprep.subr.bf16.mxu0 %v812
        %926 = vmatpush2.bf16.msra.mxu0 %v811
        %927 = vmatprep.subr.bf16.mxu0 %v808
        %928 = vmatpush2.bf16.msra.mxu0 %v807
        %929 = vmatprep.subr.bf16.mxu0 %v804
        %930 = vmatpush2.bf16.msra.mxu0 %v803
        %931 = vmatprep.mubr.bf16.mxu0 %v492
        %932 = vmatmul.mubr.bf16.gmra.mxu0 %v491
        %v933 = vpop.f32.mrf.mxu0
        %v934 = vadd.f32 %v562, %v933
        %v935 = vpop.f32.mrf.mxu0
        %v936 = vadd.f32 %v566, %v935
        %v937 = vpop.f32.mrf.mxu0
        %v938 = vpop.f32.mrf.mxu0
        %939 = vdwg.mxu0
        %940 = vmatprep.subr.bf16.mxu0 %v802
        %941 = vmatpush1.bf16.msra.mxu0 %v801
        %942 = vmatprep.subr.bf16.mxu0 %v798
        %943 = vmatpush1.bf16.msra.mxu0 %v797
        %944 = vmatprep.subr.bf16.mxu0 %v794
        %945 = vmatpush1.bf16.msra.mxu0 %v793
        %946 = vmatprep.subr.bf16.mxu0 %v790
        %947 = vmatpush1.bf16.msra.mxu0 %v789
        %948 = vmatprep.subr.bf16.mxu0 %v786
        %949 = vmatpush1.bf16.msra.mxu0 %v785
        %950 = vmatprep.subr.bf16.mxu0 %v782
        %951 = vmatpush1.bf16.msra.mxu0 %v781
        %952 = vmatprep.subr.bf16.mxu0 %v778
        %953 = vmatpush1.bf16.msra.mxu0 %v777
        %954 = vmatprep.subr.bf16.mxu0 %v774
        %955 = vmatpush1.bf16.msra.mxu0 %v773
        %956 = vmatprep.subr.bf16.mxu0 %v834
        %957 = vmatpush2.bf16.msra.mxu0 %v833
        %958 = vmatprep.subr.bf16.mxu0 %v830
        %959 = vmatpush2.bf16.msra.mxu0 %v829
        %960 = vmatprep.subr.bf16.mxu0 %v826
        %961 = vmatpush2.bf16.msra.mxu0 %v825
        %962 = vmatprep.subr.bf16.mxu0 %v822
        %963 = vmatpush2.bf16.msra.mxu0 %v821
        %964 = vmatprep.subr.bf16.mxu0 %v818
        %965 = vmatpush2.bf16.msra.mxu0 %v817
        %966 = vmatprep.subr.bf16.mxu0 %v814
        %967 = vmatpush2.bf16.msra.mxu0 %v813
        %968 = vmatprep.subr.bf16.mxu0 %v810
        %969 = vmatpush2.bf16.msra.mxu0 %v809
        %970 = vmatprep.subr.bf16.mxu0 %v806
        %971 = vmatpush2.bf16.msra.mxu0 %v805
        %972 = vmatprep.mubr.bf16.mxu0 %v492
        %973 = vmatmul.mubr.bf16.gmra.mxu0 %v491
        %v974 = vpop.f32.mrf.mxu0
        %v975 = vadd.f32 %v570, %v974
        %v976 = vpop.f32.mrf.mxu0
        %v977 = vadd.f32 %v574, %v976
        %v978 = vpop.f32.mrf.mxu0
        %v979 = vpop.f32.mrf.mxu0
        %980 = vdwg.mxu0
        %v981 = vld [vmem:[#allocation2] sm:$0xff]
        %v982 = vld [vmem:[#allocation2 + $0x8] sm:$0xff]
        %v983 = vld [vmem:[#allocation2 + $0x10] sm:$0xff]
        %v984 = vld [vmem:[#allocation2 + $0x18] sm:$0xff]
        %v985 = vpack.c.bf16 %v934, %v934
        %v986 = vpack.c.bf16 %v936, %v936
        %v987 = vpack.c.bf16 %v975, %v975
        %v988 = vpack.c.bf16 %v977, %v977
        %v989 = vld [vmem:[%s411] sm:$0xff]
        %v990 = vld [vmem:[%s411 + $0x8] sm:$0xff]
        %v991 = vld [vmem:[%s411 + $0x10] sm:$0xff]
        %v992 = vld [vmem:[%s411 + $0x18] sm:$0xff]
        %v993 = vld [vmem:[%s411 + $0x20] sm:$0xff]
        %v994 = vld [vmem:[%s411 + $0x28] sm:$0xff]
        %v995 = vld [vmem:[%s411 + $0x30] sm:$0xff]
        %v996 = vld [vmem:[%s411 + $0x38] sm:$0xff]
        %v997 = vld [vmem:[%s411 + $0x40] sm:$0xff]
        %v998 = vld [vmem:[%s411 + $0x48] sm:$0xff]
        %v999 = vld [vmem:[%s411 + $0x50] sm:$0xff]
        %v1000 = vld [vmem:[%s411 + $0x58] sm:$0xff]
        %v1001 = vld [vmem:[%s411 + $0x60] sm:$0xff]
        %v1002 = vld [vmem:[%s411 + $0x68] sm:$0xff]
        %v1003 = vld [vmem:[%s411 + $0x70] sm:$0xff]
        %v1004 = vld [vmem:[%s411 + $0x78] sm:$0xff]
        %v1005 = vld [vmem:[%s411 + $0x80] sm:$0xff]
        %v1006 = vld [vmem:[%s411 + $0x88] sm:$0xff]
        %v1007 = vld [vmem:[%s411 + $0x90] sm:$0xff]
        %v1008 = vld [vmem:[%s411 + $0x98] sm:$0xff]
        %v1009 = vld [vmem:[%s411 + $0xa0] sm:$0xff]
        %v1010 = vld [vmem:[%s411 + $0xa8] sm:$0xff]
        %v1011 = vld [vmem:[%s411 + $0xb0] sm:$0xff]
        %v1012 = vld [vmem:[%s411 + $0xb8] sm:$0xff]
        %v1013 = vld [vmem:[%s411 + $0xc0] sm:$0xff]
        %v1014 = vld [vmem:[%s411 + $0xc8] sm:$0xff]
        %v1015 = vld [vmem:[%s411 + $0xd0] sm:$0xff]
        %v1016 = vld [vmem:[%s411 + $0xd8] sm:$0xff]
        %v1017 = vld [vmem:[%s411 + $0xe0] sm:$0xff]
        %v1018 = vld [vmem:[%s411 + $0xe8] sm:$0xff]
        %v1019 = vld [vmem:[%s411 + $0xf0] sm:$0xff]
        %v1020 = vld [vmem:[%s411 + $0xf8] sm:$0xff]
        %v1021 = vld [vmem:[%s411 + $0x100] sm:$0xff]
        %v1022 = vld [vmem:[%s411 + $0x108] sm:$0xff]
        %v1023 = vld [vmem:[%s411 + $0x110] sm:$0xff]
        %v1024 = vld [vmem:[%s411 + $0x118] sm:$0xff]
        %v1025 = vld [vmem:[%s411 + $0x120] sm:$0xff]
        %v1026 = vld [vmem:[%s411 + $0x128] sm:$0xff]
        %v1027 = vld [vmem:[%s411 + $0x130] sm:$0xff]
        %v1028 = vld [vmem:[%s411 + $0x138] sm:$0xff]
        %v1029 = vld [vmem:[%s411 + $0x140] sm:$0xff]
        %v1030 = vld [vmem:[%s411 + $0x148] sm:$0xff]
        %v1031 = vld [vmem:[%s411 + $0x150] sm:$0xff]
        %v1032 = vld [vmem:[%s411 + $0x158] sm:$0xff]
        %v1033 = vld [vmem:[%s411 + $0x160] sm:$0xff]
        %v1034 = vld [vmem:[%s411 + $0x168] sm:$0xff]
        %v1035 = vld [vmem:[%s411 + $0x170] sm:$0xff]
        %v1036 = vld [vmem:[%s411 + $0x178] sm:$0xff]
        %v1037 = vld [vmem:[%s411 + $0x180] sm:$0xff]
        %v1038 = vld [vmem:[%s411 + $0x188] sm:$0xff]
        %v1039 = vld [vmem:[%s411 + $0x190] sm:$0xff]
        %v1040 = vld [vmem:[%s411 + $0x198] sm:$0xff]
        %v1041 = vld [vmem:[%s411 + $0x1a0] sm:$0xff]
        %v1042 = vld [vmem:[%s411 + $0x1a8] sm:$0xff]
        %v1043 = vld [vmem:[%s411 + $0x1b0] sm:$0xff]
        %v1044 = vld [vmem:[%s411 + $0x1b8] sm:$0xff]
        %v1045 = vld [vmem:[%s411 + $0x1c0] sm:$0xff]
        %v1046 = vld [vmem:[%s411 + $0x1c8] sm:$0xff]
        %v1047 = vld [vmem:[%s411 + $0x1d0] sm:$0xff]
        %v1048 = vld [vmem:[%s411 + $0x1d8] sm:$0xff]
        %v1049 = vld [vmem:[%s411 + $0x1e0] sm:$0xff]
        %v1050 = vld [vmem:[%s411 + $0x1e8] sm:$0xff]
        %v1051 = vld [vmem:[%s411 + $0x1f0] sm:$0xff]
        %v1052 = vld [vmem:[%s411 + $0x1f8] sm:$0xff]
        %v1053 = vld [vmem:[%s411 + $0x200] sm:$0xff]
        %v1054 = vld [vmem:[%s411 + $0x208] sm:$0xff]
        %v1055 = vld [vmem:[%s411 + $0x210] sm:$0xff]
        %v1056 = vld [vmem:[%s411 + $0x218] sm:$0xff]
        %v1057 = vld [vmem:[%s411 + $0x220] sm:$0xff]
        %v1058 = vld [vmem:[%s411 + $0x228] sm:$0xff]
        %v1059 = vld [vmem:[%s411 + $0x230] sm:$0xff]
        %v1060 = vld [vmem:[%s411 + $0x238] sm:$0xff]
        %v1061 = vld [vmem:[%s411 + $0x240] sm:$0xff]
        %v1062 = vld [vmem:[%s411 + $0x248] sm:$0xff]
        %v1063 = vld [vmem:[%s411 + $0x250] sm:$0xff]
        %v1064 = vld [vmem:[%s411 + $0x258] sm:$0xff]
        %v1065 = vld [vmem:[%s411 + $0x260] sm:$0xff]
        %v1066 = vld [vmem:[%s411 + $0x268] sm:$0xff]
        %v1067 = vld [vmem:[%s411 + $0x270] sm:$0xff]
        %v1068 = vld [vmem:[%s411 + $0x278] sm:$0xff]
        %v1069 = vld [vmem:[%s411 + $0x280] sm:$0xff]
        %v1070 = vld [vmem:[%s411 + $0x288] sm:$0xff]
        %v1071 = vld [vmem:[%s411 + $0x290] sm:$0xff]
        %v1072 = vld [vmem:[%s411 + $0x298] sm:$0xff]
        %v1073 = vld [vmem:[%s411 + $0x2a0] sm:$0xff]
        %v1074 = vld [vmem:[%s411 + $0x2a8] sm:$0xff]
        %v1075 = vld [vmem:[%s411 + $0x2b0] sm:$0xff]
        %v1076 = vld [vmem:[%s411 + $0x2b8] sm:$0xff]
        %v1077 = vld [vmem:[%s411 + $0x2c0] sm:$0xff]
        %v1078 = vld [vmem:[%s411 + $0x2c8] sm:$0xff]
        %v1079 = vld [vmem:[%s411 + $0x2d0] sm:$0xff]
        %v1080 = vld [vmem:[%s411 + $0x2d8] sm:$0xff]
        %v1081 = vld [vmem:[%s411 + $0x2e0] sm:$0xff]
        %v1082 = vld [vmem:[%s411 + $0x2e8] sm:$0xff]
        %v1083 = vld [vmem:[%s411 + $0x2f0] sm:$0xff]
        %v1084 = vld [vmem:[%s411 + $0x2f8] sm:$0xff]
        %v1085 = vld [vmem:[%s411 + $0x300] sm:$0xff]
        %v1086 = vld [vmem:[%s411 + $0x308] sm:$0xff]
        %v1087 = vld [vmem:[%s411 + $0x310] sm:$0xff]
        %v1088 = vld [vmem:[%s411 + $0x318] sm:$0xff]
        %v1089 = vld [vmem:[%s411 + $0x320] sm:$0xff]
        %v1090 = vld [vmem:[%s411 + $0x328] sm:$0xff]
        %v1091 = vld [vmem:[%s411 + $0x330] sm:$0xff]
        %v1092 = vld [vmem:[%s411 + $0x338] sm:$0xff]
        %v1093 = vld [vmem:[%s411 + $0x340] sm:$0xff]
        %v1094 = vld [vmem:[%s411 + $0x348] sm:$0xff]
        %v1095 = vld [vmem:[%s411 + $0x350] sm:$0xff]
        %v1096 = vld [vmem:[%s411 + $0x358] sm:$0xff]
        %v1097 = vld [vmem:[%s411 + $0x360] sm:$0xff]
        %v1098 = vld [vmem:[%s411 + $0x368] sm:$0xff]
        %v1099 = vld [vmem:[%s411 + $0x370] sm:$0xff]
        %v1100 = vld [vmem:[%s411 + $0x378] sm:$0xff]
        %v1101 = vld [vmem:[%s411 + $0x380] sm:$0xff]
        %v1102 = vld [vmem:[%s411 + $0x388] sm:$0xff]
        %v1103 = vld [vmem:[%s411 + $0x390] sm:$0xff]
        %v1104 = vld [vmem:[%s411 + $0x398] sm:$0xff]
        %v1105 = vld [vmem:[%s411 + $0x3a0] sm:$0xff]
        %v1106 = vld [vmem:[%s411 + $0x3a8] sm:$0xff]
        %v1107 = vld [vmem:[%s411 + $0x3b0] sm:$0xff]
        %v1108 = vld [vmem:[%s411 + $0x3b8] sm:$0xff]
        %v1109 = vld [vmem:[%s411 + $0x3c0] sm:$0xff]
        %v1110 = vld [vmem:[%s411 + $0x3c8] sm:$0xff]
        %v1111 = vld [vmem:[%s411 + $0x3d0] sm:$0xff]
        %v1112 = vld [vmem:[%s411 + $0x3d8] sm:$0xff]
        %v1113 = vld [vmem:[%s411 + $0x3e0] sm:$0xff]
        %v1114 = vld [vmem:[%s411 + $0x3e8] sm:$0xff]
        %v1115 = vld [vmem:[%s411 + $0x3f0] sm:$0xff]
        %v1116 = vld [vmem:[%s411 + $0x3f8] sm:$0xff]
        %v1117 = vld [vmem:[%s411 + $0x400] sm:$0xff]
        %v1118 = vld [vmem:[%s411 + $0x408] sm:$0xff]
        %v1119 = vld [vmem:[%s411 + $0x410] sm:$0xff]
        %v1120 = vld [vmem:[%s411 + $0x418] sm:$0xff]
        %v1121 = vld [vmem:[%s411 + $0x420] sm:$0xff]
        %v1122 = vld [vmem:[%s411 + $0x428] sm:$0xff]
        %v1123 = vld [vmem:[%s411 + $0x430] sm:$0xff]
        %v1124 = vld [vmem:[%s411 + $0x438] sm:$0xff]
        %v1125 = vld [vmem:[%s411 + $0x440] sm:$0xff]
        %v1126 = vld [vmem:[%s411 + $0x448] sm:$0xff]
        %v1127 = vld [vmem:[%s411 + $0x450] sm:$0xff]
        %v1128 = vld [vmem:[%s411 + $0x458] sm:$0xff]
        %v1129 = vld [vmem:[%s411 + $0x460] sm:$0xff]
        %v1130 = vld [vmem:[%s411 + $0x468] sm:$0xff]
        %v1131 = vld [vmem:[%s411 + $0x470] sm:$0xff]
        %v1132 = vld [vmem:[%s411 + $0x478] sm:$0xff]
        %v1133 = vld [vmem:[%s411 + $0x480] sm:$0xff]
        %v1134 = vld [vmem:[%s411 + $0x488] sm:$0xff]
        %v1135 = vld [vmem:[%s411 + $0x490] sm:$0xff]
        %v1136 = vld [vmem:[%s411 + $0x498] sm:$0xff]
        %v1137 = vld [vmem:[%s411 + $0x4a0] sm:$0xff]
        %v1138 = vld [vmem:[%s411 + $0x4a8] sm:$0xff]
        %v1139 = vld [vmem:[%s411 + $0x4b0] sm:$0xff]
        %v1140 = vld [vmem:[%s411 + $0x4b8] sm:$0xff]
        %v1141 = vld [vmem:[%s411 + $0x4c0] sm:$0xff]
        %v1142 = vld [vmem:[%s411 + $0x4c8] sm:$0xff]
        %v1143 = vld [vmem:[%s411 + $0x4d0] sm:$0xff]
        %v1144 = vld [vmem:[%s411 + $0x4d8] sm:$0xff]
        %v1145 = vld [vmem:[%s411 + $0x4e0] sm:$0xff]
        %v1146 = vld [vmem:[%s411 + $0x4e8] sm:$0xff]
        %v1147 = vld [vmem:[%s411 + $0x4f0] sm:$0xff]
        %v1148 = vld [vmem:[%s411 + $0x4f8] sm:$0xff]
        %v1149 = vld [vmem:[%s411 + $0x500] sm:$0xff]
        %v1150 = vld [vmem:[%s411 + $0x508] sm:$0xff]
        %v1151 = vld [vmem:[%s411 + $0x510] sm:$0xff]
        %v1152 = vld [vmem:[%s411 + $0x518] sm:$0xff]
        %v1153 = vld [vmem:[%s411 + $0x520] sm:$0xff]
        %v1154 = vld [vmem:[%s411 + $0x528] sm:$0xff]
        %v1155 = vld [vmem:[%s411 + $0x530] sm:$0xff]
        %v1156 = vld [vmem:[%s411 + $0x538] sm:$0xff]
        %v1157 = vld [vmem:[%s411 + $0x540] sm:$0xff]
        %v1158 = vld [vmem:[%s411 + $0x548] sm:$0xff]
        %v1159 = vld [vmem:[%s411 + $0x550] sm:$0xff]
        %v1160 = vld [vmem:[%s411 + $0x558] sm:$0xff]
        %v1161 = vld [vmem:[%s411 + $0x560] sm:$0xff]
        %v1162 = vld [vmem:[%s411 + $0x568] sm:$0xff]
        %v1163 = vld [vmem:[%s411 + $0x570] sm:$0xff]
        %v1164 = vld [vmem:[%s411 + $0x578] sm:$0xff]
        %v1165 = vld [vmem:[%s411 + $0x580] sm:$0xff]
        %v1166 = vld [vmem:[%s411 + $0x588] sm:$0xff]
        %v1167 = vld [vmem:[%s411 + $0x590] sm:$0xff]
        %v1168 = vld [vmem:[%s411 + $0x598] sm:$0xff]
        %v1169 = vld [vmem:[%s411 + $0x5a0] sm:$0xff]
        %v1170 = vld [vmem:[%s411 + $0x5a8] sm:$0xff]
        %v1171 = vld [vmem:[%s411 + $0x5b0] sm:$0xff]
        %v1172 = vld [vmem:[%s411 + $0x5b8] sm:$0xff]
        %v1173 = vld [vmem:[%s411 + $0x5c0] sm:$0xff]
        %v1174 = vld [vmem:[%s411 + $0x5c8] sm:$0xff]
        %v1175 = vld [vmem:[%s411 + $0x5d0] sm:$0xff]
        %v1176 = vld [vmem:[%s411 + $0x5d8] sm:$0xff]
        %v1177 = vld [vmem:[%s411 + $0x5e0] sm:$0xff]
        %v1178 = vld [vmem:[%s411 + $0x5e8] sm:$0xff]
        %v1179 = vld [vmem:[%s411 + $0x5f0] sm:$0xff]
        %v1180 = vld [vmem:[%s411 + $0x5f8] sm:$0xff]
        %v1181 = vld [vmem:[%s411 + $0x600] sm:$0xff]
        %v1182 = vld [vmem:[%s411 + $0x608] sm:$0xff]
        %v1183 = vld [vmem:[%s411 + $0x610] sm:$0xff]
        %v1184 = vld [vmem:[%s411 + $0x618] sm:$0xff]
        %v1185 = vld [vmem:[%s411 + $0x620] sm:$0xff]
        %v1186 = vld [vmem:[%s411 + $0x628] sm:$0xff]
        %v1187 = vld [vmem:[%s411 + $0x630] sm:$0xff]
        %v1188 = vld [vmem:[%s411 + $0x638] sm:$0xff]
        %v1189 = vld [vmem:[%s411 + $0x640] sm:$0xff]
        %v1190 = vld [vmem:[%s411 + $0x648] sm:$0xff]
        %v1191 = vld [vmem:[%s411 + $0x650] sm:$0xff]
        %v1192 = vld [vmem:[%s411 + $0x658] sm:$0xff]
        %v1193 = vld [vmem:[%s411 + $0x660] sm:$0xff]
        %v1194 = vld [vmem:[%s411 + $0x668] sm:$0xff]
        %v1195 = vld [vmem:[%s411 + $0x670] sm:$0xff]
        %v1196 = vld [vmem:[%s411 + $0x678] sm:$0xff]
        %v1197 = vld [vmem:[%s411 + $0x680] sm:$0xff]
        %v1198 = vld [vmem:[%s411 + $0x688] sm:$0xff]
        %v1199 = vld [vmem:[%s411 + $0x690] sm:$0xff]
        %v1200 = vld [vmem:[%s411 + $0x698] sm:$0xff]
        %v1201 = vld [vmem:[%s411 + $0x6a0] sm:$0xff]
        %v1202 = vld [vmem:[%s411 + $0x6a8] sm:$0xff]
        %v1203 = vld [vmem:[%s411 + $0x6b0] sm:$0xff]
        %v1204 = vld [vmem:[%s411 + $0x6b8] sm:$0xff]
        %v1205 = vld [vmem:[%s411 + $0x6c0] sm:$0xff]
        %v1206 = vld [vmem:[%s411 + $0x6c8] sm:$0xff]
        %v1207 = vld [vmem:[%s411 + $0x6d0] sm:$0xff]
        %v1208 = vld [vmem:[%s411 + $0x6d8] sm:$0xff]
        %v1209 = vld [vmem:[%s411 + $0x6e0] sm:$0xff]
        %v1210 = vld [vmem:[%s411 + $0x6e8] sm:$0xff]
        %v1211 = vld [vmem:[%s411 + $0x6f0] sm:$0xff]
        %v1212 = vld [vmem:[%s411 + $0x6f8] sm:$0xff]
        %v1213 = vld [vmem:[%s411 + $0x700] sm:$0xff]
        %v1214 = vld [vmem:[%s411 + $0x708] sm:$0xff]
        %v1215 = vld [vmem:[%s411 + $0x710] sm:$0xff]
        %v1216 = vld [vmem:[%s411 + $0x718] sm:$0xff]
        %v1217 = vld [vmem:[%s411 + $0x720] sm:$0xff]
        %v1218 = vld [vmem:[%s411 + $0x728] sm:$0xff]
        %v1219 = vld [vmem:[%s411 + $0x730] sm:$0xff]
        %v1220 = vld [vmem:[%s411 + $0x738] sm:$0xff]
        %v1221 = vld [vmem:[%s411 + $0x740] sm:$0xff]
        %v1222 = vld [vmem:[%s411 + $0x748] sm:$0xff]
        %v1223 = vld [vmem:[%s411 + $0x750] sm:$0xff]
        %v1224 = vld [vmem:[%s411 + $0x758] sm:$0xff]
        %v1225 = vld [vmem:[%s411 + $0x760] sm:$0xff]
        %v1226 = vld [vmem:[%s411 + $0x768] sm:$0xff]
        %v1227 = vld [vmem:[%s411 + $0x770] sm:$0xff]
        %v1228 = vld [vmem:[%s411 + $0x778] sm:$0xff]
        %v1229 = vld [vmem:[%s411 + $0x780] sm:$0xff]
        %v1230 = vld [vmem:[%s411 + $0x788] sm:$0xff]
        %v1231 = vld [vmem:[%s411 + $0x790] sm:$0xff]
        %v1232 = vld [vmem:[%s411 + $0x798] sm:$0xff]
        %v1233 = vld [vmem:[%s411 + $0x7a0] sm:$0xff]
        %v1234 = vld [vmem:[%s411 + $0x7a8] sm:$0xff]
        %v1235 = vld [vmem:[%s411 + $0x7b0] sm:$0xff]
        %v1236 = vld [vmem:[%s411 + $0x7b8] sm:$0xff]
        %v1237 = vld [vmem:[%s411 + $0x7c0] sm:$0xff]
        %v1238 = vld [vmem:[%s411 + $0x7c8] sm:$0xff]
        %v1239 = vld [vmem:[%s411 + $0x7d0] sm:$0xff]
        %v1240 = vld [vmem:[%s411 + $0x7d8] sm:$0xff]
        %v1241 = vld [vmem:[%s411 + $0x7e0] sm:$0xff]
        %v1242 = vld [vmem:[%s411 + $0x7e8] sm:$0xff]
        %v1243 = vld [vmem:[%s411 + $0x7f0] sm:$0xff]
        %v1244 = vld [vmem:[%s411 + $0x7f8] sm:$0xff]
        %v1245 = vld [vmem:[%s411 + $0x800] sm:$0xff]
        %v1246 = vld [vmem:[%s411 + $0x808] sm:$0xff]
        %v1247 = vld [vmem:[%s411 + $0x810] sm:$0xff]
        %v1248 = vld [vmem:[%s411 + $0x818] sm:$0xff]
        %v1249 = vld [vmem:[%s411 + $0x820] sm:$0xff]
        %v1250 = vld [vmem:[%s411 + $0x828] sm:$0xff]
        %v1251 = vld [vmem:[%s411 + $0x830] sm:$0xff]
        %v1252 = vld [vmem:[%s411 + $0x838] sm:$0xff]
        %v1253 = vld [vmem:[%s411 + $0x840] sm:$0xff]
        %v1254 = vld [vmem:[%s411 + $0x848] sm:$0xff]
        %v1255 = vld [vmem:[%s411 + $0x850] sm:$0xff]
        %v1256 = vld [vmem:[%s411 + $0x858] sm:$0xff]
        %v1257 = vld [vmem:[%s411 + $0x860] sm:$0xff]
        %v1258 = vld [vmem:[%s411 + $0x868] sm:$0xff]
        %v1259 = vld [vmem:[%s411 + $0x870] sm:$0xff]
        %v1260 = vld [vmem:[%s411 + $0x878] sm:$0xff]
        %v1261 = vld [vmem:[%s411 + $0x880] sm:$0xff]
        %v1262 = vld [vmem:[%s411 + $0x888] sm:$0xff]
        %v1263 = vld [vmem:[%s411 + $0x890] sm:$0xff]
        %v1264 = vld [vmem:[%s411 + $0x898] sm:$0xff]
        %v1265 = vld [vmem:[%s411 + $0x8a0] sm:$0xff]
        %v1266 = vld [vmem:[%s411 + $0x8a8] sm:$0xff]
        %v1267 = vld [vmem:[%s411 + $0x8b0] sm:$0xff]
        %v1268 = vld [vmem:[%s411 + $0x8b8] sm:$0xff]
        %v1269 = vld [vmem:[%s411 + $0x8c0] sm:$0xff]
        %v1270 = vld [vmem:[%s411 + $0x8c8] sm:$0xff]
        %v1271 = vld [vmem:[%s411 + $0x8d0] sm:$0xff]
        %v1272 = vld [vmem:[%s411 + $0x8d8] sm:$0xff]
        %v1273 = vld [vmem:[%s411 + $0x8e0] sm:$0xff]
        %v1274 = vld [vmem:[%s411 + $0x8e8] sm:$0xff]
        %v1275 = vld [vmem:[%s411 + $0x8f0] sm:$0xff]
        %v1276 = vld [vmem:[%s411 + $0x8f8] sm:$0xff]
        %v1277 = vld [vmem:[%s411 + $0x900] sm:$0xff]
        %v1278 = vld [vmem:[%s411 + $0x908] sm:$0xff]
        %v1279 = vld [vmem:[%s411 + $0x910] sm:$0xff]
        %v1280 = vld [vmem:[%s411 + $0x918] sm:$0xff]
        %v1281 = vld [vmem:[%s411 + $0x920] sm:$0xff]
        %v1282 = vld [vmem:[%s411 + $0x928] sm:$0xff]
        %v1283 = vld [vmem:[%s411 + $0x930] sm:$0xff]
        %v1284 = vld [vmem:[%s411 + $0x938] sm:$0xff]
        %v1285 = vld [vmem:[%s411 + $0x940] sm:$0xff]
        %v1286 = vld [vmem:[%s411 + $0x948] sm:$0xff]
        %v1287 = vld [vmem:[%s411 + $0x950] sm:$0xff]
        %v1288 = vld [vmem:[%s411 + $0x958] sm:$0xff]
        %v1289 = vld [vmem:[%s411 + $0x960] sm:$0xff]
        %v1290 = vld [vmem:[%s411 + $0x968] sm:$0xff]
        %v1291 = vld [vmem:[%s411 + $0x970] sm:$0xff]
        %v1292 = vld [vmem:[%s411 + $0x978] sm:$0xff]
        %v1293 = vld [vmem:[%s411 + $0x980] sm:$0xff]
        %v1294 = vld [vmem:[%s411 + $0x988] sm:$0xff]
        %v1295 = vld [vmem:[%s411 + $0x990] sm:$0xff]
        %v1296 = vld [vmem:[%s411 + $0x998] sm:$0xff]
        %v1297 = vld [vmem:[%s411 + $0x9a0] sm:$0xff]
        %v1298 = vld [vmem:[%s411 + $0x9a8] sm:$0xff]
        %v1299 = vld [vmem:[%s411 + $0x9b0] sm:$0xff]
        %v1300 = vld [vmem:[%s411 + $0x9b8] sm:$0xff]
        %v1301 = vld [vmem:[%s411 + $0x9c0] sm:$0xff]
        %v1302 = vld [vmem:[%s411 + $0x9c8] sm:$0xff]
        %v1303 = vld [vmem:[%s411 + $0x9d0] sm:$0xff]
        %v1304 = vld [vmem:[%s411 + $0x9d8] sm:$0xff]
        %v1305 = vld [vmem:[%s411 + $0x9e0] sm:$0xff]
        %v1306 = vld [vmem:[%s411 + $0x9e8] sm:$0xff]
        %v1307 = vld [vmem:[%s411 + $0x9f0] sm:$0xff]
        %v1308 = vld [vmem:[%s411 + $0x9f8] sm:$0xff]
        %v1309 = vld [vmem:[%s411 + $0xa00] sm:$0xff]
        %v1310 = vld [vmem:[%s411 + $0xa08] sm:$0xff]
        %v1311 = vld [vmem:[%s411 + $0xa10] sm:$0xff]
        %v1312 = vld [vmem:[%s411 + $0xa18] sm:$0xff]
        %v1313 = vld [vmem:[%s411 + $0xa20] sm:$0xff]
        %v1314 = vld [vmem:[%s411 + $0xa28] sm:$0xff]
        %v1315 = vld [vmem:[%s411 + $0xa30] sm:$0xff]
        %v1316 = vld [vmem:[%s411 + $0xa38] sm:$0xff]
        %v1317 = vld [vmem:[%s411 + $0xa40] sm:$0xff]
        %v1318 = vld [vmem:[%s411 + $0xa48] sm:$0xff]
        %v1319 = vld [vmem:[%s411 + $0xa50] sm:$0xff]
        %v1320 = vld [vmem:[%s411 + $0xa58] sm:$0xff]
        %v1321 = vld [vmem:[%s411 + $0xa60] sm:$0xff]
        %v1322 = vld [vmem:[%s411 + $0xa68] sm:$0xff]
        %v1323 = vld [vmem:[%s411 + $0xa70] sm:$0xff]
        %v1324 = vld [vmem:[%s411 + $0xa78] sm:$0xff]
        %v1325 = vld [vmem:[%s411 + $0xa80] sm:$0xff]
        %v1326 = vld [vmem:[%s411 + $0xa88] sm:$0xff]
        %v1327 = vld [vmem:[%s411 + $0xa90] sm:$0xff]
        %v1328 = vld [vmem:[%s411 + $0xa98] sm:$0xff]
        %v1329 = vld [vmem:[%s411 + $0xaa0] sm:$0xff]
        %v1330 = vld [vmem:[%s411 + $0xaa8] sm:$0xff]
        %v1331 = vld [vmem:[%s411 + $0xab0] sm:$0xff]
        %v1332 = vld [vmem:[%s411 + $0xab8] sm:$0xff]
        %v1333 = vld [vmem:[%s411 + $0xac0] sm:$0xff]
        %v1334 = vld [vmem:[%s411 + $0xac8] sm:$0xff]
        %v1335 = vld [vmem:[%s411 + $0xad0] sm:$0xff]
        %v1336 = vld [vmem:[%s411 + $0xad8] sm:$0xff]
        %v1337 = vld [vmem:[%s411 + $0xae0] sm:$0xff]
        %v1338 = vld [vmem:[%s411 + $0xae8] sm:$0xff]
        %v1339 = vld [vmem:[%s411 + $0xaf0] sm:$0xff]
        %v1340 = vld [vmem:[%s411 + $0xaf8] sm:$0xff]
        %v1341 = vld [vmem:[%s411 + $0xb00] sm:$0xff]
        %v1342 = vld [vmem:[%s411 + $0xb08] sm:$0xff]
        %v1343 = vld [vmem:[%s411 + $0xb10] sm:$0xff]
        %v1344 = vld [vmem:[%s411 + $0xb18] sm:$0xff]
        %v1345 = vld [vmem:[%s411 + $0xb20] sm:$0xff]
        %v1346 = vld [vmem:[%s411 + $0xb28] sm:$0xff]
        %v1347 = vld [vmem:[%s411 + $0xb30] sm:$0xff]
        %v1348 = vld [vmem:[%s411 + $0xb38] sm:$0xff]
        %v1349 = vld [vmem:[%s411 + $0xb40] sm:$0xff]
        %v1350 = vld [vmem:[%s411 + $0xb48] sm:$0xff]
        %v1351 = vld [vmem:[%s411 + $0xb50] sm:$0xff]
        %v1352 = vld [vmem:[%s411 + $0xb58] sm:$0xff]
        %v1353 = vld [vmem:[%s411 + $0xb60] sm:$0xff]
        %v1354 = vld [vmem:[%s411 + $0xb68] sm:$0xff]
        %v1355 = vld [vmem:[%s411 + $0xb70] sm:$0xff]
        %v1356 = vld [vmem:[%s411 + $0xb78] sm:$0xff]
        %v1357 = vld [vmem:[%s411 + $0xb80] sm:$0xff]
        %v1358 = vld [vmem:[%s411 + $0xb88] sm:$0xff]
        %v1359 = vld [vmem:[%s411 + $0xb90] sm:$0xff]
        %v1360 = vld [vmem:[%s411 + $0xb98] sm:$0xff]
        %v1361 = vld [vmem:[%s411 + $0xba0] sm:$0xff]
        %v1362 = vld [vmem:[%s411 + $0xba8] sm:$0xff]
        %v1363 = vld [vmem:[%s411 + $0xbb0] sm:$0xff]
        %v1364 = vld [vmem:[%s411 + $0xbb8] sm:$0xff]
        %v1365 = vld [vmem:[%s411 + $0xbc0] sm:$0xff]
        %v1366 = vld [vmem:[%s411 + $0xbc8] sm:$0xff]
        %v1367 = vld [vmem:[%s411 + $0xbd0] sm:$0xff]
        %v1368 = vld [vmem:[%s411 + $0xbd8] sm:$0xff]
        %v1369 = vld [vmem:[%s411 + $0xbe0] sm:$0xff]
        %v1370 = vld [vmem:[%s411 + $0xbe8] sm:$0xff]
        %v1371 = vld [vmem:[%s411 + $0xbf0] sm:$0xff]
        %v1372 = vld [vmem:[%s411 + $0xbf8] sm:$0xff]
        %v1373 = vld [vmem:[%s411 + $0xc00] sm:$0xff]
        %v1374 = vld [vmem:[%s411 + $0xc08] sm:$0xff]
        %v1375 = vld [vmem:[%s411 + $0xc10] sm:$0xff]
        %v1376 = vld [vmem:[%s411 + $0xc18] sm:$0xff]
        %v1377 = vld [vmem:[%s411 + $0xc20] sm:$0xff]
        %v1378 = vld [vmem:[%s411 + $0xc28] sm:$0xff]
        %v1379 = vld [vmem:[%s411 + $0xc30] sm:$0xff]
        %v1380 = vld [vmem:[%s411 + $0xc38] sm:$0xff]
        %v1381 = vld [vmem:[%s411 + $0xc40] sm:$0xff]
        %v1382 = vld [vmem:[%s411 + $0xc48] sm:$0xff]
        %v1383 = vld [vmem:[%s411 + $0xc50] sm:$0xff]
        %v1384 = vld [vmem:[%s411 + $0xc58] sm:$0xff]
        %v1385 = vld [vmem:[%s411 + $0xc60] sm:$0xff]
        %v1386 = vld [vmem:[%s411 + $0xc68] sm:$0xff]
        %v1387 = vld [vmem:[%s411 + $0xc70] sm:$0xff]
        %v1388 = vld [vmem:[%s411 + $0xc78] sm:$0xff]
        %v1389 = vld [vmem:[%s411 + $0xc80] sm:$0xff]
        %v1390 = vld [vmem:[%s411 + $0xc88] sm:$0xff]
        %v1391 = vld [vmem:[%s411 + $0xc90] sm:$0xff]
        %v1392 = vld [vmem:[%s411 + $0xc98] sm:$0xff]
        %v1393 = vld [vmem:[%s411 + $0xca0] sm:$0xff]
        %v1394 = vld [vmem:[%s411 + $0xca8] sm:$0xff]
        %v1395 = vld [vmem:[%s411 + $0xcb0] sm:$0xff]
        %v1396 = vld [vmem:[%s411 + $0xcb8] sm:$0xff]
        %v1397 = vld [vmem:[%s411 + $0xcc0] sm:$0xff]
        %v1398 = vld [vmem:[%s411 + $0xcc8] sm:$0xff]
        %v1399 = vld [vmem:[%s411 + $0xcd0] sm:$0xff]
        %v1400 = vld [vmem:[%s411 + $0xcd8] sm:$0xff]
        %v1401 = vld [vmem:[%s411 + $0xce0] sm:$0xff]
        %v1402 = vld [vmem:[%s411 + $0xce8] sm:$0xff]
        %v1403 = vld [vmem:[%s411 + $0xcf0] sm:$0xff]
        %v1404 = vld [vmem:[%s411 + $0xcf8] sm:$0xff]
        %v1405 = vld [vmem:[%s411 + $0xd00] sm:$0xff]
        %v1406 = vld [vmem:[%s411 + $0xd08] sm:$0xff]
        %v1407 = vld [vmem:[%s411 + $0xd10] sm:$0xff]
        %v1408 = vld [vmem:[%s411 + $0xd18] sm:$0xff]
        %v1409 = vld [vmem:[%s411 + $0xd20] sm:$0xff]
        %v1410 = vld [vmem:[%s411 + $0xd28] sm:$0xff]
        %v1411 = vld [vmem:[%s411 + $0xd30] sm:$0xff]
        %v1412 = vld [vmem:[%s411 + $0xd38] sm:$0xff]
        %v1413 = vld [vmem:[%s411 + $0xd40] sm:$0xff]
        %v1414 = vld [vmem:[%s411 + $0xd48] sm:$0xff]
        %v1415 = vld [vmem:[%s411 + $0xd50] sm:$0xff]
        %v1416 = vld [vmem:[%s411 + $0xd58] sm:$0xff]
        %v1417 = vld [vmem:[%s411 + $0xd60] sm:$0xff]
        %v1418 = vld [vmem:[%s411 + $0xd68] sm:$0xff]
        %v1419 = vld [vmem:[%s411 + $0xd70] sm:$0xff]
        %v1420 = vld [vmem:[%s411 + $0xd78] sm:$0xff]
        %v1421 = vld [vmem:[%s411 + $0xd80] sm:$0xff]
        %v1422 = vld [vmem:[%s411 + $0xd88] sm:$0xff]
        %v1423 = vld [vmem:[%s411 + $0xd90] sm:$0xff]
        %v1424 = vld [vmem:[%s411 + $0xd98] sm:$0xff]
        %v1425 = vld [vmem:[%s411 + $0xda0] sm:$0xff]
        %v1426 = vld [vmem:[%s411 + $0xda8] sm:$0xff]
        %v1427 = vld [vmem:[%s411 + $0xdb0] sm:$0xff]
        %v1428 = vld [vmem:[%s411 + $0xdb8] sm:$0xff]
        %v1429 = vld [vmem:[%s411 + $0xdc0] sm:$0xff]
        %v1430 = vld [vmem:[%s411 + $0xdc8] sm:$0xff]
        %v1431 = vld [vmem:[%s411 + $0xdd0] sm:$0xff]
        %v1432 = vld [vmem:[%s411 + $0xdd8] sm:$0xff]
        %v1433 = vld [vmem:[%s411 + $0xde0] sm:$0xff]
        %v1434 = vld [vmem:[%s411 + $0xde8] sm:$0xff]
        %v1435 = vld [vmem:[%s411 + $0xdf0] sm:$0xff]
        %v1436 = vld [vmem:[%s411 + $0xdf8] sm:$0xff]
        %v1437 = vld [vmem:[%s411 + $0xe00] sm:$0xff]
        %v1438 = vld [vmem:[%s411 + $0xe08] sm:$0xff]
        %v1439 = vld [vmem:[%s411 + $0xe10] sm:$0xff]
        %v1440 = vld [vmem:[%s411 + $0xe18] sm:$0xff]
        %v1441 = vld [vmem:[%s411 + $0xe20] sm:$0xff]
        %v1442 = vld [vmem:[%s411 + $0xe28] sm:$0xff]
        %v1443 = vld [vmem:[%s411 + $0xe30] sm:$0xff]
        %v1444 = vld [vmem:[%s411 + $0xe38] sm:$0xff]
        %v1445 = vld [vmem:[%s411 + $0xe40] sm:$0xff]
        %v1446 = vld [vmem:[%s411 + $0xe48] sm:$0xff]
        %v1447 = vld [vmem:[%s411 + $0xe50] sm:$0xff]
        %v1448 = vld [vmem:[%s411 + $0xe58] sm:$0xff]
        %v1449 = vld [vmem:[%s411 + $0xe60] sm:$0xff]
        %v1450 = vld [vmem:[%s411 + $0xe68] sm:$0xff]
        %v1451 = vld [vmem:[%s411 + $0xe70] sm:$0xff]
        %v1452 = vld [vmem:[%s411 + $0xe78] sm:$0xff]
        %v1453 = vld [vmem:[%s411 + $0xe80] sm:$0xff]
        %v1454 = vld [vmem:[%s411 + $0xe88] sm:$0xff]
        %v1455 = vld [vmem:[%s411 + $0xe90] sm:$0xff]
        %v1456 = vld [vmem:[%s411 + $0xe98] sm:$0xff]
        %v1457 = vld [vmem:[%s411 + $0xea0] sm:$0xff]
        %v1458 = vld [vmem:[%s411 + $0xea8] sm:$0xff]
        %v1459 = vld [vmem:[%s411 + $0xeb0] sm:$0xff]
        %v1460 = vld [vmem:[%s411 + $0xeb8] sm:$0xff]
        %v1461 = vld [vmem:[%s411 + $0xec0] sm:$0xff]
        %v1462 = vld [vmem:[%s411 + $0xec8] sm:$0xff]
        %v1463 = vld [vmem:[%s411 + $0xed0] sm:$0xff]
        %v1464 = vld [vmem:[%s411 + $0xed8] sm:$0xff]
        %v1465 = vld [vmem:[%s411 + $0xee0] sm:$0xff]
        %v1466 = vld [vmem:[%s411 + $0xee8] sm:$0xff]
        %v1467 = vld [vmem:[%s411 + $0xef0] sm:$0xff]
        %v1468 = vld [vmem:[%s411 + $0xef8] sm:$0xff]
        %v1469 = vld [vmem:[%s411 + $0xf00] sm:$0xff]
        %v1470 = vld [vmem:[%s411 + $0xf08] sm:$0xff]
        %v1471 = vld [vmem:[%s411 + $0xf10] sm:$0xff]
        %v1472 = vld [vmem:[%s411 + $0xf18] sm:$0xff]
        %v1473 = vld [vmem:[%s411 + $0xf20] sm:$0xff]
        %v1474 = vld [vmem:[%s411 + $0xf28] sm:$0xff]
        %v1475 = vld [vmem:[%s411 + $0xf30] sm:$0xff]
        %v1476 = vld [vmem:[%s411 + $0xf38] sm:$0xff]
        %v1477 = vld [vmem:[%s411 + $0xf40] sm:$0xff]
        %v1478 = vld [vmem:[%s411 + $0xf48] sm:$0xff]
        %v1479 = vld [vmem:[%s411 + $0xf50] sm:$0xff]
        %v1480 = vld [vmem:[%s411 + $0xf58] sm:$0xff]
        %v1481 = vld [vmem:[%s411 + $0xf60] sm:$0xff]
        %v1482 = vld [vmem:[%s411 + $0xf68] sm:$0xff]
        %v1483 = vld [vmem:[%s411 + $0xf70] sm:$0xff]
        %v1484 = vld [vmem:[%s411 + $0xf78] sm:$0xff]
        %v1485 = vld [vmem:[%s411 + $0xf80] sm:$0xff]
        %v1486 = vld [vmem:[%s411 + $0xf88] sm:$0xff]
        %v1487 = vld [vmem:[%s411 + $0xf90] sm:$0xff]
        %v1488 = vld [vmem:[%s411 + $0xf98] sm:$0xff]
        %v1489 = vld [vmem:[%s411 + $0xfa0] sm:$0xff]
        %v1490 = vld [vmem:[%s411 + $0xfa8] sm:$0xff]
        %v1491 = vld [vmem:[%s411 + $0xfb0] sm:$0xff]
        %v1492 = vld [vmem:[%s411 + $0xfb8] sm:$0xff]
        %v1493 = vld [vmem:[%s411 + $0xfc0] sm:$0xff]
        %v1494 = vld [vmem:[%s411 + $0xfc8] sm:$0xff]
        %v1495 = vld [vmem:[%s411 + $0xfd0] sm:$0xff]
        %v1496 = vld [vmem:[%s411 + $0xfd8] sm:$0xff]
        %v1497 = vld [vmem:[%s411 + $0xfe0] sm:$0xff]
        %v1498 = vld [vmem:[%s411 + $0xfe8] sm:$0xff]
        %v1499 = vld [vmem:[%s411 + $0xff0] sm:$0xff]
        %v1500 = vld [vmem:[%s411 + $0xff8] sm:$0xff]
        %v2013 = vunpack.c.l.b16 %v989
        %v2014 = vunpack.c.h.b16 %v989
        %v2015 = vunpack.c.l.b16 %v990
        %v2016 = vunpack.c.h.b16 %v990
        %v2017 = vunpack.c.l.b16 %v991
        %v2018 = vunpack.c.h.b16 %v991
        %v2019 = vunpack.c.l.b16 %v992
        %v2020 = vunpack.c.h.b16 %v992
        %v2021 = vunpack.c.l.b16 %v993
        %v2022 = vunpack.c.h.b16 %v993
        %v2023 = vunpack.c.l.b16 %v994
        %v2024 = vunpack.c.h.b16 %v994
        %v2025 = vunpack.c.l.b16 %v995
        %v2026 = vunpack.c.h.b16 %v995
        %v2027 = vunpack.c.l.b16 %v996
        %v2028 = vunpack.c.h.b16 %v996
        %v2029 = vunpack.c.l.b16 %v997
        %v2030 = vunpack.c.h.b16 %v997
        %v2031 = vunpack.c.l.b16 %v998
        %v2032 = vunpack.c.h.b16 %v998
        %v2033 = vunpack.c.l.b16 %v999
        %v2034 = vunpack.c.h.b16 %v999
        %v2035 = vunpack.c.l.b16 %v1000
        %v2036 = vunpack.c.h.b16 %v1000
        %v2037 = vunpack.c.l.b16 %v1001
        %v2038 = vunpack.c.h.b16 %v1001
        %v2039 = vunpack.c.l.b16 %v1002
        %v2040 = vunpack.c.h.b16 %v1002
        %v2041 = vunpack.c.l.b16 %v1003
        %v2042 = vunpack.c.h.b16 %v1003
        %v2043 = vunpack.c.l.b16 %v1004
        %v2044 = vunpack.c.h.b16 %v1004
        %v2045 = vunpack.c.l.b16 %v1005
        %v2046 = vunpack.c.h.b16 %v1005
        %v2047 = vunpack.c.l.b16 %v1006
        %v2048 = vunpack.c.h.b16 %v1006
        %v2049 = vunpack.c.l.b16 %v1007
        %v2050 = vunpack.c.h.b16 %v1007
        %v2051 = vunpack.c.l.b16 %v1008
        %v2052 = vunpack.c.h.b16 %v1008
        %v2053 = vunpack.c.l.b16 %v1009
        %v2054 = vunpack.c.h.b16 %v1009
        %v2055 = vunpack.c.l.b16 %v1010
        %v2056 = vunpack.c.h.b16 %v1010
        %v2057 = vunpack.c.l.b16 %v1011
        %v2058 = vunpack.c.h.b16 %v1011
        %v2059 = vunpack.c.l.b16 %v1012
        %v2060 = vunpack.c.h.b16 %v1012
        %v2061 = vunpack.c.l.b16 %v1013
        %v2062 = vunpack.c.h.b16 %v1013
        %v2063 = vunpack.c.l.b16 %v1014
        %v2064 = vunpack.c.h.b16 %v1014
        %v2065 = vunpack.c.l.b16 %v1015
        %v2066 = vunpack.c.h.b16 %v1015
        %v2067 = vunpack.c.l.b16 %v1016
        %v2068 = vunpack.c.h.b16 %v1016
        %v2069 = vunpack.c.l.b16 %v1017
        %v2070 = vunpack.c.h.b16 %v1017
        %v2071 = vunpack.c.l.b16 %v1018
        %v2072 = vunpack.c.h.b16 %v1018
        %v2073 = vunpack.c.l.b16 %v1019
        %v2074 = vunpack.c.h.b16 %v1019
        %v2075 = vunpack.c.l.b16 %v1020
        %v2076 = vunpack.c.h.b16 %v1020
        %v2077 = vunpack.c.l.b16 %v1021
        %v2078 = vunpack.c.h.b16 %v1021
        %v2079 = vunpack.c.l.b16 %v1022
        %v2080 = vunpack.c.h.b16 %v1022
        %v2081 = vunpack.c.l.b16 %v1023
        %v2082 = vunpack.c.h.b16 %v1023
        %v2083 = vunpack.c.l.b16 %v1024
        %v2084 = vunpack.c.h.b16 %v1024
        %v2085 = vunpack.c.l.b16 %v1025
        %v2086 = vunpack.c.h.b16 %v1025
        %v2087 = vunpack.c.l.b16 %v1026
        %v2088 = vunpack.c.h.b16 %v1026
        %v2089 = vunpack.c.l.b16 %v1027
        %v2090 = vunpack.c.h.b16 %v1027
        %v2091 = vunpack.c.l.b16 %v1028
        %v2092 = vunpack.c.h.b16 %v1028
        %v2093 = vunpack.c.l.b16 %v1029
        %v2094 = vunpack.c.h.b16 %v1029
        %v2095 = vunpack.c.l.b16 %v1030
        %v2096 = vunpack.c.h.b16 %v1030
        %v2097 = vunpack.c.l.b16 %v1031
        %v2098 = vunpack.c.h.b16 %v1031
        %v2099 = vunpack.c.l.b16 %v1032
        %v2100 = vunpack.c.h.b16 %v1032
        %v2101 = vunpack.c.l.b16 %v1033
        %v2102 = vunpack.c.h.b16 %v1033
        %v2103 = vunpack.c.l.b16 %v1034
        %v2104 = vunpack.c.h.b16 %v1034
        %v2105 = vunpack.c.l.b16 %v1035
        %v2106 = vunpack.c.h.b16 %v1035
        %v2107 = vunpack.c.l.b16 %v1036
        %v2108 = vunpack.c.h.b16 %v1036
        %v2109 = vunpack.c.l.b16 %v1037
        %v2110 = vunpack.c.h.b16 %v1037
        %v2111 = vunpack.c.l.b16 %v1038
        %v2112 = vunpack.c.h.b16 %v1038
        %v2113 = vunpack.c.l.b16 %v1039
        %v2114 = vunpack.c.h.b16 %v1039
        %v2115 = vunpack.c.l.b16 %v1040
        %v2116 = vunpack.c.h.b16 %v1040
        %v2117 = vunpack.c.l.b16 %v1041
        %v2118 = vunpack.c.h.b16 %v1041
        %v2119 = vunpack.c.l.b16 %v1042
        %v2120 = vunpack.c.h.b16 %v1042
        %v2121 = vunpack.c.l.b16 %v1043
        %v2122 = vunpack.c.h.b16 %v1043
        %v2123 = vunpack.c.l.b16 %v1044
        %v2124 = vunpack.c.h.b16 %v1044
        %v2125 = vunpack.c.l.b16 %v1045
        %v2126 = vunpack.c.h.b16 %v1045
        %v2127 = vunpack.c.l.b16 %v1046
        %v2128 = vunpack.c.h.b16 %v1046
        %v2129 = vunpack.c.l.b16 %v1047
        %v2130 = vunpack.c.h.b16 %v1047
        %v2131 = vunpack.c.l.b16 %v1048
        %v2132 = vunpack.c.h.b16 %v1048
        %v2133 = vunpack.c.l.b16 %v1049
        %v2134 = vunpack.c.h.b16 %v1049
        %v2135 = vunpack.c.l.b16 %v1050
        %v2136 = vunpack.c.h.b16 %v1050
        %v2137 = vunpack.c.l.b16 %v1051
        %v2138 = vunpack.c.h.b16 %v1051
        %v2139 = vunpack.c.l.b16 %v1052
        %v2140 = vunpack.c.h.b16 %v1052
        %v2141 = vunpack.c.l.b16 %v1053
        %v2142 = vunpack.c.h.b16 %v1053
        %v2143 = vunpack.c.l.b16 %v1054
        %v2144 = vunpack.c.h.b16 %v1054
        %v2145 = vunpack.c.l.b16 %v1055
        %v2146 = vunpack.c.h.b16 %v1055
        %v2147 = vunpack.c.l.b16 %v1056
        %v2148 = vunpack.c.h.b16 %v1056
        %v2149 = vunpack.c.l.b16 %v1057
        %v2150 = vunpack.c.h.b16 %v1057
        %v2151 = vunpack.c.l.b16 %v1058
        %v2152 = vunpack.c.h.b16 %v1058
        %v2153 = vunpack.c.l.b16 %v1059
        %v2154 = vunpack.c.h.b16 %v1059
        %v2155 = vunpack.c.l.b16 %v1060
        %v2156 = vunpack.c.h.b16 %v1060
        %v2157 = vunpack.c.l.b16 %v1061
        %v2158 = vunpack.c.h.b16 %v1061
        %v2159 = vunpack.c.l.b16 %v1062
        %v2160 = vunpack.c.h.b16 %v1062
        %v2161 = vunpack.c.l.b16 %v1063
        %v2162 = vunpack.c.h.b16 %v1063
        %v2163 = vunpack.c.l.b16 %v1064
        %v2164 = vunpack.c.h.b16 %v1064
        %v2165 = vunpack.c.l.b16 %v1065
        %v2166 = vunpack.c.h.b16 %v1065
        %v2167 = vunpack.c.l.b16 %v1066
        %v2168 = vunpack.c.h.b16 %v1066
        %v2169 = vunpack.c.l.b16 %v1067
        %v2170 = vunpack.c.h.b16 %v1067
        %v2171 = vunpack.c.l.b16 %v1068
        %v2172 = vunpack.c.h.b16 %v1068
        %v2173 = vunpack.c.l.b16 %v1069
        %v2174 = vunpack.c.h.b16 %v1069
        %v2175 = vunpack.c.l.b16 %v1070
        %v2176 = vunpack.c.h.b16 %v1070
        %v2177 = vunpack.c.l.b16 %v1071
        %v2178 = vunpack.c.h.b16 %v1071
        %v2179 = vunpack.c.l.b16 %v1072
        %v2180 = vunpack.c.h.b16 %v1072
        %v2181 = vunpack.c.l.b16 %v1073
        %v2182 = vunpack.c.h.b16 %v1073
        %v2183 = vunpack.c.l.b16 %v1074
        %v2184 = vunpack.c.h.b16 %v1074
        %v2185 = vunpack.c.l.b16 %v1075
        %v2186 = vunpack.c.h.b16 %v1075
        %v2187 = vunpack.c.l.b16 %v1076
        %v2188 = vunpack.c.h.b16 %v1076
        %v2189 = vunpack.c.l.b16 %v1077
        %v2190 = vunpack.c.h.b16 %v1077
        %v2191 = vunpack.c.l.b16 %v1078
        %v2192 = vunpack.c.h.b16 %v1078
        %v2193 = vunpack.c.l.b16 %v1079
        %v2194 = vunpack.c.h.b16 %v1079
        %v2195 = vunpack.c.l.b16 %v1080
        %v2196 = vunpack.c.h.b16 %v1080
        %v2197 = vunpack.c.l.b16 %v1081
        %v2198 = vunpack.c.h.b16 %v1081
        %v2199 = vunpack.c.l.b16 %v1082
        %v2200 = vunpack.c.h.b16 %v1082
        %v2201 = vunpack.c.l.b16 %v1083
        %v2202 = vunpack.c.h.b16 %v1083
        %v2203 = vunpack.c.l.b16 %v1084
        %v2204 = vunpack.c.h.b16 %v1084
        %v2205 = vunpack.c.l.b16 %v1085
        %v2206 = vunpack.c.h.b16 %v1085
        %v2207 = vunpack.c.l.b16 %v1086
        %v2208 = vunpack.c.h.b16 %v1086
        %v2209 = vunpack.c.l.b16 %v1087
        %v2210 = vunpack.c.h.b16 %v1087
        %v2211 = vunpack.c.l.b16 %v1088
        %v2212 = vunpack.c.h.b16 %v1088
        %v2213 = vunpack.c.l.b16 %v1089
        %v2214 = vunpack.c.h.b16 %v1089
        %v2215 = vunpack.c.l.b16 %v1090
        %v2216 = vunpack.c.h.b16 %v1090
        %v2217 = vunpack.c.l.b16 %v1091
        %v2218 = vunpack.c.h.b16 %v1091
        %v2219 = vunpack.c.l.b16 %v1092
        %v2220 = vunpack.c.h.b16 %v1092
        %v2221 = vunpack.c.l.b16 %v1093
        %v2222 = vunpack.c.h.b16 %v1093
        %v2223 = vunpack.c.l.b16 %v1094
        %v2224 = vunpack.c.h.b16 %v1094
        %v2225 = vunpack.c.l.b16 %v1095
        %v2226 = vunpack.c.h.b16 %v1095
        %v2227 = vunpack.c.l.b16 %v1096
        %v2228 = vunpack.c.h.b16 %v1096
        %v2229 = vunpack.c.l.b16 %v1097
        %v2230 = vunpack.c.h.b16 %v1097
        %v2231 = vunpack.c.l.b16 %v1098
        %v2232 = vunpack.c.h.b16 %v1098
        %v2233 = vunpack.c.l.b16 %v1099
        %v2234 = vunpack.c.h.b16 %v1099
        %v2235 = vunpack.c.l.b16 %v1100
        %v2236 = vunpack.c.h.b16 %v1100
        %v2237 = vunpack.c.l.b16 %v1101
        %v2238 = vunpack.c.h.b16 %v1101
        %v2239 = vunpack.c.l.b16 %v1102
        %v2240 = vunpack.c.h.b16 %v1102
        %v2241 = vunpack.c.l.b16 %v1103
        %v2242 = vunpack.c.h.b16 %v1103
        %v2243 = vunpack.c.l.b16 %v1104
        %v2244 = vunpack.c.h.b16 %v1104
        %v2245 = vunpack.c.l.b16 %v1105
        %v2246 = vunpack.c.h.b16 %v1105
        %v2247 = vunpack.c.l.b16 %v1106
        %v2248 = vunpack.c.h.b16 %v1106
        %v2249 = vunpack.c.l.b16 %v1107
        %v2250 = vunpack.c.h.b16 %v1107
        %v2251 = vunpack.c.l.b16 %v1108
        %v2252 = vunpack.c.h.b16 %v1108
        %v2253 = vunpack.c.l.b16 %v1109
        %v2254 = vunpack.c.h.b16 %v1109
        %v2255 = vunpack.c.l.b16 %v1110
        %v2256 = vunpack.c.h.b16 %v1110
        %v2257 = vunpack.c.l.b16 %v1111
        %v2258 = vunpack.c.h.b16 %v1111
        %v2259 = vunpack.c.l.b16 %v1112
        %v2260 = vunpack.c.h.b16 %v1112
        %v2261 = vunpack.c.l.b16 %v1113
        %v2262 = vunpack.c.h.b16 %v1113
        %v2263 = vunpack.c.l.b16 %v1114
        %v2264 = vunpack.c.h.b16 %v1114
        %v2265 = vunpack.c.l.b16 %v1115
        %v2266 = vunpack.c.h.b16 %v1115
        %v2267 = vunpack.c.l.b16 %v1116
        %v2268 = vunpack.c.h.b16 %v1116
        %v2269 = vunpack.c.l.b16 %v1117
        %v2270 = vunpack.c.h.b16 %v1117
        %v2271 = vunpack.c.l.b16 %v1118
        %v2272 = vunpack.c.h.b16 %v1118
        %v2273 = vunpack.c.l.b16 %v1119
        %v2274 = vunpack.c.h.b16 %v1119
        %v2275 = vunpack.c.l.b16 %v1120
        %v2276 = vunpack.c.h.b16 %v1120
        %v2277 = vunpack.c.l.b16 %v1121
        %v2278 = vunpack.c.h.b16 %v1121
        %v2279 = vunpack.c.l.b16 %v1122
        %v2280 = vunpack.c.h.b16 %v1122
        %v2281 = vunpack.c.l.b16 %v1123
        %v2282 = vunpack.c.h.b16 %v1123
        %v2283 = vunpack.c.l.b16 %v1124
        %v2284 = vunpack.c.h.b16 %v1124
        %v2285 = vunpack.c.l.b16 %v1125
        %v2286 = vunpack.c.h.b16 %v1125
        %v2287 = vunpack.c.l.b16 %v1126
        %v2288 = vunpack.c.h.b16 %v1126
        %v2289 = vunpack.c.l.b16 %v1127
        %v2290 = vunpack.c.h.b16 %v1127
        %v2291 = vunpack.c.l.b16 %v1128
        %v2292 = vunpack.c.h.b16 %v1128
        %v2293 = vunpack.c.l.b16 %v1129
        %v2294 = vunpack.c.h.b16 %v1129
        %v2295 = vunpack.c.l.b16 %v1130
        %v2296 = vunpack.c.h.b16 %v1130
        %v2297 = vunpack.c.l.b16 %v1131
        %v2298 = vunpack.c.h.b16 %v1131
        %v2299 = vunpack.c.l.b16 %v1132
        %v2300 = vunpack.c.h.b16 %v1132
        %v2301 = vunpack.c.l.b16 %v1133
        %v2302 = vunpack.c.h.b16 %v1133
        %v2303 = vunpack.c.l.b16 %v1134
        %v2304 = vunpack.c.h.b16 %v1134
        %v2305 = vunpack.c.l.b16 %v1135
        %v2306 = vunpack.c.h.b16 %v1135
        %v2307 = vunpack.c.l.b16 %v1136
        %v2308 = vunpack.c.h.b16 %v1136
        %v2309 = vunpack.c.l.b16 %v1137
        %v2310 = vunpack.c.h.b16 %v1137
        %v2311 = vunpack.c.l.b16 %v1138
        %v2312 = vunpack.c.h.b16 %v1138
        %v2313 = vunpack.c.l.b16 %v1139
        %v2314 = vunpack.c.h.b16 %v1139
        %v2315 = vunpack.c.l.b16 %v1140
        %v2316 = vunpack.c.h.b16 %v1140
        %v2317 = vunpack.c.l.b16 %v1141
        %v2318 = vunpack.c.h.b16 %v1141
        %v2319 = vunpack.c.l.b16 %v1142
        %v2320 = vunpack.c.h.b16 %v1142
        %v2321 = vunpack.c.l.b16 %v1143
        %v2322 = vunpack.c.h.b16 %v1143
        %v2323 = vunpack.c.l.b16 %v1144
        %v2324 = vunpack.c.h.b16 %v1144
        %v2325 = vunpack.c.l.b16 %v1145
        %v2326 = vunpack.c.h.b16 %v1145
        %v2327 = vunpack.c.l.b16 %v1146
        %v2328 = vunpack.c.h.b16 %v1146
        %v2329 = vunpack.c.l.b16 %v1147
        %v2330 = vunpack.c.h.b16 %v1147
        %v2331 = vunpack.c.l.b16 %v1148
        %v2332 = vunpack.c.h.b16 %v1148
        %v2333 = vunpack.c.l.b16 %v1149
        %v2334 = vunpack.c.h.b16 %v1149
        %v2335 = vunpack.c.l.b16 %v1150
        %v2336 = vunpack.c.h.b16 %v1150
        %v2337 = vunpack.c.l.b16 %v1151
        %v2338 = vunpack.c.h.b16 %v1151
        %v2339 = vunpack.c.l.b16 %v1152
        %v2340 = vunpack.c.h.b16 %v1152
        %v2341 = vunpack.c.l.b16 %v1153
        %v2342 = vunpack.c.h.b16 %v1153
        %v2343 = vunpack.c.l.b16 %v1154
        %v2344 = vunpack.c.h.b16 %v1154
        %v2345 = vunpack.c.l.b16 %v1155
        %v2346 = vunpack.c.h.b16 %v1155
        %v2347 = vunpack.c.l.b16 %v1156
        %v2348 = vunpack.c.h.b16 %v1156
        %v2349 = vunpack.c.l.b16 %v1157
        %v2350 = vunpack.c.h.b16 %v1157
        %v2351 = vunpack.c.l.b16 %v1158
        %v2352 = vunpack.c.h.b16 %v1158
        %v2353 = vunpack.c.l.b16 %v1159
        %v2354 = vunpack.c.h.b16 %v1159
        %v2355 = vunpack.c.l.b16 %v1160
        %v2356 = vunpack.c.h.b16 %v1160
        %v2357 = vunpack.c.l.b16 %v1161
        %v2358 = vunpack.c.h.b16 %v1161
        %v2359 = vunpack.c.l.b16 %v1162
        %v2360 = vunpack.c.h.b16 %v1162
        %v2361 = vunpack.c.l.b16 %v1163
        %v2362 = vunpack.c.h.b16 %v1163
        %v2363 = vunpack.c.l.b16 %v1164
        %v2364 = vunpack.c.h.b16 %v1164
        %v2365 = vunpack.c.l.b16 %v1165
        %v2366 = vunpack.c.h.b16 %v1165
        %v2367 = vunpack.c.l.b16 %v1166
        %v2368 = vunpack.c.h.b16 %v1166
        %v2369 = vunpack.c.l.b16 %v1167
        %v2370 = vunpack.c.h.b16 %v1167
        %v2371 = vunpack.c.l.b16 %v1168
        %v2372 = vunpack.c.h.b16 %v1168
        %v2373 = vunpack.c.l.b16 %v1169
        %v2374 = vunpack.c.h.b16 %v1169
        %v2375 = vunpack.c.l.b16 %v1170
        %v2376 = vunpack.c.h.b16 %v1170
        %v2377 = vunpack.c.l.b16 %v1171
        %v2378 = vunpack.c.h.b16 %v1171
        %v2379 = vunpack.c.l.b16 %v1172
        %v2380 = vunpack.c.h.b16 %v1172
        %v2381 = vunpack.c.l.b16 %v1173
        %v2382 = vunpack.c.h.b16 %v1173
        %v2383 = vunpack.c.l.b16 %v1174
        %v2384 = vunpack.c.h.b16 %v1174
        %v2385 = vunpack.c.l.b16 %v1175
        %v2386 = vunpack.c.h.b16 %v1175
        %v2387 = vunpack.c.l.b16 %v1176
        %v2388 = vunpack.c.h.b16 %v1176
        %v2389 = vunpack.c.l.b16 %v1177
        %v2390 = vunpack.c.h.b16 %v1177
        %v2391 = vunpack.c.l.b16 %v1178
        %v2392 = vunpack.c.h.b16 %v1178
        %v2393 = vunpack.c.l.b16 %v1179
        %v2394 = vunpack.c.h.b16 %v1179
        %v2395 = vunpack.c.l.b16 %v1180
        %v2396 = vunpack.c.h.b16 %v1180
        %v2397 = vunpack.c.l.b16 %v1181
        %v2398 = vunpack.c.h.b16 %v1181
        %v2399 = vunpack.c.l.b16 %v1182
        %v2400 = vunpack.c.h.b16 %v1182
        %v2401 = vunpack.c.l.b16 %v1183
        %v2402 = vunpack.c.h.b16 %v1183
        %v2403 = vunpack.c.l.b16 %v1184
        %v2404 = vunpack.c.h.b16 %v1184
        %v2405 = vunpack.c.l.b16 %v1185
        %v2406 = vunpack.c.h.b16 %v1185
        %v2407 = vunpack.c.l.b16 %v1186
        %v2408 = vunpack.c.h.b16 %v1186
        %v2409 = vunpack.c.l.b16 %v1187
        %v2410 = vunpack.c.h.b16 %v1187
        %v2411 = vunpack.c.l.b16 %v1188
        %v2412 = vunpack.c.h.b16 %v1188
        %v2413 = vunpack.c.l.b16 %v1189
        %v2414 = vunpack.c.h.b16 %v1189
        %v2415 = vunpack.c.l.b16 %v1190
        %v2416 = vunpack.c.h.b16 %v1190
        %v2417 = vunpack.c.l.b16 %v1191
        %v2418 = vunpack.c.h.b16 %v1191
        %v2419 = vunpack.c.l.b16 %v1192
        %v2420 = vunpack.c.h.b16 %v1192
        %v2421 = vunpack.c.l.b16 %v1193
        %v2422 = vunpack.c.h.b16 %v1193
        %v2423 = vunpack.c.l.b16 %v1194
        %v2424 = vunpack.c.h.b16 %v1194
        %v2425 = vunpack.c.l.b16 %v1195
        %v2426 = vunpack.c.h.b16 %v1195
        %v2427 = vunpack.c.l.b16 %v1196
        %v2428 = vunpack.c.h.b16 %v1196
        %v2429 = vunpack.c.l.b16 %v1197
        %v2430 = vunpack.c.h.b16 %v1197
        %v2431 = vunpack.c.l.b16 %v1198
        %v2432 = vunpack.c.h.b16 %v1198
        %v2433 = vunpack.c.l.b16 %v1199
        %v2434 = vunpack.c.h.b16 %v1199
        %v2435 = vunpack.c.l.b16 %v1200
        %v2436 = vunpack.c.h.b16 %v1200
        %v2437 = vunpack.c.l.b16 %v1201
        %v2438 = vunpack.c.h.b16 %v1201
        %v2439 = vunpack.c.l.b16 %v1202
        %v2440 = vunpack.c.h.b16 %v1202
        %v2441 = vunpack.c.l.b16 %v1203
        %v2442 = vunpack.c.h.b16 %v1203
        %v2443 = vunpack.c.l.b16 %v1204
        %v2444 = vunpack.c.h.b16 %v1204
        %v2445 = vunpack.c.l.b16 %v1205
        %v2446 = vunpack.c.h.b16 %v1205
        %v2447 = vunpack.c.l.b16 %v1206
        %v2448 = vunpack.c.h.b16 %v1206
        %v2449 = vunpack.c.l.b16 %v1207
        %v2450 = vunpack.c.h.b16 %v1207
        %v2451 = vunpack.c.l.b16 %v1208
        %v2452 = vunpack.c.h.b16 %v1208
        %v2453 = vunpack.c.l.b16 %v1209
        %v2454 = vunpack.c.h.b16 %v1209
        %v2455 = vunpack.c.l.b16 %v1210
        %v2456 = vunpack.c.h.b16 %v1210
        %v2457 = vunpack.c.l.b16 %v1211
        %v2458 = vunpack.c.h.b16 %v1211
        %v2459 = vunpack.c.l.b16 %v1212
        %v2460 = vunpack.c.h.b16 %v1212
        %v2461 = vunpack.c.l.b16 %v1213
        %v2462 = vunpack.c.h.b16 %v1213
        %v2463 = vunpack.c.l.b16 %v1214
        %v2464 = vunpack.c.h.b16 %v1214
        %v2465 = vunpack.c.l.b16 %v1215
        %v2466 = vunpack.c.h.b16 %v1215
        %v2467 = vunpack.c.l.b16 %v1216
        %v2468 = vunpack.c.h.b16 %v1216
        %v2469 = vunpack.c.l.b16 %v1217
        %v2470 = vunpack.c.h.b16 %v1217
        %v2471 = vunpack.c.l.b16 %v1218
        %v2472 = vunpack.c.h.b16 %v1218
        %v2473 = vunpack.c.l.b16 %v1219
        %v2474 = vunpack.c.h.b16 %v1219
        %v2475 = vunpack.c.l.b16 %v1220
        %v2476 = vunpack.c.h.b16 %v1220
        %v2477 = vunpack.c.l.b16 %v1221
        %v2478 = vunpack.c.h.b16 %v1221
        %v2479 = vunpack.c.l.b16 %v1222
        %v2480 = vunpack.c.h.b16 %v1222
        %v2481 = vunpack.c.l.b16 %v1223
        %v2482 = vunpack.c.h.b16 %v1223
        %v2483 = vunpack.c.l.b16 %v1224
        %v2484 = vunpack.c.h.b16 %v1224
        %v2485 = vunpack.c.l.b16 %v1225
        %v2486 = vunpack.c.h.b16 %v1225
        %v2487 = vunpack.c.l.b16 %v1226
        %v2488 = vunpack.c.h.b16 %v1226
        %v2489 = vunpack.c.l.b16 %v1227
        %v2490 = vunpack.c.h.b16 %v1227
        %v2491 = vunpack.c.l.b16 %v1228
        %v2492 = vunpack.c.h.b16 %v1228
        %v2493 = vunpack.c.l.b16 %v1229
        %v2494 = vunpack.c.h.b16 %v1229
        %v2495 = vunpack.c.l.b16 %v1230
        %v2496 = vunpack.c.h.b16 %v1230
        %v2497 = vunpack.c.l.b16 %v1231
        %v2498 = vunpack.c.h.b16 %v1231
        %v2499 = vunpack.c.l.b16 %v1232
        %v2500 = vunpack.c.h.b16 %v1232
        %v2501 = vunpack.c.l.b16 %v1233
        %v2502 = vunpack.c.h.b16 %v1233
        %v2503 = vunpack.c.l.b16 %v1234
        %v2504 = vunpack.c.h.b16 %v1234
        %v2505 = vunpack.c.l.b16 %v1235
        %v2506 = vunpack.c.h.b16 %v1235
        %v2507 = vunpack.c.l.b16 %v1236
        %v2508 = vunpack.c.h.b16 %v1236
        %v2509 = vunpack.c.l.b16 %v1237
        %v2510 = vunpack.c.h.b16 %v1237
        %v2511 = vunpack.c.l.b16 %v1238
        %v2512 = vunpack.c.h.b16 %v1238
        %v2513 = vunpack.c.l.b16 %v1239
        %v2514 = vunpack.c.h.b16 %v1239
        %v2515 = vunpack.c.l.b16 %v1240
        %v2516 = vunpack.c.h.b16 %v1240
        %v2517 = vunpack.c.l.b16 %v1241
        %v2518 = vunpack.c.h.b16 %v1241
        %v2519 = vunpack.c.l.b16 %v1242
        %v2520 = vunpack.c.h.b16 %v1242
        %v2521 = vunpack.c.l.b16 %v1243
        %v2522 = vunpack.c.h.b16 %v1243
        %v2523 = vunpack.c.l.b16 %v1244
        %v2524 = vunpack.c.h.b16 %v1244
        %v2525 = vunpack.c.l.b16 %v1245
        %v2526 = vunpack.c.h.b16 %v1245
        %v2527 = vunpack.c.l.b16 %v1246
        %v2528 = vunpack.c.h.b16 %v1246
        %v2529 = vunpack.c.l.b16 %v1247
        %v2530 = vunpack.c.h.b16 %v1247
        %v2531 = vunpack.c.l.b16 %v1248
        %v2532 = vunpack.c.h.b16 %v1248
        %v2533 = vunpack.c.l.b16 %v1249
        %v2534 = vunpack.c.h.b16 %v1249
        %v2535 = vunpack.c.l.b16 %v1250
        %v2536 = vunpack.c.h.b16 %v1250
        %v2537 = vunpack.c.l.b16 %v1251
        %v2538 = vunpack.c.h.b16 %v1251
        %v2539 = vunpack.c.l.b16 %v1252
        %v2540 = vunpack.c.h.b16 %v1252
        %v2541 = vunpack.c.l.b16 %v1253
        %v2542 = vunpack.c.h.b16 %v1253
        %v2543 = vunpack.c.l.b16 %v1254
        %v2544 = vunpack.c.h.b16 %v1254
        %v2545 = vunpack.c.l.b16 %v1255
        %v2546 = vunpack.c.h.b16 %v1255
        %v2547 = vunpack.c.l.b16 %v1256
        %v2548 = vunpack.c.h.b16 %v1256
        %v2549 = vunpack.c.l.b16 %v1257
        %v2550 = vunpack.c.h.b16 %v1257
        %v2551 = vunpack.c.l.b16 %v1258
        %v2552 = vunpack.c.h.b16 %v1258
        %v2553 = vunpack.c.l.b16 %v1259
        %v2554 = vunpack.c.h.b16 %v1259
        %v2555 = vunpack.c.l.b16 %v1260
        %v2556 = vunpack.c.h.b16 %v1260
        %v2557 = vunpack.c.l.b16 %v1261
        %v2558 = vunpack.c.h.b16 %v1261
        %v2559 = vunpack.c.l.b16 %v1262
        %v2560 = vunpack.c.h.b16 %v1262
        %v2561 = vunpack.c.l.b16 %v1263
        %v2562 = vunpack.c.h.b16 %v1263
        %v2563 = vunpack.c.l.b16 %v1264
        %v2564 = vunpack.c.h.b16 %v1264
        %v2565 = vunpack.c.l.b16 %v1265
        %v2566 = vunpack.c.h.b16 %v1265
        %v2567 = vunpack.c.l.b16 %v1266
        %v2568 = vunpack.c.h.b16 %v1266
        %v2569 = vunpack.c.l.b16 %v1267
        %v2570 = vunpack.c.h.b16 %v1267
        %v2571 = vunpack.c.l.b16 %v1268
        %v2572 = vunpack.c.h.b16 %v1268
        %v2573 = vunpack.c.l.b16 %v1269
        %v2574 = vunpack.c.h.b16 %v1269
        %v2575 = vunpack.c.l.b16 %v1270
        %v2576 = vunpack.c.h.b16 %v1270
        %v2577 = vunpack.c.l.b16 %v1271
        %v2578 = vunpack.c.h.b16 %v1271
        %v2579 = vunpack.c.l.b16 %v1272
        %v2580 = vunpack.c.h.b16 %v1272
        %v2581 = vunpack.c.l.b16 %v1273
        %v2582 = vunpack.c.h.b16 %v1273
        %v2583 = vunpack.c.l.b16 %v1274
        %v2584 = vunpack.c.h.b16 %v1274
        %v2585 = vunpack.c.l.b16 %v1275
        %v2586 = vunpack.c.h.b16 %v1275
        %v2587 = vunpack.c.l.b16 %v1276
        %v2588 = vunpack.c.h.b16 %v1276
        %v2589 = vunpack.c.l.b16 %v1277
        %v2590 = vunpack.c.h.b16 %v1277
        %v2591 = vunpack.c.l.b16 %v1278
        %v2592 = vunpack.c.h.b16 %v1278
        %v2593 = vunpack.c.l.b16 %v1279
        %v2594 = vunpack.c.h.b16 %v1279
        %v2595 = vunpack.c.l.b16 %v1280
        %v2596 = vunpack.c.h.b16 %v1280
        %v2597 = vunpack.c.l.b16 %v1281
        %v2598 = vunpack.c.h.b16 %v1281
        %v2599 = vunpack.c.l.b16 %v1282
        %v2600 = vunpack.c.h.b16 %v1282
        %v2601 = vunpack.c.l.b16 %v1283
        %v2602 = vunpack.c.h.b16 %v1283
        %v2603 = vunpack.c.l.b16 %v1284
        %v2604 = vunpack.c.h.b16 %v1284
        %v2605 = vunpack.c.l.b16 %v1285
        %v2606 = vunpack.c.h.b16 %v1285
        %v2607 = vunpack.c.l.b16 %v1286
        %v2608 = vunpack.c.h.b16 %v1286
        %v2609 = vunpack.c.l.b16 %v1287
        %v2610 = vunpack.c.h.b16 %v1287
        %v2611 = vunpack.c.l.b16 %v1288
        %v2612 = vunpack.c.h.b16 %v1288
        %v2613 = vunpack.c.l.b16 %v1289
        %v2614 = vunpack.c.h.b16 %v1289
        %v2615 = vunpack.c.l.b16 %v1290
        %v2616 = vunpack.c.h.b16 %v1290
        %v2617 = vunpack.c.l.b16 %v1291
        %v2618 = vunpack.c.h.b16 %v1291
        %v2619 = vunpack.c.l.b16 %v1292
        %v2620 = vunpack.c.h.b16 %v1292
        %v2621 = vunpack.c.l.b16 %v1293
        %v2622 = vunpack.c.h.b16 %v1293
        %v2623 = vunpack.c.l.b16 %v1294
        %v2624 = vunpack.c.h.b16 %v1294
        %v2625 = vunpack.c.l.b16 %v1295
        %v2626 = vunpack.c.h.b16 %v1295
        %v2627 = vunpack.c.l.b16 %v1296
        %v2628 = vunpack.c.h.b16 %v1296
        %v2629 = vunpack.c.l.b16 %v1297
        %v2630 = vunpack.c.h.b16 %v1297
        %v2631 = vunpack.c.l.b16 %v1298
        %v2632 = vunpack.c.h.b16 %v1298
        %v2633 = vunpack.c.l.b16 %v1299
        %v2634 = vunpack.c.h.b16 %v1299
        %v2635 = vunpack.c.l.b16 %v1300
        %v2636 = vunpack.c.h.b16 %v1300
        %v2637 = vunpack.c.l.b16 %v1301
        %v2638 = vunpack.c.h.b16 %v1301
        %v2639 = vunpack.c.l.b16 %v1302
        %v2640 = vunpack.c.h.b16 %v1302
        %v2641 = vunpack.c.l.b16 %v1303
        %v2642 = vunpack.c.h.b16 %v1303
        %v2643 = vunpack.c.l.b16 %v1304
        %v2644 = vunpack.c.h.b16 %v1304
        %v2645 = vunpack.c.l.b16 %v1305
        %v2646 = vunpack.c.h.b16 %v1305
        %v2647 = vunpack.c.l.b16 %v1306
        %v2648 = vunpack.c.h.b16 %v1306
        %v2649 = vunpack.c.l.b16 %v1307
        %v2650 = vunpack.c.h.b16 %v1307
        %v2651 = vunpack.c.l.b16 %v1308
        %v2652 = vunpack.c.h.b16 %v1308
        %v2653 = vunpack.c.l.b16 %v1309
        %v2654 = vunpack.c.h.b16 %v1309
        %v2655 = vunpack.c.l.b16 %v1310
        %v2656 = vunpack.c.h.b16 %v1310
        %v2657 = vunpack.c.l.b16 %v1311
        %v2658 = vunpack.c.h.b16 %v1311
        %v2659 = vunpack.c.l.b16 %v1312
        %v2660 = vunpack.c.h.b16 %v1312
        %v2661 = vunpack.c.l.b16 %v1313
        %v2662 = vunpack.c.h.b16 %v1313
        %v2663 = vunpack.c.l.b16 %v1314
        %v2664 = vunpack.c.h.b16 %v1314
        %v2665 = vunpack.c.l.b16 %v1315
        %v2666 = vunpack.c.h.b16 %v1315
        %v2667 = vunpack.c.l.b16 %v1316
        %v2668 = vunpack.c.h.b16 %v1316
        %v2669 = vunpack.c.l.b16 %v1317
        %v2670 = vunpack.c.h.b16 %v1317
        %v2671 = vunpack.c.l.b16 %v1318
        %v2672 = vunpack.c.h.b16 %v1318
        %v2673 = vunpack.c.l.b16 %v1319
        %v2674 = vunpack.c.h.b16 %v1319
        %v2675 = vunpack.c.l.b16 %v1320
        %v2676 = vunpack.c.h.b16 %v1320
        %v2677 = vunpack.c.l.b16 %v1321
        %v2678 = vunpack.c.h.b16 %v1321
        %v2679 = vunpack.c.l.b16 %v1322
        %v2680 = vunpack.c.h.b16 %v1322
        %v2681 = vunpack.c.l.b16 %v1323
        %v2682 = vunpack.c.h.b16 %v1323
        %v2683 = vunpack.c.l.b16 %v1324
        %v2684 = vunpack.c.h.b16 %v1324
        %v2685 = vunpack.c.l.b16 %v1325
        %v2686 = vunpack.c.h.b16 %v1325
        %v2687 = vunpack.c.l.b16 %v1326
        %v2688 = vunpack.c.h.b16 %v1326
        %v2689 = vunpack.c.l.b16 %v1327
        %v2690 = vunpack.c.h.b16 %v1327
        %v2691 = vunpack.c.l.b16 %v1328
        %v2692 = vunpack.c.h.b16 %v1328
        %v2693 = vunpack.c.l.b16 %v1329
        %v2694 = vunpack.c.h.b16 %v1329
        %v2695 = vunpack.c.l.b16 %v1330
        %v2696 = vunpack.c.h.b16 %v1330
        %v2697 = vunpack.c.l.b16 %v1331
        %v2698 = vunpack.c.h.b16 %v1331
        %v2699 = vunpack.c.l.b16 %v1332
        %v2700 = vunpack.c.h.b16 %v1332
        %v2701 = vunpack.c.l.b16 %v1333
        %v2702 = vunpack.c.h.b16 %v1333
        %v2703 = vunpack.c.l.b16 %v1334
        %v2704 = vunpack.c.h.b16 %v1334
        %v2705 = vunpack.c.l.b16 %v1335
        %v2706 = vunpack.c.h.b16 %v1335
        %v2707 = vunpack.c.l.b16 %v1336
        %v2708 = vunpack.c.h.b16 %v1336
        %v2709 = vunpack.c.l.b16 %v1337
        %v2710 = vunpack.c.h.b16 %v1337
        %v2711 = vunpack.c.l.b16 %v1338
        %v2712 = vunpack.c.h.b16 %v1338
        %v2713 = vunpack.c.l.b16 %v1339
        %v2714 = vunpack.c.h.b16 %v1339
        %v2715 = vunpack.c.l.b16 %v1340
        %v2716 = vunpack.c.h.b16 %v1340
        %v2717 = vunpack.c.l.b16 %v1341
        %v2718 = vunpack.c.h.b16 %v1341
        %v2719 = vunpack.c.l.b16 %v1342
        %v2720 = vunpack.c.h.b16 %v1342
        %v2721 = vunpack.c.l.b16 %v1343
        %v2722 = vunpack.c.h.b16 %v1343
        %v2723 = vunpack.c.l.b16 %v1344
        %v2724 = vunpack.c.h.b16 %v1344
        %v2725 = vunpack.c.l.b16 %v1345
        %v2726 = vunpack.c.h.b16 %v1345
        %v2727 = vunpack.c.l.b16 %v1346
        %v2728 = vunpack.c.h.b16 %v1346
        %v2729 = vunpack.c.l.b16 %v1347
        %v2730 = vunpack.c.h.b16 %v1347
        %v2731 = vunpack.c.l.b16 %v1348
        %v2732 = vunpack.c.h.b16 %v1348
        %v2733 = vunpack.c.l.b16 %v1349
        %v2734 = vunpack.c.h.b16 %v1349
        %v2735 = vunpack.c.l.b16 %v1350
        %v2736 = vunpack.c.h.b16 %v1350
        %v2737 = vunpack.c.l.b16 %v1351
        %v2738 = vunpack.c.h.b16 %v1351
        %v2739 = vunpack.c.l.b16 %v1352
        %v2740 = vunpack.c.h.b16 %v1352
        %v2741 = vunpack.c.l.b16 %v1353
        %v2742 = vunpack.c.h.b16 %v1353
        %v2743 = vunpack.c.l.b16 %v1354
        %v2744 = vunpack.c.h.b16 %v1354
        %v2745 = vunpack.c.l.b16 %v1355
        %v2746 = vunpack.c.h.b16 %v1355
        %v2747 = vunpack.c.l.b16 %v1356
        %v2748 = vunpack.c.h.b16 %v1356
        %v2749 = vunpack.c.l.b16 %v1357
        %v2750 = vunpack.c.h.b16 %v1357
        %v2751 = vunpack.c.l.b16 %v1358
        %v2752 = vunpack.c.h.b16 %v1358
        %v2753 = vunpack.c.l.b16 %v1359
        %v2754 = vunpack.c.h.b16 %v1359
        %v2755 = vunpack.c.l.b16 %v1360
        %v2756 = vunpack.c.h.b16 %v1360
        %v2757 = vunpack.c.l.b16 %v1361
        %v2758 = vunpack.c.h.b16 %v1361
        %v2759 = vunpack.c.l.b16 %v1362
        %v2760 = vunpack.c.h.b16 %v1362
        %v2761 = vunpack.c.l.b16 %v1363
        %v2762 = vunpack.c.h.b16 %v1363
        %v2763 = vunpack.c.l.b16 %v1364
        %v2764 = vunpack.c.h.b16 %v1364
        %v2765 = vunpack.c.l.b16 %v1365
        %v2766 = vunpack.c.h.b16 %v1365
        %v2767 = vunpack.c.l.b16 %v1366
        %v2768 = vunpack.c.h.b16 %v1366
        %v2769 = vunpack.c.l.b16 %v1367
        %v2770 = vunpack.c.h.b16 %v1367
        %v2771 = vunpack.c.l.b16 %v1368
        %v2772 = vunpack.c.h.b16 %v1368
        %v2773 = vunpack.c.l.b16 %v1369
        %v2774 = vunpack.c.h.b16 %v1369
        %v2775 = vunpack.c.l.b16 %v1370
        %v2776 = vunpack.c.h.b16 %v1370
        %v2777 = vunpack.c.l.b16 %v1371
        %v2778 = vunpack.c.h.b16 %v1371
        %v2779 = vunpack.c.l.b16 %v1372
        %v2780 = vunpack.c.h.b16 %v1372
        %v2781 = vunpack.c.l.b16 %v1373
        %v2782 = vunpack.c.h.b16 %v1373
        %v2783 = vunpack.c.l.b16 %v1374
        %v2784 = vunpack.c.h.b16 %v1374
        %v2785 = vunpack.c.l.b16 %v1375
        %v2786 = vunpack.c.h.b16 %v1375
        %v2787 = vunpack.c.l.b16 %v1376
        %v2788 = vunpack.c.h.b16 %v1376
        %v2789 = vunpack.c.l.b16 %v1377
        %v2790 = vunpack.c.h.b16 %v1377
        %v2791 = vunpack.c.l.b16 %v1378
        %v2792 = vunpack.c.h.b16 %v1378
        %v2793 = vunpack.c.l.b16 %v1379
        %v2794 = vunpack.c.h.b16 %v1379
        %v2795 = vunpack.c.l.b16 %v1380
        %v2796 = vunpack.c.h.b16 %v1380
        %v2797 = vunpack.c.l.b16 %v1381
        %v2798 = vunpack.c.h.b16 %v1381
        %v2799 = vunpack.c.l.b16 %v1382
        %v2800 = vunpack.c.h.b16 %v1382
        %v2801 = vunpack.c.l.b16 %v1383
        %v2802 = vunpack.c.h.b16 %v1383
        %v2803 = vunpack.c.l.b16 %v1384
        %v2804 = vunpack.c.h.b16 %v1384
        %v2805 = vunpack.c.l.b16 %v1385
        %v2806 = vunpack.c.h.b16 %v1385
        %v2807 = vunpack.c.l.b16 %v1386
        %v2808 = vunpack.c.h.b16 %v1386
        %v2809 = vunpack.c.l.b16 %v1387
        %v2810 = vunpack.c.h.b16 %v1387
        %v2811 = vunpack.c.l.b16 %v1388
        %v2812 = vunpack.c.h.b16 %v1388
        %v2813 = vunpack.c.l.b16 %v1389
        %v2814 = vunpack.c.h.b16 %v1389
        %v2815 = vunpack.c.l.b16 %v1390
        %v2816 = vunpack.c.h.b16 %v1390
        %v2817 = vunpack.c.l.b16 %v1391
        %v2818 = vunpack.c.h.b16 %v1391
        %v2819 = vunpack.c.l.b16 %v1392
        %v2820 = vunpack.c.h.b16 %v1392
        %v2821 = vunpack.c.l.b16 %v1393
        %v2822 = vunpack.c.h.b16 %v1393
        %v2823 = vunpack.c.l.b16 %v1394
        %v2824 = vunpack.c.h.b16 %v1394
        %v2825 = vunpack.c.l.b16 %v1395
        %v2826 = vunpack.c.h.b16 %v1395
        %v2827 = vunpack.c.l.b16 %v1396
        %v2828 = vunpack.c.h.b16 %v1396
        %v2829 = vunpack.c.l.b16 %v1397
        %v2830 = vunpack.c.h.b16 %v1397
        %v2831 = vunpack.c.l.b16 %v1398
        %v2832 = vunpack.c.h.b16 %v1398
        %v2833 = vunpack.c.l.b16 %v1399
        %v2834 = vunpack.c.h.b16 %v1399
        %v2835 = vunpack.c.l.b16 %v1400
        %v2836 = vunpack.c.h.b16 %v1400
        %v2837 = vunpack.c.l.b16 %v1401
        %v2838 = vunpack.c.h.b16 %v1401
        %v2839 = vunpack.c.l.b16 %v1402
        %v2840 = vunpack.c.h.b16 %v1402
        %v2841 = vunpack.c.l.b16 %v1403
        %v2842 = vunpack.c.h.b16 %v1403
        %v2843 = vunpack.c.l.b16 %v1404
        %v2844 = vunpack.c.h.b16 %v1404
        %v2845 = vunpack.c.l.b16 %v1405
        %v2846 = vunpack.c.h.b16 %v1405
        %v2847 = vunpack.c.l.b16 %v1406
        %v2848 = vunpack.c.h.b16 %v1406
        %v2849 = vunpack.c.l.b16 %v1407
        %v2850 = vunpack.c.h.b16 %v1407
        %v2851 = vunpack.c.l.b16 %v1408
        %v2852 = vunpack.c.h.b16 %v1408
        %v2853 = vunpack.c.l.b16 %v1409
        %v2854 = vunpack.c.h.b16 %v1409
        %v2855 = vunpack.c.l.b16 %v1410
        %v2856 = vunpack.c.h.b16 %v1410
        %v2857 = vunpack.c.l.b16 %v1411
        %v2858 = vunpack.c.h.b16 %v1411
        %v2859 = vunpack.c.l.b16 %v1412
        %v2860 = vunpack.c.h.b16 %v1412
        %v2861 = vunpack.c.l.b16 %v1413
        %v2862 = vunpack.c.h.b16 %v1413
        %v2863 = vunpack.c.l.b16 %v1414
        %v2864 = vunpack.c.h.b16 %v1414
        %v2865 = vunpack.c.l.b16 %v1415
        %v2866 = vunpack.c.h.b16 %v1415
        %v2867 = vunpack.c.l.b16 %v1416
        %v2868 = vunpack.c.h.b16 %v1416
        %v2869 = vunpack.c.l.b16 %v1417
        %v2870 = vunpack.c.h.b16 %v1417
        %v2871 = vunpack.c.l.b16 %v1418
        %v2872 = vunpack.c.h.b16 %v1418
        %v2873 = vunpack.c.l.b16 %v1419
        %v2874 = vunpack.c.h.b16 %v1419
        %v2875 = vunpack.c.l.b16 %v1420
        %v2876 = vunpack.c.h.b16 %v1420
        %v2877 = vunpack.c.l.b16 %v1421
        %v2878 = vunpack.c.h.b16 %v1421
        %v2879 = vunpack.c.l.b16 %v1422
        %v2880 = vunpack.c.h.b16 %v1422
        %v2881 = vunpack.c.l.b16 %v1423
        %v2882 = vunpack.c.h.b16 %v1423
        %v2883 = vunpack.c.l.b16 %v1424
        %v2884 = vunpack.c.h.b16 %v1424
        %v2885 = vunpack.c.l.b16 %v1425
        %v2886 = vunpack.c.h.b16 %v1425
        %v2887 = vunpack.c.l.b16 %v1426
        %v2888 = vunpack.c.h.b16 %v1426
        %v2889 = vunpack.c.l.b16 %v1427
        %v2890 = vunpack.c.h.b16 %v1427
        %v2891 = vunpack.c.l.b16 %v1428
        %v2892 = vunpack.c.h.b16 %v1428
        %v2893 = vunpack.c.l.b16 %v1429
        %v2894 = vunpack.c.h.b16 %v1429
        %v2895 = vunpack.c.l.b16 %v1430
        %v2896 = vunpack.c.h.b16 %v1430
        %v2897 = vunpack.c.l.b16 %v1431
        %v2898 = vunpack.c.h.b16 %v1431
        %v2899 = vunpack.c.l.b16 %v1432
        %v2900 = vunpack.c.h.b16 %v1432
        %v2901 = vunpack.c.l.b16 %v1433
        %v2902 = vunpack.c.h.b16 %v1433
        %v2903 = vunpack.c.l.b16 %v1434
        %v2904 = vunpack.c.h.b16 %v1434
        %v2905 = vunpack.c.l.b16 %v1435
        %v2906 = vunpack.c.h.b16 %v1435
        %v2907 = vunpack.c.l.b16 %v1436
        %v2908 = vunpack.c.h.b16 %v1436
        %v2909 = vunpack.c.l.b16 %v1437
        %v2910 = vunpack.c.h.b16 %v1437
        %v2911 = vunpack.c.l.b16 %v1438
        %v2912 = vunpack.c.h.b16 %v1438
        %v2913 = vunpack.c.l.b16 %v1439
        %v2914 = vunpack.c.h.b16 %v1439
        %v2915 = vunpack.c.l.b16 %v1440
        %v2916 = vunpack.c.h.b16 %v1440
        %v2917 = vunpack.c.l.b16 %v1441
        %v2918 = vunpack.c.h.b16 %v1441
        %v2919 = vunpack.c.l.b16 %v1442
        %v2920 = vunpack.c.h.b16 %v1442
        %v2921 = vunpack.c.l.b16 %v1443
        %v2922 = vunpack.c.h.b16 %v1443
        %v2923 = vunpack.c.l.b16 %v1444
        %v2924 = vunpack.c.h.b16 %v1444
        %v2925 = vunpack.c.l.b16 %v1445
        %v2926 = vunpack.c.h.b16 %v1445
        %v2927 = vunpack.c.l.b16 %v1446
        %v2928 = vunpack.c.h.b16 %v1446
        %v2929 = vunpack.c.l.b16 %v1447
        %v2930 = vunpack.c.h.b16 %v1447
        %v2931 = vunpack.c.l.b16 %v1448
        %v2932 = vunpack.c.h.b16 %v1448
        %v2933 = vunpack.c.l.b16 %v1449
        %v2934 = vunpack.c.h.b16 %v1449
        %v2935 = vunpack.c.l.b16 %v1450
        %v2936 = vunpack.c.h.b16 %v1450
        %v2937 = vunpack.c.l.b16 %v1451
        %v2938 = vunpack.c.h.b16 %v1451
        %v2939 = vunpack.c.l.b16 %v1452
        %v2940 = vunpack.c.h.b16 %v1452
        %v2941 = vunpack.c.l.b16 %v1453
        %v2942 = vunpack.c.h.b16 %v1453
        %v2943 = vunpack.c.l.b16 %v1454
        %v2944 = vunpack.c.h.b16 %v1454
        %v2945 = vunpack.c.l.b16 %v1455
        %v2946 = vunpack.c.h.b16 %v1455
        %v2947 = vunpack.c.l.b16 %v1456
        %v2948 = vunpack.c.h.b16 %v1456
        %v2949 = vunpack.c.l.b16 %v1457
        %v2950 = vunpack.c.h.b16 %v1457
        %v2951 = vunpack.c.l.b16 %v1458
        %v2952 = vunpack.c.h.b16 %v1458
        %v2953 = vunpack.c.l.b16 %v1459
        %v2954 = vunpack.c.h.b16 %v1459
        %v2955 = vunpack.c.l.b16 %v1460
        %v2956 = vunpack.c.h.b16 %v1460
        %v2957 = vunpack.c.l.b16 %v1461
        %v2958 = vunpack.c.h.b16 %v1461
        %v2959 = vunpack.c.l.b16 %v1462
        %v2960 = vunpack.c.h.b16 %v1462
        %v2961 = vunpack.c.l.b16 %v1463
        %v2962 = vunpack.c.h.b16 %v1463
        %v2963 = vunpack.c.l.b16 %v1464
        %v2964 = vunpack.c.h.b16 %v1464
        %v2965 = vunpack.c.l.b16 %v1465
        %v2966 = vunpack.c.h.b16 %v1465
        %v2967 = vunpack.c.l.b16 %v1466
        %v2968 = vunpack.c.h.b16 %v1466
        %v2969 = vunpack.c.l.b16 %v1467
        %v2970 = vunpack.c.h.b16 %v1467
        %v2971 = vunpack.c.l.b16 %v1468
        %v2972 = vunpack.c.h.b16 %v1468
        %v2973 = vunpack.c.l.b16 %v1469
        %v2974 = vunpack.c.h.b16 %v1469
        %v2975 = vunpack.c.l.b16 %v1470
        %v2976 = vunpack.c.h.b16 %v1470
        %v2977 = vunpack.c.l.b16 %v1471
        %v2978 = vunpack.c.h.b16 %v1471
        %v2979 = vunpack.c.l.b16 %v1472
        %v2980 = vunpack.c.h.b16 %v1472
        %v2981 = vunpack.c.l.b16 %v1473
        %v2982 = vunpack.c.h.b16 %v1473
        %v2983 = vunpack.c.l.b16 %v1474
        %v2984 = vunpack.c.h.b16 %v1474
        %v2985 = vunpack.c.l.b16 %v1475
        %v2986 = vunpack.c.h.b16 %v1475
        %v2987 = vunpack.c.l.b16 %v1476
        %v2988 = vunpack.c.h.b16 %v1476
        %v2989 = vunpack.c.l.b16 %v1477
        %v2990 = vunpack.c.h.b16 %v1477
        %v2991 = vunpack.c.l.b16 %v1478
        %v2992 = vunpack.c.h.b16 %v1478
        %v2993 = vunpack.c.l.b16 %v1479
        %v2994 = vunpack.c.h.b16 %v1479
        %v2995 = vunpack.c.l.b16 %v1480
        %v2996 = vunpack.c.h.b16 %v1480
        %v2997 = vunpack.c.l.b16 %v1481
        %v2998 = vunpack.c.h.b16 %v1481
        %v2999 = vunpack.c.l.b16 %v1482
        %v3000 = vunpack.c.h.b16 %v1482
        %v3001 = vunpack.c.l.b16 %v1483
        %v3002 = vunpack.c.h.b16 %v1483
        %v3003 = vunpack.c.l.b16 %v1484
        %v3004 = vunpack.c.h.b16 %v1484
        %v3005 = vunpack.c.l.b16 %v1485
        %v3006 = vunpack.c.h.b16 %v1485
        %v3007 = vunpack.c.l.b16 %v1486
        %v3008 = vunpack.c.h.b16 %v1486
        %v3009 = vunpack.c.l.b16 %v1487
        %v3010 = vunpack.c.h.b16 %v1487
        %v3011 = vunpack.c.l.b16 %v1488
        %v3012 = vunpack.c.h.b16 %v1488
        %v3013 = vunpack.c.l.b16 %v1489
        %v3014 = vunpack.c.h.b16 %v1489
        %v3015 = vunpack.c.l.b16 %v1490
        %v3016 = vunpack.c.h.b16 %v1490
        %v3017 = vunpack.c.l.b16 %v1491
        %v3018 = vunpack.c.h.b16 %v1491
        %v3019 = vunpack.c.l.b16 %v1492
        %v3020 = vunpack.c.h.b16 %v1492
        %v3021 = vunpack.c.l.b16 %v1493
        %v3022 = vunpack.c.h.b16 %v1493
        %v3023 = vunpack.c.l.b16 %v1494
        %v3024 = vunpack.c.h.b16 %v1494
        %v3025 = vunpack.c.l.b16 %v1495
        %v3026 = vunpack.c.h.b16 %v1495
        %v3027 = vunpack.c.l.b16 %v1496
        %v3028 = vunpack.c.h.b16 %v1496
        %v3029 = vunpack.c.l.b16 %v1497
        %v3030 = vunpack.c.h.b16 %v1497
        %v3031 = vunpack.c.l.b16 %v1498
        %v3032 = vunpack.c.h.b16 %v1498
        %v3033 = vunpack.c.l.b16 %v1499
        %v3034 = vunpack.c.h.b16 %v1499
        %v3035 = vunpack.c.l.b16 %v1500
        %v3036 = vunpack.c.h.b16 %v1500
        %v3037 = vpack.c.b16 %v2029, %v2013
        %v3038 = vpack.c.b16 %v2030, %v2014
        %v3039 = vpack.c.b16 %v2031, %v2015
        %v3040 = vpack.c.b16 %v2032, %v2016
        %v3041 = vpack.c.b16 %v2033, %v2017
        %v3042 = vpack.c.b16 %v2034, %v2018
        %v3043 = vpack.c.b16 %v2035, %v2019
        %v3044 = vpack.c.b16 %v2036, %v2020
        %v3045 = vpack.c.b16 %v2037, %v2021
        %v3046 = vpack.c.b16 %v2038, %v2022
        %v3047 = vpack.c.b16 %v2039, %v2023
        %v3048 = vpack.c.b16 %v2040, %v2024
        %v3049 = vpack.c.b16 %v2041, %v2025
        %v3050 = vpack.c.b16 %v2042, %v2026
        %v3051 = vpack.c.b16 %v2043, %v2027
        %v3052 = vpack.c.b16 %v2044, %v2028
        %v3053 = vpack.c.b16 %v2061, %v2045
        %v3054 = vpack.c.b16 %v2062, %v2046
        %v3055 = vpack.c.b16 %v2063, %v2047
        %v3056 = vpack.c.b16 %v2064, %v2048
        %v3057 = vpack.c.b16 %v2065, %v2049
        %v3058 = vpack.c.b16 %v2066, %v2050
        %v3059 = vpack.c.b16 %v2067, %v2051
        %v3060 = vpack.c.b16 %v2068, %v2052
        %v3061 = vpack.c.b16 %v2069, %v2053
        %v3062 = vpack.c.b16 %v2070, %v2054
        %v3063 = vpack.c.b16 %v2071, %v2055
        %v3064 = vpack.c.b16 %v2072, %v2056
        %v3065 = vpack.c.b16 %v2073, %v2057
        %v3066 = vpack.c.b16 %v2074, %v2058
        %v3067 = vpack.c.b16 %v2075, %v2059
        %v3068 = vpack.c.b16 %v2076, %v2060
        %v3069 = vpack.c.b16 %v2093, %v2077
        %v3070 = vpack.c.b16 %v2094, %v2078
        %v3071 = vpack.c.b16 %v2095, %v2079
        %v3072 = vpack.c.b16 %v2096, %v2080
        %v3073 = vpack.c.b16 %v2097, %v2081
        %v3074 = vpack.c.b16 %v2098, %v2082
        %v3075 = vpack.c.b16 %v2099, %v2083
        %v3076 = vpack.c.b16 %v2100, %v2084
        %v3077 = vpack.c.b16 %v2101, %v2085
        %v3078 = vpack.c.b16 %v2102, %v2086
        %v3079 = vpack.c.b16 %v2103, %v2087
        %v3080 = vpack.c.b16 %v2104, %v2088
        %v3081 = vpack.c.b16 %v2105, %v2089
        %v3082 = vpack.c.b16 %v2106, %v2090
        %v3083 = vpack.c.b16 %v2107, %v2091
        %v3084 = vpack.c.b16 %v2108, %v2092
        %v3085 = vpack.c.b16 %v2125, %v2109
        %v3086 = vpack.c.b16 %v2126, %v2110
        %v3087 = vpack.c.b16 %v2127, %v2111
        %v3088 = vpack.c.b16 %v2128, %v2112
        %v3089 = vpack.c.b16 %v2129, %v2113
        %v3090 = vpack.c.b16 %v2130, %v2114
        %v3091 = vpack.c.b16 %v2131, %v2115
        %v3092 = vpack.c.b16 %v2132, %v2116
        %v3093 = vpack.c.b16 %v2133, %v2117
        %v3094 = vpack.c.b16 %v2134, %v2118
        %v3095 = vpack.c.b16 %v2135, %v2119
        %v3096 = vpack.c.b16 %v2136, %v2120
        %v3097 = vpack.c.b16 %v2137, %v2121
        %v3098 = vpack.c.b16 %v2138, %v2122
        %v3099 = vpack.c.b16 %v2139, %v2123
        %v3100 = vpack.c.b16 %v2140, %v2124
        %v3101 = vpack.c.b16 %v2157, %v2141
        %v3102 = vpack.c.b16 %v2158, %v2142
        %v3103 = vpack.c.b16 %v2159, %v2143
        %v3104 = vpack.c.b16 %v2160, %v2144
        %v3105 = vpack.c.b16 %v2161, %v2145
        %v3106 = vpack.c.b16 %v2162, %v2146
        %v3107 = vpack.c.b16 %v2163, %v2147
        %v3108 = vpack.c.b16 %v2164, %v2148
        %v3109 = vpack.c.b16 %v2165, %v2149
        %v3110 = vpack.c.b16 %v2166, %v2150
        %v3111 = vpack.c.b16 %v2167, %v2151
        %v3112 = vpack.c.b16 %v2168, %v2152
        %v3113 = vpack.c.b16 %v2169, %v2153
        %v3114 = vpack.c.b16 %v2170, %v2154
        %v3115 = vpack.c.b16 %v2171, %v2155
        %v3116 = vpack.c.b16 %v2172, %v2156
        %v3117 = vpack.c.b16 %v2189, %v2173
        %v3118 = vpack.c.b16 %v2190, %v2174
        %v3119 = vpack.c.b16 %v2191, %v2175
        %v3120 = vpack.c.b16 %v2192, %v2176
        %v3121 = vpack.c.b16 %v2193, %v2177
        %v3122 = vpack.c.b16 %v2194, %v2178
        %v3123 = vpack.c.b16 %v2195, %v2179
        %v3124 = vpack.c.b16 %v2196, %v2180
        %v3125 = vpack.c.b16 %v2197, %v2181
        %v3126 = vpack.c.b16 %v2198, %v2182
        %v3127 = vpack.c.b16 %v2199, %v2183
        %v3128 = vpack.c.b16 %v2200, %v2184
        %v3129 = vpack.c.b16 %v2201, %v2185
        %v3130 = vpack.c.b16 %v2202, %v2186
        %v3131 = vpack.c.b16 %v2203, %v2187
        %v3132 = vpack.c.b16 %v2204, %v2188
        %v3133 = vpack.c.b16 %v2221, %v2205
        %v3134 = vpack.c.b16 %v2222, %v2206
        %v3135 = vpack.c.b16 %v2223, %v2207
        %v3136 = vpack.c.b16 %v2224, %v2208
        %v3137 = vpack.c.b16 %v2225, %v2209
        %v3138 = vpack.c.b16 %v2226, %v2210
        %v3139 = vpack.c.b16 %v2227, %v2211
        %v3140 = vpack.c.b16 %v2228, %v2212
        %v3141 = vpack.c.b16 %v2229, %v2213
        %v3142 = vpack.c.b16 %v2230, %v2214
        %v3143 = vpack.c.b16 %v2231, %v2215
        %v3144 = vpack.c.b16 %v2232, %v2216
        %v3145 = vpack.c.b16 %v2233, %v2217
        %v3146 = vpack.c.b16 %v2234, %v2218
        %v3147 = vpack.c.b16 %v2235, %v2219
        %v3148 = vpack.c.b16 %v2236, %v2220
        %v3149 = vpack.c.b16 %v2253, %v2237
        %v3150 = vpack.c.b16 %v2254, %v2238
        %v3151 = vpack.c.b16 %v2255, %v2239
        %v3152 = vpack.c.b16 %v2256, %v2240
        %v3153 = vpack.c.b16 %v2257, %v2241
        %v3154 = vpack.c.b16 %v2258, %v2242
        %v3155 = vpack.c.b16 %v2259, %v2243
        %v3156 = vpack.c.b16 %v2260, %v2244
        %v3157 = vpack.c.b16 %v2261, %v2245
        %v3158 = vpack.c.b16 %v2262, %v2246
        %v3159 = vpack.c.b16 %v2263, %v2247
        %v3160 = vpack.c.b16 %v2264, %v2248
        %v3161 = vpack.c.b16 %v2265, %v2249
        %v3162 = vpack.c.b16 %v2266, %v2250
        %v3163 = vpack.c.b16 %v2267, %v2251
        %v3164 = vpack.c.b16 %v2268, %v2252
        %v3165 = vpack.c.b16 %v2285, %v2269
        %v3166 = vpack.c.b16 %v2286, %v2270
        %v3167 = vpack.c.b16 %v2287, %v2271
        %v3168 = vpack.c.b16 %v2288, %v2272
        %v3169 = vpack.c.b16 %v2289, %v2273
        %v3170 = vpack.c.b16 %v2290, %v2274
        %v3171 = vpack.c.b16 %v2291, %v2275
        %v3172 = vpack.c.b16 %v2292, %v2276
        %v3173 = vpack.c.b16 %v2293, %v2277
        %v3174 = vpack.c.b16 %v2294, %v2278
        %v3175 = vpack.c.b16 %v2295, %v2279
        %v3176 = vpack.c.b16 %v2296, %v2280
        %v3177 = vpack.c.b16 %v2297, %v2281
        %v3178 = vpack.c.b16 %v2298, %v2282
        %v3179 = vpack.c.b16 %v2299, %v2283
        %v3180 = vpack.c.b16 %v2300, %v2284
        %v3181 = vpack.c.b16 %v2317, %v2301
        %v3182 = vpack.c.b16 %v2318, %v2302
        %v3183 = vpack.c.b16 %v2319, %v2303
        %v3184 = vpack.c.b16 %v2320, %v2304
        %v3185 = vpack.c.b16 %v2321, %v2305
        %v3186 = vpack.c.b16 %v2322, %v2306
        %v3187 = vpack.c.b16 %v2323, %v2307
        %v3188 = vpack.c.b16 %v2324, %v2308
        %v3189 = vpack.c.b16 %v2325, %v2309
        %v3190 = vpack.c.b16 %v2326, %v2310
        %v3191 = vpack.c.b16 %v2327, %v2311
        %v3192 = vpack.c.b16 %v2328, %v2312
        %v3193 = vpack.c.b16 %v2329, %v2313
        %v3194 = vpack.c.b16 %v2330, %v2314
        %v3195 = vpack.c.b16 %v2331, %v2315
        %v3196 = vpack.c.b16 %v2332, %v2316
        %v3197 = vpack.c.b16 %v2349, %v2333
        %v3198 = vpack.c.b16 %v2350, %v2334
        %v3199 = vpack.c.b16 %v2351, %v2335
        %v3200 = vpack.c.b16 %v2352, %v2336
        %v3201 = vpack.c.b16 %v2353, %v2337
        %v3202 = vpack.c.b16 %v2354, %v2338
        %v3203 = vpack.c.b16 %v2355, %v2339
        %v3204 = vpack.c.b16 %v2356, %v2340
        %v3205 = vpack.c.b16 %v2357, %v2341
        %v3206 = vpack.c.b16 %v2358, %v2342
        %v3207 = vpack.c.b16 %v2359, %v2343
        %v3208 = vpack.c.b16 %v2360, %v2344
        %v3209 = vpack.c.b16 %v2361, %v2345
        %v3210 = vpack.c.b16 %v2362, %v2346
        %v3211 = vpack.c.b16 %v2363, %v2347
        %v3212 = vpack.c.b16 %v2364, %v2348
        %v3213 = vpack.c.b16 %v2381, %v2365
        %v3214 = vpack.c.b16 %v2382, %v2366
        %v3215 = vpack.c.b16 %v2383, %v2367
        %v3216 = vpack.c.b16 %v2384, %v2368
        %v3217 = vpack.c.b16 %v2385, %v2369
        %v3218 = vpack.c.b16 %v2386, %v2370
        %v3219 = vpack.c.b16 %v2387, %v2371
        %v3220 = vpack.c.b16 %v2388, %v2372
        %v3221 = vpack.c.b16 %v2389, %v2373
        %v3222 = vpack.c.b16 %v2390, %v2374
        %v3223 = vpack.c.b16 %v2391, %v2375
        %v3224 = vpack.c.b16 %v2392, %v2376
        %v3225 = vpack.c.b16 %v2393, %v2377
        %v3226 = vpack.c.b16 %v2394, %v2378
        %v3227 = vpack.c.b16 %v2395, %v2379
        %v3228 = vpack.c.b16 %v2396, %v2380
        %v3229 = vpack.c.b16 %v2413, %v2397
        %v3230 = vpack.c.b16 %v2414, %v2398
        %v3231 = vpack.c.b16 %v2415, %v2399
        %v3232 = vpack.c.b16 %v2416, %v2400
        %v3233 = vpack.c.b16 %v2417, %v2401
        %v3234 = vpack.c.b16 %v2418, %v2402
        %v3235 = vpack.c.b16 %v2419, %v2403
        %v3236 = vpack.c.b16 %v2420, %v2404
        %v3237 = vpack.c.b16 %v2421, %v2405
        %v3238 = vpack.c.b16 %v2422, %v2406
        %v3239 = vpack.c.b16 %v2423, %v2407
        %v3240 = vpack.c.b16 %v2424, %v2408
        %v3241 = vpack.c.b16 %v2425, %v2409
        %v3242 = vpack.c.b16 %v2426, %v2410
        %v3243 = vpack.c.b16 %v2427, %v2411
        %v3244 = vpack.c.b16 %v2428, %v2412
        %v3245 = vpack.c.b16 %v2445, %v2429
        %v3246 = vpack.c.b16 %v2446, %v2430
        %v3247 = vpack.c.b16 %v2447, %v2431
        %v3248 = vpack.c.b16 %v2448, %v2432
        %v3249 = vpack.c.b16 %v2449, %v2433
        %v3250 = vpack.c.b16 %v2450, %v2434
        %v3251 = vpack.c.b16 %v2451, %v2435
        %v3252 = vpack.c.b16 %v2452, %v2436
        %v3253 = vpack.c.b16 %v2453, %v2437
        %v3254 = vpack.c.b16 %v2454, %v2438
        %v3255 = vpack.c.b16 %v2455, %v2439
        %v3256 = vpack.c.b16 %v2456, %v2440
        %v3257 = vpack.c.b16 %v2457, %v2441
        %v3258 = vpack.c.b16 %v2458, %v2442
        %v3259 = vpack.c.b16 %v2459, %v2443
        %v3260 = vpack.c.b16 %v2460, %v2444
        %v3261 = vpack.c.b16 %v2477, %v2461
        %v3262 = vpack.c.b16 %v2478, %v2462
        %v3263 = vpack.c.b16 %v2479, %v2463
        %v3264 = vpack.c.b16 %v2480, %v2464
        %v3265 = vpack.c.b16 %v2481, %v2465
        %v3266 = vpack.c.b16 %v2482, %v2466
        %v3267 = vpack.c.b16 %v2483, %v2467
        %v3268 = vpack.c.b16 %v2484, %v2468
        %v3269 = vpack.c.b16 %v2485, %v2469
        %v3270 = vpack.c.b16 %v2486, %v2470
        %v3271 = vpack.c.b16 %v2487, %v2471
        %v3272 = vpack.c.b16 %v2488, %v2472
        %v3273 = vpack.c.b16 %v2489, %v2473
        %v3274 = vpack.c.b16 %v2490, %v2474
        %v3275 = vpack.c.b16 %v2491, %v2475
        %v3276 = vpack.c.b16 %v2492, %v2476
        %v3277 = vpack.c.b16 %v2509, %v2493
        %v3278 = vpack.c.b16 %v2510, %v2494
        %v3279 = vpack.c.b16 %v2511, %v2495
        %v3280 = vpack.c.b16 %v2512, %v2496
        %v3281 = vpack.c.b16 %v2513, %v2497
        %v3282 = vpack.c.b16 %v2514, %v2498
        %v3283 = vpack.c.b16 %v2515, %v2499
        %v3284 = vpack.c.b16 %v2516, %v2500
        %v3285 = vpack.c.b16 %v2517, %v2501
        %v3286 = vpack.c.b16 %v2518, %v2502
        %v3287 = vpack.c.b16 %v2519, %v2503
        %v3288 = vpack.c.b16 %v2520, %v2504
        %v3289 = vpack.c.b16 %v2521, %v2505
        %v3290 = vpack.c.b16 %v2522, %v2506
        %v3291 = vpack.c.b16 %v2523, %v2507
        %v3292 = vpack.c.b16 %v2524, %v2508
        %v3293 = vpack.c.b16 %v2541, %v2525
        %v3294 = vpack.c.b16 %v2542, %v2526
        %v3295 = vpack.c.b16 %v2543, %v2527
        %v3296 = vpack.c.b16 %v2544, %v2528
        %v3297 = vpack.c.b16 %v2545, %v2529
        %v3298 = vpack.c.b16 %v2546, %v2530
        %v3299 = vpack.c.b16 %v2547, %v2531
        %v3300 = vpack.c.b16 %v2548, %v2532
        %v3301 = vpack.c.b16 %v2549, %v2533
        %v3302 = vpack.c.b16 %v2550, %v2534
        %v3303 = vpack.c.b16 %v2551, %v2535
        %v3304 = vpack.c.b16 %v2552, %v2536
        %v3305 = vpack.c.b16 %v2553, %v2537
        %v3306 = vpack.c.b16 %v2554, %v2538
        %v3307 = vpack.c.b16 %v2555, %v2539
        %v3308 = vpack.c.b16 %v2556, %v2540
        %v3309 = vpack.c.b16 %v2573, %v2557
        %v3310 = vpack.c.b16 %v2574, %v2558
        %v3311 = vpack.c.b16 %v2575, %v2559
        %v3312 = vpack.c.b16 %v2576, %v2560
        %v3313 = vpack.c.b16 %v2577, %v2561
        %v3314 = vpack.c.b16 %v2578, %v2562
        %v3315 = vpack.c.b16 %v2579, %v2563
        %v3316 = vpack.c.b16 %v2580, %v2564
        %v3317 = vpack.c.b16 %v2581, %v2565
        %v3318 = vpack.c.b16 %v2582, %v2566
        %v3319 = vpack.c.b16 %v2583, %v2567
        %v3320 = vpack.c.b16 %v2584, %v2568
        %v3321 = vpack.c.b16 %v2585, %v2569
        %v3322 = vpack.c.b16 %v2586, %v2570
        %v3323 = vpack.c.b16 %v2587, %v2571
        %v3324 = vpack.c.b16 %v2588, %v2572
        %v3325 = vpack.c.b16 %v2605, %v2589
        %v3326 = vpack.c.b16 %v2606, %v2590
        %v3327 = vpack.c.b16 %v2607, %v2591
        %v3328 = vpack.c.b16 %v2608, %v2592
        %v3329 = vpack.c.b16 %v2609, %v2593
        %v3330 = vpack.c.b16 %v2610, %v2594
        %v3331 = vpack.c.b16 %v2611, %v2595
        %v3332 = vpack.c.b16 %v2612, %v2596
        %v3333 = vpack.c.b16 %v2613, %v2597
        %v3334 = vpack.c.b16 %v2614, %v2598
        %v3335 = vpack.c.b16 %v2615, %v2599
        %v3336 = vpack.c.b16 %v2616, %v2600
        %v3337 = vpack.c.b16 %v2617, %v2601
        %v3338 = vpack.c.b16 %v2618, %v2602
        %v3339 = vpack.c.b16 %v2619, %v2603
        %v3340 = vpack.c.b16 %v2620, %v2604
        %v3341 = vpack.c.b16 %v2637, %v2621
        %v3342 = vpack.c.b16 %v2638, %v2622
        %v3343 = vpack.c.b16 %v2639, %v2623
        %v3344 = vpack.c.b16 %v2640, %v2624
        %v3345 = vpack.c.b16 %v2641, %v2625
        %v3346 = vpack.c.b16 %v2642, %v2626
        %v3347 = vpack.c.b16 %v2643, %v2627
        %v3348 = vpack.c.b16 %v2644, %v2628
        %v3349 = vpack.c.b16 %v2645, %v2629
        %v3350 = vpack.c.b16 %v2646, %v2630
        %v3351 = vpack.c.b16 %v2647, %v2631
        %v3352 = vpack.c.b16 %v2648, %v2632
        %v3353 = vpack.c.b16 %v2649, %v2633
        %v3354 = vpack.c.b16 %v2650, %v2634
        %v3355 = vpack.c.b16 %v2651, %v2635
        %v3356 = vpack.c.b16 %v2652, %v2636
        %v3357 = vpack.c.b16 %v2669, %v2653
        %v3358 = vpack.c.b16 %v2670, %v2654
        %v3359 = vpack.c.b16 %v2671, %v2655
        %v3360 = vpack.c.b16 %v2672, %v2656
        %v3361 = vpack.c.b16 %v2673, %v2657
        %v3362 = vpack.c.b16 %v2674, %v2658
        %v3363 = vpack.c.b16 %v2675, %v2659
        %v3364 = vpack.c.b16 %v2676, %v2660
        %v3365 = vpack.c.b16 %v2677, %v2661
        %v3366 = vpack.c.b16 %v2678, %v2662
        %v3367 = vpack.c.b16 %v2679, %v2663
        %v3368 = vpack.c.b16 %v2680, %v2664
        %v3369 = vpack.c.b16 %v2681, %v2665
        %v3370 = vpack.c.b16 %v2682, %v2666
        %v3371 = vpack.c.b16 %v2683, %v2667
        %v3372 = vpack.c.b16 %v2684, %v2668
        %v3373 = vpack.c.b16 %v2701, %v2685
        %v3374 = vpack.c.b16 %v2702, %v2686
        %v3375 = vpack.c.b16 %v2703, %v2687
        %v3376 = vpack.c.b16 %v2704, %v2688
        %v3377 = vpack.c.b16 %v2705, %v2689
        %v3378 = vpack.c.b16 %v2706, %v2690
        %v3379 = vpack.c.b16 %v2707, %v2691
        %v3380 = vpack.c.b16 %v2708, %v2692
        %v3381 = vpack.c.b16 %v2709, %v2693
        %v3382 = vpack.c.b16 %v2710, %v2694
        %v3383 = vpack.c.b16 %v2711, %v2695
        %v3384 = vpack.c.b16 %v2712, %v2696
        %v3385 = vpack.c.b16 %v2713, %v2697
        %v3386 = vpack.c.b16 %v2714, %v2698
        %v3387 = vpack.c.b16 %v2715, %v2699
        %v3388 = vpack.c.b16 %v2716, %v2700
        %v3389 = vpack.c.b16 %v2733, %v2717
        %v3390 = vpack.c.b16 %v2734, %v2718
        %v3391 = vpack.c.b16 %v2735, %v2719
        %v3392 = vpack.c.b16 %v2736, %v2720
        %v3393 = vpack.c.b16 %v2737, %v2721
        %v3394 = vpack.c.b16 %v2738, %v2722
        %v3395 = vpack.c.b16 %v2739, %v2723
        %v3396 = vpack.c.b16 %v2740, %v2724
        %v3397 = vpack.c.b16 %v2741, %v2725
        %v3398 = vpack.c.b16 %v2742, %v2726
        %v3399 = vpack.c.b16 %v2743, %v2727
        %v3400 = vpack.c.b16 %v2744, %v2728
        %v3401 = vpack.c.b16 %v2745, %v2729
        %v3402 = vpack.c.b16 %v2746, %v2730
        %v3403 = vpack.c.b16 %v2747, %v2731
        %v3404 = vpack.c.b16 %v2748, %v2732
        %v3405 = vpack.c.b16 %v2765, %v2749
        %v3406 = vpack.c.b16 %v2766, %v2750
        %v3407 = vpack.c.b16 %v2767, %v2751
        %v3408 = vpack.c.b16 %v2768, %v2752
        %v3409 = vpack.c.b16 %v2769, %v2753
        %v3410 = vpack.c.b16 %v2770, %v2754
        %v3411 = vpack.c.b16 %v2771, %v2755
        %v3412 = vpack.c.b16 %v2772, %v2756
        %v3413 = vpack.c.b16 %v2773, %v2757
        %v3414 = vpack.c.b16 %v2774, %v2758
        %v3415 = vpack.c.b16 %v2775, %v2759
        %v3416 = vpack.c.b16 %v2776, %v2760
        %v3417 = vpack.c.b16 %v2777, %v2761
        %v3418 = vpack.c.b16 %v2778, %v2762
        %v3419 = vpack.c.b16 %v2779, %v2763
        %v3420 = vpack.c.b16 %v2780, %v2764
        %v3421 = vpack.c.b16 %v2797, %v2781
        %v3422 = vpack.c.b16 %v2798, %v2782
        %v3423 = vpack.c.b16 %v2799, %v2783
        %v3424 = vpack.c.b16 %v2800, %v2784
        %v3425 = vpack.c.b16 %v2801, %v2785
        %v3426 = vpack.c.b16 %v2802, %v2786
        %v3427 = vpack.c.b16 %v2803, %v2787
        %v3428 = vpack.c.b16 %v2804, %v2788
        %v3429 = vpack.c.b16 %v2805, %v2789
        %v3430 = vpack.c.b16 %v2806, %v2790
        %v3431 = vpack.c.b16 %v2807, %v2791
        %v3432 = vpack.c.b16 %v2808, %v2792
        %v3433 = vpack.c.b16 %v2809, %v2793
        %v3434 = vpack.c.b16 %v2810, %v2794
        %v3435 = vpack.c.b16 %v2811, %v2795
        %v3436 = vpack.c.b16 %v2812, %v2796
        %v3437 = vpack.c.b16 %v2829, %v2813
        %v3438 = vpack.c.b16 %v2830, %v2814
        %v3439 = vpack.c.b16 %v2831, %v2815
        %v3440 = vpack.c.b16 %v2832, %v2816
        %v3441 = vpack.c.b16 %v2833, %v2817
        %v3442 = vpack.c.b16 %v2834, %v2818
        %v3443 = vpack.c.b16 %v2835, %v2819
        %v3444 = vpack.c.b16 %v2836, %v2820
        %v3445 = vpack.c.b16 %v2837, %v2821
        %v3446 = vpack.c.b16 %v2838, %v2822
        %v3447 = vpack.c.b16 %v2839, %v2823
        %v3448 = vpack.c.b16 %v2840, %v2824
        %v3449 = vpack.c.b16 %v2841, %v2825
        %v3450 = vpack.c.b16 %v2842, %v2826
        %v3451 = vpack.c.b16 %v2843, %v2827
        %v3452 = vpack.c.b16 %v2844, %v2828
        %v3453 = vpack.c.b16 %v2861, %v2845
        %v3454 = vpack.c.b16 %v2862, %v2846
        %v3455 = vpack.c.b16 %v2863, %v2847
        %v3456 = vpack.c.b16 %v2864, %v2848
        %v3457 = vpack.c.b16 %v2865, %v2849
        %v3458 = vpack.c.b16 %v2866, %v2850
        %v3459 = vpack.c.b16 %v2867, %v2851
        %v3460 = vpack.c.b16 %v2868, %v2852
        %v3461 = vpack.c.b16 %v2869, %v2853
        %v3462 = vpack.c.b16 %v2870, %v2854
        %v3463 = vpack.c.b16 %v2871, %v2855
        %v3464 = vpack.c.b16 %v2872, %v2856
        %v3465 = vpack.c.b16 %v2873, %v2857
        %v3466 = vpack.c.b16 %v2874, %v2858
        %v3467 = vpack.c.b16 %v2875, %v2859
        %v3468 = vpack.c.b16 %v2876, %v2860
        %v3469 = vpack.c.b16 %v2893, %v2877
        %v3470 = vpack.c.b16 %v2894, %v2878
        %v3471 = vpack.c.b16 %v2895, %v2879
        %v3472 = vpack.c.b16 %v2896, %v2880
        %v3473 = vpack.c.b16 %v2897, %v2881
        %v3474 = vpack.c.b16 %v2898, %v2882
        %v3475 = vpack.c.b16 %v2899, %v2883
        %v3476 = vpack.c.b16 %v2900, %v2884
        %v3477 = vpack.c.b16 %v2901, %v2885
        %v3478 = vpack.c.b16 %v2902, %v2886
        %v3479 = vpack.c.b16 %v2903, %v2887
        %v3480 = vpack.c.b16 %v2904, %v2888
        %v3481 = vpack.c.b16 %v2905, %v2889
        %v3482 = vpack.c.b16 %v2906, %v2890
        %v3483 = vpack.c.b16 %v2907, %v2891
        %v3484 = vpack.c.b16 %v2908, %v2892
        %v3485 = vpack.c.b16 %v2925, %v2909
        %v3486 = vpack.c.b16 %v2926, %v2910
        %v3487 = vpack.c.b16 %v2927, %v2911
        %v3488 = vpack.c.b16 %v2928, %v2912
        %v3489 = vpack.c.b16 %v2929, %v2913
        %v3490 = vpack.c.b16 %v2930, %v2914
        %v3491 = vpack.c.b16 %v2931, %v2915
        %v3492 = vpack.c.b16 %v2932, %v2916
        %v3493 = vpack.c.b16 %v2933, %v2917
        %v3494 = vpack.c.b16 %v2934, %v2918
        %v3495 = vpack.c.b16 %v2935, %v2919
        %v3496 = vpack.c.b16 %v2936, %v2920
        %v3497 = vpack.c.b16 %v2937, %v2921
        %v3498 = vpack.c.b16 %v2938, %v2922
        %v3499 = vpack.c.b16 %v2939, %v2923
        %v3500 = vpack.c.b16 %v2940, %v2924
        %v3501 = vpack.c.b16 %v2957, %v2941
        %v3502 = vpack.c.b16 %v2958, %v2942
        %v3503 = vpack.c.b16 %v2959, %v2943
        %v3504 = vpack.c.b16 %v2960, %v2944
        %v3505 = vpack.c.b16 %v2961, %v2945
        %v3506 = vpack.c.b16 %v2962, %v2946
        %v3507 = vpack.c.b16 %v2963, %v2947
        %v3508 = vpack.c.b16 %v2964, %v2948
        %v3509 = vpack.c.b16 %v2965, %v2949
        %v3510 = vpack.c.b16 %v2966, %v2950
        %v3511 = vpack.c.b16 %v2967, %v2951
        %v3512 = vpack.c.b16 %v2968, %v2952
        %v3513 = vpack.c.b16 %v2969, %v2953
        %v3514 = vpack.c.b16 %v2970, %v2954
        %v3515 = vpack.c.b16 %v2971, %v2955
        %v3516 = vpack.c.b16 %v2972, %v2956
        %v3517 = vpack.c.b16 %v2989, %v2973
        %v3518 = vpack.c.b16 %v2990, %v2974
        %v3519 = vpack.c.b16 %v2991, %v2975
        %v3520 = vpack.c.b16 %v2992, %v2976
        %v3521 = vpack.c.b16 %v2993, %v2977
        %v3522 = vpack.c.b16 %v2994, %v2978
        %v3523 = vpack.c.b16 %v2995, %v2979
        %v3524 = vpack.c.b16 %v2996, %v2980
        %v3525 = vpack.c.b16 %v2997, %v2981
        %v3526 = vpack.c.b16 %v2998, %v2982
        %v3527 = vpack.c.b16 %v2999, %v2983
        %v3528 = vpack.c.b16 %v3000, %v2984
        %v3529 = vpack.c.b16 %v3001, %v2985
        %v3530 = vpack.c.b16 %v3002, %v2986
        %v3531 = vpack.c.b16 %v3003, %v2987
        %v3532 = vpack.c.b16 %v3004, %v2988
        %v3533 = vpack.c.b16 %v3021, %v3005
        %v3534 = vpack.c.b16 %v3022, %v3006
        %v3535 = vpack.c.b16 %v3023, %v3007
        %v3536 = vpack.c.b16 %v3024, %v3008
        %v3537 = vpack.c.b16 %v3025, %v3009
        %v3538 = vpack.c.b16 %v3026, %v3010
        %v3539 = vpack.c.b16 %v3027, %v3011
        %v3540 = vpack.c.b16 %v3028, %v3012
        %v3541 = vpack.c.b16 %v3029, %v3013
        %v3542 = vpack.c.b16 %v3030, %v3014
        %v3543 = vpack.c.b16 %v3031, %v3015
        %v3544 = vpack.c.b16 %v3032, %v3016
        %v3545 = vpack.c.b16 %v3033, %v3017
        %v3546 = vpack.c.b16 %v3034, %v3018
        %v3547 = vpack.c.b16 %v3035, %v3019
        %v3548 = vpack.c.b16 %v3036, %v3020
        %4061 = vmatprep.subr.bf16.mxu0 %v3150
        %4062 = vmatpush1.bf16.msra.mxu0 %v3149
        %4063 = vmatprep.subr.bf16.mxu0 %v3134
        %4064 = vmatpush1.bf16.msra.mxu0 %v3133
        %4065 = vmatprep.subr.bf16.mxu0 %v3118
        %4066 = vmatpush1.bf16.msra.mxu0 %v3117
        %4067 = vmatprep.subr.bf16.mxu0 %v3102
        %4068 = vmatpush1.bf16.msra.mxu0 %v3101
        %4069 = vmatprep.subr.bf16.mxu0 %v3086
        %4070 = vmatpush1.bf16.msra.mxu0 %v3085
        %4071 = vmatprep.subr.bf16.mxu0 %v3070
        %4072 = vmatpush1.bf16.msra.mxu0 %v3069
        %4073 = vmatprep.subr.bf16.mxu0 %v3054
        %4074 = vmatpush1.bf16.msra.mxu0 %v3053
        %4075 = vmatprep.subr.bf16.mxu0 %v3038
        %4076 = vmatpush1.bf16.msra.mxu0 %v3037
        %4077 = vmatprep.subr.bf16.mxu0 %v3278
        %4078 = vmatpush2.bf16.msra.mxu0 %v3277
        %4079 = vmatprep.subr.bf16.mxu0 %v3262
        %4080 = vmatpush2.bf16.msra.mxu0 %v3261
        %4081 = vmatprep.subr.bf16.mxu0 %v3246
        %4082 = vmatpush2.bf16.msra.mxu0 %v3245
        %4083 = vmatprep.subr.bf16.mxu0 %v3230
        %4084 = vmatpush2.bf16.msra.mxu0 %v3229
        %4085 = vmatprep.subr.bf16.mxu0 %v3214
        %4086 = vmatpush2.bf16.msra.mxu0 %v3213
        %4087 = vmatprep.subr.bf16.mxu0 %v3198
        %4088 = vmatpush2.bf16.msra.mxu0 %v3197
        %4089 = vmatprep.subr.bf16.mxu0 %v3182
        %4090 = vmatpush2.bf16.msra.mxu0 %v3181
        %4091 = vmatprep.subr.bf16.mxu0 %v3166
        %4092 = vmatpush2.bf16.msra.mxu0 %v3165
        %4093 = vmatprep.mubr.bf16.mxu0 %v986
        %4094 = vmatmul.mubr.bf16.gmra.mxu0 %v985
        %v4095 = vpop.f32.mrf.mxu0
        %v4096 = vadd.f32 0.0, %v4095
        %v4097 = vpop.f32.mrf.mxu0
        %v4098 = vadd.f32 0.0, %v4097
        %v4099 = vpop.f32.mrf.mxu0
        %v4100 = vpop.f32.mrf.mxu0
        %4101 = vdwg.mxu0
        %4102 = vmatprep.subr.bf16.mxu0 %v3406
        %4103 = vmatpush1.bf16.msra.mxu0 %v3405
        %4104 = vmatprep.subr.bf16.mxu0 %v3390
        %4105 = vmatpush1.bf16.msra.mxu0 %v3389
        %4106 = vmatprep.subr.bf16.mxu0 %v3374
        %4107 = vmatpush1.bf16.msra.mxu0 %v3373
        %4108 = vmatprep.subr.bf16.mxu0 %v3358
        %4109 = vmatpush1.bf16.msra.mxu0 %v3357
        %4110 = vmatprep.subr.bf16.mxu0 %v3342
        %4111 = vmatpush1.bf16.msra.mxu0 %v3341
        %4112 = vmatprep.subr.bf16.mxu0 %v3326
        %4113 = vmatpush1.bf16.msra.mxu0 %v3325
        %4114 = vmatprep.subr.bf16.mxu0 %v3310
        %4115 = vmatpush1.bf16.msra.mxu0 %v3309
        %4116 = vmatprep.subr.bf16.mxu0 %v3294
        %4117 = vmatpush1.bf16.msra.mxu0 %v3293
        %4118 = vmatprep.subr.bf16.mxu0 %v3534
        %4119 = vmatpush2.bf16.msra.mxu0 %v3533
        %4120 = vmatprep.subr.bf16.mxu0 %v3518
        %4121 = vmatpush2.bf16.msra.mxu0 %v3517
        %4122 = vmatprep.subr.bf16.mxu0 %v3502
        %4123 = vmatpush2.bf16.msra.mxu0 %v3501
        %4124 = vmatprep.subr.bf16.mxu0 %v3486
        %4125 = vmatpush2.bf16.msra.mxu0 %v3485
        %4126 = vmatprep.subr.bf16.mxu0 %v3470
        %4127 = vmatpush2.bf16.msra.mxu0 %v3469
        %4128 = vmatprep.subr.bf16.mxu0 %v3454
        %4129 = vmatpush2.bf16.msra.mxu0 %v3453
        %4130 = vmatprep.subr.bf16.mxu0 %v3438
        %4131 = vmatpush2.bf16.msra.mxu0 %v3437
        %4132 = vmatprep.subr.bf16.mxu0 %v3422
        %4133 = vmatpush2.bf16.msra.mxu0 %v3421
        %4134 = vmatprep.mubr.bf16.mxu0 %v988
        %4135 = vmatmul.mubr.bf16.gmra.mxu0 %v987
        %v4136 = vpop.f32.mrf.mxu0
        %v4137 = vadd.f32 %v4096, %v4136
        %v4138 = vpop.f32.mrf.mxu0
        %v4139 = vadd.f32 %v4098, %v4138
        %v4140 = vpop.f32.mrf.mxu0
        %v4141 = vpop.f32.mrf.mxu0
        %4142 = vdwg.mxu0
        %4143 = vmatprep.subr.bf16.mxu0 %v3152
        %4144 = vmatpush1.bf16.msra.mxu0 %v3151
        %4145 = vmatprep.subr.bf16.mxu0 %v3136
        %4146 = vmatpush1.bf16.msra.mxu0 %v3135
        %4147 = vmatprep.subr.bf16.mxu0 %v3120
        %4148 = vmatpush1.bf16.msra.mxu0 %v3119
        %4149 = vmatprep.subr.bf16.mxu0 %v3104
        %4150 = vmatpush1.bf16.msra.mxu0 %v3103
        %4151 = vmatprep.subr.bf16.mxu0 %v3088
        %4152 = vmatpush1.bf16.msra.mxu0 %v3087
        %4153 = vmatprep.subr.bf16.mxu0 %v3072
        %4154 = vmatpush1.bf16.msra.mxu0 %v3071
        %4155 = vmatprep.subr.bf16.mxu0 %v3056
        %4156 = vmatpush1.bf16.msra.mxu0 %v3055
        %4157 = vmatprep.subr.bf16.mxu0 %v3040
        %4158 = vmatpush1.bf16.msra.mxu0 %v3039
        %4159 = vmatprep.subr.bf16.mxu0 %v3280
        %4160 = vmatpush2.bf16.msra.mxu0 %v3279
        %4161 = vmatprep.subr.bf16.mxu0 %v3264
        %4162 = vmatpush2.bf16.msra.mxu0 %v3263
        %4163 = vmatprep.subr.bf16.mxu0 %v3248
        %4164 = vmatpush2.bf16.msra.mxu0 %v3247
        %4165 = vmatprep.subr.bf16.mxu0 %v3232
        %4166 = vmatpush2.bf16.msra.mxu0 %v3231
        %4167 = vmatprep.subr.bf16.mxu0 %v3216
        %4168 = vmatpush2.bf16.msra.mxu0 %v3215
        %4169 = vmatprep.subr.bf16.mxu0 %v3200
        %4170 = vmatpush2.bf16.msra.mxu0 %v3199
        %4171 = vmatprep.subr.bf16.mxu0 %v3184
        %4172 = vmatpush2.bf16.msra.mxu0 %v3183
        %4173 = vmatprep.subr.bf16.mxu0 %v3168
        %4174 = vmatpush2.bf16.msra.mxu0 %v3167
        %4175 = vmatprep.mubr.bf16.mxu0 %v986
        %4176 = vmatmul.mubr.bf16.gmra.mxu0 %v985
        %v4177 = vpop.f32.mrf.mxu0
        %v4178 = vadd.f32 0.0, %v4177
        %v4179 = vpop.f32.mrf.mxu0
        %v4180 = vadd.f32 0.0, %v4179
        %v4181 = vpop.f32.mrf.mxu0
        %v4182 = vpop.f32.mrf.mxu0
        %4183 = vdwg.mxu0
        %4184 = vmatprep.subr.bf16.mxu0 %v3408
        %4185 = vmatpush1.bf16.msra.mxu0 %v3407
        %4186 = vmatprep.subr.bf16.mxu0 %v3392
        %4187 = vmatpush1.bf16.msra.mxu0 %v3391
        %4188 = vmatprep.subr.bf16.mxu0 %v3376
        %4189 = vmatpush1.bf16.msra.mxu0 %v3375
        %4190 = vmatprep.subr.bf16.mxu0 %v3360
        %4191 = vmatpush1.bf16.msra.mxu0 %v3359
        %4192 = vmatprep.subr.bf16.mxu0 %v3344
        %4193 = vmatpush1.bf16.msra.mxu0 %v3343
        %4194 = vmatprep.subr.bf16.mxu0 %v3328
        %4195 = vmatpush1.bf16.msra.mxu0 %v3327
        %4196 = vmatprep.subr.bf16.mxu0 %v3312
        %4197 = vmatpush1.bf16.msra.mxu0 %v3311
        %4198 = vmatprep.subr.bf16.mxu0 %v3296
        %4199 = vmatpush1.bf16.msra.mxu0 %v3295
        %4200 = vmatprep.subr.bf16.mxu0 %v3536
        %4201 = vmatpush2.bf16.msra.mxu0 %v3535
        %4202 = vmatprep.subr.bf16.mxu0 %v3520
        %4203 = vmatpush2.bf16.msra.mxu0 %v3519
        %4204 = vmatprep.subr.bf16.mxu0 %v3504
        %4205 = vmatpush2.bf16.msra.mxu0 %v3503
        %4206 = vmatprep.subr.bf16.mxu0 %v3488
        %4207 = vmatpush2.bf16.msra.mxu0 %v3487
        %4208 = vmatprep.subr.bf16.mxu0 %v3472
        %4209 = vmatpush2.bf16.msra.mxu0 %v3471
        %4210 = vmatprep.subr.bf16.mxu0 %v3456
        %4211 = vmatpush2.bf16.msra.mxu0 %v3455
        %4212 = vmatprep.subr.bf16.mxu0 %v3440
        %4213 = vmatpush2.bf16.msra.mxu0 %v3439
        %4214 = vmatprep.subr.bf16.mxu0 %v3424
        %4215 = vmatpush2.bf16.msra.mxu0 %v3423
        %4216 = vmatprep.mubr.bf16.mxu0 %v988
        %4217 = vmatmul.mubr.bf16.gmra.mxu0 %v987
        %v4218 = vpop.f32.mrf.mxu0
        %v4219 = vadd.f32 %v4178, %v4218
        %v4220 = vpop.f32.mrf.mxu0
        %v4221 = vadd.f32 %v4180, %v4220
        %v4222 = vpop.f32.mrf.mxu0
        %v4223 = vpop.f32.mrf.mxu0
        %4224 = vdwg.mxu0
        %4225 = vmatprep.subr.bf16.mxu0 %v3154
        %4226 = vmatpush1.bf16.msra.mxu0 %v3153
        %4227 = vmatprep.subr.bf16.mxu0 %v3138
        %4228 = vmatpush1.bf16.msra.mxu0 %v3137
        %4229 = vmatprep.subr.bf16.mxu0 %v3122
        %4230 = vmatpush1.bf16.msra.mxu0 %v3121
        %4231 = vmatprep.subr.bf16.mxu0 %v3106
        %4232 = vmatpush1.bf16.msra.mxu0 %v3105
        %4233 = vmatprep.subr.bf16.mxu0 %v3090
        %4234 = vmatpush1.bf16.msra.mxu0 %v3089
        %4235 = vmatprep.subr.bf16.mxu0 %v3074
        %4236 = vmatpush1.bf16.msra.mxu0 %v3073
        %4237 = vmatprep.subr.bf16.mxu0 %v3058
        %4238 = vmatpush1.bf16.msra.mxu0 %v3057
        %4239 = vmatprep.subr.bf16.mxu0 %v3042
        %4240 = vmatpush1.bf16.msra.mxu0 %v3041
        %4241 = vmatprep.subr.bf16.mxu0 %v3282
        %4242 = vmatpush2.bf16.msra.mxu0 %v3281
        %4243 = vmatprep.subr.bf16.mxu0 %v3266
        %4244 = vmatpush2.bf16.msra.mxu0 %v3265
        %4245 = vmatprep.subr.bf16.mxu0 %v3250
        %4246 = vmatpush2.bf16.msra.mxu0 %v3249
        %4247 = vmatprep.subr.bf16.mxu0 %v3234
        %4248 = vmatpush2.bf16.msra.mxu0 %v3233
        %4249 = vmatprep.subr.bf16.mxu0 %v3218
        %4250 = vmatpush2.bf16.msra.mxu0 %v3217
        %4251 = vmatprep.subr.bf16.mxu0 %v3202
        %4252 = vmatpush2.bf16.msra.mxu0 %v3201
        %4253 = vmatprep.subr.bf16.mxu0 %v3186
        %4254 = vmatpush2.bf16.msra.mxu0 %v3185
        %4255 = vmatprep.subr.bf16.mxu0 %v3170
        %4256 = vmatpush2.bf16.msra.mxu0 %v3169
        %4257 = vmatprep.mubr.bf16.mxu0 %v986
        %4258 = vmatmul.mubr.bf16.gmra.mxu0 %v985
        %v4259 = vpop.f32.mrf.mxu0
        %v4260 = vadd.f32 0.0, %v4259
        %v4261 = vpop.f32.mrf.mxu0
        %v4262 = vadd.f32 0.0, %v4261
        %v4263 = vpop.f32.mrf.mxu0
        %v4264 = vpop.f32.mrf.mxu0
        %4265 = vdwg.mxu0
        %4266 = vmatprep.subr.bf16.mxu0 %v3410
        %4267 = vmatpush1.bf16.msra.mxu0 %v3409
        %4268 = vmatprep.subr.bf16.mxu0 %v3394
        %4269 = vmatpush1.bf16.msra.mxu0 %v3393
        %4270 = vmatprep.subr.bf16.mxu0 %v3378
        %4271 = vmatpush1.bf16.msra.mxu0 %v3377
        %4272 = vmatprep.subr.bf16.mxu0 %v3362
        %4273 = vmatpush1.bf16.msra.mxu0 %v3361
        %4274 = vmatprep.subr.bf16.mxu0 %v3346
        %4275 = vmatpush1.bf16.msra.mxu0 %v3345
        %4276 = vmatprep.subr.bf16.mxu0 %v3330
        %4277 = vmatpush1.bf16.msra.mxu0 %v3329
        %4278 = vmatprep.subr.bf16.mxu0 %v3314
        %4279 = vmatpush1.bf16.msra.mxu0 %v3313
        %4280 = vmatprep.subr.bf16.mxu0 %v3298
        %4281 = vmatpush1.bf16.msra.mxu0 %v3297
        %4282 = vmatprep.subr.bf16.mxu0 %v3538
        %4283 = vmatpush2.bf16.msra.mxu0 %v3537
        %4284 = vmatprep.subr.bf16.mxu0 %v3522
        %4285 = vmatpush2.bf16.msra.mxu0 %v3521
        %4286 = vmatprep.subr.bf16.mxu0 %v3506
        %4287 = vmatpush2.bf16.msra.mxu0 %v3505
        %4288 = vmatprep.subr.bf16.mxu0 %v3490
        %4289 = vmatpush2.bf16.msra.mxu0 %v3489
        %4290 = vmatprep.subr.bf16.mxu0 %v3474
        %4291 = vmatpush2.bf16.msra.mxu0 %v3473
        %4292 = vmatprep.subr.bf16.mxu0 %v3458
        %4293 = vmatpush2.bf16.msra.mxu0 %v3457
        %4294 = vmatprep.subr.bf16.mxu0 %v3442
        %4295 = vmatpush2.bf16.msra.mxu0 %v3441
        %4296 = vmatprep.subr.bf16.mxu0 %v3426
        %4297 = vmatpush2.bf16.msra.mxu0 %v3425
        %4298 = vmatprep.mubr.bf16.mxu0 %v988
        %4299 = vmatmul.mubr.bf16.gmra.mxu0 %v987
        %v4300 = vpop.f32.mrf.mxu0
        %v4301 = vadd.f32 %v4260, %v4300
        %v4302 = vpop.f32.mrf.mxu0
        %v4303 = vadd.f32 %v4262, %v4302
        %v4304 = vpop.f32.mrf.mxu0
        %v4305 = vpop.f32.mrf.mxu0
        %4306 = vdwg.mxu0
        %4307 = vmatprep.subr.bf16.mxu0 %v3156
        %4308 = vmatpush1.bf16.msra.mxu0 %v3155
        %4309 = vmatprep.subr.bf16.mxu0 %v3140
        %4310 = vmatpush1.bf16.msra.mxu0 %v3139
        %4311 = vmatprep.subr.bf16.mxu0 %v3124
        %4312 = vmatpush1.bf16.msra.mxu0 %v3123
        %4313 = vmatprep.subr.bf16.mxu0 %v3108
        %4314 = vmatpush1.bf16.msra.mxu0 %v3107
        %4315 = vmatprep.subr.bf16.mxu0 %v3092
        %4316 = vmatpush1.bf16.msra.mxu0 %v3091
        %4317 = vmatprep.subr.bf16.mxu0 %v3076
        %4318 = vmatpush1.bf16.msra.mxu0 %v3075
        %4319 = vmatprep.subr.bf16.mxu0 %v3060
        %4320 = vmatpush1.bf16.msra.mxu0 %v3059
        %4321 = vmatprep.subr.bf16.mxu0 %v3044
        %4322 = vmatpush1.bf16.msra.mxu0 %v3043
        %4323 = vmatprep.subr.bf16.mxu0 %v3284
        %4324 = vmatpush2.bf16.msra.mxu0 %v3283
        %4325 = vmatprep.subr.bf16.mxu0 %v3268
        %4326 = vmatpush2.bf16.msra.mxu0 %v3267
        %4327 = vmatprep.subr.bf16.mxu0 %v3252
        %4328 = vmatpush2.bf16.msra.mxu0 %v3251
        %4329 = vmatprep.subr.bf16.mxu0 %v3236
        %4330 = vmatpush2.bf16.msra.mxu0 %v3235
        %4331 = vmatprep.subr.bf16.mxu0 %v3220
        %4332 = vmatpush2.bf16.msra.mxu0 %v3219
        %4333 = vmatprep.subr.bf16.mxu0 %v3204
        %4334 = vmatpush2.bf16.msra.mxu0 %v3203
        %4335 = vmatprep.subr.bf16.mxu0 %v3188
        %4336 = vmatpush2.bf16.msra.mxu0 %v3187
        %4337 = vmatprep.subr.bf16.mxu0 %v3172
        %4338 = vmatpush2.bf16.msra.mxu0 %v3171
        %4339 = vmatprep.mubr.bf16.mxu0 %v986
        %4340 = vmatmul.mubr.bf16.gmra.mxu0 %v985
        %v4341 = vpop.f32.mrf.mxu0
        %v4342 = vadd.f32 0.0, %v4341
        %v4343 = vpop.f32.mrf.mxu0
        %v4344 = vadd.f32 0.0, %v4343
        %v4345 = vpop.f32.mrf.mxu0
        %v4346 = vpop.f32.mrf.mxu0
        %4347 = vdwg.mxu0
        %4348 = vmatprep.subr.bf16.mxu0 %v3412
        %4349 = vmatpush1.bf16.msra.mxu0 %v3411
        %4350 = vmatprep.subr.bf16.mxu0 %v3396
        %4351 = vmatpush1.bf16.msra.mxu0 %v3395
        %4352 = vmatprep.subr.bf16.mxu0 %v3380
        %4353 = vmatpush1.bf16.msra.mxu0 %v3379
        %4354 = vmatprep.subr.bf16.mxu0 %v3364
        %4355 = vmatpush1.bf16.msra.mxu0 %v3363
        %4356 = vmatprep.subr.bf16.mxu0 %v3348
        %4357 = vmatpush1.bf16.msra.mxu0 %v3347
        %4358 = vmatprep.subr.bf16.mxu0 %v3332
        %4359 = vmatpush1.bf16.msra.mxu0 %v3331
        %4360 = vmatprep.subr.bf16.mxu0 %v3316
        %4361 = vmatpush1.bf16.msra.mxu0 %v3315
        %4362 = vmatprep.subr.bf16.mxu0 %v3300
        %4363 = vmatpush1.bf16.msra.mxu0 %v3299
        %4364 = vmatprep.subr.bf16.mxu0 %v3540
        %4365 = vmatpush2.bf16.msra.mxu0 %v3539
        %4366 = vmatprep.subr.bf16.mxu0 %v3524
        %4367 = vmatpush2.bf16.msra.mxu0 %v3523
        %4368 = vmatprep.subr.bf16.mxu0 %v3508
        %4369 = vmatpush2.bf16.msra.mxu0 %v3507
        %4370 = vmatprep.subr.bf16.mxu0 %v3492
        %4371 = vmatpush2.bf16.msra.mxu0 %v3491
        %4372 = vmatprep.subr.bf16.mxu0 %v3476
        %4373 = vmatpush2.bf16.msra.mxu0 %v3475
        %4374 = vmatprep.subr.bf16.mxu0 %v3460
        %4375 = vmatpush2.bf16.msra.mxu0 %v3459
        %4376 = vmatprep.subr.bf16.mxu0 %v3444
        %4377 = vmatpush2.bf16.msra.mxu0 %v3443
        %4378 = vmatprep.subr.bf16.mxu0 %v3428
        %4379 = vmatpush2.bf16.msra.mxu0 %v3427
        %4380 = vmatprep.mubr.bf16.mxu0 %v988
        %4381 = vmatmul.mubr.bf16.gmra.mxu0 %v987
        %v4382 = vpop.f32.mrf.mxu0
        %v4383 = vadd.f32 %v4342, %v4382
        %v4384 = vpop.f32.mrf.mxu0
        %v4385 = vadd.f32 %v4344, %v4384
        %v4386 = vpop.f32.mrf.mxu0
        %v4387 = vpop.f32.mrf.mxu0
        %4388 = vdwg.mxu0
        %4389 = vmatprep.subr.bf16.mxu0 %v3158
        %4390 = vmatpush1.bf16.msra.mxu0 %v3157
        %4391 = vmatprep.subr.bf16.mxu0 %v3142
        %4392 = vmatpush1.bf16.msra.mxu0 %v3141
        %4393 = vmatprep.subr.bf16.mxu0 %v3126
        %4394 = vmatpush1.bf16.msra.mxu0 %v3125
        %4395 = vmatprep.subr.bf16.mxu0 %v3110
        %4396 = vmatpush1.bf16.msra.mxu0 %v3109
        %4397 = vmatprep.subr.bf16.mxu0 %v3094
        %4398 = vmatpush1.bf16.msra.mxu0 %v3093
        %4399 = vmatprep.subr.bf16.mxu0 %v3078
        %4400 = vmatpush1.bf16.msra.mxu0 %v3077
        %4401 = vmatprep.subr.bf16.mxu0 %v3062
        %4402 = vmatpush1.bf16.msra.mxu0 %v3061
        %4403 = vmatprep.subr.bf16.mxu0 %v3046
        %4404 = vmatpush1.bf16.msra.mxu0 %v3045
        %4405 = vmatprep.subr.bf16.mxu0 %v3286
        %4406 = vmatpush2.bf16.msra.mxu0 %v3285
        %4407 = vmatprep.subr.bf16.mxu0 %v3270
        %4408 = vmatpush2.bf16.msra.mxu0 %v3269
        %4409 = vmatprep.subr.bf16.mxu0 %v3254
        %4410 = vmatpush2.bf16.msra.mxu0 %v3253
        %4411 = vmatprep.subr.bf16.mxu0 %v3238
        %4412 = vmatpush2.bf16.msra.mxu0 %v3237
        %4413 = vmatprep.subr.bf16.mxu0 %v3222
        %4414 = vmatpush2.bf16.msra.mxu0 %v3221
        %4415 = vmatprep.subr.bf16.mxu0 %v3206
        %4416 = vmatpush2.bf16.msra.mxu0 %v3205
        %4417 = vmatprep.subr.bf16.mxu0 %v3190
        %4418 = vmatpush2.bf16.msra.mxu0 %v3189
        %4419 = vmatprep.subr.bf16.mxu0 %v3174
        %4420 = vmatpush2.bf16.msra.mxu0 %v3173
        %4421 = vmatprep.mubr.bf16.mxu0 %v986
        %4422 = vmatmul.mubr.bf16.gmra.mxu0 %v985
        %v4423 = vpop.f32.mrf.mxu0
        %v4424 = vadd.f32 0.0, %v4423
        %v4425 = vpop.f32.mrf.mxu0
        %v4426 = vadd.f32 0.0, %v4425
        %v4427 = vpop.f32.mrf.mxu0
        %v4428 = vpop.f32.mrf.mxu0
        %4429 = vdwg.mxu0
        %4430 = vmatprep.subr.bf16.mxu0 %v3414
        %4431 = vmatpush1.bf16.msra.mxu0 %v3413
        %4432 = vmatprep.subr.bf16.mxu0 %v3398
        %4433 = vmatpush1.bf16.msra.mxu0 %v3397
        %4434 = vmatprep.subr.bf16.mxu0 %v3382
        %4435 = vmatpush1.bf16.msra.mxu0 %v3381
        %4436 = vmatprep.subr.bf16.mxu0 %v3366
        %4437 = vmatpush1.bf16.msra.mxu0 %v3365
        %4438 = vmatprep.subr.bf16.mxu0 %v3350
        %4439 = vmatpush1.bf16.msra.mxu0 %v3349
        %4440 = vmatprep.subr.bf16.mxu0 %v3334
        %4441 = vmatpush1.bf16.msra.mxu0 %v3333
        %4442 = vmatprep.subr.bf16.mxu0 %v3318
        %4443 = vmatpush1.bf16.msra.mxu0 %v3317
        %4444 = vmatprep.subr.bf16.mxu0 %v3302
        %4445 = vmatpush1.bf16.msra.mxu0 %v3301
        %4446 = vmatprep.subr.bf16.mxu0 %v3542
        %4447 = vmatpush2.bf16.msra.mxu0 %v3541
        %4448 = vmatprep.subr.bf16.mxu0 %v3526
        %4449 = vmatpush2.bf16.msra.mxu0 %v3525
        %4450 = vmatprep.subr.bf16.mxu0 %v3510
        %4451 = vmatpush2.bf16.msra.mxu0 %v3509
        %4452 = vmatprep.subr.bf16.mxu0 %v3494
        %4453 = vmatpush2.bf16.msra.mxu0 %v3493
        %4454 = vmatprep.subr.bf16.mxu0 %v3478
        %4455 = vmatpush2.bf16.msra.mxu0 %v3477
        %4456 = vmatprep.subr.bf16.mxu0 %v3462
        %4457 = vmatpush2.bf16.msra.mxu0 %v3461
        %4458 = vmatprep.subr.bf16.mxu0 %v3446
        %4459 = vmatpush2.bf16.msra.mxu0 %v3445
        %4460 = vmatprep.subr.bf16.mxu0 %v3430
        %4461 = vmatpush2.bf16.msra.mxu0 %v3429
        %4462 = vmatprep.mubr.bf16.mxu0 %v988
        %4463 = vmatmul.mubr.bf16.gmra.mxu0 %v987
        %v4464 = vpop.f32.mrf.mxu0
        %v4465 = vadd.f32 %v4424, %v4464
        %v4466 = vpop.f32.mrf.mxu0
        %v4467 = vadd.f32 %v4426, %v4466
        %v4468 = vpop.f32.mrf.mxu0
        %v4469 = vpop.f32.mrf.mxu0
        %4470 = vdwg.mxu0
        %4471 = vmatprep.subr.bf16.mxu0 %v3160
        %4472 = vmatpush1.bf16.msra.mxu0 %v3159
        %4473 = vmatprep.subr.bf16.mxu0 %v3144
        %4474 = vmatpush1.bf16.msra.mxu0 %v3143
        %4475 = vmatprep.subr.bf16.mxu0 %v3128
        %4476 = vmatpush1.bf16.msra.mxu0 %v3127
        %4477 = vmatprep.subr.bf16.mxu0 %v3112
        %4478 = vmatpush1.bf16.msra.mxu0 %v3111
        %4479 = vmatprep.subr.bf16.mxu0 %v3096
        %4480 = vmatpush1.bf16.msra.mxu0 %v3095
        %4481 = vmatprep.subr.bf16.mxu0 %v3080
        %4482 = vmatpush1.bf16.msra.mxu0 %v3079
        %4483 = vmatprep.subr.bf16.mxu0 %v3064
        %4484 = vmatpush1.bf16.msra.mxu0 %v3063
        %4485 = vmatprep.subr.bf16.mxu0 %v3048
        %4486 = vmatpush1.bf16.msra.mxu0 %v3047
        %4487 = vmatprep.subr.bf16.mxu0 %v3288
        %4488 = vmatpush2.bf16.msra.mxu0 %v3287
        %4489 = vmatprep.subr.bf16.mxu0 %v3272
        %4490 = vmatpush2.bf16.msra.mxu0 %v3271
        %4491 = vmatprep.subr.bf16.mxu0 %v3256
        %4492 = vmatpush2.bf16.msra.mxu0 %v3255
        %4493 = vmatprep.subr.bf16.mxu0 %v3240
        %4494 = vmatpush2.bf16.msra.mxu0 %v3239
        %4495 = vmatprep.subr.bf16.mxu0 %v3224
        %4496 = vmatpush2.bf16.msra.mxu0 %v3223
        %4497 = vmatprep.subr.bf16.mxu0 %v3208
        %4498 = vmatpush2.bf16.msra.mxu0 %v3207
        %4499 = vmatprep.subr.bf16.mxu0 %v3192
        %4500 = vmatpush2.bf16.msra.mxu0 %v3191
        %4501 = vmatprep.subr.bf16.mxu0 %v3176
        %4502 = vmatpush2.bf16.msra.mxu0 %v3175
        %4503 = vmatprep.mubr.bf16.mxu0 %v986
        %4504 = vmatmul.mubr.bf16.gmra.mxu0 %v985
        %v4505 = vpop.f32.mrf.mxu0
        %v4506 = vadd.f32 0.0, %v4505
        %v4507 = vpop.f32.mrf.mxu0
        %v4508 = vadd.f32 0.0, %v4507
        %v4509 = vpop.f32.mrf.mxu0
        %v4510 = vpop.f32.mrf.mxu0
        %4511 = vdwg.mxu0
        %4512 = vmatprep.subr.bf16.mxu0 %v3416
        %4513 = vmatpush1.bf16.msra.mxu0 %v3415
        %4514 = vmatprep.subr.bf16.mxu0 %v3400
        %4515 = vmatpush1.bf16.msra.mxu0 %v3399
        %4516 = vmatprep.subr.bf16.mxu0 %v3384
        %4517 = vmatpush1.bf16.msra.mxu0 %v3383
        %4518 = vmatprep.subr.bf16.mxu0 %v3368
        %4519 = vmatpush1.bf16.msra.mxu0 %v3367
        %4520 = vmatprep.subr.bf16.mxu0 %v3352
        %4521 = vmatpush1.bf16.msra.mxu0 %v3351
        %4522 = vmatprep.subr.bf16.mxu0 %v3336
        %4523 = vmatpush1.bf16.msra.mxu0 %v3335
        %4524 = vmatprep.subr.bf16.mxu0 %v3320
        %4525 = vmatpush1.bf16.msra.mxu0 %v3319
        %4526 = vmatprep.subr.bf16.mxu0 %v3304
        %4527 = vmatpush1.bf16.msra.mxu0 %v3303
        %4528 = vmatprep.subr.bf16.mxu0 %v3544
        %4529 = vmatpush2.bf16.msra.mxu0 %v3543
        %4530 = vmatprep.subr.bf16.mxu0 %v3528
        %4531 = vmatpush2.bf16.msra.mxu0 %v3527
        %4532 = vmatprep.subr.bf16.mxu0 %v3512
        %4533 = vmatpush2.bf16.msra.mxu0 %v3511
        %4534 = vmatprep.subr.bf16.mxu0 %v3496
        %4535 = vmatpush2.bf16.msra.mxu0 %v3495
        %4536 = vmatprep.subr.bf16.mxu0 %v3480
        %4537 = vmatpush2.bf16.msra.mxu0 %v3479
        %4538 = vmatprep.subr.bf16.mxu0 %v3464
        %4539 = vmatpush2.bf16.msra.mxu0 %v3463
        %4540 = vmatprep.subr.bf16.mxu0 %v3448
        %4541 = vmatpush2.bf16.msra.mxu0 %v3447
        %4542 = vmatprep.subr.bf16.mxu0 %v3432
        %4543 = vmatpush2.bf16.msra.mxu0 %v3431
        %4544 = vmatprep.mubr.bf16.mxu0 %v988
        %4545 = vmatmul.mubr.bf16.gmra.mxu0 %v987
        %v4546 = vpop.f32.mrf.mxu0
        %v4547 = vadd.f32 %v4506, %v4546
        %v4548 = vpop.f32.mrf.mxu0
        %v4549 = vadd.f32 %v4508, %v4548
        %v4550 = vpop.f32.mrf.mxu0
        %v4551 = vpop.f32.mrf.mxu0
        %4552 = vdwg.mxu0
        %4553 = vmatprep.subr.bf16.mxu0 %v3162
        %4554 = vmatpush1.bf16.msra.mxu0 %v3161
        %4555 = vmatprep.subr.bf16.mxu0 %v3146
        %4556 = vmatpush1.bf16.msra.mxu0 %v3145
        %4557 = vmatprep.subr.bf16.mxu0 %v3130
        %4558 = vmatpush1.bf16.msra.mxu0 %v3129
        %4559 = vmatprep.subr.bf16.mxu0 %v3114
        %4560 = vmatpush1.bf16.msra.mxu0 %v3113
        %4561 = vmatprep.subr.bf16.mxu0 %v3098
        %4562 = vmatpush1.bf16.msra.mxu0 %v3097
        %4563 = vmatprep.subr.bf16.mxu0 %v3082
        %4564 = vmatpush1.bf16.msra.mxu0 %v3081
        %4565 = vmatprep.subr.bf16.mxu0 %v3066
        %4566 = vmatpush1.bf16.msra.mxu0 %v3065
        %4567 = vmatprep.subr.bf16.mxu0 %v3050
        %4568 = vmatpush1.bf16.msra.mxu0 %v3049
        %4569 = vmatprep.subr.bf16.mxu0 %v3290
        %4570 = vmatpush2.bf16.msra.mxu0 %v3289
        %4571 = vmatprep.subr.bf16.mxu0 %v3274
        %4572 = vmatpush2.bf16.msra.mxu0 %v3273
        %4573 = vmatprep.subr.bf16.mxu0 %v3258
        %4574 = vmatpush2.bf16.msra.mxu0 %v3257
        %4575 = vmatprep.subr.bf16.mxu0 %v3242
        %4576 = vmatpush2.bf16.msra.mxu0 %v3241
        %4577 = vmatprep.subr.bf16.mxu0 %v3226
        %4578 = vmatpush2.bf16.msra.mxu0 %v3225
        %4579 = vmatprep.subr.bf16.mxu0 %v3210
        %4580 = vmatpush2.bf16.msra.mxu0 %v3209
        %4581 = vmatprep.subr.bf16.mxu0 %v3194
        %4582 = vmatpush2.bf16.msra.mxu0 %v3193
        %4583 = vmatprep.subr.bf16.mxu0 %v3178
        %4584 = vmatpush2.bf16.msra.mxu0 %v3177
        %4585 = vmatprep.mubr.bf16.mxu0 %v986
        %4586 = vmatmul.mubr.bf16.gmra.mxu0 %v985
        %v4587 = vpop.f32.mrf.mxu0
        %v4588 = vadd.f32 0.0, %v4587
        %v4589 = vpop.f32.mrf.mxu0
        %v4590 = vadd.f32 0.0, %v4589
        %v4591 = vpop.f32.mrf.mxu0
        %v4592 = vpop.f32.mrf.mxu0
        %4593 = vdwg.mxu0
        %4594 = vmatprep.subr.bf16.mxu0 %v3418
        %4595 = vmatpush1.bf16.msra.mxu0 %v3417
        %4596 = vmatprep.subr.bf16.mxu0 %v3402
        %4597 = vmatpush1.bf16.msra.mxu0 %v3401
        %4598 = vmatprep.subr.bf16.mxu0 %v3386
        %4599 = vmatpush1.bf16.msra.mxu0 %v3385
        %4600 = vmatprep.subr.bf16.mxu0 %v3370
        %4601 = vmatpush1.bf16.msra.mxu0 %v3369
        %4602 = vmatprep.subr.bf16.mxu0 %v3354
        %4603 = vmatpush1.bf16.msra.mxu0 %v3353
        %4604 = vmatprep.subr.bf16.mxu0 %v3338
        %4605 = vmatpush1.bf16.msra.mxu0 %v3337
        %4606 = vmatprep.subr.bf16.mxu0 %v3322
        %4607 = vmatpush1.bf16.msra.mxu0 %v3321
        %4608 = vmatprep.subr.bf16.mxu0 %v3306
        %4609 = vmatpush1.bf16.msra.mxu0 %v3305
        %4610 = vmatprep.subr.bf16.mxu0 %v3546
        %4611 = vmatpush2.bf16.msra.mxu0 %v3545
        %4612 = vmatprep.subr.bf16.mxu0 %v3530
        %4613 = vmatpush2.bf16.msra.mxu0 %v3529
        %4614 = vmatprep.subr.bf16.mxu0 %v3514
        %4615 = vmatpush2.bf16.msra.mxu0 %v3513
        %4616 = vmatprep.subr.bf16.mxu0 %v3498
        %4617 = vmatpush2.bf16.msra.mxu0 %v3497
        %4618 = vmatprep.subr.bf16.mxu0 %v3482
        %4619 = vmatpush2.bf16.msra.mxu0 %v3481
        %4620 = vmatprep.subr.bf16.mxu0 %v3466
        %4621 = vmatpush2.bf16.msra.mxu0 %v3465
        %4622 = vmatprep.subr.bf16.mxu0 %v3450
        %4623 = vmatpush2.bf16.msra.mxu0 %v3449
        %4624 = vmatprep.subr.bf16.mxu0 %v3434
        %4625 = vmatpush2.bf16.msra.mxu0 %v3433
        %4626 = vmatprep.mubr.bf16.mxu0 %v988
        %4627 = vmatmul.mubr.bf16.gmra.mxu0 %v987
        %v4628 = vpop.f32.mrf.mxu0
        %v4629 = vadd.f32 %v4588, %v4628
        %v4630 = vpop.f32.mrf.mxu0
        %v4631 = vadd.f32 %v4590, %v4630
        %v4632 = vpop.f32.mrf.mxu0
        %v4633 = vpop.f32.mrf.mxu0
        %4634 = vdwg.mxu0
        %4635 = vmatprep.subr.bf16.mxu0 %v3164
        %4636 = vmatpush1.bf16.msra.mxu0 %v3163
        %4637 = vmatprep.subr.bf16.mxu0 %v3148
        %4638 = vmatpush1.bf16.msra.mxu0 %v3147
        %4639 = vmatprep.subr.bf16.mxu0 %v3132
        %4640 = vmatpush1.bf16.msra.mxu0 %v3131
        %4641 = vmatprep.subr.bf16.mxu0 %v3116
        %4642 = vmatpush1.bf16.msra.mxu0 %v3115
        %4643 = vmatprep.subr.bf16.mxu0 %v3100
        %4644 = vmatpush1.bf16.msra.mxu0 %v3099
        %4645 = vmatprep.subr.bf16.mxu0 %v3084
        %4646 = vmatpush1.bf16.msra.mxu0 %v3083
        %4647 = vmatprep.subr.bf16.mxu0 %v3068
        %4648 = vmatpush1.bf16.msra.mxu0 %v3067
        %4649 = vmatprep.subr.bf16.mxu0 %v3052
        %4650 = vmatpush1.bf16.msra.mxu0 %v3051
        %4651 = vmatprep.subr.bf16.mxu0 %v3292
        %4652 = vmatpush2.bf16.msra.mxu0 %v3291
        %4653 = vmatprep.subr.bf16.mxu0 %v3276
        %4654 = vmatpush2.bf16.msra.mxu0 %v3275
        %4655 = vmatprep.subr.bf16.mxu0 %v3260
        %4656 = vmatpush2.bf16.msra.mxu0 %v3259
        %4657 = vmatprep.subr.bf16.mxu0 %v3244
        %4658 = vmatpush2.bf16.msra.mxu0 %v3243
        %4659 = vmatprep.subr.bf16.mxu0 %v3228
        %4660 = vmatpush2.bf16.msra.mxu0 %v3227
        %4661 = vmatprep.subr.bf16.mxu0 %v3212
        %4662 = vmatpush2.bf16.msra.mxu0 %v3211
        %4663 = vmatprep.subr.bf16.mxu0 %v3196
        %4664 = vmatpush2.bf16.msra.mxu0 %v3195
        %4665 = vmatprep.subr.bf16.mxu0 %v3180
        %4666 = vmatpush2.bf16.msra.mxu0 %v3179
        %4667 = vmatprep.mubr.bf16.mxu0 %v986
        %4668 = vmatmul.mubr.bf16.gmra.mxu0 %v985
        %v4669 = vpop.f32.mrf.mxu0
        %v4670 = vadd.f32 0.0, %v4669
        %v4671 = vpop.f32.mrf.mxu0
        %v4672 = vadd.f32 0.0, %v4671
        %v4673 = vpop.f32.mrf.mxu0
        %v4674 = vpop.f32.mrf.mxu0
        %4675 = vdwg.mxu0
        %4676 = vmatprep.subr.bf16.mxu0 %v3420
        %4677 = vmatpush1.bf16.msra.mxu0 %v3419
        %4678 = vmatprep.subr.bf16.mxu0 %v3404
        %4679 = vmatpush1.bf16.msra.mxu0 %v3403
        %4680 = vmatprep.subr.bf16.mxu0 %v3388
        %4681 = vmatpush1.bf16.msra.mxu0 %v3387
        %4682 = vmatprep.subr.bf16.mxu0 %v3372
        %4683 = vmatpush1.bf16.msra.mxu0 %v3371
        %4684 = vmatprep.subr.bf16.mxu0 %v3356
        %4685 = vmatpush1.bf16.msra.mxu0 %v3355
        %4686 = vmatprep.subr.bf16.mxu0 %v3340
        %4687 = vmatpush1.bf16.msra.mxu0 %v3339
        %4688 = vmatprep.subr.bf16.mxu0 %v3324
        %4689 = vmatpush1.bf16.msra.mxu0 %v3323
        %4690 = vmatprep.subr.bf16.mxu0 %v3308
        %4691 = vmatpush1.bf16.msra.mxu0 %v3307
        %4692 = vmatprep.subr.bf16.mxu0 %v3548
        %4693 = vmatpush2.bf16.msra.mxu0 %v3547
        %4694 = vmatprep.subr.bf16.mxu0 %v3532
        %4695 = vmatpush2.bf16.msra.mxu0 %v3531
        %4696 = vmatprep.subr.bf16.mxu0 %v3516
        %4697 = vmatpush2.bf16.msra.mxu0 %v3515
        %4698 = vmatprep.subr.bf16.mxu0 %v3500
        %4699 = vmatpush2.bf16.msra.mxu0 %v3499
        %4700 = vmatprep.subr.bf16.mxu0 %v3484
        %4701 = vmatpush2.bf16.msra.mxu0 %v3483
        %4702 = vmatprep.subr.bf16.mxu0 %v3468
        %4703 = vmatpush2.bf16.msra.mxu0 %v3467
        %4704 = vmatprep.subr.bf16.mxu0 %v3452
        %4705 = vmatpush2.bf16.msra.mxu0 %v3451
        %4706 = vmatprep.subr.bf16.mxu0 %v3436
        %4707 = vmatpush2.bf16.msra.mxu0 %v3435
        %4708 = vmatprep.mubr.bf16.mxu0 %v988
        %4709 = vmatmul.mubr.bf16.gmra.mxu0 %v987
        %v4710 = vpop.f32.mrf.mxu0
        %v4711 = vadd.f32 %v4670, %v4710
        %v4712 = vpop.f32.mrf.mxu0
        %v4713 = vadd.f32 %v4672, %v4712
        %v4714 = vpop.f32.mrf.mxu0
        %v4715 = vpop.f32.mrf.mxu0
        %4716 = vdwg.mxu0
        %v4733 = vcombine.low %v4137, %v4139
        %v4734 = vcombine.low %v4219, %v4221
        %v4736 = vunpack.c.l.s4 1983009808
        %v4737 = vunpack.c.0.s8 %v4736
        %v4738 = vlaneseq
        %v4739 = vshrl.u32 %v4738, 7
        %v4740 = vsub.s32 %v4737, %v4739
        %v4741 = vrot.slane %v4733, %v4740
        %v4743 = vunpack.c.l.s4 1983009808
        %v4744 = vunpack.c.0.s8 %v4743
        %v4745 = vlaneseq
        %v4746 = vshrl.u32 %v4745, 7
        %v4747 = vsub.s32 %v4744, %v4746
        %v4748 = vrot.slane %v4734, %v4747
        %v4749 = vcombine.low %v4741, %v4748
        %v4750 = vcombine.low %v4301, %v4303
        %v4751 = vcombine.low %v4383, %v4385
        %v4753 = vunpack.c.l.s4 1983009808
        %v4754 = vunpack.c.0.s8 %v4753
        %v4755 = vlaneseq
        %v4756 = vshrl.u32 %v4755, 7
        %v4757 = vsub.s32 %v4754, %v4756
        %v4758 = vrot.slane %v4750, %v4757
        %v4760 = vunpack.c.l.s4 1983009808
        %v4761 = vunpack.c.0.s8 %v4760
        %v4762 = vlaneseq
        %v4763 = vshrl.u32 %v4762, 7
        %v4764 = vsub.s32 %v4761, %v4763
        %v4765 = vrot.slane %v4751, %v4764
        %v4766 = vcombine.low %v4758, %v4765
        %v4767 = vcombine.low %v4465, %v4467
        %v4768 = vcombine.low %v4547, %v4549
        %v4770 = vunpack.c.l.s4 1983009808
        %v4771 = vunpack.c.0.s8 %v4770
        %v4772 = vlaneseq
        %v4773 = vshrl.u32 %v4772, 7
        %v4774 = vsub.s32 %v4771, %v4773
        %v4775 = vrot.slane %v4767, %v4774
        %v4777 = vunpack.c.l.s4 1983009808
        %v4778 = vunpack.c.0.s8 %v4777
        %v4779 = vlaneseq
        %v4780 = vshrl.u32 %v4779, 7
        %v4781 = vsub.s32 %v4778, %v4780
        %v4782 = vrot.slane %v4768, %v4781
        %v4783 = vcombine.low %v4775, %v4782
        %v4784 = vcombine.low %v4629, %v4631
        %v4785 = vcombine.low %v4711, %v4713
        %v4787 = vunpack.c.l.s4 1983009808
        %v4788 = vunpack.c.0.s8 %v4787
        %v4789 = vlaneseq
        %v4790 = vshrl.u32 %v4789, 7
        %v4791 = vsub.s32 %v4788, %v4790
        %v4792 = vrot.slane %v4784, %v4791
        %v4794 = vunpack.c.l.s4 1983009808
        %v4795 = vunpack.c.0.s8 %v4794
        %v4796 = vlaneseq
        %v4797 = vshrl.u32 %v4796, 7
        %v4798 = vsub.s32 %v4795, %v4797
        %v4799 = vrot.slane %v4785, %v4798
        %v4800 = vcombine.low %v4792, %v4799
        %v4805 = vadd.f32 %v981, %v4749
        %v4806 = vadd.f32 %v982, %v4766
        %v4807 = vadd.f32 %v983, %v4783
        %v4808 = vadd.f32 %v984, %v4800
        %4809 = vst [vmem:[#allocation2] sm:$0xff] %v4805
        %4810 = vst [vmem:[#allocation2 + $0x8] sm:$0xff] %v4806
        %4811 = vst [vmem:[#allocation2 + $0x10] sm:$0xff] %v4807
        %4812 = vst [vmem:[#allocation2 + $0x18] sm:$0xff] %v4808
        %p4813 = scmp.eq.s32.totalorder %s29, 3
        // Predicated region
        $region89: #{rnn_model_forward.3} parent=55 // pred_check
          %p4814 = pneg %p4813
        $region90: #{rnn_model_forward.3} parent=55 // pred_check_branch
          %4816 = sbr.rel (%p4814) target = $region92
        $region91: #{rnn_model_forward.3} parent=55 // pred_region
          %v4817 = vld [vmem:[#allocation2] sm:$0xff]
          %v4818 = vld [vmem:[#allocation2 + $0x8] sm:$0xff]
          %v4819 = vld [vmem:[#allocation2 + $0x10] sm:$0xff]
          %v4820 = vld [vmem:[#allocation2 + $0x18] sm:$0xff]
          %v4821 = vld [vmem:[#allocation9] sm:$0xff]
          %v4822 = vld [vmem:[#allocation9 + $0x8] sm:$0xff]
          %v4825 = vlaneseq
          %v4826 = vshrl.u32 %v4825, 7
          %v4827 = vsub.s32 0, %v4826
          %v4828 = vrot.slane %v4821, %v4827
          %v4829 = vlaneseq
          %v4830 = vshrl.u32 %v4829, 7
          %v4831 = vsub.s32 1, %v4830
          %v4832 = vrot.slane %v4821, %v4831
          %v4833 = vlaneseq
          %v4834 = vshrl.u32 %v4833, 7
          %v4835 = vsub.s32 2, %v4834
          %v4836 = vrot.slane %v4821, %v4835
          %v4837 = vlaneseq
          %v4838 = vshrl.u32 %v4837, 7
          %v4839 = vsub.s32 3, %v4838
          %v4840 = vrot.slane %v4821, %v4839
          %v4841 = vlaneseq
          %v4842 = vshrl.u32 %v4841, 7
          %v4843 = vsub.s32 4, %v4842
          %v4844 = vrot.slane %v4821, %v4843
          %v4845 = vlaneseq
          %v4846 = vshrl.u32 %v4845, 7
          %v4847 = vsub.s32 5, %v4846
          %v4848 = vrot.slane %v4821, %v4847
          %v4849 = vlaneseq
          %v4850 = vshrl.u32 %v4849, 7
          %v4851 = vsub.s32 6, %v4850
          %v4852 = vrot.slane %v4821, %v4851
          %v4853 = vlaneseq
          %v4854 = vshrl.u32 %v4853, 7
          %v4855 = vsub.s32 7, %v4854
          %v4856 = vrot.slane %v4821, %v4855
          %v4857 = vlaneseq
          %v4858 = vshrl.u32 %v4857, 7
          %v4859 = vsub.s32 0, %v4858
          %v4860 = vrot.slane %v4822, %v4859
          %v4861 = vlaneseq
          %v4862 = vshrl.u32 %v4861, 7
          %v4863 = vsub.s32 1, %v4862
          %v4864 = vrot.slane %v4822, %v4863
          %v4865 = vlaneseq
          %v4866 = vshrl.u32 %v4865, 7
          %v4867 = vsub.s32 2, %v4866
          %v4868 = vrot.slane %v4822, %v4867
          %v4869 = vlaneseq
          %v4870 = vshrl.u32 %v4869, 7
          %v4871 = vsub.s32 3, %v4870
          %v4872 = vrot.slane %v4822, %v4871
          %v4873 = vlaneseq
          %v4874 = vshrl.u32 %v4873, 7
          %v4875 = vsub.s32 4, %v4874
          %v4876 = vrot.slane %v4822, %v4875
          %v4877 = vlaneseq
          %v4878 = vshrl.u32 %v4877, 7
          %v4879 = vsub.s32 5, %v4878
          %v4880 = vrot.slane %v4822, %v4879
          %v4881 = vlaneseq
          %v4882 = vshrl.u32 %v4881, 7
          %v4883 = vsub.s32 6, %v4882
          %v4884 = vrot.slane %v4822, %v4883
          %v4885 = vlaneseq
          %v4886 = vshrl.u32 %v4885, 7
          %v4887 = vsub.s32 7, %v4886
          %v4888 = vrot.slane %v4822, %v4887
          %v4889 = vcombine.low %v4828, %v4832
          %v4890 = vcombine.low %v4836, %v4840
          %v4892 = vunpack.c.l.s4 1983009808
          %v4893 = vunpack.c.0.s8 %v4892
          %v4894 = vlaneseq
          %v4895 = vshrl.u32 %v4894, 7
          %v4896 = vsub.s32 %v4893, %v4895
          %v4897 = vrot.slane %v4889, %v4896
          %v4899 = vunpack.c.l.s4 1983009808
          %v4900 = vunpack.c.0.s8 %v4899
          %v4901 = vlaneseq
          %v4902 = vshrl.u32 %v4901, 7
          %v4903 = vsub.s32 %v4900, %v4902
          %v4904 = vrot.slane %v4890, %v4903
          %v4905 = vcombine.low %v4897, %v4904
          %v4906 = vcombine.low %v4844, %v4848
          %v4907 = vcombine.low %v4852, %v4856
          %v4909 = vunpack.c.l.s4 1983009808
          %v4910 = vunpack.c.0.s8 %v4909
          %v4911 = vlaneseq
          %v4912 = vshrl.u32 %v4911, 7
          %v4913 = vsub.s32 %v4910, %v4912
          %v4914 = vrot.slane %v4906, %v4913
          %v4916 = vunpack.c.l.s4 1983009808
          %v4917 = vunpack.c.0.s8 %v4916
          %v4918 = vlaneseq
          %v4919 = vshrl.u32 %v4918, 7
          %v4920 = vsub.s32 %v4917, %v4919
          %v4921 = vrot.slane %v4907, %v4920
          %v4922 = vcombine.low %v4914, %v4921
          %v4923 = vcombine.low %v4860, %v4864
          %v4924 = vcombine.low %v4868, %v4872
          %v4926 = vunpack.c.l.s4 1983009808
          %v4927 = vunpack.c.0.s8 %v4926
          %v4928 = vlaneseq
          %v4929 = vshrl.u32 %v4928, 7
          %v4930 = vsub.s32 %v4927, %v4929
          %v4931 = vrot.slane %v4923, %v4930
          %v4933 = vunpack.c.l.s4 1983009808
          %v4934 = vunpack.c.0.s8 %v4933
          %v4935 = vlaneseq
          %v4936 = vshrl.u32 %v4935, 7
          %v4937 = vsub.s32 %v4934, %v4936
          %v4938 = vrot.slane %v4924, %v4937
          %v4939 = vcombine.low %v4931, %v4938
          %v4940 = vcombine.low %v4876, %v4880
          %v4941 = vcombine.low %v4884, %v4888
          %v4943 = vunpack.c.l.s4 1983009808
          %v4944 = vunpack.c.0.s8 %v4943
          %v4945 = vlaneseq
          %v4946 = vshrl.u32 %v4945, 7
          %v4947 = vsub.s32 %v4944, %v4946
          %v4948 = vrot.slane %v4940, %v4947
          %v4950 = vunpack.c.l.s4 1983009808
          %v4951 = vunpack.c.0.s8 %v4950
          %v4952 = vlaneseq
          %v4953 = vshrl.u32 %v4952, 7
          %v4954 = vsub.s32 %v4951, %v4953
          %v4955 = vrot.slane %v4941, %v4954
          %v4956 = vcombine.low %v4948, %v4955
          %v4961 = vadd.f32 %v4817, %v4905
          %v4962 = vadd.f32 %v4818, %v4922
          %v4963 = vadd.f32 %v4819, %v4939
          %v4964 = vadd.f32 %v4820, %v4956
          %v4969 = vcombine.high %v4961, %v4961
          %v4971 = vunpack.c.l.s4 1983009808
          %v4972 = vunpack.c.0.s8 %v4971
          %v4973 = vlaneseq
          %v4974 = vshrl.u32 %v4973, 7
          %v4975 = vsub.s32 %v4972, %v4974
          %v4976 = vrot.slane %v4961, %v4975
          %v4978 = vunpack.c.l.s4 1983009808
          %v4979 = vunpack.c.0.s8 %v4978
          %v4980 = vlaneseq
          %v4981 = vshrl.u32 %v4980, 7
          %v4982 = vsub.s32 %v4979, %v4981
          %v4983 = vrot.slane %v4969, %v4982
          %v4984 = vcombine.high %v4976, %v4976
          %v4985 = vcombine.high %v4983, %v4983
          %v4986 = vcombine.high %v4962, %v4962
          %v4988 = vunpack.c.l.s4 1983009808
          %v4989 = vunpack.c.0.s8 %v4988
          %v4990 = vlaneseq
          %v4991 = vshrl.u32 %v4990, 7
          %v4992 = vsub.s32 %v4989, %v4991
          %v4993 = vrot.slane %v4962, %v4992
          %v4995 = vunpack.c.l.s4 1983009808
          %v4996 = vunpack.c.0.s8 %v4995
          %v4997 = vlaneseq
          %v4998 = vshrl.u32 %v4997, 7
          %v4999 = vsub.s32 %v4996, %v4998
          %v5000 = vrot.slane %v4986, %v4999
          %v5001 = vcombine.high %v4993, %v4993
          %v5002 = vcombine.high %v5000, %v5000
          %v5003 = vcombine.high %v4963, %v4963
          %v5005 = vunpack.c.l.s4 1983009808
          %v5006 = vunpack.c.0.s8 %v5005
          %v5007 = vlaneseq
          %v5008 = vshrl.u32 %v5007, 7
          %v5009 = vsub.s32 %v5006, %v5008
          %v5010 = vrot.slane %v4963, %v5009
          %v5012 = vunpack.c.l.s4 1983009808
          %v5013 = vunpack.c.0.s8 %v5012
          %v5014 = vlaneseq
          %v5015 = vshrl.u32 %v5014, 7
          %v5016 = vsub.s32 %v5013, %v5015
          %v5017 = vrot.slane %v5003, %v5016
          %v5018 = vcombine.high %v5010, %v5010
          %v5019 = vcombine.high %v5017, %v5017
          %v5020 = vcombine.high %v4964, %v4964
          %v5022 = vunpack.c.l.s4 1983009808
          %v5023 = vunpack.c.0.s8 %v5022
          %v5024 = vlaneseq
          %v5025 = vshrl.u32 %v5024, 7
          %v5026 = vsub.s32 %v5023, %v5025
          %v5027 = vrot.slane %v4964, %v5026
          %v5029 = vunpack.c.l.s4 1983009808
          %v5030 = vunpack.c.0.s8 %v5029
          %v5031 = vlaneseq
          %v5032 = vshrl.u32 %v5031, 7
          %v5033 = vsub.s32 %v5030, %v5032
          %v5034 = vrot.slane %v5020, %v5033
          %v5035 = vcombine.high %v5027, %v5027
          %v5036 = vcombine.high %v5034, %v5034
          %v5053 = vpack.c.bf16 %v4976, %v4976
          %v5054 = vpack.c.bf16 %v4984, %v4984
          %v5055 = vpack.c.bf16 %v4983, %v4983
          %v5056 = vpack.c.bf16 %v4985, %v4985
          %v5057 = vpack.c.bf16 %v4993, %v4993
          %v5058 = vpack.c.bf16 %v5001, %v5001
          %v5059 = vpack.c.bf16 %v5000, %v5000
          %v5060 = vpack.c.bf16 %v5002, %v5002
          %v5061 = vpack.c.bf16 %v5010, %v5010
          %v5062 = vpack.c.bf16 %v5018, %v5018
          %v5063 = vpack.c.bf16 %v5017, %v5017
          %v5064 = vpack.c.bf16 %v5019, %v5019
          %v5065 = vpack.c.bf16 %v5027, %v5027
          %v5066 = vpack.c.bf16 %v5035, %v5035
          %v5067 = vpack.c.bf16 %v5034, %v5034
          %v5068 = vpack.c.bf16 %v5036, %v5036
          %v5069 = vld [vmem:[#allocation11] sm:$0xff]
          %v5070 = vld [vmem:[#allocation11 + $0x8] sm:$0xff]
          %v5071 = vld [vmem:[#allocation11 + $0x10] sm:$0xff]
          %v5072 = vld [vmem:[#allocation11 + $0x18] sm:$0xff]
          %v5073 = vld [vmem:[#allocation11 + $0x20] sm:$0xff]
          %v5074 = vld [vmem:[#allocation11 + $0x28] sm:$0xff]
          %v5075 = vld [vmem:[#allocation11 + $0x30] sm:$0xff]
          %v5076 = vld [vmem:[#allocation11 + $0x38] sm:$0xff]
          %v5077 = vld [vmem:[#allocation11 + $0x40] sm:$0xff]
          %v5078 = vld [vmem:[#allocation11 + $0x48] sm:$0xff]
          %v5079 = vld [vmem:[#allocation11 + $0x50] sm:$0xff]
          %v5080 = vld [vmem:[#allocation11 + $0x58] sm:$0xff]
          %v5081 = vld [vmem:[#allocation11 + $0x60] sm:$0xff]
          %v5082 = vld [vmem:[#allocation11 + $0x68] sm:$0xff]
          %v5083 = vld [vmem:[#allocation11 + $0x70] sm:$0xff]
          %v5084 = vld [vmem:[#allocation11 + $0x78] sm:$0xff]
          %v5085 = vld [vmem:[#allocation11 + $0x80] sm:$0xff]
          %v5086 = vld [vmem:[#allocation11 + $0x88] sm:$0xff]
          %v5087 = vld [vmem:[#allocation11 + $0x90] sm:$0xff]
          %v5088 = vld [vmem:[#allocation11 + $0x98] sm:$0xff]
          %v5089 = vld [vmem:[#allocation11 + $0xa0] sm:$0xff]
          %v5090 = vld [vmem:[#allocation11 + $0xa8] sm:$0xff]
          %v5091 = vld [vmem:[#allocation11 + $0xb0] sm:$0xff]
          %v5092 = vld [vmem:[#allocation11 + $0xb8] sm:$0xff]
          %v5093 = vld [vmem:[#allocation11 + $0xc0] sm:$0xff]
          %v5094 = vld [vmem:[#allocation11 + $0xc8] sm:$0xff]
          %v5095 = vld [vmem:[#allocation11 + $0xd0] sm:$0xff]
          %v5096 = vld [vmem:[#allocation11 + $0xd8] sm:$0xff]
          %v5097 = vld [vmem:[#allocation11 + $0xe0] sm:$0xff]
          %v5098 = vld [vmem:[#allocation11 + $0xe8] sm:$0xff]
          %v5099 = vld [vmem:[#allocation11 + $0xf0] sm:$0xff]
          %v5100 = vld [vmem:[#allocation11 + $0xf8] sm:$0xff]
          %v5101 = vld [vmem:[#allocation11 + $0x100] sm:$0xff]
          %v5102 = vld [vmem:[#allocation11 + $0x108] sm:$0xff]
          %v5103 = vld [vmem:[#allocation11 + $0x110] sm:$0xff]
          %v5104 = vld [vmem:[#allocation11 + $0x118] sm:$0xff]
          %v5105 = vld [vmem:[#allocation11 + $0x120] sm:$0xff]
          %v5106 = vld [vmem:[#allocation11 + $0x128] sm:$0xff]
          %v5107 = vld [vmem:[#allocation11 + $0x130] sm:$0xff]
          %v5108 = vld [vmem:[#allocation11 + $0x138] sm:$0xff]
          %v5109 = vld [vmem:[#allocation11 + $0x140] sm:$0xff]
          %v5110 = vld [vmem:[#allocation11 + $0x148] sm:$0xff]
          %v5111 = vld [vmem:[#allocation11 + $0x150] sm:$0xff]
          %v5112 = vld [vmem:[#allocation11 + $0x158] sm:$0xff]
          %v5113 = vld [vmem:[#allocation11 + $0x160] sm:$0xff]
          %v5114 = vld [vmem:[#allocation11 + $0x168] sm:$0xff]
          %v5115 = vld [vmem:[#allocation11 + $0x170] sm:$0xff]
          %v5116 = vld [vmem:[#allocation11 + $0x178] sm:$0xff]
          %v5117 = vld [vmem:[#allocation11 + $0x180] sm:$0xff]
          %v5118 = vld [vmem:[#allocation11 + $0x188] sm:$0xff]
          %v5119 = vld [vmem:[#allocation11 + $0x190] sm:$0xff]
          %v5120 = vld [vmem:[#allocation11 + $0x198] sm:$0xff]
          %v5121 = vld [vmem:[#allocation11 + $0x1a0] sm:$0xff]
          %v5122 = vld [vmem:[#allocation11 + $0x1a8] sm:$0xff]
          %v5123 = vld [vmem:[#allocation11 + $0x1b0] sm:$0xff]
          %v5124 = vld [vmem:[#allocation11 + $0x1b8] sm:$0xff]
          %v5125 = vld [vmem:[#allocation11 + $0x1c0] sm:$0xff]
          %v5126 = vld [vmem:[#allocation11 + $0x1c8] sm:$0xff]
          %v5127 = vld [vmem:[#allocation11 + $0x1d0] sm:$0xff]
          %v5128 = vld [vmem:[#allocation11 + $0x1d8] sm:$0xff]
          %v5129 = vld [vmem:[#allocation11 + $0x1e0] sm:$0xff]
          %v5130 = vld [vmem:[#allocation11 + $0x1e8] sm:$0xff]
          %v5131 = vld [vmem:[#allocation11 + $0x1f0] sm:$0xff]
          %v5132 = vld [vmem:[#allocation11 + $0x1f8] sm:$0xff]
          %v5133 = vld [vmem:[#allocation11 + $0x200] sm:$0xff]
          %v5134 = vld [vmem:[#allocation11 + $0x208] sm:$0xff]
          %v5135 = vld [vmem:[#allocation11 + $0x210] sm:$0xff]
          %v5136 = vld [vmem:[#allocation11 + $0x218] sm:$0xff]
          %v5137 = vld [vmem:[#allocation11 + $0x220] sm:$0xff]
          %v5138 = vld [vmem:[#allocation11 + $0x228] sm:$0xff]
          %v5139 = vld [vmem:[#allocation11 + $0x230] sm:$0xff]
          %v5140 = vld [vmem:[#allocation11 + $0x238] sm:$0xff]
          %v5141 = vld [vmem:[#allocation11 + $0x240] sm:$0xff]
          %v5142 = vld [vmem:[#allocation11 + $0x248] sm:$0xff]
          %v5143 = vld [vmem:[#allocation11 + $0x250] sm:$0xff]
          %v5144 = vld [vmem:[#allocation11 + $0x258] sm:$0xff]
          %v5145 = vld [vmem:[#allocation11 + $0x260] sm:$0xff]
          %v5146 = vld [vmem:[#allocation11 + $0x268] sm:$0xff]
          %v5147 = vld [vmem:[#allocation11 + $0x270] sm:$0xff]
          %v5148 = vld [vmem:[#allocation11 + $0x278] sm:$0xff]
          %v5149 = vld [vmem:[#allocation11 + $0x280] sm:$0xff]
          %v5150 = vld [vmem:[#allocation11 + $0x288] sm:$0xff]
          %v5151 = vld [vmem:[#allocation11 + $0x290] sm:$0xff]
          %v5152 = vld [vmem:[#allocation11 + $0x298] sm:$0xff]
          %v5153 = vld [vmem:[#allocation11 + $0x2a0] sm:$0xff]
          %v5154 = vld [vmem:[#allocation11 + $0x2a8] sm:$0xff]
          %v5155 = vld [vmem:[#allocation11 + $0x2b0] sm:$0xff]
          %v5156 = vld [vmem:[#allocation11 + $0x2b8] sm:$0xff]
          %v5157 = vld [vmem:[#allocation11 + $0x2c0] sm:$0xff]
          %v5158 = vld [vmem:[#allocation11 + $0x2c8] sm:$0xff]
          %v5159 = vld [vmem:[#allocation11 + $0x2d0] sm:$0xff]
          %v5160 = vld [vmem:[#allocation11 + $0x2d8] sm:$0xff]
          %v5161 = vld [vmem:[#allocation11 + $0x2e0] sm:$0xff]
          %v5162 = vld [vmem:[#allocation11 + $0x2e8] sm:$0xff]
          %v5163 = vld [vmem:[#allocation11 + $0x2f0] sm:$0xff]
          %v5164 = vld [vmem:[#allocation11 + $0x2f8] sm:$0xff]
          %v5165 = vld [vmem:[#allocation11 + $0x300] sm:$0xff]
          %v5166 = vld [vmem:[#allocation11 + $0x308] sm:$0xff]
          %v5167 = vld [vmem:[#allocation11 + $0x310] sm:$0xff]
          %v5168 = vld [vmem:[#allocation11 + $0x318] sm:$0xff]
          %v5169 = vld [vmem:[#allocation11 + $0x320] sm:$0xff]
          %v5170 = vld [vmem:[#allocation11 + $0x328] sm:$0xff]
          %v5171 = vld [vmem:[#allocation11 + $0x330] sm:$0xff]
          %v5172 = vld [vmem:[#allocation11 + $0x338] sm:$0xff]
          %v5173 = vld [vmem:[#allocation11 + $0x340] sm:$0xff]
          %v5174 = vld [vmem:[#allocation11 + $0x348] sm:$0xff]
          %v5175 = vld [vmem:[#allocation11 + $0x350] sm:$0xff]
          %v5176 = vld [vmem:[#allocation11 + $0x358] sm:$0xff]
          %v5177 = vld [vmem:[#allocation11 + $0x360] sm:$0xff]
          %v5178 = vld [vmem:[#allocation11 + $0x368] sm:$0xff]
          %v5179 = vld [vmem:[#allocation11 + $0x370] sm:$0xff]
          %v5180 = vld [vmem:[#allocation11 + $0x378] sm:$0xff]
          %v5181 = vld [vmem:[#allocation11 + $0x380] sm:$0xff]
          %v5182 = vld [vmem:[#allocation11 + $0x388] sm:$0xff]
          %v5183 = vld [vmem:[#allocation11 + $0x390] sm:$0xff]
          %v5184 = vld [vmem:[#allocation11 + $0x398] sm:$0xff]
          %v5185 = vld [vmem:[#allocation11 + $0x3a0] sm:$0xff]
          %v5186 = vld [vmem:[#allocation11 + $0x3a8] sm:$0xff]
          %v5187 = vld [vmem:[#allocation11 + $0x3b0] sm:$0xff]
          %v5188 = vld [vmem:[#allocation11 + $0x3b8] sm:$0xff]
          %v5189 = vld [vmem:[#allocation11 + $0x3c0] sm:$0xff]
          %v5190 = vld [vmem:[#allocation11 + $0x3c8] sm:$0xff]
          %v5191 = vld [vmem:[#allocation11 + $0x3d0] sm:$0xff]
          %v5192 = vld [vmem:[#allocation11 + $0x3d8] sm:$0xff]
          %v5193 = vld [vmem:[#allocation11 + $0x3e0] sm:$0xff]
          %v5194 = vld [vmem:[#allocation11 + $0x3e8] sm:$0xff]
          %v5195 = vld [vmem:[#allocation11 + $0x3f0] sm:$0xff]
          %v5196 = vld [vmem:[#allocation11 + $0x3f8] sm:$0xff]
          %v5197 = vld [vmem:[#allocation11 + $0x400] sm:$0xff]
          %v5198 = vld [vmem:[#allocation11 + $0x408] sm:$0xff]
          %v5199 = vld [vmem:[#allocation11 + $0x410] sm:$0xff]
          %v5200 = vld [vmem:[#allocation11 + $0x418] sm:$0xff]
          %v5201 = vld [vmem:[#allocation11 + $0x420] sm:$0xff]
          %v5202 = vld [vmem:[#allocation11 + $0x428] sm:$0xff]
          %v5203 = vld [vmem:[#allocation11 + $0x430] sm:$0xff]
          %v5204 = vld [vmem:[#allocation11 + $0x438] sm:$0xff]
          %v5205 = vld [vmem:[#allocation11 + $0x440] sm:$0xff]
          %v5206 = vld [vmem:[#allocation11 + $0x448] sm:$0xff]
          %v5207 = vld [vmem:[#allocation11 + $0x450] sm:$0xff]
          %v5208 = vld [vmem:[#allocation11 + $0x458] sm:$0xff]
          %v5209 = vld [vmem:[#allocation11 + $0x460] sm:$0xff]
          %v5210 = vld [vmem:[#allocation11 + $0x468] sm:$0xff]
          %v5211 = vld [vmem:[#allocation11 + $0x470] sm:$0xff]
          %v5212 = vld [vmem:[#allocation11 + $0x478] sm:$0xff]
          %v5213 = vld [vmem:[#allocation11 + $0x480] sm:$0xff]
          %v5214 = vld [vmem:[#allocation11 + $0x488] sm:$0xff]
          %v5215 = vld [vmem:[#allocation11 + $0x490] sm:$0xff]
          %v5216 = vld [vmem:[#allocation11 + $0x498] sm:$0xff]
          %v5217 = vld [vmem:[#allocation11 + $0x4a0] sm:$0xff]
          %v5218 = vld [vmem:[#allocation11 + $0x4a8] sm:$0xff]
          %v5219 = vld [vmem:[#allocation11 + $0x4b0] sm:$0xff]
          %v5220 = vld [vmem:[#allocation11 + $0x4b8] sm:$0xff]
          %v5221 = vld [vmem:[#allocation11 + $0x4c0] sm:$0xff]
          %v5222 = vld [vmem:[#allocation11 + $0x4c8] sm:$0xff]
          %v5223 = vld [vmem:[#allocation11 + $0x4d0] sm:$0xff]
          %v5224 = vld [vmem:[#allocation11 + $0x4d8] sm:$0xff]
          %v5225 = vld [vmem:[#allocation11 + $0x4e0] sm:$0xff]
          %v5226 = vld [vmem:[#allocation11 + $0x4e8] sm:$0xff]
          %v5227 = vld [vmem:[#allocation11 + $0x4f0] sm:$0xff]
          %v5228 = vld [vmem:[#allocation11 + $0x4f8] sm:$0xff]
          %v5229 = vld [vmem:[#allocation11 + $0x500] sm:$0xff]
          %v5230 = vld [vmem:[#allocation11 + $0x508] sm:$0xff]
          %v5231 = vld [vmem:[#allocation11 + $0x510] sm:$0xff]
          %v5232 = vld [vmem:[#allocation11 + $0x518] sm:$0xff]
          %v5233 = vld [vmem:[#allocation11 + $0x520] sm:$0xff]
          %v5234 = vld [vmem:[#allocation11 + $0x528] sm:$0xff]
          %v5235 = vld [vmem:[#allocation11 + $0x530] sm:$0xff]
          %v5236 = vld [vmem:[#allocation11 + $0x538] sm:$0xff]
          %v5237 = vld [vmem:[#allocation11 + $0x540] sm:$0xff]
          %v5238 = vld [vmem:[#allocation11 + $0x548] sm:$0xff]
          %v5239 = vld [vmem:[#allocation11 + $0x550] sm:$0xff]
          %v5240 = vld [vmem:[#allocation11 + $0x558] sm:$0xff]
          %v5241 = vld [vmem:[#allocation11 + $0x560] sm:$0xff]
          %v5242 = vld [vmem:[#allocation11 + $0x568] sm:$0xff]
          %v5243 = vld [vmem:[#allocation11 + $0x570] sm:$0xff]
          %v5244 = vld [vmem:[#allocation11 + $0x578] sm:$0xff]
          %v5245 = vld [vmem:[#allocation11 + $0x580] sm:$0xff]
          %v5246 = vld [vmem:[#allocation11 + $0x588] sm:$0xff]
          %v5247 = vld [vmem:[#allocation11 + $0x590] sm:$0xff]
          %v5248 = vld [vmem:[#allocation11 + $0x598] sm:$0xff]
          %v5249 = vld [vmem:[#allocation11 + $0x5a0] sm:$0xff]
          %v5250 = vld [vmem:[#allocation11 + $0x5a8] sm:$0xff]
          %v5251 = vld [vmem:[#allocation11 + $0x5b0] sm:$0xff]
          %v5252 = vld [vmem:[#allocation11 + $0x5b8] sm:$0xff]
          %v5253 = vld [vmem:[#allocation11 + $0x5c0] sm:$0xff]
          %v5254 = vld [vmem:[#allocation11 + $0x5c8] sm:$0xff]
          %v5255 = vld [vmem:[#allocation11 + $0x5d0] sm:$0xff]
          %v5256 = vld [vmem:[#allocation11 + $0x5d8] sm:$0xff]
          %v5257 = vld [vmem:[#allocation11 + $0x5e0] sm:$0xff]
          %v5258 = vld [vmem:[#allocation11 + $0x5e8] sm:$0xff]
          %v5259 = vld [vmem:[#allocation11 + $0x5f0] sm:$0xff]
          %v5260 = vld [vmem:[#allocation11 + $0x5f8] sm:$0xff]
          %v5261 = vld [vmem:[#allocation11 + $0x600] sm:$0xff]
          %v5262 = vld [vmem:[#allocation11 + $0x608] sm:$0xff]
          %v5263 = vld [vmem:[#allocation11 + $0x610] sm:$0xff]
          %v5264 = vld [vmem:[#allocation11 + $0x618] sm:$0xff]
          %v5265 = vld [vmem:[#allocation11 + $0x620] sm:$0xff]
          %v5266 = vld [vmem:[#allocation11 + $0x628] sm:$0xff]
          %v5267 = vld [vmem:[#allocation11 + $0x630] sm:$0xff]
          %v5268 = vld [vmem:[#allocation11 + $0x638] sm:$0xff]
          %v5269 = vld [vmem:[#allocation11 + $0x640] sm:$0xff]
          %v5270 = vld [vmem:[#allocation11 + $0x648] sm:$0xff]
          %v5271 = vld [vmem:[#allocation11 + $0x650] sm:$0xff]
          %v5272 = vld [vmem:[#allocation11 + $0x658] sm:$0xff]
          %v5273 = vld [vmem:[#allocation11 + $0x660] sm:$0xff]
          %v5274 = vld [vmem:[#allocation11 + $0x668] sm:$0xff]
          %v5275 = vld [vmem:[#allocation11 + $0x670] sm:$0xff]
          %v5276 = vld [vmem:[#allocation11 + $0x678] sm:$0xff]
          %v5277 = vld [vmem:[#allocation11 + $0x680] sm:$0xff]
          %v5278 = vld [vmem:[#allocation11 + $0x688] sm:$0xff]
          %v5279 = vld [vmem:[#allocation11 + $0x690] sm:$0xff]
          %v5280 = vld [vmem:[#allocation11 + $0x698] sm:$0xff]
          %v5281 = vld [vmem:[#allocation11 + $0x6a0] sm:$0xff]
          %v5282 = vld [vmem:[#allocation11 + $0x6a8] sm:$0xff]
          %v5283 = vld [vmem:[#allocation11 + $0x6b0] sm:$0xff]
          %v5284 = vld [vmem:[#allocation11 + $0x6b8] sm:$0xff]
          %v5285 = vld [vmem:[#allocation11 + $0x6c0] sm:$0xff]
          %v5286 = vld [vmem:[#allocation11 + $0x6c8] sm:$0xff]
          %v5287 = vld [vmem:[#allocation11 + $0x6d0] sm:$0xff]
          %v5288 = vld [vmem:[#allocation11 + $0x6d8] sm:$0xff]
          %v5289 = vld [vmem:[#allocation11 + $0x6e0] sm:$0xff]
          %v5290 = vld [vmem:[#allocation11 + $0x6e8] sm:$0xff]
          %v5291 = vld [vmem:[#allocation11 + $0x6f0] sm:$0xff]
          %v5292 = vld [vmem:[#allocation11 + $0x6f8] sm:$0xff]
          %v5293 = vld [vmem:[#allocation11 + $0x700] sm:$0xff]
          %v5294 = vld [vmem:[#allocation11 + $0x708] sm:$0xff]
          %v5295 = vld [vmem:[#allocation11 + $0x710] sm:$0xff]
          %v5296 = vld [vmem:[#allocation11 + $0x718] sm:$0xff]
          %v5297 = vld [vmem:[#allocation11 + $0x720] sm:$0xff]
          %v5298 = vld [vmem:[#allocation11 + $0x728] sm:$0xff]
          %v5299 = vld [vmem:[#allocation11 + $0x730] sm:$0xff]
          %v5300 = vld [vmem:[#allocation11 + $0x738] sm:$0xff]
          %v5301 = vld [vmem:[#allocation11 + $0x740] sm:$0xff]
          %v5302 = vld [vmem:[#allocation11 + $0x748] sm:$0xff]
          %v5303 = vld [vmem:[#allocation11 + $0x750] sm:$0xff]
          %v5304 = vld [vmem:[#allocation11 + $0x758] sm:$0xff]
          %v5305 = vld [vmem:[#allocation11 + $0x760] sm:$0xff]
          %v5306 = vld [vmem:[#allocation11 + $0x768] sm:$0xff]
          %v5307 = vld [vmem:[#allocation11 + $0x770] sm:$0xff]
          %v5308 = vld [vmem:[#allocation11 + $0x778] sm:$0xff]
          %v5309 = vld [vmem:[#allocation11 + $0x780] sm:$0xff]
          %v5310 = vld [vmem:[#allocation11 + $0x788] sm:$0xff]
          %v5311 = vld [vmem:[#allocation11 + $0x790] sm:$0xff]
          %v5312 = vld [vmem:[#allocation11 + $0x798] sm:$0xff]
          %v5313 = vld [vmem:[#allocation11 + $0x7a0] sm:$0xff]
          %v5314 = vld [vmem:[#allocation11 + $0x7a8] sm:$0xff]
          %v5315 = vld [vmem:[#allocation11 + $0x7b0] sm:$0xff]
          %v5316 = vld [vmem:[#allocation11 + $0x7b8] sm:$0xff]
          %v5317 = vld [vmem:[#allocation11 + $0x7c0] sm:$0xff]
          %v5318 = vld [vmem:[#allocation11 + $0x7c8] sm:$0xff]
          %v5319 = vld [vmem:[#allocation11 + $0x7d0] sm:$0xff]
          %v5320 = vld [vmem:[#allocation11 + $0x7d8] sm:$0xff]
          %v5321 = vld [vmem:[#allocation11 + $0x7e0] sm:$0xff]
          %v5322 = vld [vmem:[#allocation11 + $0x7e8] sm:$0xff]
          %v5323 = vld [vmem:[#allocation11 + $0x7f0] sm:$0xff]
          %v5324 = vld [vmem:[#allocation11 + $0x7f8] sm:$0xff]
          %v5325 = vld [vmem:[#allocation12] sm:$0x3]
          %v5327 = vlaneseq
          %v5328 = vshrl.u32 %v5327, 7
          %v5329 = vsub.s32 0, %v5328
          %v5330 = vrot.slane %v5325, %v5329
          %v5331 = vlaneseq
          %v5332 = vshrl.u32 %v5331, 7
          %v5333 = vsub.s32 1, %v5332
          %v5334 = vrot.slane %v5325, %v5333
          %v5593 = vunpack.c.l.b16 %v5069
          %v5594 = vunpack.c.h.b16 %v5069
          %v5595 = vunpack.c.l.b16 %v5070
          %v5596 = vunpack.c.h.b16 %v5070
          %v5597 = vunpack.c.l.b16 %v5071
          %v5598 = vunpack.c.h.b16 %v5071
          %v5599 = vunpack.c.l.b16 %v5072
          %v5600 = vunpack.c.h.b16 %v5072
          %v5601 = vunpack.c.l.b16 %v5073
          %v5602 = vunpack.c.h.b16 %v5073
          %v5603 = vunpack.c.l.b16 %v5074
          %v5604 = vunpack.c.h.b16 %v5074
          %v5605 = vunpack.c.l.b16 %v5075
          %v5606 = vunpack.c.h.b16 %v5075
          %v5607 = vunpack.c.l.b16 %v5076
          %v5608 = vunpack.c.h.b16 %v5076
          %v5609 = vunpack.c.l.b16 %v5077
          %v5610 = vunpack.c.h.b16 %v5077
          %v5611 = vunpack.c.l.b16 %v5078
          %v5612 = vunpack.c.h.b16 %v5078
          %v5613 = vunpack.c.l.b16 %v5079
          %v5614 = vunpack.c.h.b16 %v5079
          %v5615 = vunpack.c.l.b16 %v5080
          %v5616 = vunpack.c.h.b16 %v5080
          %v5617 = vunpack.c.l.b16 %v5081
          %v5618 = vunpack.c.h.b16 %v5081
          %v5619 = vunpack.c.l.b16 %v5082
          %v5620 = vunpack.c.h.b16 %v5082
          %v5621 = vunpack.c.l.b16 %v5083
          %v5622 = vunpack.c.h.b16 %v5083
          %v5623 = vunpack.c.l.b16 %v5084
          %v5624 = vunpack.c.h.b16 %v5084
          %v5625 = vunpack.c.l.b16 %v5085
          %v5626 = vunpack.c.h.b16 %v5085
          %v5627 = vunpack.c.l.b16 %v5086
          %v5628 = vunpack.c.h.b16 %v5086
          %v5629 = vunpack.c.l.b16 %v5087
          %v5630 = vunpack.c.h.b16 %v5087
          %v5631 = vunpack.c.l.b16 %v5088
          %v5632 = vunpack.c.h.b16 %v5088
          %v5633 = vunpack.c.l.b16 %v5089
          %v5634 = vunpack.c.h.b16 %v5089
          %v5635 = vunpack.c.l.b16 %v5090
          %v5636 = vunpack.c.h.b16 %v5090
          %v5637 = vunpack.c.l.b16 %v5091
          %v5638 = vunpack.c.h.b16 %v5091
          %v5639 = vunpack.c.l.b16 %v5092
          %v5640 = vunpack.c.h.b16 %v5092
          %v5641 = vunpack.c.l.b16 %v5093
          %v5642 = vunpack.c.h.b16 %v5093
          %v5643 = vunpack.c.l.b16 %v5094
          %v5644 = vunpack.c.h.b16 %v5094
          %v5645 = vunpack.c.l.b16 %v5095
          %v5646 = vunpack.c.h.b16 %v5095
          %v5647 = vunpack.c.l.b16 %v5096
          %v5648 = vunpack.c.h.b16 %v5096
          %v5649 = vunpack.c.l.b16 %v5097
          %v5650 = vunpack.c.h.b16 %v5097
          %v5651 = vunpack.c.l.b16 %v5098
          %v5652 = vunpack.c.h.b16 %v5098
          %v5653 = vunpack.c.l.b16 %v5099
          %v5654 = vunpack.c.h.b16 %v5099
          %v5655 = vunpack.c.l.b16 %v5100
          %v5656 = vunpack.c.h.b16 %v5100
          %v5657 = vunpack.c.l.b16 %v5101
          %v5658 = vunpack.c.h.b16 %v5101
          %v5659 = vunpack.c.l.b16 %v5102
          %v5660 = vunpack.c.h.b16 %v5102
          %v5661 = vunpack.c.l.b16 %v5103
          %v5662 = vunpack.c.h.b16 %v5103
          %v5663 = vunpack.c.l.b16 %v5104
          %v5664 = vunpack.c.h.b16 %v5104
          %v5665 = vunpack.c.l.b16 %v5105
          %v5666 = vunpack.c.h.b16 %v5105
          %v5667 = vunpack.c.l.b16 %v5106
          %v5668 = vunpack.c.h.b16 %v5106
          %v5669 = vunpack.c.l.b16 %v5107
          %v5670 = vunpack.c.h.b16 %v5107
          %v5671 = vunpack.c.l.b16 %v5108
          %v5672 = vunpack.c.h.b16 %v5108
          %v5673 = vunpack.c.l.b16 %v5109
          %v5674 = vunpack.c.h.b16 %v5109
          %v5675 = vunpack.c.l.b16 %v5110
          %v5676 = vunpack.c.h.b16 %v5110
          %v5677 = vunpack.c.l.b16 %v5111
          %v5678 = vunpack.c.h.b16 %v5111
          %v5679 = vunpack.c.l.b16 %v5112
          %v5680 = vunpack.c.h.b16 %v5112
          %v5681 = vunpack.c.l.b16 %v5113
          %v5682 = vunpack.c.h.b16 %v5113
          %v5683 = vunpack.c.l.b16 %v5114
          %v5684 = vunpack.c.h.b16 %v5114
          %v5685 = vunpack.c.l.b16 %v5115
          %v5686 = vunpack.c.h.b16 %v5115
          %v5687 = vunpack.c.l.b16 %v5116
          %v5688 = vunpack.c.h.b16 %v5116
          %v5689 = vunpack.c.l.b16 %v5117
          %v5690 = vunpack.c.h.b16 %v5117
          %v5691 = vunpack.c.l.b16 %v5118
          %v5692 = vunpack.c.h.b16 %v5118
          %v5693 = vunpack.c.l.b16 %v5119
          %v5694 = vunpack.c.h.b16 %v5119
          %v5695 = vunpack.c.l.b16 %v5120
          %v5696 = vunpack.c.h.b16 %v5120
          %v5697 = vunpack.c.l.b16 %v5121
          %v5698 = vunpack.c.h.b16 %v5121
          %v5699 = vunpack.c.l.b16 %v5122
          %v5700 = vunpack.c.h.b16 %v5122
          %v5701 = vunpack.c.l.b16 %v5123
          %v5702 = vunpack.c.h.b16 %v5123
          %v5703 = vunpack.c.l.b16 %v5124
          %v5704 = vunpack.c.h.b16 %v5124
          %v5705 = vunpack.c.l.b16 %v5125
          %v5706 = vunpack.c.h.b16 %v5125
          %v5707 = vunpack.c.l.b16 %v5126
          %v5708 = vunpack.c.h.b16 %v5126
          %v5709 = vunpack.c.l.b16 %v5127
          %v5710 = vunpack.c.h.b16 %v5127
          %v5711 = vunpack.c.l.b16 %v5128
          %v5712 = vunpack.c.h.b16 %v5128
          %v5713 = vunpack.c.l.b16 %v5129
          %v5714 = vunpack.c.h.b16 %v5129
          %v5715 = vunpack.c.l.b16 %v5130
          %v5716 = vunpack.c.h.b16 %v5130
          %v5717 = vunpack.c.l.b16 %v5131
          %v5718 = vunpack.c.h.b16 %v5131
          %v5719 = vunpack.c.l.b16 %v5132
          %v5720 = vunpack.c.h.b16 %v5132
          %v5721 = vunpack.c.l.b16 %v5133
          %v5722 = vunpack.c.h.b16 %v5133
          %v5723 = vunpack.c.l.b16 %v5134
          %v5724 = vunpack.c.h.b16 %v5134
          %v5725 = vunpack.c.l.b16 %v5135
          %v5726 = vunpack.c.h.b16 %v5135
          %v5727 = vunpack.c.l.b16 %v5136
          %v5728 = vunpack.c.h.b16 %v5136
          %v5729 = vunpack.c.l.b16 %v5137
          %v5730 = vunpack.c.h.b16 %v5137
          %v5731 = vunpack.c.l.b16 %v5138
          %v5732 = vunpack.c.h.b16 %v5138
          %v5733 = vunpack.c.l.b16 %v5139
          %v5734 = vunpack.c.h.b16 %v5139
          %v5735 = vunpack.c.l.b16 %v5140
          %v5736 = vunpack.c.h.b16 %v5140
          %v5737 = vunpack.c.l.b16 %v5141
          %v5738 = vunpack.c.h.b16 %v5141
          %v5739 = vunpack.c.l.b16 %v5142
          %v5740 = vunpack.c.h.b16 %v5142
          %v5741 = vunpack.c.l.b16 %v5143
          %v5742 = vunpack.c.h.b16 %v5143
          %v5743 = vunpack.c.l.b16 %v5144
          %v5744 = vunpack.c.h.b16 %v5144
          %v5745 = vunpack.c.l.b16 %v5145
          %v5746 = vunpack.c.h.b16 %v5145
          %v5747 = vunpack.c.l.b16 %v5146
          %v5748 = vunpack.c.h.b16 %v5146
          %v5749 = vunpack.c.l.b16 %v5147
          %v5750 = vunpack.c.h.b16 %v5147
          %v5751 = vunpack.c.l.b16 %v5148
          %v5752 = vunpack.c.h.b16 %v5148
          %v5753 = vunpack.c.l.b16 %v5149
          %v5754 = vunpack.c.h.b16 %v5149
          %v5755 = vunpack.c.l.b16 %v5150
          %v5756 = vunpack.c.h.b16 %v5150
          %v5757 = vunpack.c.l.b16 %v5151
          %v5758 = vunpack.c.h.b16 %v5151
          %v5759 = vunpack.c.l.b16 %v5152
          %v5760 = vunpack.c.h.b16 %v5152
          %v5761 = vunpack.c.l.b16 %v5153
          %v5762 = vunpack.c.h.b16 %v5153
          %v5763 = vunpack.c.l.b16 %v5154
          %v5764 = vunpack.c.h.b16 %v5154
          %v5765 = vunpack.c.l.b16 %v5155
          %v5766 = vunpack.c.h.b16 %v5155
          %v5767 = vunpack.c.l.b16 %v5156
          %v5768 = vunpack.c.h.b16 %v5156
          %v5769 = vunpack.c.l.b16 %v5157
          %v5770 = vunpack.c.h.b16 %v5157
          %v5771 = vunpack.c.l.b16 %v5158
          %v5772 = vunpack.c.h.b16 %v5158
          %v5773 = vunpack.c.l.b16 %v5159
          %v5774 = vunpack.c.h.b16 %v5159
          %v5775 = vunpack.c.l.b16 %v5160
          %v5776 = vunpack.c.h.b16 %v5160
          %v5777 = vunpack.c.l.b16 %v5161
          %v5778 = vunpack.c.h.b16 %v5161
          %v5779 = vunpack.c.l.b16 %v5162
          %v5780 = vunpack.c.h.b16 %v5162
          %v5781 = vunpack.c.l.b16 %v5163
          %v5782 = vunpack.c.h.b16 %v5163
          %v5783 = vunpack.c.l.b16 %v5164
          %v5784 = vunpack.c.h.b16 %v5164
          %v5785 = vunpack.c.l.b16 %v5165
          %v5786 = vunpack.c.h.b16 %v5165
          %v5787 = vunpack.c.l.b16 %v5166
          %v5788 = vunpack.c.h.b16 %v5166
          %v5789 = vunpack.c.l.b16 %v5167
          %v5790 = vunpack.c.h.b16 %v5167
          %v5791 = vunpack.c.l.b16 %v5168
          %v5792 = vunpack.c.h.b16 %v5168
          %v5793 = vunpack.c.l.b16 %v5169
          %v5794 = vunpack.c.h.b16 %v5169
          %v5795 = vunpack.c.l.b16 %v5170
          %v5796 = vunpack.c.h.b16 %v5170
          %v5797 = vunpack.c.l.b16 %v5171
          %v5798 = vunpack.c.h.b16 %v5171
          %v5799 = vunpack.c.l.b16 %v5172
          %v5800 = vunpack.c.h.b16 %v5172
          %v5801 = vunpack.c.l.b16 %v5173
          %v5802 = vunpack.c.h.b16 %v5173
          %v5803 = vunpack.c.l.b16 %v5174
          %v5804 = vunpack.c.h.b16 %v5174
          %v5805 = vunpack.c.l.b16 %v5175
          %v5806 = vunpack.c.h.b16 %v5175
          %v5807 = vunpack.c.l.b16 %v5176
          %v5808 = vunpack.c.h.b16 %v5176
          %v5809 = vunpack.c.l.b16 %v5177
          %v5810 = vunpack.c.h.b16 %v5177
          %v5811 = vunpack.c.l.b16 %v5178
          %v5812 = vunpack.c.h.b16 %v5178
          %v5813 = vunpack.c.l.b16 %v5179
          %v5814 = vunpack.c.h.b16 %v5179
          %v5815 = vunpack.c.l.b16 %v5180
          %v5816 = vunpack.c.h.b16 %v5180
          %v5817 = vunpack.c.l.b16 %v5181
          %v5818 = vunpack.c.h.b16 %v5181
          %v5819 = vunpack.c.l.b16 %v5182
          %v5820 = vunpack.c.h.b16 %v5182
          %v5821 = vunpack.c.l.b16 %v5183
          %v5822 = vunpack.c.h.b16 %v5183
          %v5823 = vunpack.c.l.b16 %v5184
          %v5824 = vunpack.c.h.b16 %v5184
          %v5825 = vunpack.c.l.b16 %v5185
          %v5826 = vunpack.c.h.b16 %v5185
          %v5827 = vunpack.c.l.b16 %v5186
          %v5828 = vunpack.c.h.b16 %v5186
          %v5829 = vunpack.c.l.b16 %v5187
          %v5830 = vunpack.c.h.b16 %v5187
          %v5831 = vunpack.c.l.b16 %v5188
          %v5832 = vunpack.c.h.b16 %v5188
          %v5833 = vunpack.c.l.b16 %v5189
          %v5834 = vunpack.c.h.b16 %v5189
          %v5835 = vunpack.c.l.b16 %v5190
          %v5836 = vunpack.c.h.b16 %v5190
          %v5837 = vunpack.c.l.b16 %v5191
          %v5838 = vunpack.c.h.b16 %v5191
          %v5839 = vunpack.c.l.b16 %v5192
          %v5840 = vunpack.c.h.b16 %v5192
          %v5841 = vunpack.c.l.b16 %v5193
          %v5842 = vunpack.c.h.b16 %v5193
          %v5843 = vunpack.c.l.b16 %v5194
          %v5844 = vunpack.c.h.b16 %v5194
          %v5845 = vunpack.c.l.b16 %v5195
          %v5846 = vunpack.c.h.b16 %v5195
          %v5847 = vunpack.c.l.b16 %v5196
          %v5848 = vunpack.c.h.b16 %v5196
          %v5849 = vunpack.c.l.b16 %v5197
          %v5850 = vunpack.c.h.b16 %v5197
          %v5851 = vunpack.c.l.b16 %v5198
          %v5852 = vunpack.c.h.b16 %v5198
          %v5853 = vunpack.c.l.b16 %v5199
          %v5854 = vunpack.c.h.b16 %v5199
          %v5855 = vunpack.c.l.b16 %v5200
          %v5856 = vunpack.c.h.b16 %v5200
          %v5857 = vunpack.c.l.b16 %v5201
          %v5858 = vunpack.c.h.b16 %v5201
          %v5859 = vunpack.c.l.b16 %v5202
          %v5860 = vunpack.c.h.b16 %v5202
          %v5861 = vunpack.c.l.b16 %v5203
          %v5862 = vunpack.c.h.b16 %v5203
          %v5863 = vunpack.c.l.b16 %v5204
          %v5864 = vunpack.c.h.b16 %v5204
          %v5865 = vunpack.c.l.b16 %v5205
          %v5866 = vunpack.c.h.b16 %v5205
          %v5867 = vunpack.c.l.b16 %v5206
          %v5868 = vunpack.c.h.b16 %v5206
          %v5869 = vunpack.c.l.b16 %v5207
          %v5870 = vunpack.c.h.b16 %v5207
          %v5871 = vunpack.c.l.b16 %v5208
          %v5872 = vunpack.c.h.b16 %v5208
          %v5873 = vunpack.c.l.b16 %v5209
          %v5874 = vunpack.c.h.b16 %v5209
          %v5875 = vunpack.c.l.b16 %v5210
          %v5876 = vunpack.c.h.b16 %v5210
          %v5877 = vunpack.c.l.b16 %v5211
          %v5878 = vunpack.c.h.b16 %v5211
          %v5879 = vunpack.c.l.b16 %v5212
          %v5880 = vunpack.c.h.b16 %v5212
          %v5881 = vunpack.c.l.b16 %v5213
          %v5882 = vunpack.c.h.b16 %v5213
          %v5883 = vunpack.c.l.b16 %v5214
          %v5884 = vunpack.c.h.b16 %v5214
          %v5885 = vunpack.c.l.b16 %v5215
          %v5886 = vunpack.c.h.b16 %v5215
          %v5887 = vunpack.c.l.b16 %v5216
          %v5888 = vunpack.c.h.b16 %v5216
          %v5889 = vunpack.c.l.b16 %v5217
          %v5890 = vunpack.c.h.b16 %v5217
          %v5891 = vunpack.c.l.b16 %v5218
          %v5892 = vunpack.c.h.b16 %v5218
          %v5893 = vunpack.c.l.b16 %v5219
          %v5894 = vunpack.c.h.b16 %v5219
          %v5895 = vunpack.c.l.b16 %v5220
          %v5896 = vunpack.c.h.b16 %v5220
          %v5897 = vunpack.c.l.b16 %v5221
          %v5898 = vunpack.c.h.b16 %v5221
          %v5899 = vunpack.c.l.b16 %v5222
          %v5900 = vunpack.c.h.b16 %v5222
          %v5901 = vunpack.c.l.b16 %v5223
          %v5902 = vunpack.c.h.b16 %v5223
          %v5903 = vunpack.c.l.b16 %v5224
          %v5904 = vunpack.c.h.b16 %v5224
          %v5905 = vunpack.c.l.b16 %v5225
          %v5906 = vunpack.c.h.b16 %v5225
          %v5907 = vunpack.c.l.b16 %v5226
          %v5908 = vunpack.c.h.b16 %v5226
          %v5909 = vunpack.c.l.b16 %v5227
          %v5910 = vunpack.c.h.b16 %v5227
          %v5911 = vunpack.c.l.b16 %v5228
          %v5912 = vunpack.c.h.b16 %v5228
          %v5913 = vunpack.c.l.b16 %v5229
          %v5914 = vunpack.c.h.b16 %v5229
          %v5915 = vunpack.c.l.b16 %v5230
          %v5916 = vunpack.c.h.b16 %v5230
          %v5917 = vunpack.c.l.b16 %v5231
          %v5918 = vunpack.c.h.b16 %v5231
          %v5919 = vunpack.c.l.b16 %v5232
          %v5920 = vunpack.c.h.b16 %v5232
          %v5921 = vunpack.c.l.b16 %v5233
          %v5922 = vunpack.c.h.b16 %v5233
          %v5923 = vunpack.c.l.b16 %v5234
          %v5924 = vunpack.c.h.b16 %v5234
          %v5925 = vunpack.c.l.b16 %v5235
          %v5926 = vunpack.c.h.b16 %v5235
          %v5927 = vunpack.c.l.b16 %v5236
          %v5928 = vunpack.c.h.b16 %v5236
          %v5929 = vunpack.c.l.b16 %v5237
          %v5930 = vunpack.c.h.b16 %v5237
          %v5931 = vunpack.c.l.b16 %v5238
          %v5932 = vunpack.c.h.b16 %v5238
          %v5933 = vunpack.c.l.b16 %v5239
          %v5934 = vunpack.c.h.b16 %v5239
          %v5935 = vunpack.c.l.b16 %v5240
          %v5936 = vunpack.c.h.b16 %v5240
          %v5937 = vunpack.c.l.b16 %v5241
          %v5938 = vunpack.c.h.b16 %v5241
          %v5939 = vunpack.c.l.b16 %v5242
          %v5940 = vunpack.c.h.b16 %v5242
          %v5941 = vunpack.c.l.b16 %v5243
          %v5942 = vunpack.c.h.b16 %v5243
          %v5943 = vunpack.c.l.b16 %v5244
          %v5944 = vunpack.c.h.b16 %v5244
          %v5945 = vunpack.c.l.b16 %v5245
          %v5946 = vunpack.c.h.b16 %v5245
          %v5947 = vunpack.c.l.b16 %v5246
          %v5948 = vunpack.c.h.b16 %v5246
          %v5949 = vunpack.c.l.b16 %v5247
          %v5950 = vunpack.c.h.b16 %v5247
          %v5951 = vunpack.c.l.b16 %v5248
          %v5952 = vunpack.c.h.b16 %v5248
          %v5953 = vunpack.c.l.b16 %v5249
          %v5954 = vunpack.c.h.b16 %v5249
          %v5955 = vunpack.c.l.b16 %v5250
          %v5956 = vunpack.c.h.b16 %v5250
          %v5957 = vunpack.c.l.b16 %v5251
          %v5958 = vunpack.c.h.b16 %v5251
          %v5959 = vunpack.c.l.b16 %v5252
          %v5960 = vunpack.c.h.b16 %v5252
          %v5961 = vunpack.c.l.b16 %v5253
          %v5962 = vunpack.c.h.b16 %v5253
          %v5963 = vunpack.c.l.b16 %v5254
          %v5964 = vunpack.c.h.b16 %v5254
          %v5965 = vunpack.c.l.b16 %v5255
          %v5966 = vunpack.c.h.b16 %v5255
          %v5967 = vunpack.c.l.b16 %v5256
          %v5968 = vunpack.c.h.b16 %v5256
          %v5969 = vunpack.c.l.b16 %v5257
          %v5970 = vunpack.c.h.b16 %v5257
          %v5971 = vunpack.c.l.b16 %v5258
          %v5972 = vunpack.c.h.b16 %v5258
          %v5973 = vunpack.c.l.b16 %v5259
          %v5974 = vunpack.c.h.b16 %v5259
          %v5975 = vunpack.c.l.b16 %v5260
          %v5976 = vunpack.c.h.b16 %v5260
          %v5977 = vunpack.c.l.b16 %v5261
          %v5978 = vunpack.c.h.b16 %v5261
          %v5979 = vunpack.c.l.b16 %v5262
          %v5980 = vunpack.c.h.b16 %v5262
          %v5981 = vunpack.c.l.b16 %v5263
          %v5982 = vunpack.c.h.b16 %v5263
          %v5983 = vunpack.c.l.b16 %v5264
          %v5984 = vunpack.c.h.b16 %v5264
          %v5985 = vunpack.c.l.b16 %v5265
          %v5986 = vunpack.c.h.b16 %v5265
          %v5987 = vunpack.c.l.b16 %v5266
          %v5988 = vunpack.c.h.b16 %v5266
          %v5989 = vunpack.c.l.b16 %v5267
          %v5990 = vunpack.c.h.b16 %v5267
          %v5991 = vunpack.c.l.b16 %v5268
          %v5992 = vunpack.c.h.b16 %v5268
          %v5993 = vunpack.c.l.b16 %v5269
          %v5994 = vunpack.c.h.b16 %v5269
          %v5995 = vunpack.c.l.b16 %v5270
          %v5996 = vunpack.c.h.b16 %v5270
          %v5997 = vunpack.c.l.b16 %v5271
          %v5998 = vunpack.c.h.b16 %v5271
          %v5999 = vunpack.c.l.b16 %v5272
          %v6000 = vunpack.c.h.b16 %v5272
          %v6001 = vunpack.c.l.b16 %v5273
          %v6002 = vunpack.c.h.b16 %v5273
          %v6003 = vunpack.c.l.b16 %v5274
          %v6004 = vunpack.c.h.b16 %v5274
          %v6005 = vunpack.c.l.b16 %v5275
          %v6006 = vunpack.c.h.b16 %v5275
          %v6007 = vunpack.c.l.b16 %v5276
          %v6008 = vunpack.c.h.b16 %v5276
          %v6009 = vunpack.c.l.b16 %v5277
          %v6010 = vunpack.c.h.b16 %v5277
          %v6011 = vunpack.c.l.b16 %v5278
          %v6012 = vunpack.c.h.b16 %v5278
          %v6013 = vunpack.c.l.b16 %v5279
          %v6014 = vunpack.c.h.b16 %v5279
          %v6015 = vunpack.c.l.b16 %v5280
          %v6016 = vunpack.c.h.b16 %v5280
          %v6017 = vunpack.c.l.b16 %v5281
          %v6018 = vunpack.c.h.b16 %v5281
          %v6019 = vunpack.c.l.b16 %v5282
          %v6020 = vunpack.c.h.b16 %v5282
          %v6021 = vunpack.c.l.b16 %v5283
          %v6022 = vunpack.c.h.b16 %v5283
          %v6023 = vunpack.c.l.b16 %v5284
          %v6024 = vunpack.c.h.b16 %v5284
          %v6025 = vunpack.c.l.b16 %v5285
          %v6026 = vunpack.c.h.b16 %v5285
          %v6027 = vunpack.c.l.b16 %v5286
          %v6028 = vunpack.c.h.b16 %v5286
          %v6029 = vunpack.c.l.b16 %v5287
          %v6030 = vunpack.c.h.b16 %v5287
          %v6031 = vunpack.c.l.b16 %v5288
          %v6032 = vunpack.c.h.b16 %v5288
          %v6033 = vunpack.c.l.b16 %v5289
          %v6034 = vunpack.c.h.b16 %v5289
          %v6035 = vunpack.c.l.b16 %v5290
          %v6036 = vunpack.c.h.b16 %v5290
          %v6037 = vunpack.c.l.b16 %v5291
          %v6038 = vunpack.c.h.b16 %v5291
          %v6039 = vunpack.c.l.b16 %v5292
          %v6040 = vunpack.c.h.b16 %v5292
          %v6041 = vunpack.c.l.b16 %v5293
          %v6042 = vunpack.c.h.b16 %v5293
          %v6043 = vunpack.c.l.b16 %v5294
          %v6044 = vunpack.c.h.b16 %v5294
          %v6045 = vunpack.c.l.b16 %v5295
          %v6046 = vunpack.c.h.b16 %v5295
          %v6047 = vunpack.c.l.b16 %v5296
          %v6048 = vunpack.c.h.b16 %v5296
          %v6049 = vunpack.c.l.b16 %v5297
          %v6050 = vunpack.c.h.b16 %v5297
          %v6051 = vunpack.c.l.b16 %v5298
          %v6052 = vunpack.c.h.b16 %v5298
          %v6053 = vunpack.c.l.b16 %v5299
          %v6054 = vunpack.c.h.b16 %v5299
          %v6055 = vunpack.c.l.b16 %v5300
          %v6056 = vunpack.c.h.b16 %v5300
          %v6057 = vunpack.c.l.b16 %v5301
          %v6058 = vunpack.c.h.b16 %v5301
          %v6059 = vunpack.c.l.b16 %v5302
          %v6060 = vunpack.c.h.b16 %v5302
          %v6061 = vunpack.c.l.b16 %v5303
          %v6062 = vunpack.c.h.b16 %v5303
          %v6063 = vunpack.c.l.b16 %v5304
          %v6064 = vunpack.c.h.b16 %v5304
          %v6065 = vunpack.c.l.b16 %v5305
          %v6066 = vunpack.c.h.b16 %v5305
          %v6067 = vunpack.c.l.b16 %v5306
          %v6068 = vunpack.c.h.b16 %v5306
          %v6069 = vunpack.c.l.b16 %v5307
          %v6070 = vunpack.c.h.b16 %v5307
          %v6071 = vunpack.c.l.b16 %v5308
          %v6072 = vunpack.c.h.b16 %v5308
          %v6073 = vunpack.c.l.b16 %v5309
          %v6074 = vunpack.c.h.b16 %v5309
          %v6075 = vunpack.c.l.b16 %v5310
          %v6076 = vunpack.c.h.b16 %v5310
          %v6077 = vunpack.c.l.b16 %v5311
          %v6078 = vunpack.c.h.b16 %v5311
          %v6079 = vunpack.c.l.b16 %v5312
          %v6080 = vunpack.c.h.b16 %v5312
          %v6081 = vunpack.c.l.b16 %v5313
          %v6082 = vunpack.c.h.b16 %v5313
          %v6083 = vunpack.c.l.b16 %v5314
          %v6084 = vunpack.c.h.b16 %v5314
          %v6085 = vunpack.c.l.b16 %v5315
          %v6086 = vunpack.c.h.b16 %v5315
          %v6087 = vunpack.c.l.b16 %v5316
          %v6088 = vunpack.c.h.b16 %v5316
          %v6089 = vunpack.c.l.b16 %v5317
          %v6090 = vunpack.c.h.b16 %v5317
          %v6091 = vunpack.c.l.b16 %v5318
          %v6092 = vunpack.c.h.b16 %v5318
          %v6093 = vunpack.c.l.b16 %v5319
          %v6094 = vunpack.c.h.b16 %v5319
          %v6095 = vunpack.c.l.b16 %v5320
          %v6096 = vunpack.c.h.b16 %v5320
          %v6097 = vunpack.c.l.b16 %v5321
          %v6098 = vunpack.c.h.b16 %v5321
          %v6099 = vunpack.c.l.b16 %v5322
          %v6100 = vunpack.c.h.b16 %v5322
          %v6101 = vunpack.c.l.b16 %v5323
          %v6102 = vunpack.c.h.b16 %v5323
          %v6103 = vunpack.c.l.b16 %v5324
          %v6104 = vunpack.c.h.b16 %v5324
          %v6105 = vpack.c.b16 %v5595, %v5593
          %v6106 = vpack.c.b16 %v5596, %v5594
          %v6107 = vpack.c.b16 %v5599, %v5597
          %v6108 = vpack.c.b16 %v5600, %v5598
          %v6109 = vpack.c.b16 %v5603, %v5601
          %v6110 = vpack.c.b16 %v5604, %v5602
          %v6111 = vpack.c.b16 %v5607, %v5605
          %v6112 = vpack.c.b16 %v5608, %v5606
          %v6113 = vpack.c.b16 %v5611, %v5609
          %v6114 = vpack.c.b16 %v5612, %v5610
          %v6115 = vpack.c.b16 %v5615, %v5613
          %v6116 = vpack.c.b16 %v5616, %v5614
          %v6117 = vpack.c.b16 %v5619, %v5617
          %v6118 = vpack.c.b16 %v5620, %v5618
          %v6119 = vpack.c.b16 %v5623, %v5621
          %v6120 = vpack.c.b16 %v5624, %v5622
          %v6121 = vpack.c.b16 %v5627, %v5625
          %v6122 = vpack.c.b16 %v5628, %v5626
          %v6123 = vpack.c.b16 %v5631, %v5629
          %v6124 = vpack.c.b16 %v5632, %v5630
          %v6125 = vpack.c.b16 %v5635, %v5633
          %v6126 = vpack.c.b16 %v5636, %v5634
          %v6127 = vpack.c.b16 %v5639, %v5637
          %v6128 = vpack.c.b16 %v5640, %v5638
          %v6129 = vpack.c.b16 %v5643, %v5641
          %v6130 = vpack.c.b16 %v5644, %v5642
          %v6131 = vpack.c.b16 %v5647, %v5645
          %v6132 = vpack.c.b16 %v5648, %v5646
          %v6133 = vpack.c.b16 %v5651, %v5649
          %v6134 = vpack.c.b16 %v5652, %v5650
          %v6135 = vpack.c.b16 %v5655, %v5653
          %v6136 = vpack.c.b16 %v5656, %v5654
          %v6137 = vpack.c.b16 %v5659, %v5657
          %v6138 = vpack.c.b16 %v5660, %v5658
          %v6139 = vpack.c.b16 %v5663, %v5661
          %v6140 = vpack.c.b16 %v5664, %v5662
          %v6141 = vpack.c.b16 %v5667, %v5665
          %v6142 = vpack.c.b16 %v5668, %v5666
          %v6143 = vpack.c.b16 %v5671, %v5669
          %v6144 = vpack.c.b16 %v5672, %v5670
          %v6145 = vpack.c.b16 %v5675, %v5673
          %v6146 = vpack.c.b16 %v5676, %v5674
          %v6147 = vpack.c.b16 %v5679, %v5677
          %v6148 = vpack.c.b16 %v5680, %v5678
          %v6149 = vpack.c.b16 %v5683, %v5681
          %v6150 = vpack.c.b16 %v5684, %v5682
          %v6151 = vpack.c.b16 %v5687, %v5685
          %v6152 = vpack.c.b16 %v5688, %v5686
          %v6153 = vpack.c.b16 %v5691, %v5689
          %v6154 = vpack.c.b16 %v5692, %v5690
          %v6155 = vpack.c.b16 %v5695, %v5693
          %v6156 = vpack.c.b16 %v5696, %v5694
          %v6157 = vpack.c.b16 %v5699, %v5697
          %v6158 = vpack.c.b16 %v5700, %v5698
          %v6159 = vpack.c.b16 %v5703, %v5701
          %v6160 = vpack.c.b16 %v5704, %v5702
          %v6161 = vpack.c.b16 %v5707, %v5705
          %v6162 = vpack.c.b16 %v5708, %v5706
          %v6163 = vpack.c.b16 %v5711, %v5709
          %v6164 = vpack.c.b16 %v5712, %v5710
          %v6165 = vpack.c.b16 %v5715, %v5713
          %v6166 = vpack.c.b16 %v5716, %v5714
          %v6167 = vpack.c.b16 %v5719, %v5717
          %v6168 = vpack.c.b16 %v5720, %v5718
          %v6169 = vpack.c.b16 %v5723, %v5721
          %v6170 = vpack.c.b16 %v5724, %v5722
          %v6171 = vpack.c.b16 %v5727, %v5725
          %v6172 = vpack.c.b16 %v5728, %v5726
          %v6173 = vpack.c.b16 %v5731, %v5729
          %v6174 = vpack.c.b16 %v5732, %v5730
          %v6175 = vpack.c.b16 %v5735, %v5733
          %v6176 = vpack.c.b16 %v5736, %v5734
          %v6177 = vpack.c.b16 %v5739, %v5737
          %v6178 = vpack.c.b16 %v5740, %v5738
          %v6179 = vpack.c.b16 %v5743, %v5741
          %v6180 = vpack.c.b16 %v5744, %v5742
          %v6181 = vpack.c.b16 %v5747, %v5745
          %v6182 = vpack.c.b16 %v5748, %v5746
          %v6183 = vpack.c.b16 %v5751, %v5749
          %v6184 = vpack.c.b16 %v5752, %v5750
          %v6185 = vpack.c.b16 %v5755, %v5753
          %v6186 = vpack.c.b16 %v5756, %v5754
          %v6187 = vpack.c.b16 %v5759, %v5757
          %v6188 = vpack.c.b16 %v5760, %v5758
          %v6189 = vpack.c.b16 %v5763, %v5761
          %v6190 = vpack.c.b16 %v5764, %v5762
          %v6191 = vpack.c.b16 %v5767, %v5765
          %v6192 = vpack.c.b16 %v5768, %v5766
          %v6193 = vpack.c.b16 %v5771, %v5769
          %v6194 = vpack.c.b16 %v5772, %v5770
          %v6195 = vpack.c.b16 %v5775, %v5773
          %v6196 = vpack.c.b16 %v5776, %v5774
          %v6197 = vpack.c.b16 %v5779, %v5777
          %v6198 = vpack.c.b16 %v5780, %v5778
          %v6199 = vpack.c.b16 %v5783, %v5781
          %v6200 = vpack.c.b16 %v5784, %v5782
          %v6201 = vpack.c.b16 %v5787, %v5785
          %v6202 = vpack.c.b16 %v5788, %v5786
          %v6203 = vpack.c.b16 %v5791, %v5789
          %v6204 = vpack.c.b16 %v5792, %v5790
          %v6205 = vpack.c.b16 %v5795, %v5793
          %v6206 = vpack.c.b16 %v5796, %v5794
          %v6207 = vpack.c.b16 %v5799, %v5797
          %v6208 = vpack.c.b16 %v5800, %v5798
          %v6209 = vpack.c.b16 %v5803, %v5801
          %v6210 = vpack.c.b16 %v5804, %v5802
          %v6211 = vpack.c.b16 %v5807, %v5805
          %v6212 = vpack.c.b16 %v5808, %v5806
          %v6213 = vpack.c.b16 %v5811, %v5809
          %v6214 = vpack.c.b16 %v5812, %v5810
          %v6215 = vpack.c.b16 %v5815, %v5813
          %v6216 = vpack.c.b16 %v5816, %v5814
          %v6217 = vpack.c.b16 %v5819, %v5817
          %v6218 = vpack.c.b16 %v5820, %v5818
          %v6219 = vpack.c.b16 %v5823, %v5821
          %v6220 = vpack.c.b16 %v5824, %v5822
          %v6221 = vpack.c.b16 %v5827, %v5825
          %v6222 = vpack.c.b16 %v5828, %v5826
          %v6223 = vpack.c.b16 %v5831, %v5829
          %v6224 = vpack.c.b16 %v5832, %v5830
          %v6225 = vpack.c.b16 %v5835, %v5833
          %v6226 = vpack.c.b16 %v5836, %v5834
          %v6227 = vpack.c.b16 %v5839, %v5837
          %v6228 = vpack.c.b16 %v5840, %v5838
          %v6229 = vpack.c.b16 %v5843, %v5841
          %v6230 = vpack.c.b16 %v5844, %v5842
          %v6231 = vpack.c.b16 %v5847, %v5845
          %v6232 = vpack.c.b16 %v5848, %v5846
          %v6233 = vpack.c.b16 %v5851, %v5849
          %v6234 = vpack.c.b16 %v5852, %v5850
          %v6235 = vpack.c.b16 %v5855, %v5853
          %v6236 = vpack.c.b16 %v5856, %v5854
          %v6237 = vpack.c.b16 %v5859, %v5857
          %v6238 = vpack.c.b16 %v5860, %v5858
          %v6239 = vpack.c.b16 %v5863, %v5861
          %v6240 = vpack.c.b16 %v5864, %v5862
          %v6241 = vpack.c.b16 %v5867, %v5865
          %v6242 = vpack.c.b16 %v5868, %v5866
          %v6243 = vpack.c.b16 %v5871, %v5869
          %v6244 = vpack.c.b16 %v5872, %v5870
          %v6245 = vpack.c.b16 %v5875, %v5873
          %v6246 = vpack.c.b16 %v5876, %v5874
          %v6247 = vpack.c.b16 %v5879, %v5877
          %v6248 = vpack.c.b16 %v5880, %v5878
          %v6249 = vpack.c.b16 %v5883, %v5881
          %v6250 = vpack.c.b16 %v5884, %v5882
          %v6251 = vpack.c.b16 %v5887, %v5885
          %v6252 = vpack.c.b16 %v5888, %v5886
          %v6253 = vpack.c.b16 %v5891, %v5889
          %v6254 = vpack.c.b16 %v5892, %v5890
          %v6255 = vpack.c.b16 %v5895, %v5893
          %v6256 = vpack.c.b16 %v5896, %v5894
          %v6257 = vpack.c.b16 %v5899, %v5897
          %v6258 = vpack.c.b16 %v5900, %v5898
          %v6259 = vpack.c.b16 %v5903, %v5901
          %v6260 = vpack.c.b16 %v5904, %v5902
          %v6261 = vpack.c.b16 %v5907, %v5905
          %v6262 = vpack.c.b16 %v5908, %v5906
          %v6263 = vpack.c.b16 %v5911, %v5909
          %v6264 = vpack.c.b16 %v5912, %v5910
          %v6265 = vpack.c.b16 %v5915, %v5913
          %v6266 = vpack.c.b16 %v5916, %v5914
          %v6267 = vpack.c.b16 %v5919, %v5917
          %v6268 = vpack.c.b16 %v5920, %v5918
          %v6269 = vpack.c.b16 %v5923, %v5921
          %v6270 = vpack.c.b16 %v5924, %v5922
          %v6271 = vpack.c.b16 %v5927, %v5925
          %v6272 = vpack.c.b16 %v5928, %v5926
          %v6273 = vpack.c.b16 %v5931, %v5929
          %v6274 = vpack.c.b16 %v5932, %v5930
          %v6275 = vpack.c.b16 %v5935, %v5933
          %v6276 = vpack.c.b16 %v5936, %v5934
          %v6277 = vpack.c.b16 %v5939, %v5937
          %v6278 = vpack.c.b16 %v5940, %v5938
          %v6279 = vpack.c.b16 %v5943, %v5941
          %v6280 = vpack.c.b16 %v5944, %v5942
          %v6281 = vpack.c.b16 %v5947, %v5945
          %v6282 = vpack.c.b16 %v5948, %v5946
          %v6283 = vpack.c.b16 %v5951, %v5949
          %v6284 = vpack.c.b16 %v5952, %v5950
          %v6285 = vpack.c.b16 %v5955, %v5953
          %v6286 = vpack.c.b16 %v5956, %v5954
          %v6287 = vpack.c.b16 %v5959, %v5957
          %v6288 = vpack.c.b16 %v5960, %v5958
          %v6289 = vpack.c.b16 %v5963, %v5961
          %v6290 = vpack.c.b16 %v5964, %v5962
          %v6291 = vpack.c.b16 %v5967, %v5965
          %v6292 = vpack.c.b16 %v5968, %v5966
          %v6293 = vpack.c.b16 %v5971, %v5969
          %v6294 = vpack.c.b16 %v5972, %v5970
          %v6295 = vpack.c.b16 %v5975, %v5973
          %v6296 = vpack.c.b16 %v5976, %v5974
          %v6297 = vpack.c.b16 %v5979, %v5977
          %v6298 = vpack.c.b16 %v5980, %v5978
          %v6299 = vpack.c.b16 %v5983, %v5981
          %v6300 = vpack.c.b16 %v5984, %v5982
          %v6301 = vpack.c.b16 %v5987, %v5985
          %v6302 = vpack.c.b16 %v5988, %v5986
          %v6303 = vpack.c.b16 %v5991, %v5989
          %v6304 = vpack.c.b16 %v5992, %v5990
          %v6305 = vpack.c.b16 %v5995, %v5993
          %v6306 = vpack.c.b16 %v5996, %v5994
          %v6307 = vpack.c.b16 %v5999, %v5997
          %v6308 = vpack.c.b16 %v6000, %v5998
          %v6309 = vpack.c.b16 %v6003, %v6001
          %v6310 = vpack.c.b16 %v6004, %v6002
          %v6311 = vpack.c.b16 %v6007, %v6005
          %v6312 = vpack.c.b16 %v6008, %v6006
          %v6313 = vpack.c.b16 %v6011, %v6009
          %v6314 = vpack.c.b16 %v6012, %v6010
          %v6315 = vpack.c.b16 %v6015, %v6013
          %v6316 = vpack.c.b16 %v6016, %v6014
          %v6317 = vpack.c.b16 %v6019, %v6017
          %v6318 = vpack.c.b16 %v6020, %v6018
          %v6319 = vpack.c.b16 %v6023, %v6021
          %v6320 = vpack.c.b16 %v6024, %v6022
          %v6321 = vpack.c.b16 %v6027, %v6025
          %v6322 = vpack.c.b16 %v6028, %v6026
          %v6323 = vpack.c.b16 %v6031, %v6029
          %v6324 = vpack.c.b16 %v6032, %v6030
          %v6325 = vpack.c.b16 %v6035, %v6033
          %v6326 = vpack.c.b16 %v6036, %v6034
          %v6327 = vpack.c.b16 %v6039, %v6037
          %v6328 = vpack.c.b16 %v6040, %v6038
          %v6329 = vpack.c.b16 %v6043, %v6041
          %v6330 = vpack.c.b16 %v6044, %v6042
          %v6331 = vpack.c.b16 %v6047, %v6045
          %v6332 = vpack.c.b16 %v6048, %v6046
          %v6333 = vpack.c.b16 %v6051, %v6049
          %v6334 = vpack.c.b16 %v6052, %v6050
          %v6335 = vpack.c.b16 %v6055, %v6053
          %v6336 = vpack.c.b16 %v6056, %v6054
          %v6337 = vpack.c.b16 %v6059, %v6057
          %v6338 = vpack.c.b16 %v6060, %v6058
          %v6339 = vpack.c.b16 %v6063, %v6061
          %v6340 = vpack.c.b16 %v6064, %v6062
          %v6341 = vpack.c.b16 %v6067, %v6065
          %v6342 = vpack.c.b16 %v6068, %v6066
          %v6343 = vpack.c.b16 %v6071, %v6069
          %v6344 = vpack.c.b16 %v6072, %v6070
          %v6345 = vpack.c.b16 %v6075, %v6073
          %v6346 = vpack.c.b16 %v6076, %v6074
          %v6347 = vpack.c.b16 %v6079, %v6077
          %v6348 = vpack.c.b16 %v6080, %v6078
          %v6349 = vpack.c.b16 %v6083, %v6081
          %v6350 = vpack.c.b16 %v6084, %v6082
          %v6351 = vpack.c.b16 %v6087, %v6085
          %v6352 = vpack.c.b16 %v6088, %v6086
          %v6353 = vpack.c.b16 %v6091, %v6089
          %v6354 = vpack.c.b16 %v6092, %v6090
          %v6355 = vpack.c.b16 %v6095, %v6093
          %v6356 = vpack.c.b16 %v6096, %v6094
          %v6357 = vpack.c.b16 %v6099, %v6097
          %v6358 = vpack.c.b16 %v6100, %v6098
          %v6359 = vpack.c.b16 %v6103, %v6101
          %v6360 = vpack.c.b16 %v6104, %v6102
          %6617 = vmatprep.subr.bf16.mxu0 %v6120
          %6618 = vmatpush1.bf16.msra.mxu0 %v6119
          %6619 = vmatprep.subr.bf16.mxu0 %v6118
          %6620 = vmatpush1.bf16.msra.mxu0 %v6117
          %6621 = vmatprep.subr.bf16.mxu0 %v6116
          %6622 = vmatpush1.bf16.msra.mxu0 %v6115
          %6623 = vmatprep.subr.bf16.mxu0 %v6114
          %6624 = vmatpush1.bf16.msra.mxu0 %v6113
          %6625 = vmatprep.subr.bf16.mxu0 %v6112
          %6626 = vmatpush1.bf16.msra.mxu0 %v6111
          %6627 = vmatprep.subr.bf16.mxu0 %v6110
          %6628 = vmatpush1.bf16.msra.mxu0 %v6109
          %6629 = vmatprep.subr.bf16.mxu0 %v6108
          %6630 = vmatpush1.bf16.msra.mxu0 %v6107
          %6631 = vmatprep.subr.bf16.mxu0 %v6106
          %6632 = vmatpush1.bf16.msra.mxu0 %v6105
          %6633 = vmatprep.subr.bf16.mxu0 %v6136
          %6634 = vmatpush2.bf16.msra.mxu0 %v6135
          %6635 = vmatprep.subr.bf16.mxu0 %v6134
          %6636 = vmatpush2.bf16.msra.mxu0 %v6133
          %6637 = vmatprep.subr.bf16.mxu0 %v6132
          %6638 = vmatpush2.bf16.msra.mxu0 %v6131
          %6639 = vmatprep.subr.bf16.mxu0 %v6130
          %6640 = vmatpush2.bf16.msra.mxu0 %v6129
          %6641 = vmatprep.subr.bf16.mxu0 %v6128
          %6642 = vmatpush2.bf16.msra.mxu0 %v6127
          %6643 = vmatprep.subr.bf16.mxu0 %v6126
          %6644 = vmatpush2.bf16.msra.mxu0 %v6125
          %6645 = vmatprep.subr.bf16.mxu0 %v6124
          %6646 = vmatpush2.bf16.msra.mxu0 %v6123
          %6647 = vmatprep.subr.bf16.mxu0 %v6122
          %6648 = vmatpush2.bf16.msra.mxu0 %v6121
          %6649 = vmatprep.mubr.bf16.mxu0 %v5054
          %6650 = vmatmul.mubr.bf16.gmra.mxu0 %v5053
          %v6651 = vpop.f32.mrf.mxu0
          %v6652 = vadd.f32 %v5330, %v6651
          %v6653 = vpop.f32.mrf.mxu0
          %v6654 = vadd.f32 %v5334, %v6653
          %v6655 = vpop.f32.mrf.mxu0
          %v6656 = vpop.f32.mrf.mxu0
          %6657 = vdwg.mxu0
          %6658 = vmatprep.subr.bf16.mxu0 %v6152
          %6659 = vmatpush1.bf16.msra.mxu0 %v6151
          %6660 = vmatprep.subr.bf16.mxu0 %v6150
          %6661 = vmatpush1.bf16.msra.mxu0 %v6149
          %6662 = vmatprep.subr.bf16.mxu0 %v6148
          %6663 = vmatpush1.bf16.msra.mxu0 %v6147
          %6664 = vmatprep.subr.bf16.mxu0 %v6146
          %6665 = vmatpush1.bf16.msra.mxu0 %v6145
          %6666 = vmatprep.subr.bf16.mxu0 %v6144
          %6667 = vmatpush1.bf16.msra.mxu0 %v6143
          %6668 = vmatprep.subr.bf16.mxu0 %v6142
          %6669 = vmatpush1.bf16.msra.mxu0 %v6141
          %6670 = vmatprep.subr.bf16.mxu0 %v6140
          %6671 = vmatpush1.bf16.msra.mxu0 %v6139
          %6672 = vmatprep.subr.bf16.mxu0 %v6138
          %6673 = vmatpush1.bf16.msra.mxu0 %v6137
          %6674 = vmatprep.subr.bf16.mxu0 %v6168
          %6675 = vmatpush2.bf16.msra.mxu0 %v6167
          %6676 = vmatprep.subr.bf16.mxu0 %v6166
          %6677 = vmatpush2.bf16.msra.mxu0 %v6165
          %6678 = vmatprep.subr.bf16.mxu0 %v6164
          %6679 = vmatpush2.bf16.msra.mxu0 %v6163
          %6680 = vmatprep.subr.bf16.mxu0 %v6162
          %6681 = vmatpush2.bf16.msra.mxu0 %v6161
          %6682 = vmatprep.subr.bf16.mxu0 %v6160
          %6683 = vmatpush2.bf16.msra.mxu0 %v6159
          %6684 = vmatprep.subr.bf16.mxu0 %v6158
          %6685 = vmatpush2.bf16.msra.mxu0 %v6157
          %6686 = vmatprep.subr.bf16.mxu0 %v6156
          %6687 = vmatpush2.bf16.msra.mxu0 %v6155
          %6688 = vmatprep.subr.bf16.mxu0 %v6154
          %6689 = vmatpush2.bf16.msra.mxu0 %v6153
          %6690 = vmatprep.mubr.bf16.mxu0 %v5056
          %6691 = vmatmul.mubr.bf16.gmra.mxu0 %v5055
          %v6692 = vpop.f32.mrf.mxu0
          %v6693 = vadd.f32 %v6652, %v6692
          %v6694 = vpop.f32.mrf.mxu0
          %v6695 = vadd.f32 %v6654, %v6694
          %v6696 = vpop.f32.mrf.mxu0
          %v6697 = vpop.f32.mrf.mxu0
          %6698 = vdwg.mxu0
          %6699 = vmatprep.subr.bf16.mxu0 %v6184
          %6700 = vmatpush1.bf16.msra.mxu0 %v6183
          %6701 = vmatprep.subr.bf16.mxu0 %v6182
          %6702 = vmatpush1.bf16.msra.mxu0 %v6181
          %6703 = vmatprep.subr.bf16.mxu0 %v6180
          %6704 = vmatpush1.bf16.msra.mxu0 %v6179
          %6705 = vmatprep.subr.bf16.mxu0 %v6178
          %6706 = vmatpush1.bf16.msra.mxu0 %v6177
          %6707 = vmatprep.subr.bf16.mxu0 %v6176
          %6708 = vmatpush1.bf16.msra.mxu0 %v6175
          %6709 = vmatprep.subr.bf16.mxu0 %v6174
          %6710 = vmatpush1.bf16.msra.mxu0 %v6173
          %6711 = vmatprep.subr.bf16.mxu0 %v6172
          %6712 = vmatpush1.bf16.msra.mxu0 %v6171
          %6713 = vmatprep.subr.bf16.mxu0 %v6170
          %6714 = vmatpush1.bf16.msra.mxu0 %v6169
          %6715 = vmatprep.subr.bf16.mxu0 %v6200
          %6716 = vmatpush2.bf16.msra.mxu0 %v6199
          %6717 = vmatprep.subr.bf16.mxu0 %v6198
          %6718 = vmatpush2.bf16.msra.mxu0 %v6197
          %6719 = vmatprep.subr.bf16.mxu0 %v6196
          %6720 = vmatpush2.bf16.msra.mxu0 %v6195
          %6721 = vmatprep.subr.bf16.mxu0 %v6194
          %6722 = vmatpush2.bf16.msra.mxu0 %v6193
          %6723 = vmatprep.subr.bf16.mxu0 %v6192
          %6724 = vmatpush2.bf16.msra.mxu0 %v6191
          %6725 = vmatprep.subr.bf16.mxu0 %v6190
          %6726 = vmatpush2.bf16.msra.mxu0 %v6189
          %6727 = vmatprep.subr.bf16.mxu0 %v6188
          %6728 = vmatpush2.bf16.msra.mxu0 %v6187
          %6729 = vmatprep.subr.bf16.mxu0 %v6186
          %6730 = vmatpush2.bf16.msra.mxu0 %v6185
          %6731 = vmatprep.mubr.bf16.mxu0 %v5058
          %6732 = vmatmul.mubr.bf16.gmra.mxu0 %v5057
          %v6733 = vpop.f32.mrf.mxu0
          %v6734 = vadd.f32 %v6693, %v6733
          %v6735 = vpop.f32.mrf.mxu0
          %v6736 = vadd.f32 %v6695, %v6735
          %v6737 = vpop.f32.mrf.mxu0
          %v6738 = vpop.f32.mrf.mxu0
          %6739 = vdwg.mxu0
          %6740 = vmatprep.subr.bf16.mxu0 %v6216
          %6741 = vmatpush1.bf16.msra.mxu0 %v6215
          %6742 = vmatprep.subr.bf16.mxu0 %v6214
          %6743 = vmatpush1.bf16.msra.mxu0 %v6213
          %6744 = vmatprep.subr.bf16.mxu0 %v6212
          %6745 = vmatpush1.bf16.msra.mxu0 %v6211
          %6746 = vmatprep.subr.bf16.mxu0 %v6210
          %6747 = vmatpush1.bf16.msra.mxu0 %v6209
          %6748 = vmatprep.subr.bf16.mxu0 %v6208
          %6749 = vmatpush1.bf16.msra.mxu0 %v6207
          %6750 = vmatprep.subr.bf16.mxu0 %v6206
          %6751 = vmatpush1.bf16.msra.mxu0 %v6205
          %6752 = vmatprep.subr.bf16.mxu0 %v6204
          %6753 = vmatpush1.bf16.msra.mxu0 %v6203
          %6754 = vmatprep.subr.bf16.mxu0 %v6202
          %6755 = vmatpush1.bf16.msra.mxu0 %v6201
          %6756 = vmatprep.subr.bf16.mxu0 %v6232
          %6757 = vmatpush2.bf16.msra.mxu0 %v6231
          %6758 = vmatprep.subr.bf16.mxu0 %v6230
          %6759 = vmatpush2.bf16.msra.mxu0 %v6229
          %6760 = vmatprep.subr.bf16.mxu0 %v6228
          %6761 = vmatpush2.bf16.msra.mxu0 %v6227
          %6762 = vmatprep.subr.bf16.mxu0 %v6226
          %6763 = vmatpush2.bf16.msra.mxu0 %v6225
          %6764 = vmatprep.subr.bf16.mxu0 %v6224
          %6765 = vmatpush2.bf16.msra.mxu0 %v6223
          %6766 = vmatprep.subr.bf16.mxu0 %v6222
          %6767 = vmatpush2.bf16.msra.mxu0 %v6221
          %6768 = vmatprep.subr.bf16.mxu0 %v6220
          %6769 = vmatpush2.bf16.msra.mxu0 %v6219
          %6770 = vmatprep.subr.bf16.mxu0 %v6218
          %6771 = vmatpush2.bf16.msra.mxu0 %v6217
          %6772 = vmatprep.mubr.bf16.mxu0 %v5060
          %6773 = vmatmul.mubr.bf16.gmra.mxu0 %v5059
          %v6774 = vpop.f32.mrf.mxu0
          %v6775 = vadd.f32 %v6734, %v6774
          %v6776 = vpop.f32.mrf.mxu0
          %v6777 = vadd.f32 %v6736, %v6776
          %v6778 = vpop.f32.mrf.mxu0
          %v6779 = vpop.f32.mrf.mxu0
          %6780 = vdwg.mxu0
          %6781 = vmatprep.subr.bf16.mxu0 %v6248
          %6782 = vmatpush1.bf16.msra.mxu0 %v6247
          %6783 = vmatprep.subr.bf16.mxu0 %v6246
          %6784 = vmatpush1.bf16.msra.mxu0 %v6245
          %6785 = vmatprep.subr.bf16.mxu0 %v6244
          %6786 = vmatpush1.bf16.msra.mxu0 %v6243
          %6787 = vmatprep.subr.bf16.mxu0 %v6242
          %6788 = vmatpush1.bf16.msra.mxu0 %v6241
          %6789 = vmatprep.subr.bf16.mxu0 %v6240
          %6790 = vmatpush1.bf16.msra.mxu0 %v6239
          %6791 = vmatprep.subr.bf16.mxu0 %v6238
          %6792 = vmatpush1.bf16.msra.mxu0 %v6237
          %6793 = vmatprep.subr.bf16.mxu0 %v6236
          %6794 = vmatpush1.bf16.msra.mxu0 %v6235
          %6795 = vmatprep.subr.bf16.mxu0 %v6234
          %6796 = vmatpush1.bf16.msra.mxu0 %v6233
          %6797 = vmatprep.subr.bf16.mxu0 %v6264
          %6798 = vmatpush2.bf16.msra.mxu0 %v6263
          %6799 = vmatprep.subr.bf16.mxu0 %v6262
          %6800 = vmatpush2.bf16.msra.mxu0 %v6261
          %6801 = vmatprep.subr.bf16.mxu0 %v6260
          %6802 = vmatpush2.bf16.msra.mxu0 %v6259
          %6803 = vmatprep.subr.bf16.mxu0 %v6258
          %6804 = vmatpush2.bf16.msra.mxu0 %v6257
          %6805 = vmatprep.subr.bf16.mxu0 %v6256
          %6806 = vmatpush2.bf16.msra.mxu0 %v6255
          %6807 = vmatprep.subr.bf16.mxu0 %v6254
          %6808 = vmatpush2.bf16.msra.mxu0 %v6253
          %6809 = vmatprep.subr.bf16.mxu0 %v6252
          %6810 = vmatpush2.bf16.msra.mxu0 %v6251
          %6811 = vmatprep.subr.bf16.mxu0 %v6250
          %6812 = vmatpush2.bf16.msra.mxu0 %v6249
          %6813 = vmatprep.mubr.bf16.mxu0 %v5062
          %6814 = vmatmul.mubr.bf16.gmra.mxu0 %v5061
          %v6815 = vpop.f32.mrf.mxu0
          %v6816 = vadd.f32 %v6775, %v6815
          %v6817 = vpop.f32.mrf.mxu0
          %v6818 = vadd.f32 %v6777, %v6817
          %v6819 = vpop.f32.mrf.mxu0
          %v6820 = vpop.f32.mrf.mxu0
          %6821 = vdwg.mxu0
          %6822 = vmatprep.subr.bf16.mxu0 %v6280
          %6823 = vmatpush1.bf16.msra.mxu0 %v6279
          %6824 = vmatprep.subr.bf16.mxu0 %v6278
          %6825 = vmatpush1.bf16.msra.mxu0 %v6277
          %6826 = vmatprep.subr.bf16.mxu0 %v6276
          %6827 = vmatpush1.bf16.msra.mxu0 %v6275
          %6828 = vmatprep.subr.bf16.mxu0 %v6274
          %6829 = vmatpush1.bf16.msra.mxu0 %v6273
          %6830 = vmatprep.subr.bf16.mxu0 %v6272
          %6831 = vmatpush1.bf16.msra.mxu0 %v6271
          %6832 = vmatprep.subr.bf16.mxu0 %v6270
          %6833 = vmatpush1.bf16.msra.mxu0 %v6269
          %6834 = vmatprep.subr.bf16.mxu0 %v6268
          %6835 = vmatpush1.bf16.msra.mxu0 %v6267
          %6836 = vmatprep.subr.bf16.mxu0 %v6266
          %6837 = vmatpush1.bf16.msra.mxu0 %v6265
          %6838 = vmatprep.subr.bf16.mxu0 %v6296
          %6839 = vmatpush2.bf16.msra.mxu0 %v6295
          %6840 = vmatprep.subr.bf16.mxu0 %v6294
          %6841 = vmatpush2.bf16.msra.mxu0 %v6293
          %6842 = vmatprep.subr.bf16.mxu0 %v6292
          %6843 = vmatpush2.bf16.msra.mxu0 %v6291
          %6844 = vmatprep.subr.bf16.mxu0 %v6290
          %6845 = vmatpush2.bf16.msra.mxu0 %v6289
          %6846 = vmatprep.subr.bf16.mxu0 %v6288
          %6847 = vmatpush2.bf16.msra.mxu0 %v6287
          %6848 = vmatprep.subr.bf16.mxu0 %v6286
          %6849 = vmatpush2.bf16.msra.mxu0 %v6285
          %6850 = vmatprep.subr.bf16.mxu0 %v6284
          %6851 = vmatpush2.bf16.msra.mxu0 %v6283
          %6852 = vmatprep.subr.bf16.mxu0 %v6282
          %6853 = vmatpush2.bf16.msra.mxu0 %v6281
          %6854 = vmatprep.mubr.bf16.mxu0 %v5064
          %6855 = vmatmul.mubr.bf16.gmra.mxu0 %v5063
          %v6856 = vpop.f32.mrf.mxu0
          %v6857 = vadd.f32 %v6816, %v6856
          %v6858 = vpop.f32.mrf.mxu0
          %v6859 = vadd.f32 %v6818, %v6858
          %v6860 = vpop.f32.mrf.mxu0
          %v6861 = vpop.f32.mrf.mxu0
          %6862 = vdwg.mxu0
          %6863 = vmatprep.subr.bf16.mxu0 %v6312
          %6864 = vmatpush1.bf16.msra.mxu0 %v6311
          %6865 = vmatprep.subr.bf16.mxu0 %v6310
          %6866 = vmatpush1.bf16.msra.mxu0 %v6309
          %6867 = vmatprep.subr.bf16.mxu0 %v6308
          %6868 = vmatpush1.bf16.msra.mxu0 %v6307
          %6869 = vmatprep.subr.bf16.mxu0 %v6306
          %6870 = vmatpush1.bf16.msra.mxu0 %v6305
          %6871 = vmatprep.subr.bf16.mxu0 %v6304
          %6872 = vmatpush1.bf16.msra.mxu0 %v6303
          %6873 = vmatprep.subr.bf16.mxu0 %v6302
          %6874 = vmatpush1.bf16.msra.mxu0 %v6301
          %6875 = vmatprep.subr.bf16.mxu0 %v6300
          %6876 = vmatpush1.bf16.msra.mxu0 %v6299
          %6877 = vmatprep.subr.bf16.mxu0 %v6298
          %6878 = vmatpush1.bf16.msra.mxu0 %v6297
          %6879 = vmatprep.subr.bf16.mxu0 %v6328
          %6880 = vmatpush2.bf16.msra.mxu0 %v6327
          %6881 = vmatprep.subr.bf16.mxu0 %v6326
          %6882 = vmatpush2.bf16.msra.mxu0 %v6325
          %6883 = vmatprep.subr.bf16.mxu0 %v6324
          %6884 = vmatpush2.bf16.msra.mxu0 %v6323
          %6885 = vmatprep.subr.bf16.mxu0 %v6322
          %6886 = vmatpush2.bf16.msra.mxu0 %v6321
          %6887 = vmatprep.subr.bf16.mxu0 %v6320
          %6888 = vmatpush2.bf16.msra.mxu0 %v6319
          %6889 = vmatprep.subr.bf16.mxu0 %v6318
          %6890 = vmatpush2.bf16.msra.mxu0 %v6317
          %6891 = vmatprep.subr.bf16.mxu0 %v6316
          %6892 = vmatpush2.bf16.msra.mxu0 %v6315
          %6893 = vmatprep.subr.bf16.mxu0 %v6314
          %6894 = vmatpush2.bf16.msra.mxu0 %v6313
          %6895 = vmatprep.mubr.bf16.mxu0 %v5066
          %6896 = vmatmul.mubr.bf16.gmra.mxu0 %v5065
          %v6897 = vpop.f32.mrf.mxu0
          %v6898 = vadd.f32 %v6857, %v6897
          %v6899 = vpop.f32.mrf.mxu0
          %v6900 = vadd.f32 %v6859, %v6899
          %v6901 = vpop.f32.mrf.mxu0
          %v6902 = vpop.f32.mrf.mxu0
          %6903 = vdwg.mxu0
          %6904 = vmatprep.subr.bf16.mxu0 %v6344
          %6905 = vmatpush1.bf16.msra.mxu0 %v6343
          %6906 = vmatprep.subr.bf16.mxu0 %v6342
          %6907 = vmatpush1.bf16.msra.mxu0 %v6341
          %6908 = vmatprep.subr.bf16.mxu0 %v6340
          %6909 = vmatpush1.bf16.msra.mxu0 %v6339
          %6910 = vmatprep.subr.bf16.mxu0 %v6338
          %6911 = vmatpush1.bf16.msra.mxu0 %v6337
          %6912 = vmatprep.subr.bf16.mxu0 %v6336
          %6913 = vmatpush1.bf16.msra.mxu0 %v6335
          %6914 = vmatprep.subr.bf16.mxu0 %v6334
          %6915 = vmatpush1.bf16.msra.mxu0 %v6333
          %6916 = vmatprep.subr.bf16.mxu0 %v6332
          %6917 = vmatpush1.bf16.msra.mxu0 %v6331
          %6918 = vmatprep.subr.bf16.mxu0 %v6330
          %6919 = vmatpush1.bf16.msra.mxu0 %v6329
          %6920 = vmatprep.subr.bf16.mxu0 %v6360
          %6921 = vmatpush2.bf16.msra.mxu0 %v6359
          %6922 = vmatprep.subr.bf16.mxu0 %v6358
          %6923 = vmatpush2.bf16.msra.mxu0 %v6357
          %6924 = vmatprep.subr.bf16.mxu0 %v6356
          %6925 = vmatpush2.bf16.msra.mxu0 %v6355
          %6926 = vmatprep.subr.bf16.mxu0 %v6354
          %6927 = vmatpush2.bf16.msra.mxu0 %v6353
          %6928 = vmatprep.subr.bf16.mxu0 %v6352
          %6929 = vmatpush2.bf16.msra.mxu0 %v6351
          %6930 = vmatprep.subr.bf16.mxu0 %v6350
          %6931 = vmatpush2.bf16.msra.mxu0 %v6349
          %6932 = vmatprep.subr.bf16.mxu0 %v6348
          %6933 = vmatpush2.bf16.msra.mxu0 %v6347
          %6934 = vmatprep.subr.bf16.mxu0 %v6346
          %6935 = vmatpush2.bf16.msra.mxu0 %v6345
          %6936 = vmatprep.mubr.bf16.mxu0 %v5068
          %6937 = vmatmul.mubr.bf16.gmra.mxu0 %v5067
          %v6938 = vpop.f32.mrf.mxu0
          %v6939 = vadd.f32 %v6898, %v6938
          %v6940 = vpop.f32.mrf.mxu0
          %v6941 = vadd.f32 %v6900, %v6940
          %v6942 = vpop.f32.mrf.mxu0
          %v6943 = vpop.f32.mrf.mxu0
          %6944 = vdwg.mxu0
          %v6945 = vpack.c.bf16 %v6939, %v6939
          %v6946 = vpack.c.bf16 %v6941, %v6941
          %v6947 = vld [vmem:[%s7] sm:$0xf]
          %v6948 = vld [vmem:[%s7 + $0x4] sm:$0xf]
          %v6949 = vld [vmem:[%s7 + $0x8] sm:$0xf]
          %v6950 = vld [vmem:[%s7 + $0xc] sm:$0xf]
          %v6951 = vld [vmem:[%s7 + $0x10] sm:$0xf]
          %v6952 = vld [vmem:[%s7 + $0x14] sm:$0xf]
          %v6953 = vld [vmem:[%s7 + $0x18] sm:$0xf]
          %v6954 = vld [vmem:[%s7 + $0x1c] sm:$0xf]
          %v6955 = vld [vmem:[%s7 + $0x20] sm:$0xf]
          %v6956 = vld [vmem:[%s7 + $0x24] sm:$0xf]
          %v6957 = vld [vmem:[%s7 + $0x28] sm:$0xf]
          %v6958 = vld [vmem:[%s7 + $0x2c] sm:$0xf]
          %v6959 = vld [vmem:[%s7 + $0x30] sm:$0xf]
          %v6960 = vld [vmem:[%s7 + $0x34] sm:$0xf]
          %v6961 = vld [vmem:[%s7 + $0x38] sm:$0xf]
          %v6962 = vld [vmem:[%s7 + $0x3c] sm:$0xf]
          %v6963 = vld [vmem:[%s7 + $0x40] sm:$0xf]
          %v6964 = vld [vmem:[%s7 + $0x44] sm:$0xf]
          %v6965 = vld [vmem:[%s7 + $0x48] sm:$0xf]
          %v6966 = vld [vmem:[%s7 + $0x4c] sm:$0xf]
          %v6967 = vld [vmem:[%s7 + $0x50] sm:$0xf]
          %v6968 = vld [vmem:[%s7 + $0x54] sm:$0xf]
          %v6969 = vld [vmem:[%s7 + $0x58] sm:$0xf]
          %v6970 = vld [vmem:[%s7 + $0x5c] sm:$0xf]
          %v6971 = vld [vmem:[%s7 + $0x60] sm:$0xf]
          %v6972 = vld [vmem:[%s7 + $0x64] sm:$0xf]
          %v6973 = vld [vmem:[%s7 + $0x68] sm:$0xf]
          %v6974 = vld [vmem:[%s7 + $0x6c] sm:$0xf]
          %v6975 = vld [vmem:[%s7 + $0x70] sm:$0xf]
          %v6976 = vld [vmem:[%s7 + $0x74] sm:$0xf]
          %v6977 = vld [vmem:[%s7 + $0x78] sm:$0xf]
          %v6978 = vld [vmem:[%s7 + $0x7c] sm:$0xf]
          %v6979 = vld [vmem:[#allocation14] sm:$0x1]
          %v6981 = vlaneseq
          %v6982 = vshrl.u32 %v6981, 7
          %v6983 = vsub.s32 0, %v6982
          %v6984 = vrot.slane %v6979, %v6983
          %v7018 = vunpack.c.l.b16 %v6947
          %v7019 = vunpack.c.l.b16 %v6948
          %v7020 = vunpack.c.l.b16 %v6949
          %v7021 = vunpack.c.l.b16 %v6950
          %v7022 = vunpack.c.l.b16 %v6951
          %v7023 = vunpack.c.l.b16 %v6952
          %v7024 = vunpack.c.l.b16 %v6953
          %v7025 = vunpack.c.l.b16 %v6954
          %v7026 = vunpack.c.l.b16 %v6955
          %v7027 = vunpack.c.l.b16 %v6956
          %v7028 = vunpack.c.l.b16 %v6957
          %v7029 = vunpack.c.l.b16 %v6958
          %v7030 = vunpack.c.l.b16 %v6959
          %v7031 = vunpack.c.l.b16 %v6960
          %v7032 = vunpack.c.l.b16 %v6961
          %v7033 = vunpack.c.l.b16 %v6962
          %v7034 = vunpack.c.l.b16 %v6963
          %v7035 = vunpack.c.l.b16 %v6964
          %v7036 = vunpack.c.l.b16 %v6965
          %v7037 = vunpack.c.l.b16 %v6966
          %v7038 = vunpack.c.l.b16 %v6967
          %v7039 = vunpack.c.l.b16 %v6968
          %v7040 = vunpack.c.l.b16 %v6969
          %v7041 = vunpack.c.l.b16 %v6970
          %v7042 = vunpack.c.l.b16 %v6971
          %v7043 = vunpack.c.l.b16 %v6972
          %v7044 = vunpack.c.l.b16 %v6973
          %v7045 = vunpack.c.l.b16 %v6974
          %v7046 = vunpack.c.l.b16 %v6975
          %v7047 = vunpack.c.l.b16 %v6976
          %v7048 = vunpack.c.l.b16 %v6977
          %v7049 = vunpack.c.l.b16 %v6978
          %v7050 = vpack.c.b16 %v7019, %v7018
          %v7051 = vpack.c.b16 %v7021, %v7020
          %v7052 = vpack.c.b16 %v7023, %v7022
          %v7053 = vpack.c.b16 %v7025, %v7024
          %v7054 = vpack.c.b16 %v7027, %v7026
          %v7055 = vpack.c.b16 %v7029, %v7028
          %v7056 = vpack.c.b16 %v7031, %v7030
          %v7057 = vpack.c.b16 %v7033, %v7032
          %v7058 = vpack.c.b16 %v7035, %v7034
          %v7059 = vpack.c.b16 %v7037, %v7036
          %v7060 = vpack.c.b16 %v7039, %v7038
          %v7061 = vpack.c.b16 %v7041, %v7040
          %v7062 = vpack.c.b16 %v7043, %v7042
          %v7063 = vpack.c.b16 %v7045, %v7044
          %v7064 = vpack.c.b16 %v7047, %v7046
          %v7065 = vpack.c.b16 %v7049, %v7048
          %7082 = vmatprep.subr.bf16.mxu0 0
          %7083 = vmatpush1.bf16.msra.mxu0 %v7057
          %7084 = vmatprep.subr.bf16.mxu0 0
          %7085 = vmatpush1.bf16.msra.mxu0 %v7056
          %7086 = vmatprep.subr.bf16.mxu0 0
          %7087 = vmatpush1.bf16.msra.mxu0 %v7055
          %7088 = vmatprep.subr.bf16.mxu0 0
          %7089 = vmatpush1.bf16.msra.mxu0 %v7054
          %7090 = vmatprep.subr.bf16.mxu0 0
          %7091 = vmatpush1.bf16.msra.mxu0 %v7053
          %7092 = vmatprep.subr.bf16.mxu0 0
          %7093 = vmatpush1.bf16.msra.mxu0 %v7052
          %7094 = vmatprep.subr.bf16.mxu0 0
          %7095 = vmatpush1.bf16.msra.mxu0 %v7051
          %7096 = vmatprep.subr.bf16.mxu0 0
          %7097 = vmatpush1.bf16.msra.mxu0 %v7050
          %7098 = vmatprep.subr.bf16.mxu0 0
          %7099 = vmatpush2.bf16.msra.mxu0 %v7065
          %7100 = vmatprep.subr.bf16.mxu0 0
          %7101 = vmatpush2.bf16.msra.mxu0 %v7064
          %7102 = vmatprep.subr.bf16.mxu0 0
          %7103 = vmatpush2.bf16.msra.mxu0 %v7063
          %7104 = vmatprep.subr.bf16.mxu0 0
          %7105 = vmatpush2.bf16.msra.mxu0 %v7062
          %7106 = vmatprep.subr.bf16.mxu0 0
          %7107 = vmatpush2.bf16.msra.mxu0 %v7061
          %7108 = vmatprep.subr.bf16.mxu0 0
          %7109 = vmatpush2.bf16.msra.mxu0 %v7060
          %7110 = vmatprep.subr.bf16.mxu0 0
          %7111 = vmatpush2.bf16.msra.mxu0 %v7059
          %7112 = vmatprep.subr.bf16.mxu0 0
          %7113 = vmatpush2.bf16.msra.mxu0 %v7058
          %7114 = vmatprep.mubr.bf16.mxu0 %v6946
          %7115 = vmatmul.mubr.bf16.gmra.mxu0 %v6945
          %v7116 = vpop.f32.mrf.mxu0
          %v7117 = vadd.f32 %v6984, %v7116
          %v7118 = vpop.f32.mrf.mxu0
          %v7119 = vpop.f32.mrf.mxu0
          %v7120 = vpop.f32.mrf.mxu0
          %7121 = vdwg.mxu0
          %vm7122 = vcmask 9216
          %v7123 = vsel %vm7122, %v7117, -inf
          %7124 = vmax.xlane.f32.xlu0 %v7123
          %v7125 = vpop.xlane.xlu0 %7124
          %v7126 = vsub.f32 %v7117, %v7125
          %v7127 = vmul.f32 %v7126, 1.442695
          %v7128 = vpow.pop %v7127
          %v7129 = vsel %vm7122, %v7128, 0.0
          %7130 = vadd.xlane.f32.xlu0 %v7129
          %v7131 = vpop.xlane.xlu0 %7130
          %v7132 = vlog2.pop %v7131
          %v7133 = vmul.f32 %v7132, 0.6931472
          %v7134 = vsub.f32 %v7126, %v7133
          %7135 = vst.msk [vmem:[#allocation15] sm:$0x3] %vm7122, %v7134
        $region92: #{rnn_model_forward.3} parent=55 // pred_fallthru
          _
        // Predicated region
        $region93: #{rnn_model_forward.3} parent=55 // pred_check
          %p7136 = pneg %p246
        $region94: #{rnn_model_forward.3} parent=55 // pred_check_branch
          %7138 = sbr.rel (%p7136) target = $region96
        $region95: #{rnn_model_forward.3} parent=55 // pred_region
          %s7140 = ssub.s32 32, 32
          %7141 = vsyncadd [#allocation5], %s7140
          %s7143 = sshll.u32 [#allocation15], 4
          %s7144 = int_to_ptr.vmem [resolvable:$true] %s7143
          %7146 = dma.vmem_to_hbm [thread:$0]  %s7144, 32, %s9, [#allocation5]
        $region96: #{rnn_model_forward.3} parent=55 // pred_fallthru
          _
        // Predicated region
        $region97: #{rnn_model_forward.3} parent=55 // pred_check
          %p7147 = pneg %p246
        $region98: #{rnn_model_forward.3} parent=55 // pred_check_branch
          %7149 = sbr.rel (%p7147) target = $region100
        $region99: #{rnn_model_forward.3} parent=55 // pred_region
          %7150 = dma.done [#allocation5], 32
        $region100: #{rnn_model_forward.3} parent=55 // pred_fallthru
          _
      $region56: #{rnn_model_forward.3} parent=5 // pred_fallthru
        _
      %p7151 = scmp.le.s32.totalorder 2, %s24
      // Predicated region
      $region101: #{rnn_model_forward.3} parent=5 // pred_check
        %p7152 = pneg %p7151
      $region102: #{rnn_model_forward.3} parent=5 // pred_check_branch
        %7154 = sbr.rel (%p7152) target = $region104
      $region103: #{rnn_model_forward.3} parent=5 // pred_region
        %s7155 = ssub.s32 %s24, 2
      $region104: #{rnn_model_forward.3} parent=5 // pred_fallthru
        _
    $region6: #{rnn_model_forward.3} parent=1 // loop_footer
      %s28 = sadd.s32 1, %s24
    $region7: #{rnn_model_forward.3} parent=1 // loop_footer_branch
      %23 = sbr.rel target = $region3
    $region8: #{rnn_model_forward.3} parent=1 // loop_exit
      _
    %7156 = vsyncpa [#allocation4], 1
    %s7157 = scalar_lea.sflag [#allocation4], 1
    %7158 = vsyncpa %s7157, 1
    %7159 = vsyncpa [#allocation7], 1
    %s7160 = scalar_lea.sflag [#allocation7], 1
    %7161 = vsyncpa %s7160, 1
    %7162 = vsyncpa [#allocation10], 1
    %7163 = vsyncpa [#allocation13], 1
    %7164 = vsyncpa [#allocation5], 1
    %s7165 = scalar_lea.sflag [#allocation5], 1
    %7166 = vsyncpa %s7165, 1

</llo_original>
